<compile_context>
chip_gen: v7x
topology: tpu7x:2x2x1
jax: 0.10.0
libtpu: 0.0.40
codegen_flags: <defaults>
</compile_context>

<pallas_src>
import functools

import jax
import jax.numpy as jnp
from jax.experimental import pallas as pl
from jax.experimental.pallas import tpu as pltpu

LANE = 128
_VMEM_LIMIT = 32 * 1024 * 1024   # well above the ~1.5 MiB of tiles we use,
                                 # <= physical VMEM on v5e/v6e/v7x.


def _round_up(x, m):
    return ((x + m - 1) // m) * m


def _pad2(x, rows, cols):
    return jnp.pad(x, ((0, rows - x.shape[0]), (0, cols - x.shape[1])))


# ----------------------------- GraphConv kernels ------------------------------

def _agg_first_kernel(a_ref, h_ref, wt_ref, b_ref, o_ref, acc_ref, *, act):
    """out_dim > in_dim branch:  out = act((A_hat @ h) @ W_T + b)."""
    k = pl.program_id(1)

    @pl.when(k == 0)
    def _():
        acc_ref[...] = jnp.zeros_like(acc_ref)

    # Streamed bf16 MXU matmul over column tiles of A_hat, f32 accumulation.
    acc_ref[...] += jnp.dot(a_ref[...], h_ref[...],
                            preferred_element_type=jnp.float32)

    @pl.when(k == pl.num_programs(1) - 1)
    def _():
        # Small feature matmul + bias + activation only in the epilogue.
        z = jnp.dot(acc_ref[...].astype(jnp.bfloat16), wt_ref[...],
                    preferred_element_type=jnp.float32) + b_ref[...]
        if act:
            z = jnp.maximum(z, 0.0)
        o_ref[...] = z.astype(o_ref.dtype)


def _lin_first_kernel(a_ref, h_ref, wt_ref, b_ref, o_ref, acc_ref, *, act):
    """out_dim <= in_dim branch:  z = h @ W_T + b ; out = act(A_hat @ z)."""
    k = pl.program_id(1)

    @pl.when(k == 0)
    def _():
        acc_ref[...] = jnp.zeros_like(acc_ref)

    # Linear on the current column tile (cheap), then aggregate with A_hat.
    z = jnp.dot(h_ref[...], wt_ref[...],
                preferred_element_type=jnp.float32) + b_ref[...]
    acc_ref[...] += jnp.dot(a_ref[...], z.astype(jnp.bfloat16),
                            preferred_element_type=jnp.float32)

    @pl.when(k == pl.num_programs(1) - 1)
    def _():
        out = acc_ref[...]
        if act:
            out = jnp.maximum(out, 0.0)
        o_ref[...] = out.astype(o_ref.dtype)


def graph_conv_layer(a_hat, h, w, b, *, activation, tm, tk):
    """One GraphConv layer on padded inputs.

    a_hat: (n_pad, n_pad) bf16 (= adj + I, zero-padded)
    h    : (n_pad, in_p) bf16
    w, b : un-padded PyTorch nn.Linear params, w is [out_dim, in_dim].
    Returns (n_pad, out_p) bf16.
    """
    n_pad, in_p = h.shape
    out_dim, in_dim = w.shape
    out_p = _round_up(out_dim, LANE)
    wt = _pad2(jnp.transpose(w), in_p, out_p).astype(jnp.bfloat16)
    b2 = _pad2(b.reshape(1, -1), 1, out_p).astype(jnp.float32)

    agg_first = out_dim > in_dim
    kernel = functools.partial(
        _agg_first_kernel if agg_first else _lin_first_kernel, act=activation)
    acc_cols = in_p if agg_first else out_p
    grid = (n_pad // tm, n_pad // tk)

    return pl.pallas_call(
        kernel,
        out_shape=jax.ShapeDtypeStruct((n_pad, out_p), jnp.bfloat16),
        grid=grid,
        in_specs=[
            pl.BlockSpec((tm, tk), lambda i, k: (i, k)),        # A_hat tile (bf16)
            pl.BlockSpec((tk, in_p), lambda i, k: (k, 0)),      # h tile   (bf16)
            pl.BlockSpec((in_p, out_p), lambda i, k: (0, 0)),   # W_T      (bf16)
            pl.BlockSpec((1, out_p), lambda i, k: (0, 0)),      # bias     (f32)
        ],
        out_specs=pl.BlockSpec((tm, out_p), lambda i, k: (i, 0)),
        scratch_shapes=[pltpu.VMEM((tm, acc_cols), jnp.float32)],
        compiler_params=pltpu.CompilerParams(
            dimension_semantics=("parallel", "arbitrary"),
            vmem_limit_bytes=_VMEM_LIMIT),
    )(a_hat, h, wt, b2)


# ------------- final GraphConv fused with CrossEntropyLoss(sum) ---------------

def _final_ce_kernel(a_ref, h_ref, wt_ref, b_ref, labels_ref, loss_ref,
                     acc_ref, loss_acc_ref, *, n_classes, n_rows, tm):
    i = pl.program_id(0)
    k = pl.program_id(1)
    last_i = pl.num_programs(0) - 1
    last_k = pl.num_programs(1) - 1

    @pl.when(jnp.logical_and(i == 0, k == 0))
    def _():
        loss_acc_ref[...] = jnp.zeros_like(loss_acc_ref)

    @pl.when(k == 0)
    def _():
        acc_ref[...] = jnp.zeros_like(acc_ref)

    # last layer is the out_dim <= in_dim branch with no activation:
    #   z = h @ W_T + b ; logits = A_hat @ z
    z = jnp.dot(h_ref[...], wt_ref[...],
                preferred_element_type=jnp.float32) + b_ref[...]
    acc_ref[...] += jnp.dot(a_ref[...], z.astype(jnp.bfloat16),
                            preferred_element_type=jnp.float32)

    @pl.when(k == last_k)
    def _():
        logits = acc_ref[...]                       # (tm, c_pad) f32 (f32_loss)
        tm_, c_pad = logits.shape
        col_ids = jax.lax.broadcasted_iota(jnp.int32, (tm_, c_pad), 1)
        col_valid = col_ids < n_classes             # mask padded class columns
        x = jnp.where(col_valid, logits, jnp.float32(-1e30))
        m = jnp.max(x, axis=-1, keepdims=True)
        lse = m + jnp.log(jnp.sum(jnp.exp(x - m), axis=-1, keepdims=True))
        onehot = (col_ids == labels_ref[...]).astype(jnp.float32)
        picked = jnp.sum(logits * onehot, axis=-1, keepdims=True)
        row_ids = i * tm + jax.lax.broadcasted_iota(jnp.int32, (tm_, 1), 0)
        row_valid = (row_ids < n_rows).astype(jnp.float32)   # mask padded rows
        partial = jnp.sum((lse - picked) * row_valid)
        loss_acc_ref[...] += partial

    @pl.when(jnp.logical_and(i == last_i, k == last_k))
    def _():
        loss_ref[...] = loss_acc_ref[...]


def final_layer_ce_loss(a_hat, h, w, b, labels_p, *, n_classes, n_rows, tm, tk):
    n_pad, in_p = h.shape
    out_dim, _ = w.shape
    c_pad = _round_up(out_dim, LANE)
    wt = _pad2(jnp.transpose(w), in_p, c_pad).astype(jnp.bfloat16)
    b2 = _pad2(b.reshape(1, -1), 1, c_pad).astype(jnp.float32)
    grid = (n_pad // tm, n_pad // tk)

    kernel = functools.partial(_final_ce_kernel, n_classes=n_classes,
                               n_rows=n_rows, tm=tm)
    out = pl.pallas_call(
        kernel,
        out_shape=jax.ShapeDtypeStruct((1, 1), jnp.float32),
        grid=grid,
        in_specs=[
            pl.BlockSpec((tm, tk), lambda i, k: (i, k)),        # A_hat tile
            pl.BlockSpec((tk, in_p), lambda i, k: (k, 0)),      # h tile
            pl.BlockSpec((in_p, c_pad), lambda i, k: (0, 0)),   # W_T
            pl.BlockSpec((1, c_pad), lambda i, k: (0, 0)),      # bias
            pl.BlockSpec((tm, 1), lambda i, k: (i, 0)),         # labels (int32)
        ],
        out_specs=pl.BlockSpec((1, 1), lambda i, k: (0, 0)),
        scratch_shapes=[pltpu.VMEM((tm, c_pad), jnp.float32),
                        pltpu.VMEM((1, 1), jnp.float32)],
        compiler_params=pltpu.CompilerParams(
            dimension_semantics=("arbitrary", "arbitrary"),
            vmem_limit_bytes=_VMEM_LIMIT),
    )(a_hat, h, wt, b2, labels_p)
    return out[0, 0]


# -------------------------------- GCN_ forward ---------------------------------

def gcn_forward(params, adj, features, labels, *, tm=256, tk=512):
    """params: list of (w, b) per GraphConv layer; returns scalar summed CE loss."""
    assert tk % tm == 0
    n, in_feats = features.shape
    n_classes, last_in = params[-1][0].shape
    if n_classes > last_in:
        raise NotImplementedError("fused final layer assumes n_classes <= n_hidden")

    n_pad = _round_up(n, max(tm, tk))

    # Fold the GraphConv residual into the operator:  A @ x + x == (A + I) @ x.
    a_hat = adj.astype(jnp.float32) + jnp.eye(n, dtype=jnp.float32)
    a_hat = _pad2(a_hat, n_pad, n_pad).astype(jnp.bfloat16)

    h = _pad2(features.astype(jnp.float32), n_pad, _round_up(in_feats, LANE))
    h = h.astype(jnp.bfloat16)
    labels_p = jnp.pad(labels.astype(jnp.int32), (0, n_pad - n)).reshape(n_pad, 1)

    # TODO(synk): nn.Dropout between layers is identity here (p=0.0 / eval mode);
    # training-mode RNG dropout is not implemented in-kernel.
    for w, b in params[:-1]:
        h = graph_conv_layer(a_hat, h, w, b, activation=True, tm=tm, tk=tk)

    w, b = params[-1]   # last GraphConv: no activation, fused with the CE-sum loss
    return final_layer_ce_loss(a_hat, h, w, b, labels_p,
                               n_classes=n_classes, n_rows=n, tm=tm, tk=tk)


# -------------------------------- pure-JAX ref ----------------------------------

def gcn_forward_ref(params, adj, features, labels):
    """Reference mirroring the kernel's bf16-MXU / f32-accumulation math."""
    a_hat = (adj + jnp.eye(adj.shape[0], dtype=adj.dtype)).astype(jnp.bfloat16)
    h = features.astype(jnp.bfloat16)
    num_layers = len(params)
    logits = None
    for idx, (w, b) in enumerate(params):
        out_dim, in_dim = w.shape
        wt = jnp.transpose(w).astype(jnp.bfloat16)
        if out_dim > in_dim:
            agg = jnp.dot(a_hat, h, preferred_element_type=jnp.float32)
            out = jnp.dot(agg.astype(jnp.bfloat16), wt,
                          preferred_element_type=jnp.float32) + b
        else:
            z = jnp.dot(h, wt, preferred_element_type=jnp.float32) + b
            out = jnp.dot(a_hat, z.astype(jnp.bfloat16),
                          preferred_element_type=jnp.float32)
        if idx < num_layers - 1:
            h = jnp.maximum(out, 0.0).astype(jnp.bfloat16)
        else:
            logits = out.astype(jnp.float32)
    m = jnp.max(logits, axis=-1, keepdims=True)
    lse = (m + jnp.log(jnp.sum(jnp.exp(logits - m), axis=-1, keepdims=True)))[:, 0]
    picked = jnp.take_along_axis(logits, labels[:, None].astype(jnp.int32),
                                 axis=-1)[:, 0]
    return jnp.sum(lse - picked)


# ------------------------------------ main --------------------------------------

def _init_linear(key, in_dim, out_dim):
    # nn.Linear default init: U(-1/sqrt(in_dim), 1/sqrt(in_dim))
    kw, kb = jax.random.split(key)
    bound = 1.0 / (in_dim ** 0.5)
    w = jax.random.uniform(kw, (out_dim, in_dim), jnp.float32, -bound, bound)
    b = jax.random.uniform(kb, (out_dim,), jnp.float32, -bound, bound)
    return w, b


if __name__ == "__main__":
    N = 64            # number of graph nodes
    IN_FEATS = 16
    N_HIDDEN = 32
    N_CLASSES = 8
    N_LAYERS = 2      # -> GraphConv dims: 16->32(relu), 32->32(relu), 32->8

    key = jax.random.PRNGKey(0)
    k_feat, k_adj, k_lab, k_par = jax.random.split(key, 4)

    features = jax.random.normal(k_feat, (N, IN_FEATS), jnp.float32)
    labels = jax.random.randint(k_lab, (N,), 0, N_CLASSES, jnp.int32)

    # Dense row-normalized adjacency (stands in for the csr sparse operator).
    u = jax.random.uniform(k_adj, (N, N), jnp.float32)
    adj = (u < 0.1).astype(jnp.float32) + jnp.eye(N, dtype=jnp.float32)
    adj = adj / jnp.sum(adj, axis=-1, keepdims=True)

    dims = [(IN_FEATS, N_HIDDEN)] + [(N_HIDDEN, N_HIDDEN)] * (N_LAYERS - 1) \
           + [(N_HIDDEN, N_CLASSES)]
    keys = jax.random.split(k_par, len(dims))
    params = [_init_linear(k, di, do) for k, (di, do) in zip(keys, dims)]

    loss_fn = jax.jit(gcn_forward)
    loss = jax.block_until_ready(loss_fn(params, adj, features, labels))
    loss_ref = jax.block_until_ready(gcn_forward_ref(params, adj, features, labels))

    assert jnp.allclose(loss, loss_ref, rtol=2e-3, atol=2e-2), (loss, loss_ref)
    print("KERNEL_OK")
</pallas_src>

<mosaic_0001>
module attributes {stable_mosaic.version = 11 : i64} {
  func.func @_agg_first_kernel(%arg0: i32, %arg1: i32, %arg2: memref<256x512xbf16, #tpu.memory_space<vmem>>, %arg3: memref<512x128xbf16, #tpu.memory_space<vmem>>, %arg4: memref<128x128xbf16, #tpu.memory_space<vmem>>, %arg5: memref<1x128xf32, #tpu.memory_space<vmem>>, %arg6: memref<256x128xbf16, #tpu.memory_space<vmem>>, %arg7: memref<256x128xf32, #tpu.memory_space<vmem>>) attributes {dimension_semantics = [#tpu.dimension_semantics<parallel>, #tpu.dimension_semantics<arbitrary>], iteration_bounds = array<i64: 2, 1>, scalar_prefetch = 0 : i64, scratch_operands = 1 : i64, tpu.core_type = #tpu.core_type<tc>, window_params = [{transform_indices = @transform_0, window_bounds = array<i64: 256, 512>}, {transform_indices = @transform_1, window_bounds = array<i64: 512, 128>}, {pipeline_mode = #tpu.pipeline_mode<synchronous>, transform_indices = @transform_2, window_bounds = array<i64: 128, 128>}, {pipeline_mode = #tpu.pipeline_mode<synchronous>, transform_indices = @transform_3, window_bounds = array<i64: 1, 128>}, {transform_indices = @transform_4, window_bounds = array<i64: 256, 128>}]} {
    %c0_i32 = arith.constant 0 : i32
    %0 = arith.cmpi eq, %arg1, %c0_i32 : i32
    %1 = arith.extui %0 : i1 to i32
    %c0_i32_0 = arith.constant 0 : i32
    %2 = arith.cmpi ne, %1, %c0_i32_0 : i32
    scf.if %2 {
      %cst_10 = arith.constant 0.000000e+00 : f32
      %12 = vector.broadcast %cst_10 : f32 to vector<256x128xf32>
      %c0_11 = arith.constant 0 : index
      %c0_12 = arith.constant 0 : index
      %13 = vector.load %arg7[%c0_11, %c0_12] : memref<256x128xf32, #tpu.memory_space<vmem>>, vector<256x128xf32>
      tpu.vector_store %arg7[%c0_11, %c0_12], %12 {strides = array<i32>} : memref<256x128xf32, #tpu.memory_space<vmem>>, vector<256x128xf32>,
    } else {
    }
    %c0 = arith.constant 0 : index
    %c0_1 = arith.constant 0 : index
    %3 = vector.load %arg7[%c0, %c0_1] : memref<256x128xf32, #tpu.memory_space<vmem>>, vector<256x128xf32>
    %c0_2 = arith.constant 0 : index
    %c0_3 = arith.constant 0 : index
    %4 = vector.load %arg2[%c0_2, %c0_3] : memref<256x512xbf16, #tpu.memory_space<vmem>>, vector<256x512xbf16>
    %c0_4 = arith.constant 0 : index
    %c0_5 = arith.constant 0 : index
    %5 = vector.load %arg3[%c0_4, %c0_5] : memref<512x128xbf16, #tpu.memory_space<vmem>>, vector<512x128xbf16>
    %cst = arith.constant dense<0.000000e+00> : vector<256x128xf32>
    %6 = tpu.matmul %4, %5, %cst {dimension_numbers = #tpu.dot_dimension_numbers<[1], [0], [0], [1], [0, 0, 1, 1], [], []>} : vector<256x512xbf16>, vector<512x128xbf16>, vector<256x128xf32> -> vector<256x128xf32>
    %7 = arith.addf %3, %6 : vector<256x128xf32>
    %c0_6 = arith.constant 0 : index
    %c0_7 = arith.constant 0 : index
    %8 = vector.load %arg7[%c0_6, %c0_7] : memref<256x128xf32, #tpu.memory_space<vmem>>, vector<256x128xf32>
    tpu.vector_store %arg7[%c0_6, %c0_7], %7 {strides = array<i32>} : memref<256x128xf32, #tpu.memory_space<vmem>>, vector<256x128xf32>,
    %c0_i32_8 = arith.constant 0 : i32
    %9 = arith.cmpi eq, %arg1, %c0_i32_8 : i32
    %10 = arith.extui %9 : i1 to i32
    %c0_i32_9 = arith.constant 0 : i32
    %11 = arith.cmpi ne, %10, %c0_i32_9 : i32
    scf.if %11 {
      %c0_10 = arith.constant 0 : index
      %c0_11 = arith.constant 0 : index
      %12 = vector.load %arg7[%c0_10, %c0_11] : memref<256x128xf32, #tpu.memory_space<vmem>>, vector<256x128xf32>
      %13 = arith.truncf %12 : vector<256x128xf32> to vector<256x128xbf16>
      %c0_12 = arith.constant 0 : index
      %c0_13 = arith.constant 0 : index
      %14 = vector.load %arg4[%c0_12, %c0_13] : memref<128x128xbf16, #tpu.memory_space<vmem>>, vector<128x128xbf16>
      %cst_14 = arith.constant dense<0.000000e+00> : vector<256x128xf32>
      %15 = tpu.matmul %13, %14, %cst_14 {dimension_numbers = #tpu.dot_dimension_numbers<[1], [0], [0], [1], [0, 0, 1, 1], [], []>} : vector<256x128xbf16>, vector<128x128xbf16>, vector<256x128xf32> -> vector<256x128xf32>
      %c0_15 = arith.constant 0 : index
      %c0_16 = arith.constant 0 : index
      %16 = vector.load %arg5[%c0_15, %c0_16] : memref<1x128xf32, #tpu.memory_space<vmem>>, vector<1x128xf32>
      %17 = vector.broadcast %16 : vector<1x128xf32> to vector<256x128xf32>
      %18 = arith.addf %15, %17 : vector<256x128xf32>
      %cst_17 = arith.constant 0.000000e+00 : f32
      %19 = vector.broadcast %cst_17 : f32 to vector<256x128xf32>
      %20 = arith.maximumf %18, %19 : vector<256x128xf32>
      %21 = arith.truncf %20 : vector<256x128xf32> to vector<256x128xbf16>
      %c0_18 = arith.constant 0 : index
      %c0_19 = arith.constant 0 : index
      %22 = vector.load %arg6[%c0_18, %c0_19] : memref<256x128xbf16, #tpu.memory_space<vmem>>, vector<256x128xbf16>
      tpu.vector_store %arg6[%c0_18, %c0_19], %21 {strides = array<i32>} : memref<256x128xbf16, #tpu.memory_space<vmem>>, vector<256x128xbf16>,
    } else {
    }
    return
  }
  func.func @transform_0(%arg0: i32, %arg1: i32) -> (i32, i32) {
    %c0_i32 = arith.constant 0 : i32
    return %arg0, %arg1 : i32, i32
  }
  func.func @transform_1(%arg0: i32, %arg1: i32) -> (i32, i32) {
    %c0_i32 = arith.constant 0 : i32
    %c0_i32_0 = arith.constant 0 : i32
    return %arg1, %c0_i32 : i32, i32
  }
  func.func @transform_2(%arg0: i32, %arg1: i32) -> (i32, i32) {
    %c0_i32 = arith.constant 0 : i32
    %c0_i32_0 = arith.constant 0 : i32
    %c0_i32_1 = arith.constant 0 : i32
    return %c0_i32, %c0_i32_0 : i32, i32
  }
  func.func @transform_3(%arg0: i32, %arg1: i32) -> (i32, i32) {
    %c0_i32 = arith.constant 0 : i32
    %c0_i32_0 = arith.constant 0 : i32
    %c0_i32_1 = arith.constant 0 : i32
    return %c0_i32, %c0_i32_0 : i32, i32
  }
  func.func @transform_4(%arg0: i32, %arg1: i32) -> (i32, i32) {
    %c0_i32 = arith.constant 0 : i32
    %c0_i32_0 = arith.constant 0 : i32
    return %arg0, %c0_i32 : i32, i32
  }
}

module attributes {stable_mosaic.version = 11 : i64} {
  func.func @_lin_first_kernel(%arg0: i32, %arg1: i32, %arg2: memref<256x512xbf16, #tpu.memory_space<vmem>>, %arg3: memref<512x128xbf16, #tpu.memory_space<vmem>>, %arg4: memref<128x128xbf16, #tpu.memory_space<vmem>>, %arg5: memref<1x128xf32, #tpu.memory_space<vmem>>, %arg6: memref<256x128xbf16, #tpu.memory_space<vmem>>, %arg7: memref<256x128xf32, #tpu.memory_space<vmem>>) attributes {dimension_semantics = [#tpu.dimension_semantics<parallel>, #tpu.dimension_semantics<arbitrary>], iteration_bounds = array<i64: 2, 1>, scalar_prefetch = 0 : i64, scratch_operands = 1 : i64, tpu.core_type = #tpu.core_type<tc>, window_params = [{transform_indices = @transform_0, window_bounds = array<i64: 256, 512>}, {transform_indices = @transform_1, window_bounds = array<i64: 512, 128>}, {pipeline_mode = #tpu.pipeline_mode<synchronous>, transform_indices = @transform_2, window_bounds = array<i64: 128, 128>}, {pipeline_mode = #tpu.pipeline_mode<synchronous>, transform_indices = @transform_3, window_bounds = array<i64: 1, 128>}, {transform_indices = @transform_4, window_bounds = array<i64: 256, 128>}]} {
    %c0_i32 = arith.constant 0 : i32
    %0 = arith.cmpi eq, %arg1, %c0_i32 : i32
    %1 = arith.extui %0 : i1 to i32
    %c0_i32_0 = arith.constant 0 : i32
    %2 = arith.cmpi ne, %1, %c0_i32_0 : i32
    scf.if %2 {
      %cst_15 = arith.constant 0.000000e+00 : f32
      %18 = vector.broadcast %cst_15 : f32 to vector<256x128xf32>
      %c0_16 = arith.constant 0 : index
      %c0_17 = arith.constant 0 : index
      %19 = vector.load %arg7[%c0_16, %c0_17] : memref<256x128xf32, #tpu.memory_space<vmem>>, vector<256x128xf32>
      tpu.vector_store %arg7[%c0_16, %c0_17], %18 {strides = array<i32>} : memref<256x128xf32, #tpu.memory_space<vmem>>, vector<256x128xf32>,
    } else {
    }
    %c0 = arith.constant 0 : index
    %c0_1 = arith.constant 0 : index
    %3 = vector.load %arg3[%c0, %c0_1] : memref<512x128xbf16, #tpu.memory_space<vmem>>, vector<512x128xbf16>
    %c0_2 = arith.constant 0 : index
    %c0_3 = arith.constant 0 : index
    %4 = vector.load %arg4[%c0_2, %c0_3] : memref<128x128xbf16, #tpu.memory_space<vmem>>, vector<128x128xbf16>
    %cst = arith.constant dense<0.000000e+00> : vector<512x128xf32>
    %5 = tpu.matmul %3, %4, %cst {dimension_numbers = #tpu.dot_dimension_numbers<[1], [0], [0], [1], [0, 0, 1, 1], [], []>} : vector<512x128xbf16>, vector<128x128xbf16>, vector<512x128xf32> -> vector<512x128xf32>
    %c0_4 = arith.constant 0 : index
    %c0_5 = arith.constant 0 : index
    %6 = vector.load %arg5[%c0_4, %c0_5] : memref<1x128xf32, #tpu.memory_space<vmem>>, vector<1x128xf32>
    %7 = vector.broadcast %6 : vector<1x128xf32> to vector<512x128xf32>
    %8 = arith.addf %5, %7 : vector<512x128xf32>
    %c0_6 = arith.constant 0 : index
    %c0_7 = arith.constant 0 : index
    %9 = vector.load %arg7[%c0_6, %c0_7] : memref<256x128xf32, #tpu.memory_space<vmem>>, vector<256x128xf32>
    %c0_8 = arith.constant 0 : index
    %c0_9 = arith.constant 0 : index
    %10 = vector.load %arg2[%c0_8, %c0_9] : memref<256x512xbf16, #tpu.memory_space<vmem>>, vector<256x512xbf16>
    %11 = arith.truncf %8 : vector<512x128xf32> to vector<512x128xbf16>
    %cst_10 = arith.constant dense<0.000000e+00> : vector<256x128xf32>
    %12 = tpu.matmul %10, %11, %cst_10 {dimension_numbers = #tpu.dot_dimension_numbers<[1], [0], [0], [1], [0, 0, 1, 1], [], []>} : vector<256x512xbf16>, vector<512x128xbf16>, vector<256x128xf32> -> vector<256x128xf32>
    %13 = arith.addf %9, %12 : vector<256x128xf32>
    %c0_11 = arith.constant 0 : index
    %c0_12 = arith.constant 0 : index
    %14 = vector.load %arg7[%c0_11, %c0_12] : memref<256x128xf32, #tpu.memory_space<vmem>>, vector<256x128xf32>
    tpu.vector_store %arg7[%c0_11, %c0_12], %13 {strides = array<i32>} : memref<256x128xf32, #tpu.memory_space<vmem>>, vector<256x128xf32>,
    %c0_i32_13 = arith.constant 0 : i32
    %15 = arith.cmpi eq, %arg1, %c0_i32_13 : i32
    %16 = arith.extui %15 : i1 to i32
    %c0_i32_14 = arith.constant 0 : i32
    %17 = arith.cmpi ne, %16, %c0_i32_14 : i32
    scf.if %17 {
      %c0_15 = arith.constant 0 : index
      %c0_16 = arith.constant 0 : index
      %18 = vector.load %arg7[%c0_15, %c0_16] : memref<256x128xf32, #tpu.memory_space<vmem>>, vector<256x128xf32>
      %cst_17 = arith.constant 0.000000e+00 : f32
      %19 = vector.broadcast %cst_17 : f32 to vector<256x128xf32>
      %20 = arith.maximumf %18, %19 : vector<256x128xf32>
      %21 = arith.truncf %20 : vector<256x128xf32> to vector<256x128xbf16>
      %c0_18 = arith.constant 0 : index
      %c0_19 = arith.constant 0 : index
      %22 = vector.load %arg6[%c0_18, %c0_19] : memref<256x128xbf16, #tpu.memory_space<vmem>>, vector<256x128xbf16>
      tpu.vector_store %arg6[%c0_18, %c0_19], %21 {strides = array<i32>} : memref<256x128xbf16, #tpu.memory_space<vmem>>, vector<256x128xbf16>,
    } else {
    }
    return
  }
  func.func @transform_0(%arg0: i32, %arg1: i32) -> (i32, i32) {
    %c0_i32 = arith.constant 0 : i32
    return %arg0, %arg1 : i32, i32
  }
  func.func @transform_1(%arg0: i32, %arg1: i32) -> (i32, i32) {
    %c0_i32 = arith.constant 0 : i32
    %c0_i32_0 = arith.constant 0 : i32
    return %arg1, %c0_i32 : i32, i32
  }
  func.func @transform_2(%arg0: i32, %arg1: i32) -> (i32, i32) {
    %c0_i32 = arith.constant 0 : i32
    %c0_i32_0 = arith.constant 0 : i32
    %c0_i32_1 = arith.constant 0 : i32
    return %c0_i32, %c0_i32_0 : i32, i32
  }
  func.func @transform_3(%arg0: i32, %arg1: i32) -> (i32, i32) {
    %c0_i32 = arith.constant 0 : i32
    %c0_i32_0 = arith.constant 0 : i32
    %c0_i32_1 = arith.constant 0 : i32
    return %c0_i32, %c0_i32_0 : i32, i32
  }
  func.func @transform_4(%arg0: i32, %arg1: i32) -> (i32, i32) {
    %c0_i32 = arith.constant 0 : i32
    %c0_i32_0 = arith.constant 0 : i32
    return %arg0, %c0_i32 : i32, i32
  }
}

module attributes {stable_mosaic.version = 11 : i64} {
  func.func @_final_ce_kernel(%arg0: i32, %arg1: i32, %arg2: memref<256x512xbf16, #tpu.memory_space<vmem>>, %arg3: memref<512x128xbf16, #tpu.memory_space<vmem>>, %arg4: memref<128x128xbf16, #tpu.memory_space<vmem>>, %arg5: memref<1x128xf32, #tpu.memory_space<vmem>>, %arg6: memref<256x1xi32, #tpu.memory_space<vmem>>, %arg7: memref<1x1xf32, #tpu.memory_space<vmem>>, %arg8: memref<256x128xf32, #tpu.memory_space<vmem>>, %arg9: memref<1x1xf32, #tpu.memory_space<vmem>>) attributes {dimension_semantics = [#tpu.dimension_semantics<arbitrary>, #tpu.dimension_semantics<arbitrary>], iteration_bounds = array<i64: 2, 1>, scalar_prefetch = 0 : i64, scratch_operands = 2 : i64, tpu.core_type = #tpu.core_type<tc>, window_params = [{transform_indices = @transform_0, window_bounds = array<i64: 256, 512>}, {transform_indices = @transform_1, window_bounds = array<i64: 512, 128>}, {pipeline_mode = #tpu.pipeline_mode<synchronous>, transform_indices = @transform_2, window_bounds = array<i64: 128, 128>}, {pipeline_mode = #tpu.pipeline_mode<synchronous>, transform_indices = @transform_3, window_bounds = array<i64: 1, 128>}, {transform_indices = @transform_4, window_bounds = array<i64: 256, 1>}, {pipeline_mode = #tpu.pipeline_mode<synchronous>, transform_indices = @transform_5, window_bounds = array<i64: 1, 1>}]} {
    %c0_i32 = arith.constant 0 : i32
    %0 = arith.cmpi eq, %arg0, %c0_i32 : i32
    %c0_i32_0 = arith.constant 0 : i32
    %1 = arith.cmpi eq, %arg1, %c0_i32_0 : i32
    %2 = arith.andi %0, %1 : i1
    %3 = arith.extui %2 : i1 to i32
    %c0_i32_1 = arith.constant 0 : i32
    %4 = arith.cmpi ne, %3, %c0_i32_1 : i32
    scf.if %4 {
      %cst_20 = arith.constant 0.000000e+00 : f32
      %28 = vector.broadcast %cst_20 : f32 to vector<1x1xf32>
      %c0_21 = arith.constant 0 : index
      %c0_22 = arith.constant 0 : index
      %29 = vector.load %arg9[%c0_21, %c0_22] : memref<1x1xf32, #tpu.memory_space<vmem>>, vector<1x1xf32>
      tpu.vector_store %arg9[%c0_21, %c0_22], %28 {strides = array<i32>} : memref<1x1xf32, #tpu.memory_space<vmem>>, vector<1x1xf32>,
    } else {
    }
    %c0_i32_2 = arith.constant 0 : i32
    %5 = arith.cmpi eq, %arg1, %c0_i32_2 : i32
    %6 = arith.extui %5 : i1 to i32
    %c0_i32_3 = arith.constant 0 : i32
    %7 = arith.cmpi ne, %6, %c0_i32_3 : i32
    scf.if %7 {
      %cst_20 = arith.constant 0.000000e+00 : f32
      %28 = vector.broadcast %cst_20 : f32 to vector<256x128xf32>
      %c0_21 = arith.constant 0 : index
      %c0_22 = arith.constant 0 : index
      %29 = vector.load %arg8[%c0_21, %c0_22] : memref<256x128xf32, #tpu.memory_space<vmem>>, vector<256x128xf32>
      tpu.vector_store %arg8[%c0_21, %c0_22], %28 {strides = array<i32>} : memref<256x128xf32, #tpu.memory_space<vmem>>, vector<256x128xf32>,
    } else {
    }
    %c0 = arith.constant 0 : index
    %c0_4 = arith.constant 0 : index
    %8 = vector.load %arg3[%c0, %c0_4] : memref<512x128xbf16, #tpu.memory_space<vmem>>, vector<512x128xbf16>
    %c0_5 = arith.constant 0 : index
    %c0_6 = arith.constant 0 : index
    %9 = vector.load %arg4[%c0_5, %c0_6] : memref<128x128xbf16, #tpu.memory_space<vmem>>, vector<128x128xbf16>
    %cst = arith.constant dense<0.000000e+00> : vector<512x128xf32>
    %10 = tpu.matmul %8, %9, %cst {dimension_numbers = #tpu.dot_dimension_numbers<[1], [0], [0], [1], [0, 0, 1, 1], [], []>} : vector<512x128xbf16>, vector<128x128xbf16>, vector<512x128xf32> -> vector<512x128xf32>
    %c0_7 = arith.constant 0 : index
    %c0_8 = arith.constant 0 : index
    %11 = vector.load %arg5[%c0_7, %c0_8] : memref<1x128xf32, #tpu.memory_space<vmem>>, vector<1x128xf32>
    %12 = vector.broadcast %11 : vector<1x128xf32> to vector<512x128xf32>
    %13 = arith.addf %10, %12 : vector<512x128xf32>
    %c0_9 = arith.constant 0 : index
    %c0_10 = arith.constant 0 : index
    %14 = vector.load %arg8[%c0_9, %c0_10] : memref<256x128xf32, #tpu.memory_space<vmem>>, vector<256x128xf32>
    %c0_11 = arith.constant 0 : index
    %c0_12 = arith.constant 0 : index
    %15 = vector.load %arg2[%c0_11, %c0_12] : memref<256x512xbf16, #tpu.memory_space<vmem>>, vector<256x512xbf16>
    %16 = arith.truncf %13 : vector<512x128xf32> to vector<512x128xbf16>
    %cst_13 = arith.constant dense<0.000000e+00> : vector<256x128xf32>
    %17 = tpu.matmul %15, %16, %cst_13 {dimension_numbers = #tpu.dot_dimension_numbers<[1], [0], [0], [1], [0, 0, 1, 1], [], []>} : vector<256x512xbf16>, vector<512x128xbf16>, vector<256x128xf32> -> vector<256x128xf32>
    %18 = arith.addf %14, %17 : vector<256x128xf32>
    %c0_14 = arith.constant 0 : index
    %c0_15 = arith.constant 0 : index
    %19 = vector.load %arg8[%c0_14, %c0_15] : memref<256x128xf32, #tpu.memory_space<vmem>>, vector<256x128xf32>
    tpu.vector_store %arg8[%c0_14, %c0_15], %18 {strides = array<i32>} : memref<256x128xf32, #tpu.memory_space<vmem>>, vector<256x128xf32>,
    %c0_i32_16 = arith.constant 0 : i32
    %20 = arith.cmpi eq, %arg1, %c0_i32_16 : i32
    %21 = arith.extui %20 : i1 to i32
    %c0_i32_17 = arith.constant 0 : i32
    %22 = arith.cmpi ne, %21, %c0_i32_17 : i32
    scf.if %22 {
      %c0_20 = arith.constant 0 : index
      %c0_21 = arith.constant 0 : index
      %28 = vector.load %arg8[%c0_20, %c0_21] : memref<256x128xf32, #tpu.memory_space<vmem>>, vector<256x128xf32>
      %29 = tpu.iota {dimensions = array<i32: 1>} : vector<256x128xi32>
      %c8_i32 = arith.constant 8 : i32
      %30 = vector.broadcast %c8_i32 : i32 to vector<256x128xi32>
      %31 = arith.cmpi slt, %29, %30 : vector<256x128xi32>
      %cst_22 = arith.constant -1.000000e+30 : f32
      %32 = vector.broadcast %cst_22 : f32 to vector<256x128xf32>
      %33 = arith.select %31, %28, %32 : vector<256x128xi1>, vector<256x128xf32>
      %cst_23 = arith.constant dense<0xFF800000> : vector<256xf32>
      %34 = vector.multi_reduction <maximumf>, %33, %cst_23 [1] : vector<256x128xf32> to vector<256xf32>
      %35 = vector.shape_cast %34 : vector<256xf32> to vector<256x1xf32>
      %36 = vector.broadcast %35 : vector<256x1xf32> to vector<256x128xf32>
      %37 = arith.subf %33, %36 : vector<256x128xf32>
      %38 = math.exp %37 : vector<256x128xf32>
      %cst_24 = arith.constant dense<0.000000e+00> : vector<256xf32>
      %39 = vector.multi_reduction <add>, %38, %cst_24 [1] : vector<256x128xf32> to vector<256xf32>
      %40 = vector.shape_cast %39 : vector<256xf32> to vector<256x1xf32>
      %41 = math.log %40 : vector<256x1xf32>
      %42 = arith.addf %35, %41 : vector<256x1xf32>
      %c0_25 = arith.constant 0 : index
      %c0_26 = arith.constant 0 : index
      %43 = vector.load %arg6[%c0_25, %c0_26] : memref<256x1xi32, #tpu.memory_space<vmem>>, vector<256x1xi32>
      %44 = vector.broadcast %43 : vector<256x1xi32> to vector<256x128xi32>
      %45 = arith.cmpi eq, %29, %44 : vector<256x128xi32>
      %46 = arith.extui %45 : vector<256x128xi1> to vector<256x128xi32>
      %47 = arith.sitofp %46 : vector<256x128xi32> to vector<256x128xf32>
      %48 = arith.mulf %28, %47 : vector<256x128xf32>
      %cst_27 = arith.constant dense<0.000000e+00> : vector<256xf32>
      %49 = vector.multi_reduction <add>, %48, %cst_27 [1] : vector<256x128xf32> to vector<256xf32>
      %50 = vector.shape_cast %49 : vector<256xf32> to vector<256x1xf32>
      %c256_i32 = arith.constant 256 : i32
      %51 = arith.muli %arg0, %c256_i32 : i32
      %52 = tpu.iota {dimensions = array<i32: 0>} : vector<256x1xi32>
      %53 = vector.broadcast %51 : i32 to vector<256x1xi32>
      %54 = arith.addi %53, %52 : vector<256x1xi32>
      %c64_i32 = arith.constant 64 : i32
      %55 = vector.broadcast %c64_i32 : i32 to vector<256x1xi32>
      %56 = arith.cmpi slt, %54, %55 : vector<256x1xi32>
      %57 = arith.extui %56 : vector<256x1xi1> to vector<256x1xi32>
      %58 = arith.sitofp %57 : vector<256x1xi32> to vector<256x1xf32>
      %59 = arith.subf %42, %50 : vector<256x1xf32>
      %60 = arith.mulf %59, %58 : vector<256x1xf32>
      %61 = vector.shape_cast %60 : vector<256x1xf32> to vector<1x256x1xf32>
      %cst_28 = arith.constant dense<0.000000e+00> : vector<1xf32>
      %62 = vector.multi_reduction <add>, %61, %cst_28 [1, 2] : vector<1x256x1xf32> to vector<1xf32>
      %63 = vector.shape_cast %62 : vector<1xf32> to vector<1x1x1xf32>
      %64 = vector.extract %63[0, 0, 0] : f32 from vector<1x1x1xf32>
      %c0_29 = arith.constant 0 : index
      %c0_30 = arith.constant 0 : index
      %65 = vector.load %arg9[%c0_29, %c0_30] : memref<1x1xf32, #tpu.memory_space<vmem>>, vector<1x1xf32>
      %66 = vector.broadcast %64 : f32 to vector<1x1xf32>
      %67 = arith.addf %65, %66 : vector<1x1xf32>
      %c0_31 = arith.constant 0 : index
      %c0_32 = arith.constant 0 : index
      %68 = vector.load %arg9[%c0_31, %c0_32] : memref<1x1xf32, #tpu.memory_space<vmem>>, vector<1x1xf32>
      tpu.vector_store %arg9[%c0_31, %c0_32], %67 {strides = array<i32>} : memref<1x1xf32, #tpu.memory_space<vmem>>, vector<1x1xf32>,
    } else {
    }
    %c1_i32 = arith.constant 1 : i32
    %23 = arith.cmpi eq, %arg0, %c1_i32 : i32
    %c0_i32_18 = arith.constant 0 : i32
    %24 = arith.cmpi eq, %arg1, %c0_i32_18 : i32
    %25 = arith.andi %23, %24 : i1
    %26 = arith.extui %25 : i1 to i32
    %c0_i32_19 = arith.constant 0 : i32
    %27 = arith.cmpi ne, %26, %c0_i32_19 : i32
    scf.if %27 {
      %c0_20 = arith.constant 0 : index
      %c0_21 = arith.constant 0 : index
      %28 = vector.load %arg9[%c0_20, %c0_21] : memref<1x1xf32, #tpu.memory_space<vmem>>, vector<1x1xf32>
      %c0_22 = arith.constant 0 : index
      %c0_23 = arith.constant 0 : index
      %29 = vector.load %arg7[%c0_22, %c0_23] : memref<1x1xf32, #tpu.memory_space<vmem>>, vector<1x1xf32>
      tpu.vector_store %arg7[%c0_22, %c0_23], %28 {strides = array<i32>} : memref<1x1xf32, #tpu.memory_space<vmem>>, vector<1x1xf32>,
    } else {
    }
    return
  }
  func.func @transform_0(%arg0: i32, %arg1: i32) -> (i32, i32) {
    %c0_i32 = arith.constant 0 : i32
    return %arg0, %arg1 : i32, i32
  }
  func.func @transform_1(%arg0: i32, %arg1: i32) -> (i32, i32) {
    %c0_i32 = arith.constant 0 : i32
    %c0_i32_0 = arith.constant 0 : i32
    return %arg1, %c0_i32 : i32, i32
  }
  func.func @transform_2(%arg0: i32, %arg1: i32) -> (i32, i32) {
    %c0_i32 = arith.constant 0 : i32
    %c0_i32_0 = arith.constant 0 : i32
    %c0_i32_1 = arith.constant 0 : i32
    return %c0_i32, %c0_i32_0 : i32, i32
  }
  func.func @transform_3(%arg0: i32, %arg1: i32) -> (i32, i32) {
    %c0_i32 = arith.constant 0 : i32
    %c0_i32_0 = arith.constant 0 : i32
    %c0_i32_1 = arith.constant 0 : i32
    return %c0_i32, %c0_i32_0 : i32, i32
  }
  func.func @transform_4(%arg0: i32, %arg1: i32) -> (i32, i32) {
    %c0_i32 = arith.constant 0 : i32
    %c0_i32_0 = arith.constant 0 : i32
    return %arg0, %c0_i32 : i32, i32
  }
  func.func @transform_5(%arg0: i32, %arg1: i32) -> (i32, i32) {
    %c0_i32 = arith.constant 0 : i32
    %c0_i32_0 = arith.constant 0 : i32
    %c0_i32_1 = arith.constant 0 : i32
    return %c0_i32, %c0_i32_0 : i32, i32
  }
}

</mosaic_0001>

<llo_original>
// kernel: gcn_forward.3
$region0: #{gcn_forward.3}
  #allocation0 [shape = 'u32[]', space=smem, size = 0x4, offset = 0x4, fixed_abs, tag = 'smem constant byte address 0x4 - core index']
  #allocation1 [shape = 'u32[144,128]{1,0:T(1,128)}', space=vmem, size = 0x12000, scoped, tag = 'internal scratch']
  #allocation2 [shape = 'f32[256,128]{1,0:T(8,128)}', space=vmem, size = 0x20000, scoped, tag = 'scratch operand']
  %s0 = inlined_call_operand.vmem [shape: bf16[512,512], index: 0, kind: input, shape index: {}]
  %s1 = inlined_call_operand.vmem [shape: bf16[512,128], index: 1, kind: input, shape index: {}]
  %s2 = inlined_call_operand.vmem [shape: bf16[128,128], index: 2, kind: input, shape index: {}]
  %s3 = inlined_call_operand.vmem [shape: f32[1,128], index: 3, kind: input, shape index: {}]
  %s4 = inlined_call_operand.vmem [shape: bf16[512,128], index: 4, kind: output, shape index: {}]
  %s5 = sld [smem:[#allocation0]]
  $region57: #{gcn_forward.3} parent=0
    _
  %s7 = ssub.s32 1, %s5
  %s8 = scalar_select 0, %s7, %s5
  loop: start=0, step=1, limit=4
  $region2: #{gcn_forward.3} parent=0 // loop_pre_header
    _
  $region3: #{gcn_forward.3} parent=0 // loop_header
    %s10 = sphi 0, %s14
    %p11 = scmp.ge.s32.totalorder %s10, 4
    %s17 = sphi 0, %s29
    %s18 = sphi 0, %s25
    %s19 = sphi 0, %s17
    %s20 = sphi 0, %s18
    %s21 = sphi 0, %s19
    %s22 = sphi 0, %s20
    %s34 = sphi 0, %s36
    %s37 = sphi 0, %s34
    %s38 = sphi 0, %s37
    %s54 = sphi 0, %s38
    %s60 = sphi 0, %s62
    %s63 = sphi 0, %s60
    %s64 = sphi 0, %s63
    %s80 = sphi 0, %s64
    %s84 = sphi 0, %s84
    %s86 = sphi 0, %s84
    %s87 = sphi 0, %s86
    %s101 = sphi 0, %s87
    %s105 = sphi 0, %s105
    %s107 = sphi 0, %s105
    %s108 = sphi 0, %s107
    %s122 = sphi 0, %s108
    %s128 = sphi 0, %s130
    %s131 = sphi 0, %s128
    %s132 = sphi 0, %s131
    %s148 = sphi 0, %s132
  $region4: #{gcn_forward.3} parent=0 // loop_header_branch
    %13 = sbr.rel (%p11) target = $region8
  $region5: #{gcn_forward.3} parent=0 // loop_body
    %s15 = ssub.s32 %s10, 1
    %s16 = ssub.s32 %s10, 2
    %s23 = sadd.s32 1, %s18
    %p24 = scmp.ge.s32.totalorder %s23, 1
    %s25 = scalar_select %p24, 0, %s23
    %s26 = sadd.s32 1, %s17
    %s27 = scalar_select %p24, %s26, %s17
    %p28 = scmp.ge.s32.totalorder %s27, 2
    %s29 = scalar_select %p28, 0, %s27
    %s30 = ssub.s32 %s17, %s29
    %s31 = ssub.s32 %s18, %s25
    %s32 = sor.u32 %s30, %s31
    %p33 = scmp.eq.s32.totalorder %s32, 0
    %s35 = sadd.s32 %s34, 1
    %s36 = scalar_select %p33, %s34, %s35
    %p39 = pneg %p33
    %p40 = scmp.eq.s32.totalorder %s10, 1
    %p41 = por %p39, %p40
    %p42 = scmp.ne.s32.totalorder %s34, %s37
    %p43 = scmp.eq.s32.totalorder %s10, 0
    %p44 = por %p42, %p43
    %p45 = scmp.ne.s32.totalorder %s34, %s37
    %p46 = scmp.eq.s32.totalorder %s15, 1
    %p47 = por %p45, %p46
    %p48 = scmp.ne.s32.totalorder %s37, %s38
    %p49 = scmp.eq.s32.totalorder %s15, 0
    %p50 = por %p48, %p49
    %p51 = scmp.ne.s32.totalorder %s37, %s38
    %p52 = scmp.eq.s32.totalorder %s16, 1
    %p53 = por %p51, %p52
    %p55 = scmp.ne.s32.totalorder %s38, %s54
    %p56 = scmp.eq.s32.totalorder %s16, 0
    %p57 = por %p55, %p56
    %s58 = ssub.s32 %s18, %s25
    %p59 = scmp.eq.s32.totalorder %s58, 0
    %s61 = sadd.s32 %s60, 1
    %s62 = scalar_select %p59, %s60, %s61
    %p65 = pneg %p59
    %p66 = scmp.eq.s32.totalorder %s10, 1
    %p67 = por %p65, %p66
    %p68 = scmp.ne.s32.totalorder %s60, %s63
    %p69 = scmp.eq.s32.totalorder %s10, 0
    %p70 = por %p68, %p69
    %p71 = scmp.ne.s32.totalorder %s60, %s63
    %p72 = scmp.eq.s32.totalorder %s15, 1
    %p73 = por %p71, %p72
    %p74 = scmp.ne.s32.totalorder %s63, %s64
    %p75 = scmp.eq.s32.totalorder %s15, 0
    %p76 = por %p74, %p75
    %p77 = scmp.ne.s32.totalorder %s63, %s64
    %p78 = scmp.eq.s32.totalorder %s16, 1
    %p79 = por %p77, %p78
    %p81 = scmp.ne.s32.totalorder %s64, %s80
    %p82 = scmp.eq.s32.totalorder %s16, 0
    %p83 = por %p81, %p82
    %s85 = sadd.s32 %s84, 1
    %p88 = scmp.eq.s32.totalorder %s10, 1
    %p89 = scmp.ne.s32.totalorder %s84, %s86
    %p90 = scmp.eq.s32.totalorder %s10, 0
    %p91 = por %p89, %p90
    %p92 = scmp.ne.s32.totalorder %s84, %s86
    %p93 = scmp.eq.s32.totalorder %s15, 1
    %p94 = por %p92, %p93
    %p95 = scmp.ne.s32.totalorder %s86, %s87
    %p96 = scmp.eq.s32.totalorder %s15, 0
    %p97 = por %p95, %p96
    %p98 = scmp.ne.s32.totalorder %s86, %s87
    %p99 = scmp.eq.s32.totalorder %s16, 1
    %p100 = por %p98, %p99
    %p102 = scmp.ne.s32.totalorder %s87, %s101
    %p103 = scmp.eq.s32.totalorder %s16, 0
    %p104 = por %p102, %p103
    %s106 = sadd.s32 %s105, 1
    %p109 = scmp.eq.s32.totalorder %s10, 1
    %p110 = scmp.ne.s32.totalorder %s105, %s107
    %p111 = scmp.eq.s32.totalorder %s10, 0
    %p112 = por %p110, %p111
    %p113 = scmp.ne.s32.totalorder %s105, %s107
    %p114 = scmp.eq.s32.totalorder %s15, 1
    %p115 = por %p113, %p114
    %p116 = scmp.ne.s32.totalorder %s107, %s108
    %p117 = scmp.eq.s32.totalorder %s15, 0
    %p118 = por %p116, %p117
    %p119 = scmp.ne.s32.totalorder %s107, %s108
    %p120 = scmp.eq.s32.totalorder %s16, 1
    %p121 = por %p119, %p120
    %p123 = scmp.ne.s32.totalorder %s108, %s122
    %p124 = scmp.eq.s32.totalorder %s16, 0
    %p125 = por %p123, %p124
    %s126 = ssub.s32 %s17, %s29
    %p127 = scmp.eq.s32.totalorder %s126, 0
    %s129 = sadd.s32 %s128, 1
    %s130 = scalar_select %p127, %s128, %s129
    %p133 = pneg %p127
    %p134 = scmp.eq.s32.totalorder %s10, 1
    %p135 = por %p133, %p134
    %p136 = scmp.ne.s32.totalorder %s128, %s131
    %p137 = scmp.eq.s32.totalorder %s10, 0
    %p138 = por %p136, %p137
    %p139 = scmp.ne.s32.totalorder %s128, %s131
    %p140 = scmp.eq.s32.totalorder %s15, 1
    %p141 = por %p139, %p140
    %p142 = scmp.ne.s32.totalorder %s131, %s132
    %p143 = scmp.eq.s32.totalorder %s15, 0
    %p144 = por %p142, %p143
    %p145 = scmp.ne.s32.totalorder %s131, %s132
    %p146 = scmp.eq.s32.totalorder %s16, 1
    %p147 = por %p145, %p146
    %p149 = scmp.ne.s32.totalorder %s132, %s148
    %p150 = scmp.eq.s32.totalorder %s16, 0
    %p151 = por %p149, %p150
    %p152 = scmp.le.s32.totalorder 1, %s10
    %p153 = scmp.lt.s32.totalorder %s10, 3
    %p154 = pnand %p152, %p153
    %p155 = pneg %p154
    // Predicated region
    $region9: #{gcn_forward.3} parent=5 // pred_check
      _
    $region10: #{gcn_forward.3} parent=5 // pred_check_branch
      %157 = sbr.rel (%p154) target = $region12
    $region11: #{gcn_forward.3} parent=5 // pred_region
      %s158 = ssub.s32 %s10, 1
      // Predicated region
      $region13: #{gcn_forward.3} parent=11 // pred_check
        %p159 = pneg %p76
      $region14: #{gcn_forward.3} parent=11 // pred_check_branch
        %161 = sbr.rel (%p159) target = $region16
      $region15: #{gcn_forward.3} parent=11 // pred_region
        %s162 = smul.u32 64, %s20
        %p163 = scmp.lt.s32.totalorder %s162, 63
        %s164 = scalar_select %p163, %s162, 63
        %s165 = smul.addr %s164, 4
        %s166 = scalar_lea.vmem %s1, %s165
        %s167 = smul.u32 64, %s20
      $region16: #{gcn_forward.3} parent=11 // pred_fallthru
        _
      // Predicated region
      $region17: #{gcn_forward.3} parent=11 // pred_check
        %p168 = pneg %p97
      $region18: #{gcn_forward.3} parent=11 // pred_check_branch
        %170 = sbr.rel (%p168) target = $region20
      $region19: #{gcn_forward.3} parent=11 // pred_region
        _
      $region20: #{gcn_forward.3} parent=11 // pred_fallthru
        _
      // Predicated region
      $region21: #{gcn_forward.3} parent=11 // pred_check
        %p171 = pneg %p118
      $region22: #{gcn_forward.3} parent=11 // pred_check_branch
        %173 = sbr.rel (%p171) target = $region24
      $region23: #{gcn_forward.3} parent=11 // pred_region
        _
      $region24: #{gcn_forward.3} parent=11 // pred_fallthru
        _
    $region12: #{gcn_forward.3} parent=5 // pred_fallthru
      _
    %p174 = scmp.lt.s32.totalorder %s10, 2
    // Predicated region
    $region25: #{gcn_forward.3} parent=5 // pred_check
      %p175 = pneg %p174
    $region26: #{gcn_forward.3} parent=5 // pred_check_branch
      %177 = sbr.rel (%p175) target = $region28
    $region27: #{gcn_forward.3} parent=5 // pred_region
      // Predicated region
      $region29: #{gcn_forward.3} parent=27 // pred_check
        %p178 = pneg %p44
      $region30: #{gcn_forward.3} parent=27 // pred_check_branch
        %180 = sbr.rel (%p178) target = $region32
      $region31: #{gcn_forward.3} parent=27 // pred_region
        %s181 = smul.u32 32, %s17
        %s182 = smul.u32 4, %s18
        %p183 = scmp.lt.s32.totalorder %s181, 63
        %s184 = scalar_select %p183, %s181, 63
        %p185 = scmp.lt.s32.totalorder %s182, 3
        %s186 = scalar_select %p185, %s182, 3
        %s187 = smul.addr %s184, 4
        %s188 = sadd.s32 %s186, %s187
        %s189 = smul.addr %s188, 4
        %s190 = scalar_lea.vmem %s0, %s189
        %s191 = smul.u32 32, %s17
        %s192 = smul.u32 4, %s18
      $region32: #{gcn_forward.3} parent=27 // pred_fallthru
        _
    $region28: #{gcn_forward.3} parent=5 // pred_fallthru
      _
    %p193 = scmp.le.s32.totalorder 1, %s10
    %p194 = scmp.lt.s32.totalorder %s10, 3
    %p195 = pnand %p193, %p194
    %p196 = pneg %p195
    // Predicated region
    $region33: #{gcn_forward.3} parent=5 // pred_check
      _
    $region34: #{gcn_forward.3} parent=5 // pred_check_branch
      %198 = sbr.rel (%p195) target = $region36
    $region35: #{gcn_forward.3} parent=5 // pred_region
      %s199 = ssub.s32 %s10, 1
      %s200 = smul.u32 32, %s19
      %s201 = smul.u32 4, %s20
      %p202 = scmp.lt.s32.totalorder %s200, 63
      %s203 = scalar_select %p202, %s200, 63
      %p204 = scmp.lt.s32.totalorder %s201, 3
      %s205 = scalar_select %p204, %s201, 3
      %s206 = smul.addr %s203, 4
      %s207 = sadd.s32 %s205, %s206
      %s208 = smul.addr %s207, 4
      %s209 = scalar_lea.vmem %s0, %s208
      %p210 = pneg %p50
      %p211 = pneg %p47
      %s212 = smul.u32 64, %s20
      %p213 = scmp.lt.s32.totalorder %s212, 63
      %s214 = scalar_select %p213, %s212, 63
      %s215 = smul.addr %s214, 4
      %s216 = scalar_lea.vmem %s1, %s215
      %p217 = pneg %p76
      %p218 = pneg %p73
      %p219 = pneg %p97
      %p220 = pneg %p94
      %p221 = pneg %p118
      %p222 = pneg %p115
      %p223 = pneg %p144
      %p224 = pneg %p141
      %s225 = smul.u32 32, %s19
      %p226 = scmp.lt.s32.totalorder %s225, 63
      %s227 = scalar_select %p226, %s225, 63
      %s228 = smul.addr %s227, 4
      %s229 = scalar_lea.vmem %s4, %s228
      %s230 = smul.u32 32, %s19
      %s231 = smul.u32 4, %s20
      %p232 = scmp.lt.s32.totalorder %s230, 63
      %s233 = scalar_select %p232, %s230, 63
      %p234 = scmp.lt.s32.totalorder %s231, 3
      %s235 = scalar_select %p234, %s231, 3
      %s236 = smul.addr %s233, 4
      %s237 = sadd.s32 %s235, %s236
      %s238 = smul.addr %s237, 4
      %s239 = scalar_lea.vmem %s0, %s238
      %s240 = smul.u32 32, %s19
      %s241 = smul.u32 4, %s20
      %s242 = smul.u32 64, %s20
      %p243 = scmp.lt.s32.totalorder %s242, 63
      %s244 = scalar_select %p243, %s242, 63
      %s245 = smul.addr %s244, 4
      %s246 = scalar_lea.vmem %s1, %s245
      %s247 = smul.u32 64, %s20
      %s248 = smul.u32 32, %s19
      %p249 = scmp.lt.s32.totalorder %s248, 63
      %s250 = scalar_select %p249, %s248, 63
      %s251 = smul.addr %s250, 4
      %s252 = scalar_lea.vmem %s4, %s251
      %s253 = smul.u32 32, %s19
      %p255 = scmp.eq.s32.totalorder %s20, 0
      // Predicated region
      $region37: #{gcn_forward.3} parent=35 // pred_check
        %p256 = pneg %p255
      $region38: #{gcn_forward.3} parent=35 // pred_check_branch
        %258 = sbr.rel (%p256) target = $region40
      $region39: #{gcn_forward.3} parent=35 // pred_region
        %259 = vst [vmem:[#allocation2] sm:$0xff] 0.0
        %260 = vst [vmem:[#allocation2 + $0x8] sm:$0xff] 0.0
        %261 = vst [vmem:[#allocation2 + $0x10] sm:$0xff] 0.0
        %262 = vst [vmem:[#allocation2 + $0x18] sm:$0xff] 0.0
        %263 = vst [vmem:[#allocation2 + $0x20] sm:$0xff] 0.0
        %264 = vst [vmem:[#allocation2 + $0x28] sm:$0xff] 0.0
        %265 = vst [vmem:[#allocation2 + $0x30] sm:$0xff] 0.0
        %266 = vst [vmem:[#allocation2 + $0x38] sm:$0xff] 0.0
        %267 = vst [vmem:[#allocation2 + $0x40] sm:$0xff] 0.0
        %268 = vst [vmem:[#allocation2 + $0x48] sm:$0xff] 0.0
        %269 = vst [vmem:[#allocation2 + $0x50] sm:$0xff] 0.0
        %270 = vst [vmem:[#allocation2 + $0x58] sm:$0xff] 0.0
        %271 = vst [vmem:[#allocation2 + $0x60] sm:$0xff] 0.0
        %272 = vst [vmem:[#allocation2 + $0x68] sm:$0xff] 0.0
        %273 = vst [vmem:[#allocation2 + $0x70] sm:$0xff] 0.0
        %274 = vst [vmem:[#allocation2 + $0x78] sm:$0xff] 0.0
        %275 = vst [vmem:[#allocation2 + $0x80] sm:$0xff] 0.0
        %276 = vst [vmem:[#allocation2 + $0x88] sm:$0xff] 0.0
        %277 = vst [vmem:[#allocation2 + $0x90] sm:$0xff] 0.0
        %278 = vst [vmem:[#allocation2 + $0x98] sm:$0xff] 0.0
        %279 = vst [vmem:[#allocation2 + $0xa0] sm:$0xff] 0.0
        %280 = vst [vmem:[#allocation2 + $0xa8] sm:$0xff] 0.0
        %281 = vst [vmem:[#allocation2 + $0xb0] sm:$0xff] 0.0
        %282 = vst [vmem:[#allocation2 + $0xb8] sm:$0xff] 0.0
        %283 = vst [vmem:[#allocation2 + $0xc0] sm:$0xff] 0.0
        %284 = vst [vmem:[#allocation2 + $0xc8] sm:$0xff] 0.0
        %285 = vst [vmem:[#allocation2 + $0xd0] sm:$0xff] 0.0
        %286 = vst [vmem:[#allocation2 + $0xd8] sm:$0xff] 0.0
        %287 = vst [vmem:[#allocation2 + $0xe0] sm:$0xff] 0.0
        %288 = vst [vmem:[#allocation2 + $0xe8] sm:$0xff] 0.0
        %289 = vst [vmem:[#allocation2 + $0xf0] sm:$0xff] 0.0
        %290 = vst [vmem:[#allocation2 + $0xf8] sm:$0xff] 0.0
      $region40: #{gcn_forward.3} parent=35 // pred_fallthru
        _
      %v291 = vld [vmem:[#allocation2] sm:$0xff]
      %v292 = vld [vmem:[#allocation2 + $0x8] sm:$0xff]
      %v293 = vld [vmem:[#allocation2 + $0x10] sm:$0xff]
      %v294 = vld [vmem:[#allocation2 + $0x18] sm:$0xff]
      %v295 = vld [vmem:[#allocation2 + $0x20] sm:$0xff]
      %v296 = vld [vmem:[#allocation2 + $0x28] sm:$0xff]
      %v297 = vld [vmem:[#allocation2 + $0x30] sm:$0xff]
      %v298 = vld [vmem:[#allocation2 + $0x38] sm:$0xff]
      %v299 = vld [vmem:[#allocation2 + $0x40] sm:$0xff]
      %v300 = vld [vmem:[#allocation2 + $0x48] sm:$0xff]
      %v301 = vld [vmem:[#allocation2 + $0x50] sm:$0xff]
      %v302 = vld [vmem:[#allocation2 + $0x58] sm:$0xff]
      %v303 = vld [vmem:[#allocation2 + $0x60] sm:$0xff]
      %v304 = vld [vmem:[#allocation2 + $0x68] sm:$0xff]
      %v305 = vld [vmem:[#allocation2 + $0x70] sm:$0xff]
      %v306 = vld [vmem:[#allocation2 + $0x78] sm:$0xff]
      %v307 = vld [vmem:[#allocation2 + $0x80] sm:$0xff]
      %v308 = vld [vmem:[#allocation2 + $0x88] sm:$0xff]
      %v309 = vld [vmem:[#allocation2 + $0x90] sm:$0xff]
      %v310 = vld [vmem:[#allocation2 + $0x98] sm:$0xff]
      %v311 = vld [vmem:[#allocation2 + $0xa0] sm:$0xff]
      %v312 = vld [vmem:[#allocation2 + $0xa8] sm:$0xff]
      %v313 = vld [vmem:[#allocation2 + $0xb0] sm:$0xff]
      %v314 = vld [vmem:[#allocation2 + $0xb8] sm:$0xff]
      %v315 = vld [vmem:[#allocation2 + $0xc0] sm:$0xff]
      %v316 = vld [vmem:[#allocation2 + $0xc8] sm:$0xff]
      %v317 = vld [vmem:[#allocation2 + $0xd0] sm:$0xff]
      %v318 = vld [vmem:[#allocation2 + $0xd8] sm:$0xff]
      %v319 = vld [vmem:[#allocation2 + $0xe0] sm:$0xff]
      %v320 = vld [vmem:[#allocation2 + $0xe8] sm:$0xff]
      %v321 = vld [vmem:[#allocation2 + $0xf0] sm:$0xff]
      %v322 = vld [vmem:[#allocation2 + $0xf8] sm:$0xff]
      %v323 = vld [vmem:[%s239] sm:$0xff]
      %v324 = vld [vmem:[%s239 + $0x8] sm:$0xff]
      %v325 = vld [vmem:[%s239 + $0x10] sm:$0xff]
      %v326 = vld [vmem:[%s239 + $0x18] sm:$0xff]
      %v327 = vld [vmem:[%s239 + $0x20] sm:$0xff]
      %v328 = vld [vmem:[%s239 + $0x28] sm:$0xff]
      %v329 = vld [vmem:[%s239 + $0x30] sm:$0xff]
      %v330 = vld [vmem:[%s239 + $0x38] sm:$0xff]
      %v331 = vld [vmem:[%s239 + $0x40] sm:$0xff]
      %v332 = vld [vmem:[%s239 + $0x48] sm:$0xff]
      %v333 = vld [vmem:[%s239 + $0x50] sm:$0xff]
      %v334 = vld [vmem:[%s239 + $0x58] sm:$0xff]
      %v335 = vld [vmem:[%s239 + $0x60] sm:$0xff]
      %v336 = vld [vmem:[%s239 + $0x68] sm:$0xff]
      %v337 = vld [vmem:[%s239 + $0x70] sm:$0xff]
      %v338 = vld [vmem:[%s239 + $0x78] sm:$0xff]
      %v339 = vld [vmem:[%s239 + $0x80] sm:$0xff]
      %v340 = vld [vmem:[%s239 + $0x88] sm:$0xff]
      %v341 = vld [vmem:[%s239 + $0x90] sm:$0xff]
      %v342 = vld [vmem:[%s239 + $0x98] sm:$0xff]
      %v343 = vld [vmem:[%s239 + $0xa0] sm:$0xff]
      %v344 = vld [vmem:[%s239 + $0xa8] sm:$0xff]
      %v345 = vld [vmem:[%s239 + $0xb0] sm:$0xff]
      %v346 = vld [vmem:[%s239 + $0xb8] sm:$0xff]
      %v347 = vld [vmem:[%s239 + $0xc0] sm:$0xff]
      %v348 = vld [vmem:[%s239 + $0xc8] sm:$0xff]
      %v349 = vld [vmem:[%s239 + $0xd0] sm:$0xff]
      %v350 = vld [vmem:[%s239 + $0xd8] sm:$0xff]
      %v351 = vld [vmem:[%s239 + $0xe0] sm:$0xff]
      %v352 = vld [vmem:[%s239 + $0xe8] sm:$0xff]
      %v353 = vld [vmem:[%s239 + $0xf0] sm:$0xff]
      %v354 = vld [vmem:[%s239 + $0xf8] sm:$0xff]
      %v355 = vld [vmem:[%s239 + $0x100] sm:$0xff]
      %v356 = vld [vmem:[%s239 + $0x108] sm:$0xff]
      %v357 = vld [vmem:[%s239 + $0x110] sm:$0xff]
      %v358 = vld [vmem:[%s239 + $0x118] sm:$0xff]
      %v359 = vld [vmem:[%s239 + $0x120] sm:$0xff]
      %v360 = vld [vmem:[%s239 + $0x128] sm:$0xff]
      %v361 = vld [vmem:[%s239 + $0x130] sm:$0xff]
      %v362 = vld [vmem:[%s239 + $0x138] sm:$0xff]
      %v363 = vld [vmem:[%s239 + $0x140] sm:$0xff]
      %v364 = vld [vmem:[%s239 + $0x148] sm:$0xff]
      %v365 = vld [vmem:[%s239 + $0x150] sm:$0xff]
      %v366 = vld [vmem:[%s239 + $0x158] sm:$0xff]
      %v367 = vld [vmem:[%s239 + $0x160] sm:$0xff]
      %v368 = vld [vmem:[%s239 + $0x168] sm:$0xff]
      %v369 = vld [vmem:[%s239 + $0x170] sm:$0xff]
      %v370 = vld [vmem:[%s239 + $0x178] sm:$0xff]
      %v371 = vld [vmem:[%s239 + $0x180] sm:$0xff]
      %v372 = vld [vmem:[%s239 + $0x188] sm:$0xff]
      %v373 = vld [vmem:[%s239 + $0x190] sm:$0xff]
      %v374 = vld [vmem:[%s239 + $0x198] sm:$0xff]
      %v375 = vld [vmem:[%s239 + $0x1a0] sm:$0xff]
      %v376 = vld [vmem:[%s239 + $0x1a8] sm:$0xff]
      %v377 = vld [vmem:[%s239 + $0x1b0] sm:$0xff]
      %v378 = vld [vmem:[%s239 + $0x1b8] sm:$0xff]
      %v379 = vld [vmem:[%s239 + $0x1c0] sm:$0xff]
      %v380 = vld [vmem:[%s239 + $0x1c8] sm:$0xff]
      %v381 = vld [vmem:[%s239 + $0x1d0] sm:$0xff]
      %v382 = vld [vmem:[%s239 + $0x1d8] sm:$0xff]
      %v383 = vld [vmem:[%s239 + $0x1e0] sm:$0xff]
      %v384 = vld [vmem:[%s239 + $0x1e8] sm:$0xff]
      %v385 = vld [vmem:[%s239 + $0x1f0] sm:$0xff]
      %v386 = vld [vmem:[%s239 + $0x1f8] sm:$0xff]
      %v387 = vld [vmem:[%s246] sm:$0xf]
      %v388 = vld [vmem:[%s246 + $0x4] sm:$0xf]
      %v389 = vld [vmem:[%s246 + $0x8] sm:$0xf]
      %v390 = vld [vmem:[%s246 + $0xc] sm:$0xf]
      %v391 = vld [vmem:[%s246 + $0x10] sm:$0xf]
      %v392 = vld [vmem:[%s246 + $0x14] sm:$0xf]
      %v393 = vld [vmem:[%s246 + $0x18] sm:$0xf]
      %v394 = vld [vmem:[%s246 + $0x1c] sm:$0xf]
      %v395 = vld [vmem:[%s246 + $0x20] sm:$0xf]
      %v396 = vld [vmem:[%s246 + $0x24] sm:$0xf]
      %v397 = vld [vmem:[%s246 + $0x28] sm:$0xf]
      %v398 = vld [vmem:[%s246 + $0x2c] sm:$0xf]
      %v399 = vld [vmem:[%s246 + $0x30] sm:$0xf]
      %v400 = vld [vmem:[%s246 + $0x34] sm:$0xf]
      %v401 = vld [vmem:[%s246 + $0x38] sm:$0xf]
      %v402 = vld [vmem:[%s246 + $0x3c] sm:$0xf]
      %v403 = vld [vmem:[%s246 + $0x40] sm:$0xf]
      %v404 = vld [vmem:[%s246 + $0x44] sm:$0xf]
      %v405 = vld [vmem:[%s246 + $0x48] sm:$0xf]
      %v406 = vld [vmem:[%s246 + $0x4c] sm:$0xf]
      %v407 = vld [vmem:[%s246 + $0x50] sm:$0xf]
      %v408 = vld [vmem:[%s246 + $0x54] sm:$0xf]
      %v409 = vld [vmem:[%s246 + $0x58] sm:$0xf]
      %v410 = vld [vmem:[%s246 + $0x5c] sm:$0xf]
      %v411 = vld [vmem:[%s246 + $0x60] sm:$0xf]
      %v412 = vld [vmem:[%s246 + $0x64] sm:$0xf]
      %v413 = vld [vmem:[%s246 + $0x68] sm:$0xf]
      %v414 = vld [vmem:[%s246 + $0x6c] sm:$0xf]
      %v415 = vld [vmem:[%s246 + $0x70] sm:$0xf]
      %v416 = vld [vmem:[%s246 + $0x74] sm:$0xf]
      %v417 = vld [vmem:[%s246 + $0x78] sm:$0xf]
      %v418 = vld [vmem:[%s246 + $0x7c] sm:$0xf]
      %v419 = vld [vmem:[%s246 + $0x80] sm:$0xf]
      %v420 = vld [vmem:[%s246 + $0x84] sm:$0xf]
      %v421 = vld [vmem:[%s246 + $0x88] sm:$0xf]
      %v422 = vld [vmem:[%s246 + $0x8c] sm:$0xf]
      %v423 = vld [vmem:[%s246 + $0x90] sm:$0xf]
      %v424 = vld [vmem:[%s246 + $0x94] sm:$0xf]
      %v425 = vld [vmem:[%s246 + $0x98] sm:$0xf]
      %v426 = vld [vmem:[%s246 + $0x9c] sm:$0xf]
      %v427 = vld [vmem:[%s246 + $0xa0] sm:$0xf]
      %v428 = vld [vmem:[%s246 + $0xa4] sm:$0xf]
      %v429 = vld [vmem:[%s246 + $0xa8] sm:$0xf]
      %v430 = vld [vmem:[%s246 + $0xac] sm:$0xf]
      %v431 = vld [vmem:[%s246 + $0xb0] sm:$0xf]
      %v432 = vld [vmem:[%s246 + $0xb4] sm:$0xf]
      %v433 = vld [vmem:[%s246 + $0xb8] sm:$0xf]
      %v434 = vld [vmem:[%s246 + $0xbc] sm:$0xf]
      %v435 = vld [vmem:[%s246 + $0xc0] sm:$0xf]
      %v436 = vld [vmem:[%s246 + $0xc4] sm:$0xf]
      %v437 = vld [vmem:[%s246 + $0xc8] sm:$0xf]
      %v438 = vld [vmem:[%s246 + $0xcc] sm:$0xf]
      %v439 = vld [vmem:[%s246 + $0xd0] sm:$0xf]
      %v440 = vld [vmem:[%s246 + $0xd4] sm:$0xf]
      %v441 = vld [vmem:[%s246 + $0xd8] sm:$0xf]
      %v442 = vld [vmem:[%s246 + $0xdc] sm:$0xf]
      %v443 = vld [vmem:[%s246 + $0xe0] sm:$0xf]
      %v444 = vld [vmem:[%s246 + $0xe4] sm:$0xf]
      %v445 = vld [vmem:[%s246 + $0xe8] sm:$0xf]
      %v446 = vld [vmem:[%s246 + $0xec] sm:$0xf]
      %v447 = vld [vmem:[%s246 + $0xf0] sm:$0xf]
      %v448 = vld [vmem:[%s246 + $0xf4] sm:$0xf]
      %v449 = vld [vmem:[%s246 + $0xf8] sm:$0xf]
      %v450 = vld [vmem:[%s246 + $0xfc] sm:$0xf]
      %v515 = vunpack.c.l.b16 %v323
      %v516 = vunpack.c.h.b16 %v323
      %v517 = vunpack.c.l.b16 %v324
      %v518 = vunpack.c.h.b16 %v324
      %v519 = vunpack.c.l.b16 %v325
      %v520 = vunpack.c.h.b16 %v325
      %v521 = vunpack.c.l.b16 %v326
      %v522 = vunpack.c.h.b16 %v326
      %v523 = vunpack.c.l.b16 %v327
      %v524 = vunpack.c.h.b16 %v327
      %v525 = vunpack.c.l.b16 %v328
      %v526 = vunpack.c.h.b16 %v328
      %v527 = vunpack.c.l.b16 %v329
      %v528 = vunpack.c.h.b16 %v329
      %v529 = vunpack.c.l.b16 %v330
      %v530 = vunpack.c.h.b16 %v330
      %v531 = vunpack.c.l.b16 %v331
      %v532 = vunpack.c.h.b16 %v331
      %v533 = vunpack.c.l.b16 %v332
      %v534 = vunpack.c.h.b16 %v332
      %v535 = vunpack.c.l.b16 %v333
      %v536 = vunpack.c.h.b16 %v333
      %v537 = vunpack.c.l.b16 %v334
      %v538 = vunpack.c.h.b16 %v334
      %v539 = vunpack.c.l.b16 %v335
      %v540 = vunpack.c.h.b16 %v335
      %v541 = vunpack.c.l.b16 %v336
      %v542 = vunpack.c.h.b16 %v336
      %v543 = vunpack.c.l.b16 %v337
      %v544 = vunpack.c.h.b16 %v337
      %v545 = vunpack.c.l.b16 %v338
      %v546 = vunpack.c.h.b16 %v338
      %v547 = vunpack.c.l.b16 %v339
      %v548 = vunpack.c.h.b16 %v339
      %v549 = vunpack.c.l.b16 %v340
      %v550 = vunpack.c.h.b16 %v340
      %v551 = vunpack.c.l.b16 %v341
      %v552 = vunpack.c.h.b16 %v341
      %v553 = vunpack.c.l.b16 %v342
      %v554 = vunpack.c.h.b16 %v342
      %v555 = vunpack.c.l.b16 %v343
      %v556 = vunpack.c.h.b16 %v343
      %v557 = vunpack.c.l.b16 %v344
      %v558 = vunpack.c.h.b16 %v344
      %v559 = vunpack.c.l.b16 %v345
      %v560 = vunpack.c.h.b16 %v345
      %v561 = vunpack.c.l.b16 %v346
      %v562 = vunpack.c.h.b16 %v346
      %v563 = vunpack.c.l.b16 %v347
      %v564 = vunpack.c.h.b16 %v347
      %v565 = vunpack.c.l.b16 %v348
      %v566 = vunpack.c.h.b16 %v348
      %v567 = vunpack.c.l.b16 %v349
      %v568 = vunpack.c.h.b16 %v349
      %v569 = vunpack.c.l.b16 %v350
      %v570 = vunpack.c.h.b16 %v350
      %v571 = vunpack.c.l.b16 %v351
      %v572 = vunpack.c.h.b16 %v351
      %v573 = vunpack.c.l.b16 %v352
      %v574 = vunpack.c.h.b16 %v352
      %v575 = vunpack.c.l.b16 %v353
      %v576 = vunpack.c.h.b16 %v353
      %v577 = vunpack.c.l.b16 %v354
      %v578 = vunpack.c.h.b16 %v354
      %v579 = vunpack.c.l.b16 %v355
      %v580 = vunpack.c.h.b16 %v355
      %v581 = vunpack.c.l.b16 %v356
      %v582 = vunpack.c.h.b16 %v356
      %v583 = vunpack.c.l.b16 %v357
      %v584 = vunpack.c.h.b16 %v357
      %v585 = vunpack.c.l.b16 %v358
      %v586 = vunpack.c.h.b16 %v358
      %v587 = vunpack.c.l.b16 %v359
      %v588 = vunpack.c.h.b16 %v359
      %v589 = vunpack.c.l.b16 %v360
      %v590 = vunpack.c.h.b16 %v360
      %v591 = vunpack.c.l.b16 %v361
      %v592 = vunpack.c.h.b16 %v361
      %v593 = vunpack.c.l.b16 %v362
      %v594 = vunpack.c.h.b16 %v362
      %v595 = vunpack.c.l.b16 %v363
      %v596 = vunpack.c.h.b16 %v363
      %v597 = vunpack.c.l.b16 %v364
      %v598 = vunpack.c.h.b16 %v364
      %v599 = vunpack.c.l.b16 %v365
      %v600 = vunpack.c.h.b16 %v365
      %v601 = vunpack.c.l.b16 %v366
      %v602 = vunpack.c.h.b16 %v366
      %v603 = vunpack.c.l.b16 %v367
      %v604 = vunpack.c.h.b16 %v367
      %v605 = vunpack.c.l.b16 %v368
      %v606 = vunpack.c.h.b16 %v368
      %v607 = vunpack.c.l.b16 %v369
      %v608 = vunpack.c.h.b16 %v369
      %v609 = vunpack.c.l.b16 %v370
      %v610 = vunpack.c.h.b16 %v370
      %v611 = vunpack.c.l.b16 %v371
      %v612 = vunpack.c.h.b16 %v371
      %v613 = vunpack.c.l.b16 %v372
      %v614 = vunpack.c.h.b16 %v372
      %v615 = vunpack.c.l.b16 %v373
      %v616 = vunpack.c.h.b16 %v373
      %v617 = vunpack.c.l.b16 %v374
      %v618 = vunpack.c.h.b16 %v374
      %v619 = vunpack.c.l.b16 %v375
      %v620 = vunpack.c.h.b16 %v375
      %v621 = vunpack.c.l.b16 %v376
      %v622 = vunpack.c.h.b16 %v376
      %v623 = vunpack.c.l.b16 %v377
      %v624 = vunpack.c.h.b16 %v377
      %v625 = vunpack.c.l.b16 %v378
      %v626 = vunpack.c.h.b16 %v378
      %v627 = vunpack.c.l.b16 %v379
      %v628 = vunpack.c.h.b16 %v379
      %v629 = vunpack.c.l.b16 %v380
      %v630 = vunpack.c.h.b16 %v380
      %v631 = vunpack.c.l.b16 %v381
      %v632 = vunpack.c.h.b16 %v381
      %v633 = vunpack.c.l.b16 %v382
      %v634 = vunpack.c.h.b16 %v382
      %v635 = vunpack.c.l.b16 %v383
      %v636 = vunpack.c.h.b16 %v383
      %v637 = vunpack.c.l.b16 %v384
      %v638 = vunpack.c.h.b16 %v384
      %v639 = vunpack.c.l.b16 %v385
      %v640 = vunpack.c.h.b16 %v385
      %v641 = vunpack.c.l.b16 %v386
      %v642 = vunpack.c.h.b16 %v386
      %v643 = vpack.c.b16 %v519, %v515
      %v644 = vpack.c.b16 %v520, %v516
      %v645 = vpack.c.b16 %v521, %v517
      %v646 = vpack.c.b16 %v522, %v518
      %v647 = vpack.c.b16 %v527, %v523
      %v648 = vpack.c.b16 %v528, %v524
      %v649 = vpack.c.b16 %v529, %v525
      %v650 = vpack.c.b16 %v530, %v526
      %v651 = vpack.c.b16 %v535, %v531
      %v652 = vpack.c.b16 %v536, %v532
      %v653 = vpack.c.b16 %v537, %v533
      %v654 = vpack.c.b16 %v538, %v534
      %v655 = vpack.c.b16 %v543, %v539
      %v656 = vpack.c.b16 %v544, %v540
      %v657 = vpack.c.b16 %v545, %v541
      %v658 = vpack.c.b16 %v546, %v542
      %v659 = vpack.c.b16 %v551, %v547
      %v660 = vpack.c.b16 %v552, %v548
      %v661 = vpack.c.b16 %v553, %v549
      %v662 = vpack.c.b16 %v554, %v550
      %v663 = vpack.c.b16 %v559, %v555
      %v664 = vpack.c.b16 %v560, %v556
      %v665 = vpack.c.b16 %v561, %v557
      %v666 = vpack.c.b16 %v562, %v558
      %v667 = vpack.c.b16 %v567, %v563
      %v668 = vpack.c.b16 %v568, %v564
      %v669 = vpack.c.b16 %v569, %v565
      %v670 = vpack.c.b16 %v570, %v566
      %v671 = vpack.c.b16 %v575, %v571
      %v672 = vpack.c.b16 %v576, %v572
      %v673 = vpack.c.b16 %v577, %v573
      %v674 = vpack.c.b16 %v578, %v574
      %v675 = vpack.c.b16 %v583, %v579
      %v676 = vpack.c.b16 %v584, %v580
      %v677 = vpack.c.b16 %v585, %v581
      %v678 = vpack.c.b16 %v586, %v582
      %v679 = vpack.c.b16 %v591, %v587
      %v680 = vpack.c.b16 %v592, %v588
      %v681 = vpack.c.b16 %v593, %v589
      %v682 = vpack.c.b16 %v594, %v590
      %v683 = vpack.c.b16 %v599, %v595
      %v684 = vpack.c.b16 %v600, %v596
      %v685 = vpack.c.b16 %v601, %v597
      %v686 = vpack.c.b16 %v602, %v598
      %v687 = vpack.c.b16 %v607, %v603
      %v688 = vpack.c.b16 %v608, %v604
      %v689 = vpack.c.b16 %v609, %v605
      %v690 = vpack.c.b16 %v610, %v606
      %v691 = vpack.c.b16 %v615, %v611
      %v692 = vpack.c.b16 %v616, %v612
      %v693 = vpack.c.b16 %v617, %v613
      %v694 = vpack.c.b16 %v618, %v614
      %v695 = vpack.c.b16 %v623, %v619
      %v696 = vpack.c.b16 %v624, %v620
      %v697 = vpack.c.b16 %v625, %v621
      %v698 = vpack.c.b16 %v626, %v622
      %v699 = vpack.c.b16 %v631, %v627
      %v700 = vpack.c.b16 %v632, %v628
      %v701 = vpack.c.b16 %v633, %v629
      %v702 = vpack.c.b16 %v634, %v630
      %v703 = vpack.c.b16 %v639, %v635
      %v704 = vpack.c.b16 %v640, %v636
      %v705 = vpack.c.b16 %v641, %v637
      %v706 = vpack.c.b16 %v642, %v638
      %v835 = vunpack.c.l.b16 %v387
      %v836 = vunpack.c.l.b16 %v388
      %v837 = vunpack.c.l.b16 %v389
      %v838 = vunpack.c.l.b16 %v390
      %v839 = vunpack.c.l.b16 %v391
      %v840 = vunpack.c.l.b16 %v392
      %v841 = vunpack.c.l.b16 %v393
      %v842 = vunpack.c.l.b16 %v394
      %v843 = vunpack.c.l.b16 %v395
      %v844 = vunpack.c.l.b16 %v396
      %v845 = vunpack.c.l.b16 %v397
      %v846 = vunpack.c.l.b16 %v398
      %v847 = vunpack.c.l.b16 %v399
      %v848 = vunpack.c.l.b16 %v400
      %v849 = vunpack.c.l.b16 %v401
      %v850 = vunpack.c.l.b16 %v402
      %v851 = vunpack.c.l.b16 %v403
      %v852 = vunpack.c.l.b16 %v404
      %v853 = vunpack.c.l.b16 %v405
      %v854 = vunpack.c.l.b16 %v406
      %v855 = vunpack.c.l.b16 %v407
      %v856 = vunpack.c.l.b16 %v408
      %v857 = vunpack.c.l.b16 %v409
      %v858 = vunpack.c.l.b16 %v410
      %v859 = vunpack.c.l.b16 %v411
      %v860 = vunpack.c.l.b16 %v412
      %v861 = vunpack.c.l.b16 %v413
      %v862 = vunpack.c.l.b16 %v414
      %v863 = vunpack.c.l.b16 %v415
      %v864 = vunpack.c.l.b16 %v416
      %v865 = vunpack.c.l.b16 %v417
      %v866 = vunpack.c.l.b16 %v418
      %v867 = vunpack.c.l.b16 %v419
      %v868 = vunpack.c.l.b16 %v420
      %v869 = vunpack.c.l.b16 %v421
      %v870 = vunpack.c.l.b16 %v422
      %v871 = vunpack.c.l.b16 %v423
      %v872 = vunpack.c.l.b16 %v424
      %v873 = vunpack.c.l.b16 %v425
      %v874 = vunpack.c.l.b16 %v426
      %v875 = vunpack.c.l.b16 %v427
      %v876 = vunpack.c.l.b16 %v428
      %v877 = vunpack.c.l.b16 %v429
      %v878 = vunpack.c.l.b16 %v430
      %v879 = vunpack.c.l.b16 %v431
      %v880 = vunpack.c.l.b16 %v432
      %v881 = vunpack.c.l.b16 %v433
      %v882 = vunpack.c.l.b16 %v434
      %v883 = vunpack.c.l.b16 %v435
      %v884 = vunpack.c.l.b16 %v436
      %v885 = vunpack.c.l.b16 %v437
      %v886 = vunpack.c.l.b16 %v438
      %v887 = vunpack.c.l.b16 %v439
      %v888 = vunpack.c.l.b16 %v440
      %v889 = vunpack.c.l.b16 %v441
      %v890 = vunpack.c.l.b16 %v442
      %v891 = vunpack.c.l.b16 %v443
      %v892 = vunpack.c.l.b16 %v444
      %v893 = vunpack.c.l.b16 %v445
      %v894 = vunpack.c.l.b16 %v446
      %v895 = vunpack.c.l.b16 %v447
      %v896 = vunpack.c.l.b16 %v448
      %v897 = vunpack.c.l.b16 %v449
      %v898 = vunpack.c.l.b16 %v450
      %v899 = vpack.c.b16 %v836, %v835
      %v900 = vpack.c.b16 %v838, %v837
      %v901 = vpack.c.b16 %v840, %v839
      %v902 = vpack.c.b16 %v842, %v841
      %v903 = vpack.c.b16 %v844, %v843
      %v904 = vpack.c.b16 %v846, %v845
      %v905 = vpack.c.b16 %v848, %v847
      %v906 = vpack.c.b16 %v850, %v849
      %v907 = vpack.c.b16 %v852, %v851
      %v908 = vpack.c.b16 %v854, %v853
      %v909 = vpack.c.b16 %v856, %v855
      %v910 = vpack.c.b16 %v858, %v857
      %v911 = vpack.c.b16 %v860, %v859
      %v912 = vpack.c.b16 %v862, %v861
      %v913 = vpack.c.b16 %v864, %v863
      %v914 = vpack.c.b16 %v866, %v865
      %v915 = vpack.c.b16 %v868, %v867
      %v916 = vpack.c.b16 %v870, %v869
      %v917 = vpack.c.b16 %v872, %v871
      %v918 = vpack.c.b16 %v874, %v873
      %v919 = vpack.c.b16 %v876, %v875
      %v920 = vpack.c.b16 %v878, %v877
      %v921 = vpack.c.b16 %v880, %v879
      %v922 = vpack.c.b16 %v882, %v881
      %v923 = vpack.c.b16 %v884, %v883
      %v924 = vpack.c.b16 %v886, %v885
      %v925 = vpack.c.b16 %v888, %v887
      %v926 = vpack.c.b16 %v890, %v889
      %v927 = vpack.c.b16 %v892, %v891
      %v928 = vpack.c.b16 %v894, %v893
      %v929 = vpack.c.b16 %v896, %v895
      %v930 = vpack.c.b16 %v898, %v897
      %963 = vmatprep.subr.bf16.mxu0 0
      %964 = vmatpush1.bf16.msra.mxu0 %v899
      %965 = vmatprep.subr.bf16.mxu0 0
      %966 = vmatpush1.bf16.msra.mxu0 %v900
      %967 = vmatprep.subr.bf16.mxu0 0
      %968 = vmatpush1.bf16.msra.mxu0 %v901
      %969 = vmatprep.subr.bf16.mxu0 0
      %970 = vmatpush1.bf16.msra.mxu0 %v902
      %971 = vmatprep.subr.bf16.mxu0 0
      %972 = vmatpush1.bf16.msra.mxu0 %v903
      %973 = vmatprep.subr.bf16.mxu0 0
      %974 = vmatpush1.bf16.msra.mxu0 %v904
      %975 = vmatprep.subr.bf16.mxu0 0
      %976 = vmatpush1.bf16.msra.mxu0 %v905
      %977 = vmatprep.subr.bf16.mxu0 0
      %978 = vmatpush1.bf16.msra.mxu0 %v906
      %979 = vmatprep.subr.bf16.mxu0 0
      %980 = vmatpush1.bf16.msra.mxu0 %v907
      %981 = vmatprep.subr.bf16.mxu0 0
      %982 = vmatpush1.bf16.msra.mxu0 %v908
      %983 = vmatprep.subr.bf16.mxu0 0
      %984 = vmatpush1.bf16.msra.mxu0 %v909
      %985 = vmatprep.subr.bf16.mxu0 0
      %986 = vmatpush1.bf16.msra.mxu0 %v910
      %987 = vmatprep.subr.bf16.mxu0 0
      %988 = vmatpush1.bf16.msra.mxu0 %v911
      %989 = vmatprep.subr.bf16.mxu0 0
      %990 = vmatpush1.bf16.msra.mxu0 %v912
      %991 = vmatprep.subr.bf16.mxu0 0
      %992 = vmatpush1.bf16.msra.mxu0 %v913
      %993 = vmatprep.subr.bf16.mxu0 0
      %994 = vmatpush1.bf16.msra.mxu0 %v914
      %995 = vmatprep.mubr.bf16.mxu0 %v644
      %996 = vmatmul.mubr.bf16.gmra.mrb[0].mxu0 %v643
      %v997 = vpop.f32.mrb[0].mxu0
      %v998 = vadd.f32 0.0, %v997
      %v999 = vpop.f32.mrb[0].mxu0
      %v1000 = vpop.f32.mrb[0].mxu0
      %v1001 = vadd.f32 0.0, %v1000
      %v1002 = vpop.f32.mrb[0].mxu0
      %1003 = vmatprep.mubr.bf16.mxu0 %v648
      %1004 = vmatmul.mubr.bf16.gmra.mrb[0].mxu0 %v647
      %v1005 = vpop.f32.mrb[0].mxu0
      %v1006 = vadd.f32 0.0, %v1005
      %v1007 = vpop.f32.mrb[0].mxu0
      %v1008 = vpop.f32.mrb[0].mxu0
      %v1009 = vadd.f32 0.0, %v1008
      %v1010 = vpop.f32.mrb[0].mxu0
      %1011 = vmatprep.mubr.bf16.mxu0 %v652
      %1012 = vmatmul.mubr.bf16.gmra.mrb[0].mxu0 %v651
      %v1013 = vpop.f32.mrb[0].mxu0
      %v1014 = vadd.f32 0.0, %v1013
      %v1015 = vpop.f32.mrb[0].mxu0
      %v1016 = vpop.f32.mrb[0].mxu0
      %v1017 = vadd.f32 0.0, %v1016
      %v1018 = vpop.f32.mrb[0].mxu0
      %1019 = vmatprep.mubr.bf16.mxu0 %v656
      %1020 = vmatmul.mubr.bf16.gmra.mrb[0].mxu0 %v655
      %v1021 = vpop.f32.mrb[0].mxu0
      %v1022 = vadd.f32 0.0, %v1021
      %v1023 = vpop.f32.mrb[0].mxu0
      %v1024 = vpop.f32.mrb[0].mxu0
      %v1025 = vadd.f32 0.0, %v1024
      %v1026 = vpop.f32.mrb[0].mxu0
      %1027 = vmatprep.mubr.bf16.mxu0 %v660
      %1028 = vmatmul.mubr.bf16.gmra.mrb[0].mxu0 %v659
      %v1029 = vpop.f32.mrb[0].mxu0
      %v1030 = vadd.f32 0.0, %v1029
      %v1031 = vpop.f32.mrb[0].mxu0
      %v1032 = vpop.f32.mrb[0].mxu0
      %v1033 = vadd.f32 0.0, %v1032
      %v1034 = vpop.f32.mrb[0].mxu0
      %1035 = vmatprep.mubr.bf16.mxu0 %v664
      %1036 = vmatmul.mubr.bf16.gmra.mrb[0].mxu0 %v663
      %v1037 = vpop.f32.mrb[0].mxu0
      %v1038 = vadd.f32 0.0, %v1037
      %v1039 = vpop.f32.mrb[0].mxu0
      %v1040 = vpop.f32.mrb[0].mxu0
      %v1041 = vadd.f32 0.0, %v1040
      %v1042 = vpop.f32.mrb[0].mxu0
      %1043 = vmatprep.mubr.bf16.mxu0 %v668
      %1044 = vmatmul.mubr.bf16.gmra.mrb[0].mxu0 %v667
      %v1045 = vpop.f32.mrb[0].mxu0
      %v1046 = vadd.f32 0.0, %v1045
      %v1047 = vpop.f32.mrb[0].mxu0
      %v1048 = vpop.f32.mrb[0].mxu0
      %v1049 = vadd.f32 0.0, %v1048
      %v1050 = vpop.f32.mrb[0].mxu0
      %1051 = vmatprep.mubr.bf16.mxu0 %v672
      %1052 = vmatmul.mubr.bf16.gmra.mrb[0].mxu0 %v671
      %v1053 = vpop.f32.mrb[0].mxu0
      %v1054 = vadd.f32 0.0, %v1053
      %v1055 = vpop.f32.mrb[0].mxu0
      %v1056 = vpop.f32.mrb[0].mxu0
      %v1057 = vadd.f32 0.0, %v1056
      %v1058 = vpop.f32.mrb[0].mxu0
      %1059 = vmatprep.mubr.bf16.mxu0 %v676
      %1060 = vmatmul.mubr.bf16.gmra.mrb[0].mxu0 %v675
      %v1061 = vpop.f32.mrb[0].mxu0
      %v1062 = vadd.f32 0.0, %v1061
      %v1063 = vpop.f32.mrb[0].mxu0
      %v1064 = vpop.f32.mrb[0].mxu0
      %v1065 = vadd.f32 0.0, %v1064
      %v1066 = vpop.f32.mrb[0].mxu0
      %1067 = vmatprep.mubr.bf16.mxu0 %v680
      %1068 = vmatmul.mubr.bf16.gmra.mrb[0].mxu0 %v679
      %v1069 = vpop.f32.mrb[0].mxu0
      %v1070 = vadd.f32 0.0, %v1069
      %v1071 = vpop.f32.mrb[0].mxu0
      %v1072 = vpop.f32.mrb[0].mxu0
      %v1073 = vadd.f32 0.0, %v1072
      %v1074 = vpop.f32.mrb[0].mxu0
      %1075 = vmatprep.mubr.bf16.mxu0 %v684
      %1076 = vmatmul.mubr.bf16.gmra.mrb[0].mxu0 %v683
      %v1077 = vpop.f32.mrb[0].mxu0
      %v1078 = vadd.f32 0.0, %v1077
      %v1079 = vpop.f32.mrb[0].mxu0
      %v1080 = vpop.f32.mrb[0].mxu0
      %v1081 = vadd.f32 0.0, %v1080
      %v1082 = vpop.f32.mrb[0].mxu0
      %1083 = vmatprep.mubr.bf16.mxu0 %v688
      %1084 = vmatmul.mubr.bf16.gmra.mrb[0].mxu0 %v687
      %v1085 = vpop.f32.mrb[0].mxu0
      %v1086 = vadd.f32 0.0, %v1085
      %v1087 = vpop.f32.mrb[0].mxu0
      %v1088 = vpop.f32.mrb[0].mxu0
      %v1089 = vadd.f32 0.0, %v1088
      %v1090 = vpop.f32.mrb[0].mxu0
      %1091 = vmatprep.mubr.bf16.mxu0 %v692
      %1092 = vmatmul.mubr.bf16.gmra.mrb[0].mxu0 %v691
      %v1093 = vpop.f32.mrb[0].mxu0
      %v1094 = vadd.f32 0.0, %v1093
      %v1095 = vpop.f32.mrb[0].mxu0
      %v1096 = vpop.f32.mrb[0].mxu0
      %v1097 = vadd.f32 0.0, %v1096
      %v1098 = vpop.f32.mrb[0].mxu0
      %1099 = vmatprep.mubr.bf16.mxu0 %v696
      %1100 = vmatmul.mubr.bf16.gmra.mrb[0].mxu0 %v695
      %v1101 = vpop.f32.mrb[0].mxu0
      %v1102 = vadd.f32 0.0, %v1101
      %v1103 = vpop.f32.mrb[0].mxu0
      %v1104 = vpop.f32.mrb[0].mxu0
      %v1105 = vadd.f32 0.0, %v1104
      %v1106 = vpop.f32.mrb[0].mxu0
      %1107 = vmatprep.mubr.bf16.mxu0 %v700
      %1108 = vmatmul.mubr.bf16.gmra.mrb[0].mxu0 %v699
      %v1109 = vpop.f32.mrb[0].mxu0
      %v1110 = vadd.f32 0.0, %v1109
      %v1111 = vpop.f32.mrb[0].mxu0
      %v1112 = vpop.f32.mrb[0].mxu0
      %v1113 = vadd.f32 0.0, %v1112
      %v1114 = vpop.f32.mrb[0].mxu0
      %1115 = vmatprep.mubr.bf16.mxu0 %v704
      %1116 = vmatmul.mubr.bf16.gmra.mrb[0].mxu0 %v703
      %v1117 = vpop.f32.mrb[0].mxu0
      %v1118 = vadd.f32 0.0, %v1117
      %v1119 = vpop.f32.mrb[0].mxu0
      %v1120 = vpop.f32.mrb[0].mxu0
      %v1121 = vadd.f32 0.0, %v1120
      %v1122 = vpop.f32.mrb[0].mxu0
      %1123 = vdwg.mxu0
      %1124 = vmatprep.subr.bf16.mxu0 0
      %1125 = vmatpush1.bf16.msra.mxu0 %v915
      %1126 = vmatprep.subr.bf16.mxu0 0
      %1127 = vmatpush1.bf16.msra.mxu0 %v916
      %1128 = vmatprep.subr.bf16.mxu0 0
      %1129 = vmatpush1.bf16.msra.mxu0 %v917
      %1130 = vmatprep.subr.bf16.mxu0 0
      %1131 = vmatpush1.bf16.msra.mxu0 %v918
      %1132 = vmatprep.subr.bf16.mxu0 0
      %1133 = vmatpush1.bf16.msra.mxu0 %v919
      %1134 = vmatprep.subr.bf16.mxu0 0
      %1135 = vmatpush1.bf16.msra.mxu0 %v920
      %1136 = vmatprep.subr.bf16.mxu0 0
      %1137 = vmatpush1.bf16.msra.mxu0 %v921
      %1138 = vmatprep.subr.bf16.mxu0 0
      %1139 = vmatpush1.bf16.msra.mxu0 %v922
      %1140 = vmatprep.subr.bf16.mxu0 0
      %1141 = vmatpush1.bf16.msra.mxu0 %v923
      %1142 = vmatprep.subr.bf16.mxu0 0
      %1143 = vmatpush1.bf16.msra.mxu0 %v924
      %1144 = vmatprep.subr.bf16.mxu0 0
      %1145 = vmatpush1.bf16.msra.mxu0 %v925
      %1146 = vmatprep.subr.bf16.mxu0 0
      %1147 = vmatpush1.bf16.msra.mxu0 %v926
      %1148 = vmatprep.subr.bf16.mxu0 0
      %1149 = vmatpush1.bf16.msra.mxu0 %v927
      %1150 = vmatprep.subr.bf16.mxu0 0
      %1151 = vmatpush1.bf16.msra.mxu0 %v928
      %1152 = vmatprep.subr.bf16.mxu0 0
      %1153 = vmatpush1.bf16.msra.mxu0 %v929
      %1154 = vmatprep.subr.bf16.mxu0 0
      %1155 = vmatpush1.bf16.msra.mxu0 %v930
      %1156 = vmatprep.mubr.bf16.mxu0 %v646
      %1157 = vmatmul.mubr.bf16.gmra.mrb[0].mxu0 %v645
      %v1158 = vpop.f32.mrb[0].mxu0
      %v1159 = vadd.f32 %v998, %v1158
      %v1160 = vpop.f32.mrb[0].mxu0
      %v1161 = vpop.f32.mrb[0].mxu0
      %v1162 = vadd.f32 %v1001, %v1161
      %v1163 = vpop.f32.mrb[0].mxu0
      %1164 = vmatprep.mubr.bf16.mxu0 %v650
      %1165 = vmatmul.mubr.bf16.gmra.mrb[0].mxu0 %v649
      %v1166 = vpop.f32.mrb[0].mxu0
      %v1167 = vadd.f32 %v1006, %v1166
      %v1168 = vpop.f32.mrb[0].mxu0
      %v1169 = vpop.f32.mrb[0].mxu0
      %v1170 = vadd.f32 %v1009, %v1169
      %v1171 = vpop.f32.mrb[0].mxu0
      %1172 = vmatprep.mubr.bf16.mxu0 %v654
      %1173 = vmatmul.mubr.bf16.gmra.mrb[0].mxu0 %v653
      %v1174 = vpop.f32.mrb[0].mxu0
      %v1175 = vadd.f32 %v1014, %v1174
      %v1176 = vpop.f32.mrb[0].mxu0
      %v1177 = vpop.f32.mrb[0].mxu0
      %v1178 = vadd.f32 %v1017, %v1177
      %v1179 = vpop.f32.mrb[0].mxu0
      %1180 = vmatprep.mubr.bf16.mxu0 %v658
      %1181 = vmatmul.mubr.bf16.gmra.mrb[0].mxu0 %v657
      %v1182 = vpop.f32.mrb[0].mxu0
      %v1183 = vadd.f32 %v1022, %v1182
      %v1184 = vpop.f32.mrb[0].mxu0
      %v1185 = vpop.f32.mrb[0].mxu0
      %v1186 = vadd.f32 %v1025, %v1185
      %v1187 = vpop.f32.mrb[0].mxu0
      %1188 = vmatprep.mubr.bf16.mxu0 %v662
      %1189 = vmatmul.mubr.bf16.gmra.mrb[0].mxu0 %v661
      %v1190 = vpop.f32.mrb[0].mxu0
      %v1191 = vadd.f32 %v1030, %v1190
      %v1192 = vpop.f32.mrb[0].mxu0
      %v1193 = vpop.f32.mrb[0].mxu0
      %v1194 = vadd.f32 %v1033, %v1193
      %v1195 = vpop.f32.mrb[0].mxu0
      %1196 = vmatprep.mubr.bf16.mxu0 %v666
      %1197 = vmatmul.mubr.bf16.gmra.mrb[0].mxu0 %v665
      %v1198 = vpop.f32.mrb[0].mxu0
      %v1199 = vadd.f32 %v1038, %v1198
      %v1200 = vpop.f32.mrb[0].mxu0
      %v1201 = vpop.f32.mrb[0].mxu0
      %v1202 = vadd.f32 %v1041, %v1201
      %v1203 = vpop.f32.mrb[0].mxu0
      %1204 = vmatprep.mubr.bf16.mxu0 %v670
      %1205 = vmatmul.mubr.bf16.gmra.mrb[0].mxu0 %v669
      %v1206 = vpop.f32.mrb[0].mxu0
      %v1207 = vadd.f32 %v1046, %v1206
      %v1208 = vpop.f32.mrb[0].mxu0
      %v1209 = vpop.f32.mrb[0].mxu0
      %v1210 = vadd.f32 %v1049, %v1209
      %v1211 = vpop.f32.mrb[0].mxu0
      %1212 = vmatprep.mubr.bf16.mxu0 %v674
      %1213 = vmatmul.mubr.bf16.gmra.mrb[0].mxu0 %v673
      %v1214 = vpop.f32.mrb[0].mxu0
      %v1215 = vadd.f32 %v1054, %v1214
      %v1216 = vpop.f32.mrb[0].mxu0
      %v1217 = vpop.f32.mrb[0].mxu0
      %v1218 = vadd.f32 %v1057, %v1217
      %v1219 = vpop.f32.mrb[0].mxu0
      %1220 = vmatprep.mubr.bf16.mxu0 %v678
      %1221 = vmatmul.mubr.bf16.gmra.mrb[0].mxu0 %v677
      %v1222 = vpop.f32.mrb[0].mxu0
      %v1223 = vadd.f32 %v1062, %v1222
      %v1224 = vpop.f32.mrb[0].mxu0
      %v1225 = vpop.f32.mrb[0].mxu0
      %v1226 = vadd.f32 %v1065, %v1225
      %v1227 = vpop.f32.mrb[0].mxu0
      %1228 = vmatprep.mubr.bf16.mxu0 %v682
      %1229 = vmatmul.mubr.bf16.gmra.mrb[0].mxu0 %v681
      %v1230 = vpop.f32.mrb[0].mxu0
      %v1231 = vadd.f32 %v1070, %v1230
      %v1232 = vpop.f32.mrb[0].mxu0
      %v1233 = vpop.f32.mrb[0].mxu0
      %v1234 = vadd.f32 %v1073, %v1233
      %v1235 = vpop.f32.mrb[0].mxu0
      %1236 = vmatprep.mubr.bf16.mxu0 %v686
      %1237 = vmatmul.mubr.bf16.gmra.mrb[0].mxu0 %v685
      %v1238 = vpop.f32.mrb[0].mxu0
      %v1239 = vadd.f32 %v1078, %v1238
      %v1240 = vpop.f32.mrb[0].mxu0
      %v1241 = vpop.f32.mrb[0].mxu0
      %v1242 = vadd.f32 %v1081, %v1241
      %v1243 = vpop.f32.mrb[0].mxu0
      %1244 = vmatprep.mubr.bf16.mxu0 %v690
      %1245 = vmatmul.mubr.bf16.gmra.mrb[0].mxu0 %v689
      %v1246 = vpop.f32.mrb[0].mxu0
      %v1247 = vadd.f32 %v1086, %v1246
      %v1248 = vpop.f32.mrb[0].mxu0
      %v1249 = vpop.f32.mrb[0].mxu0
      %v1250 = vadd.f32 %v1089, %v1249
      %v1251 = vpop.f32.mrb[0].mxu0
      %1252 = vmatprep.mubr.bf16.mxu0 %v694
      %1253 = vmatmul.mubr.bf16.gmra.mrb[0].mxu0 %v693
      %v1254 = vpop.f32.mrb[0].mxu0
      %v1255 = vadd.f32 %v1094, %v1254
      %v1256 = vpop.f32.mrb[0].mxu0
      %v1257 = vpop.f32.mrb[0].mxu0
      %v1258 = vadd.f32 %v1097, %v1257
      %v1259 = vpop.f32.mrb[0].mxu0
      %1260 = vmatprep.mubr.bf16.mxu0 %v698
      %1261 = vmatmul.mubr.bf16.gmra.mrb[0].mxu0 %v697
      %v1262 = vpop.f32.mrb[0].mxu0
      %v1263 = vadd.f32 %v1102, %v1262
      %v1264 = vpop.f32.mrb[0].mxu0
      %v1265 = vpop.f32.mrb[0].mxu0
      %v1266 = vadd.f32 %v1105, %v1265
      %v1267 = vpop.f32.mrb[0].mxu0
      %1268 = vmatprep.mubr.bf16.mxu0 %v702
      %1269 = vmatmul.mubr.bf16.gmra.mrb[0].mxu0 %v701
      %v1270 = vpop.f32.mrb[0].mxu0
      %v1271 = vadd.f32 %v1110, %v1270
      %v1272 = vpop.f32.mrb[0].mxu0
      %v1273 = vpop.f32.mrb[0].mxu0
      %v1274 = vadd.f32 %v1113, %v1273
      %v1275 = vpop.f32.mrb[0].mxu0
      %1276 = vmatprep.mubr.bf16.mxu0 %v706
      %1277 = vmatmul.mubr.bf16.gmra.mrb[0].mxu0 %v705
      %v1278 = vpop.f32.mrb[0].mxu0
      %v1279 = vadd.f32 %v1118, %v1278
      %v1280 = vpop.f32.mrb[0].mxu0
      %v1281 = vpop.f32.mrb[0].mxu0
      %v1282 = vadd.f32 %v1121, %v1281
      %v1283 = vpop.f32.mrb[0].mxu0
      %1284 = vdwg.mxu0
      %v1285 = vadd.f32 %v291, %v1159
      %v1286 = vadd.f32 %v292, %v1162
      %v1287 = vadd.f32 %v293, %v1167
      %v1288 = vadd.f32 %v294, %v1170
      %v1289 = vadd.f32 %v295, %v1175
      %v1290 = vadd.f32 %v296, %v1178
      %v1291 = vadd.f32 %v297, %v1183
      %v1292 = vadd.f32 %v298, %v1186
      %v1293 = vadd.f32 %v299, %v1191
      %v1294 = vadd.f32 %v300, %v1194
      %v1295 = vadd.f32 %v301, %v1199
      %v1296 = vadd.f32 %v302, %v1202
      %v1297 = vadd.f32 %v303, %v1207
      %v1298 = vadd.f32 %v304, %v1210
      %v1299 = vadd.f32 %v305, %v1215
      %v1300 = vadd.f32 %v306, %v1218
      %v1301 = vadd.f32 %v307, %v1223
      %v1302 = vadd.f32 %v308, %v1226
      %v1303 = vadd.f32 %v309, %v1231
      %v1304 = vadd.f32 %v310, %v1234
      %v1305 = vadd.f32 %v311, %v1239
      %v1306 = vadd.f32 %v312, %v1242
      %v1307 = vadd.f32 %v313, %v1247
      %v1308 = vadd.f32 %v314, %v1250
      %v1309 = vadd.f32 %v315, %v1255
      %v1310 = vadd.f32 %v316, %v1258
      %v1311 = vadd.f32 %v317, %v1263
      %v1312 = vadd.f32 %v318, %v1266
      %v1313 = vadd.f32 %v319, %v1271
      %v1314 = vadd.f32 %v320, %v1274
      %v1315 = vadd.f32 %v321, %v1279
      %v1316 = vadd.f32 %v322, %v1282
      %1317 = vst [vmem:[#allocation2] sm:$0xff] %v1285
      %1318 = vst [vmem:[#allocation2 + $0x8] sm:$0xff] %v1286
      %1319 = vst [vmem:[#allocation2 + $0x10] sm:$0xff] %v1287
      %1320 = vst [vmem:[#allocation2 + $0x18] sm:$0xff] %v1288
      %1321 = vst [vmem:[#allocation2 + $0x20] sm:$0xff] %v1289
      %1322 = vst [vmem:[#allocation2 + $0x28] sm:$0xff] %v1290
      %1323 = vst [vmem:[#allocation2 + $0x30] sm:$0xff] %v1291
      %1324 = vst [vmem:[#allocation2 + $0x38] sm:$0xff] %v1292
      %1325 = vst [vmem:[#allocation2 + $0x40] sm:$0xff] %v1293
      %1326 = vst [vmem:[#allocation2 + $0x48] sm:$0xff] %v1294
      %1327 = vst [vmem:[#allocation2 + $0x50] sm:$0xff] %v1295
      %1328 = vst [vmem:[#allocation2 + $0x58] sm:$0xff] %v1296
      %1329 = vst [vmem:[#allocation2 + $0x60] sm:$0xff] %v1297
      %1330 = vst [vmem:[#allocation2 + $0x68] sm:$0xff] %v1298
      %1331 = vst [vmem:[#allocation2 + $0x70] sm:$0xff] %v1299
      %1332 = vst [vmem:[#allocation2 + $0x78] sm:$0xff] %v1300
      %1333 = vst [vmem:[#allocation2 + $0x80] sm:$0xff] %v1301
      %1334 = vst [vmem:[#allocation2 + $0x88] sm:$0xff] %v1302
      %1335 = vst [vmem:[#allocation2 + $0x90] sm:$0xff] %v1303
      %1336 = vst [vmem:[#allocation2 + $0x98] sm:$0xff] %v1304
      %1337 = vst [vmem:[#allocation2 + $0xa0] sm:$0xff] %v1305
      %1338 = vst [vmem:[#allocation2 + $0xa8] sm:$0xff] %v1306
      %1339 = vst [vmem:[#allocation2 + $0xb0] sm:$0xff] %v1307
      %1340 = vst [vmem:[#allocation2 + $0xb8] sm:$0xff] %v1308
      %1341 = vst [vmem:[#allocation2 + $0xc0] sm:$0xff] %v1309
      %1342 = vst [vmem:[#allocation2 + $0xc8] sm:$0xff] %v1310
      %1343 = vst [vmem:[#allocation2 + $0xd0] sm:$0xff] %v1311
      %1344 = vst [vmem:[#allocation2 + $0xd8] sm:$0xff] %v1312
      %1345 = vst [vmem:[#allocation2 + $0xe0] sm:$0xff] %v1313
      %1346 = vst [vmem:[#allocation2 + $0xe8] sm:$0xff] %v1314
      %1347 = vst [vmem:[#allocation2 + $0xf0] sm:$0xff] %v1315
      %1348 = vst [vmem:[#allocation2 + $0xf8] sm:$0xff] %v1316
      // Predicated region
      $region41: #{gcn_forward.3} parent=35 // pred_check
        %p1349 = pneg %p255
      $region42: #{gcn_forward.3} parent=35 // pred_check_branch
        %1351 = sbr.rel (%p1349) target = $region44
      $region43: #{gcn_forward.3} parent=35 // pred_region
        %v1352 = vld [vmem:[#allocation2] sm:$0xff]
        %v1353 = vld [vmem:[#allocation2 + $0x8] sm:$0xff]
        %v1354 = vld [vmem:[#allocation2 + $0x10] sm:$0xff]
        %v1355 = vld [vmem:[#allocation2 + $0x18] sm:$0xff]
        %v1356 = vld [vmem:[#allocation2 + $0x20] sm:$0xff]
        %v1357 = vld [vmem:[#allocation2 + $0x28] sm:$0xff]
        %v1358 = vld [vmem:[#allocation2 + $0x30] sm:$0xff]
        %v1359 = vld [vmem:[#allocation2 + $0x38] sm:$0xff]
        %v1360 = vld [vmem:[#allocation2 + $0x40] sm:$0xff]
        %v1361 = vld [vmem:[#allocation2 + $0x48] sm:$0xff]
        %v1362 = vld [vmem:[#allocation2 + $0x50] sm:$0xff]
        %v1363 = vld [vmem:[#allocation2 + $0x58] sm:$0xff]
        %v1364 = vld [vmem:[#allocation2 + $0x60] sm:$0xff]
        %v1365 = vld [vmem:[#allocation2 + $0x68] sm:$0xff]
        %v1366 = vld [vmem:[#allocation2 + $0x70] sm:$0xff]
        %v1367 = vld [vmem:[#allocation2 + $0x78] sm:$0xff]
        %v1368 = vld [vmem:[#allocation2 + $0x80] sm:$0xff]
        %v1369 = vld [vmem:[#allocation2 + $0x88] sm:$0xff]
        %v1370 = vld [vmem:[#allocation2 + $0x90] sm:$0xff]
        %v1371 = vld [vmem:[#allocation2 + $0x98] sm:$0xff]
        %v1372 = vld [vmem:[#allocation2 + $0xa0] sm:$0xff]
        %v1373 = vld [vmem:[#allocation2 + $0xa8] sm:$0xff]
        %v1374 = vld [vmem:[#allocation2 + $0xb0] sm:$0xff]
        %v1375 = vld [vmem:[#allocation2 + $0xb8] sm:$0xff]
        %v1376 = vld [vmem:[#allocation2 + $0xc0] sm:$0xff]
        %v1377 = vld [vmem:[#allocation2 + $0xc8] sm:$0xff]
        %v1378 = vld [vmem:[#allocation2 + $0xd0] sm:$0xff]
        %v1379 = vld [vmem:[#allocation2 + $0xd8] sm:$0xff]
        %v1380 = vld [vmem:[#allocation2 + $0xe0] sm:$0xff]
        %v1381 = vld [vmem:[#allocation2 + $0xe8] sm:$0xff]
        %v1382 = vld [vmem:[#allocation2 + $0xf0] sm:$0xff]
        %v1383 = vld [vmem:[#allocation2 + $0xf8] sm:$0xff]
        %v1384 = vpack.c.bf16 %v1353, %v1352
        %v1385 = vpack.c.bf16 %v1355, %v1354
        %v1386 = vpack.c.bf16 %v1357, %v1356
        %v1387 = vpack.c.bf16 %v1359, %v1358
        %v1388 = vpack.c.bf16 %v1361, %v1360
        %v1389 = vpack.c.bf16 %v1363, %v1362
        %v1390 = vpack.c.bf16 %v1365, %v1364
        %v1391 = vpack.c.bf16 %v1367, %v1366
        %v1392 = vpack.c.bf16 %v1369, %v1368
        %v1393 = vpack.c.bf16 %v1371, %v1370
        %v1394 = vpack.c.bf16 %v1373, %v1372
        %v1395 = vpack.c.bf16 %v1375, %v1374
        %v1396 = vpack.c.bf16 %v1377, %v1376
        %v1397 = vpack.c.bf16 %v1379, %v1378
        %v1398 = vpack.c.bf16 %v1381, %v1380
        %v1399 = vpack.c.bf16 %v1383, %v1382
        %v1400 = vld [vmem:[%s2] sm:$0xf]
        %v1401 = vld [vmem:[%s2 + $0x4] sm:$0xf]
        %v1402 = vld [vmem:[%s2 + $0x8] sm:$0xf]
        %v1403 = vld [vmem:[%s2 + $0xc] sm:$0xf]
        %v1404 = vld [vmem:[%s2 + $0x10] sm:$0xf]
        %v1405 = vld [vmem:[%s2 + $0x14] sm:$0xf]
        %v1406 = vld [vmem:[%s2 + $0x18] sm:$0xf]
        %v1407 = vld [vmem:[%s2 + $0x1c] sm:$0xf]
        %v1408 = vld [vmem:[%s2 + $0x20] sm:$0xf]
        %v1409 = vld [vmem:[%s2 + $0x24] sm:$0xf]
        %v1410 = vld [vmem:[%s2 + $0x28] sm:$0xf]
        %v1411 = vld [vmem:[%s2 + $0x2c] sm:$0xf]
        %v1412 = vld [vmem:[%s2 + $0x30] sm:$0xf]
        %v1413 = vld [vmem:[%s2 + $0x34] sm:$0xf]
        %v1414 = vld [vmem:[%s2 + $0x38] sm:$0xf]
        %v1415 = vld [vmem:[%s2 + $0x3c] sm:$0xf]
        %v1416 = vld [vmem:[%s3] sm:$0x1]
        %v1418 = vlaneseq
        %v1419 = vshrl.u32 %v1418, 7
        %v1420 = vsub.s32 0, %v1419
        %v1421 = vrot.slane %v1416, %v1420
        %v1439 = vunpack.c.l.b16 %v1400
        %v1440 = vunpack.c.l.b16 %v1401
        %v1441 = vunpack.c.l.b16 %v1402
        %v1442 = vunpack.c.l.b16 %v1403
        %v1443 = vunpack.c.l.b16 %v1404
        %v1444 = vunpack.c.l.b16 %v1405
        %v1445 = vunpack.c.l.b16 %v1406
        %v1446 = vunpack.c.l.b16 %v1407
        %v1447 = vunpack.c.l.b16 %v1408
        %v1448 = vunpack.c.l.b16 %v1409
        %v1449 = vunpack.c.l.b16 %v1410
        %v1450 = vunpack.c.l.b16 %v1411
        %v1451 = vunpack.c.l.b16 %v1412
        %v1452 = vunpack.c.l.b16 %v1413
        %v1453 = vunpack.c.l.b16 %v1414
        %v1454 = vunpack.c.l.b16 %v1415
        %v1455 = vpack.c.b16 %v1440, %v1439
        %v1456 = vpack.c.b16 %v1442, %v1441
        %v1457 = vpack.c.b16 %v1444, %v1443
        %v1458 = vpack.c.b16 %v1446, %v1445
        %v1459 = vpack.c.b16 %v1448, %v1447
        %v1460 = vpack.c.b16 %v1450, %v1449
        %v1461 = vpack.c.b16 %v1452, %v1451
        %v1462 = vpack.c.b16 %v1454, %v1453
        %1471 = vmatprep.subr.bf16.mxu0 0
        %1472 = vmatpush1.bf16.msra.mxu0 %v1455
        %1473 = vmatprep.subr.bf16.mxu0 0
        %1474 = vmatpush1.bf16.msra.mxu0 %v1456
        %1475 = vmatprep.subr.bf16.mxu0 0
        %1476 = vmatpush1.bf16.msra.mxu0 %v1457
        %1477 = vmatprep.subr.bf16.mxu0 0
        %1478 = vmatpush1.bf16.msra.mxu0 %v1458
        %1479 = vmatprep.subr.bf16.mxu0 0
        %1480 = vmatpush1.bf16.msra.mxu0 %v1459
        %1481 = vmatprep.subr.bf16.mxu0 0
        %1482 = vmatpush1.bf16.msra.mxu0 %v1460
        %1483 = vmatprep.subr.bf16.mxu0 0
        %1484 = vmatpush1.bf16.msra.mxu0 %v1461
        %1485 = vmatprep.subr.bf16.mxu0 0
        %1486 = vmatpush1.bf16.msra.mxu0 %v1462
        %1487 = vmatprep.subr.bf16.mxu0 0
        %1488 = vmatpush1.bf16.msra.mxu0 0
        %1489 = vmatprep.subr.bf16.mxu0 0
        %1490 = vmatpush1.bf16.msra.mxu0 0
        %1491 = vmatprep.subr.bf16.mxu0 0
        %1492 = vmatpush1.bf16.msra.mxu0 0
        %1493 = vmatprep.subr.bf16.mxu0 0
        %1494 = vmatpush1.bf16.msra.mxu0 0
        %1495 = vmatprep.subr.bf16.mxu0 0
        %1496 = vmatpush1.bf16.msra.mxu0 0
        %1497 = vmatprep.subr.bf16.mxu0 0
        %1498 = vmatpush1.bf16.msra.mxu0 0
        %1499 = vmatprep.subr.bf16.mxu0 0
        %1500 = vmatpush1.bf16.msra.mxu0 0
        %1501 = vmatprep.subr.bf16.mxu0 0
        %1502 = vmatpush1.bf16.msra.mxu0 0
        %1503 = vmatprep.mubr.bf16.mxu0 0
        %1504 = vmatmul.mubr.bf16.gmra.mrb[0].mxu0 %v1384
        %v1505 = vpop.f32.mrb[0].mxu0
        %v1506 = vadd.f32 %v1421, %v1505
        %v1507 = vpop.f32.mrb[0].mxu0
        %v1508 = vpop.f32.mrb[0].mxu0
        %v1509 = vadd.f32 %v1421, %v1508
        %v1510 = vpop.f32.mrb[0].mxu0
        %1511 = vmatprep.mubr.bf16.mxu0 0
        %1512 = vmatmul.mubr.bf16.gmra.mrb[0].mxu0 %v1385
        %v1513 = vpop.f32.mrb[0].mxu0
        %v1514 = vadd.f32 %v1421, %v1513
        %v1515 = vpop.f32.mrb[0].mxu0
        %v1516 = vpop.f32.mrb[0].mxu0
        %v1517 = vadd.f32 %v1421, %v1516
        %v1518 = vpop.f32.mrb[0].mxu0
        %1519 = vmatprep.mubr.bf16.mxu0 0
        %1520 = vmatmul.mubr.bf16.gmra.mrb[0].mxu0 %v1386
        %v1521 = vpop.f32.mrb[0].mxu0
        %v1522 = vadd.f32 %v1421, %v1521
        %v1523 = vpop.f32.mrb[0].mxu0
        %v1524 = vpop.f32.mrb[0].mxu0
        %v1525 = vadd.f32 %v1421, %v1524
        %v1526 = vpop.f32.mrb[0].mxu0
        %1527 = vmatprep.mubr.bf16.mxu0 0
        %1528 = vmatmul.mubr.bf16.gmra.mrb[0].mxu0 %v1387
        %v1529 = vpop.f32.mrb[0].mxu0
        %v1530 = vadd.f32 %v1421, %v1529
        %v1531 = vpop.f32.mrb[0].mxu0
        %v1532 = vpop.f32.mrb[0].mxu0
        %v1533 = vadd.f32 %v1421, %v1532
        %v1534 = vpop.f32.mrb[0].mxu0
        %1535 = vmatprep.mubr.bf16.mxu0 0
        %1536 = vmatmul.mubr.bf16.gmra.mrb[0].mxu0 %v1388
        %v1537 = vpop.f32.mrb[0].mxu0
        %v1538 = vadd.f32 %v1421, %v1537
        %v1539 = vpop.f32.mrb[0].mxu0
        %v1540 = vpop.f32.mrb[0].mxu0
        %v1541 = vadd.f32 %v1421, %v1540
        %v1542 = vpop.f32.mrb[0].mxu0
        %1543 = vmatprep.mubr.bf16.mxu0 0
        %1544 = vmatmul.mubr.bf16.gmra.mrb[0].mxu0 %v1389
        %v1545 = vpop.f32.mrb[0].mxu0
        %v1546 = vadd.f32 %v1421, %v1545
        %v1547 = vpop.f32.mrb[0].mxu0
        %v1548 = vpop.f32.mrb[0].mxu0
        %v1549 = vadd.f32 %v1421, %v1548
        %v1550 = vpop.f32.mrb[0].mxu0
        %1551 = vmatprep.mubr.bf16.mxu0 0
        %1552 = vmatmul.mubr.bf16.gmra.mrb[0].mxu0 %v1390
        %v1553 = vpop.f32.mrb[0].mxu0
        %v1554 = vadd.f32 %v1421, %v1553
        %v1555 = vpop.f32.mrb[0].mxu0
        %v1556 = vpop.f32.mrb[0].mxu0
        %v1557 = vadd.f32 %v1421, %v1556
        %v1558 = vpop.f32.mrb[0].mxu0
        %1559 = vmatprep.mubr.bf16.mxu0 0
        %1560 = vmatmul.mubr.bf16.gmra.mrb[0].mxu0 %v1391
        %v1561 = vpop.f32.mrb[0].mxu0
        %v1562 = vadd.f32 %v1421, %v1561
        %v1563 = vpop.f32.mrb[0].mxu0
        %v1564 = vpop.f32.mrb[0].mxu0
        %v1565 = vadd.f32 %v1421, %v1564
        %v1566 = vpop.f32.mrb[0].mxu0
        %1567 = vmatprep.mubr.bf16.mxu0 0
        %1568 = vmatmul.mubr.bf16.gmra.mrb[0].mxu0 %v1392
        %v1569 = vpop.f32.mrb[0].mxu0
        %v1570 = vadd.f32 %v1421, %v1569
        %v1571 = vpop.f32.mrb[0].mxu0
        %v1572 = vpop.f32.mrb[0].mxu0
        %v1573 = vadd.f32 %v1421, %v1572
        %v1574 = vpop.f32.mrb[0].mxu0
        %1575 = vmatprep.mubr.bf16.mxu0 0
        %1576 = vmatmul.mubr.bf16.gmra.mrb[0].mxu0 %v1393
        %v1577 = vpop.f32.mrb[0].mxu0
        %v1578 = vadd.f32 %v1421, %v1577
        %v1579 = vpop.f32.mrb[0].mxu0
        %v1580 = vpop.f32.mrb[0].mxu0
        %v1581 = vadd.f32 %v1421, %v1580
        %v1582 = vpop.f32.mrb[0].mxu0
        %1583 = vmatprep.mubr.bf16.mxu0 0
        %1584 = vmatmul.mubr.bf16.gmra.mrb[0].mxu0 %v1394
        %v1585 = vpop.f32.mrb[0].mxu0
        %v1586 = vadd.f32 %v1421, %v1585
        %v1587 = vpop.f32.mrb[0].mxu0
        %v1588 = vpop.f32.mrb[0].mxu0
        %v1589 = vadd.f32 %v1421, %v1588
        %v1590 = vpop.f32.mrb[0].mxu0
        %1591 = vmatprep.mubr.bf16.mxu0 0
        %1592 = vmatmul.mubr.bf16.gmra.mrb[0].mxu0 %v1395
        %v1593 = vpop.f32.mrb[0].mxu0
        %v1594 = vadd.f32 %v1421, %v1593
        %v1595 = vpop.f32.mrb[0].mxu0
        %v1596 = vpop.f32.mrb[0].mxu0
        %v1597 = vadd.f32 %v1421, %v1596
        %v1598 = vpop.f32.mrb[0].mxu0
        %1599 = vmatprep.mubr.bf16.mxu0 0
        %1600 = vmatmul.mubr.bf16.gmra.mrb[0].mxu0 %v1396
        %v1601 = vpop.f32.mrb[0].mxu0
        %v1602 = vadd.f32 %v1421, %v1601
        %v1603 = vpop.f32.mrb[0].mxu0
        %v1604 = vpop.f32.mrb[0].mxu0
        %v1605 = vadd.f32 %v1421, %v1604
        %v1606 = vpop.f32.mrb[0].mxu0
        %1607 = vmatprep.mubr.bf16.mxu0 0
        %1608 = vmatmul.mubr.bf16.gmra.mrb[0].mxu0 %v1397
        %v1609 = vpop.f32.mrb[0].mxu0
        %v1610 = vadd.f32 %v1421, %v1609
        %v1611 = vpop.f32.mrb[0].mxu0
        %v1612 = vpop.f32.mrb[0].mxu0
        %v1613 = vadd.f32 %v1421, %v1612
        %v1614 = vpop.f32.mrb[0].mxu0
        %1615 = vmatprep.mubr.bf16.mxu0 0
        %1616 = vmatmul.mubr.bf16.gmra.mrb[0].mxu0 %v1398
        %v1617 = vpop.f32.mrb[0].mxu0
        %v1618 = vadd.f32 %v1421, %v1617
        %v1619 = vpop.f32.mrb[0].mxu0
        %v1620 = vpop.f32.mrb[0].mxu0
        %v1621 = vadd.f32 %v1421, %v1620
        %v1622 = vpop.f32.mrb[0].mxu0
        %1623 = vmatprep.mubr.bf16.mxu0 0
        %1624 = vmatmul.mubr.bf16.gmra.mrb[0].mxu0 %v1399
        %v1625 = vpop.f32.mrb[0].mxu0
        %v1626 = vadd.f32 %v1421, %v1625
        %v1627 = vpop.f32.mrb[0].mxu0
        %v1628 = vpop.f32.mrb[0].mxu0
        %v1629 = vadd.f32 %v1421, %v1628
        %v1630 = vpop.f32.mrb[0].mxu0
        %1631 = vdwg.mxu0
        %v1632 = vmax.f32 %v1506, 0.0
        %v1633 = vmax.f32 %v1509, 0.0
        %v1634 = vmax.f32 %v1514, 0.0
        %v1635 = vmax.f32 %v1517, 0.0
        %v1636 = vmax.f32 %v1522, 0.0
        %v1637 = vmax.f32 %v1525, 0.0
        %v1638 = vmax.f32 %v1530, 0.0
        %v1639 = vmax.f32 %v1533, 0.0
        %v1640 = vmax.f32 %v1538, 0.0
        %v1641 = vmax.f32 %v1541, 0.0
        %v1642 = vmax.f32 %v1546, 0.0
        %v1643 = vmax.f32 %v1549, 0.0
        %v1644 = vmax.f32 %v1554, 0.0
        %v1645 = vmax.f32 %v1557, 0.0
        %v1646 = vmax.f32 %v1562, 0.0
        %v1647 = vmax.f32 %v1565, 0.0
        %v1648 = vmax.f32 %v1570, 0.0
        %v1649 = vmax.f32 %v1573, 0.0
        %v1650 = vmax.f32 %v1578, 0.0
        %v1651 = vmax.f32 %v1581, 0.0
        %v1652 = vmax.f32 %v1586, 0.0
        %v1653 = vmax.f32 %v1589, 0.0
        %v1654 = vmax.f32 %v1594, 0.0
        %v1655 = vmax.f32 %v1597, 0.0
        %v1656 = vmax.f32 %v1602, 0.0
        %v1657 = vmax.f32 %v1605, 0.0
        %v1658 = vmax.f32 %v1610, 0.0
        %v1659 = vmax.f32 %v1613, 0.0
        %v1660 = vmax.f32 %v1618, 0.0
        %v1661 = vmax.f32 %v1621, 0.0
        %v1662 = vmax.f32 %v1626, 0.0
        %v1663 = vmax.f32 %v1629, 0.0
        %v1664 = vpack.c.bf16 %v1633, %v1632
        %v1665 = vpack.c.bf16 %v1635, %v1634
        %v1666 = vpack.c.bf16 %v1637, %v1636
        %v1667 = vpack.c.bf16 %v1639, %v1638
        %v1668 = vpack.c.bf16 %v1641, %v1640
        %v1669 = vpack.c.bf16 %v1643, %v1642
        %v1670 = vpack.c.bf16 %v1645, %v1644
        %v1671 = vpack.c.bf16 %v1647, %v1646
        %v1672 = vpack.c.bf16 %v1649, %v1648
        %v1673 = vpack.c.bf16 %v1651, %v1650
        %v1674 = vpack.c.bf16 %v1653, %v1652
        %v1675 = vpack.c.bf16 %v1655, %v1654
        %v1676 = vpack.c.bf16 %v1657, %v1656
        %v1677 = vpack.c.bf16 %v1659, %v1658
        %v1678 = vpack.c.bf16 %v1661, %v1660
        %v1679 = vpack.c.bf16 %v1663, %v1662
        %v1696 = vunpack.c.l.b16 %v1664
        %v1697 = vunpack.c.h.b16 %v1664
        %v1698 = vunpack.c.l.b16 %v1665
        %v1699 = vunpack.c.h.b16 %v1665
        %v1700 = vunpack.c.l.b16 %v1666
        %v1701 = vunpack.c.h.b16 %v1666
        %v1702 = vunpack.c.l.b16 %v1667
        %v1703 = vunpack.c.h.b16 %v1667
        %v1704 = vunpack.c.l.b16 %v1668
        %v1705 = vunpack.c.h.b16 %v1668
        %v1706 = vunpack.c.l.b16 %v1669
        %v1707 = vunpack.c.h.b16 %v1669
        %v1708 = vunpack.c.l.b16 %v1670
        %v1709 = vunpack.c.h.b16 %v1670
        %v1710 = vunpack.c.l.b16 %v1671
        %v1711 = vunpack.c.h.b16 %v1671
        %v1712 = vunpack.c.l.b16 %v1672
        %v1713 = vunpack.c.h.b16 %v1672
        %v1714 = vunpack.c.l.b16 %v1673
        %v1715 = vunpack.c.h.b16 %v1673
        %v1716 = vunpack.c.l.b16 %v1674
        %v1717 = vunpack.c.h.b16 %v1674
        %v1718 = vunpack.c.l.b16 %v1675
        %v1719 = vunpack.c.h.b16 %v1675
        %v1720 = vunpack.c.l.b16 %v1676
        %v1721 = vunpack.c.h.b16 %v1676
        %v1722 = vunpack.c.l.b16 %v1677
        %v1723 = vunpack.c.h.b16 %v1677
        %v1724 = vunpack.c.l.b16 %v1678
        %v1725 = vunpack.c.h.b16 %v1678
        %v1726 = vunpack.c.l.b16 %v1679
        %v1727 = vunpack.c.h.b16 %v1679
        %v1728 = vpack.c.b16 %v1696, %v1696
        %v1729 = vpack.c.b16 %v1697, %v1697
        %v1730 = vpack.c.b16 %v1698, %v1698
        %v1731 = vpack.c.b16 %v1699, %v1699
        %v1732 = vpack.c.b16 %v1700, %v1700
        %v1733 = vpack.c.b16 %v1701, %v1701
        %v1734 = vpack.c.b16 %v1702, %v1702
        %v1735 = vpack.c.b16 %v1703, %v1703
        %v1736 = vpack.c.b16 %v1704, %v1704
        %v1737 = vpack.c.b16 %v1705, %v1705
        %v1738 = vpack.c.b16 %v1706, %v1706
        %v1739 = vpack.c.b16 %v1707, %v1707
        %v1740 = vpack.c.b16 %v1708, %v1708
        %v1741 = vpack.c.b16 %v1709, %v1709
        %v1742 = vpack.c.b16 %v1710, %v1710
        %v1743 = vpack.c.b16 %v1711, %v1711
        %v1744 = vpack.c.b16 %v1712, %v1712
        %v1745 = vpack.c.b16 %v1713, %v1713
        %v1746 = vpack.c.b16 %v1714, %v1714
        %v1747 = vpack.c.b16 %v1715, %v1715
        %v1748 = vpack.c.b16 %v1716, %v1716
        %v1749 = vpack.c.b16 %v1717, %v1717
        %v1750 = vpack.c.b16 %v1718, %v1718
        %v1751 = vpack.c.b16 %v1719, %v1719
        %v1752 = vpack.c.b16 %v1720, %v1720
        %v1753 = vpack.c.b16 %v1721, %v1721
        %v1754 = vpack.c.b16 %v1722, %v1722
        %v1755 = vpack.c.b16 %v1723, %v1723
        %v1756 = vpack.c.b16 %v1724, %v1724
        %v1757 = vpack.c.b16 %v1725, %v1725
        %v1758 = vpack.c.b16 %v1726, %v1726
        %v1759 = vpack.c.b16 %v1727, %v1727
        %1792 = vst [vmem:[%s252] sm:$0xf] %v1728
        %1793 = vst [vmem:[%s252 + $0x4] sm:$0xf] %v1729
        %1794 = vst [vmem:[%s252 + $0x8] sm:$0xf] %v1730
        %1795 = vst [vmem:[%s252 + $0xc] sm:$0xf] %v1731
        %1796 = vst [vmem:[%s252 + $0x10] sm:$0xf] %v1732
        %1797 = vst [vmem:[%s252 + $0x14] sm:$0xf] %v1733
        %1798 = vst [vmem:[%s252 + $0x18] sm:$0xf] %v1734
        %1799 = vst [vmem:[%s252 + $0x1c] sm:$0xf] %v1735
        %1800 = vst [vmem:[%s252 + $0x20] sm:$0xf] %v1736
        %1801 = vst [vmem:[%s252 + $0x24] sm:$0xf] %v1737
        %1802 = vst [vmem:[%s252 + $0x28] sm:$0xf] %v1738
        %1803 = vst [vmem:[%s252 + $0x2c] sm:$0xf] %v1739
        %1804 = vst [vmem:[%s252 + $0x30] sm:$0xf] %v1740
        %1805 = vst [vmem:[%s252 + $0x34] sm:$0xf] %v1741
        %1806 = vst [vmem:[%s252 + $0x38] sm:$0xf] %v1742
        %1807 = vst [vmem:[%s252 + $0x3c] sm:$0xf] %v1743
        %1808 = vst [vmem:[%s252 + $0x40] sm:$0xf] %v1744
        %1809 = vst [vmem:[%s252 + $0x44] sm:$0xf] %v1745
        %1810 = vst [vmem:[%s252 + $0x48] sm:$0xf] %v1746
        %1811 = vst [vmem:[%s252 + $0x4c] sm:$0xf] %v1747
        %1812 = vst [vmem:[%s252 + $0x50] sm:$0xf] %v1748
        %1813 = vst [vmem:[%s252 + $0x54] sm:$0xf] %v1749
        %1814 = vst [vmem:[%s252 + $0x58] sm:$0xf] %v1750
        %1815 = vst [vmem:[%s252 + $0x5c] sm:$0xf] %v1751
        %1816 = vst [vmem:[%s252 + $0x60] sm:$0xf] %v1752
        %1817 = vst [vmem:[%s252 + $0x64] sm:$0xf] %v1753
        %1818 = vst [vmem:[%s252 + $0x68] sm:$0xf] %v1754
        %1819 = vst [vmem:[%s252 + $0x6c] sm:$0xf] %v1755
        %1820 = vst [vmem:[%s252 + $0x70] sm:$0xf] %v1756
        %1821 = vst [vmem:[%s252 + $0x74] sm:$0xf] %v1757
        %1822 = vst [vmem:[%s252 + $0x78] sm:$0xf] %v1758
        %1823 = vst [vmem:[%s252 + $0x7c] sm:$0xf] %v1759
      $region44: #{gcn_forward.3} parent=35 // pred_fallthru
        _
      %s1824 = smul.u32 32, %s19
      %p1825 = scmp.lt.s32.totalorder %s1824, 63
      %s1826 = scalar_select %p1825, %s1824, 63
      %s1827 = smul.addr %s1826, 4
      %s1828 = scalar_lea.vmem %s4, %s1827
      // Predicated region
      $region45: #{gcn_forward.3} parent=35 // pred_check
        %p1829 = pneg %p141
      $region46: #{gcn_forward.3} parent=35 // pred_check_branch
        %1831 = sbr.rel (%p1829) target = $region48
      $region47: #{gcn_forward.3} parent=35 // pred_region
        %s1832 = smul.u32 32, %s19
      $region48: #{gcn_forward.3} parent=35 // pred_fallthru
        _
    $region36: #{gcn_forward.3} parent=5 // pred_fallthru
      _
    %p1833 = scmp.le.s32.totalorder 2, %s10
    // Predicated region
    $region49: #{gcn_forward.3} parent=5 // pred_check
      %p1834 = pneg %p1833
    $region50: #{gcn_forward.3} parent=5 // pred_check_branch
      %1836 = sbr.rel (%p1834) target = $region52
    $region51: #{gcn_forward.3} parent=5 // pred_region
      %s1837 = ssub.s32 %s10, 2
      // Predicated region
      $region53: #{gcn_forward.3} parent=51 // pred_check
        %p1838 = pneg %p147
      $region54: #{gcn_forward.3} parent=51 // pred_check_branch
        %1840 = sbr.rel (%p1838) target = $region56
      $region55: #{gcn_forward.3} parent=51 // pred_region
        %s1841 = smul.u32 32, %s21
        %p1842 = scmp.lt.s32.totalorder %s1841, 63
        %s1843 = scalar_select %p1842, %s1841, 63
        %s1844 = smul.addr %s1843, 4
        %s1845 = scalar_lea.vmem %s4, %s1844
      $region56: #{gcn_forward.3} parent=51 // pred_fallthru
        _
    $region52: #{gcn_forward.3} parent=5 // pred_fallthru
      _
  $region6: #{gcn_forward.3} parent=0 // loop_footer
    %s14 = sadd.s32 1, %s10
  $region7: #{gcn_forward.3} parent=0 // loop_footer_branch
    %9 = sbr.rel target = $region3
  $region8: #{gcn_forward.3} parent=0 // loop_exit
    _

// kernel: gcn_forward.4
$region0: #{gcn_forward.4}
  #allocation0 [shape = 'u32[]', space=smem, size = 0x4, offset = 0x4, fixed_abs, tag = 'smem constant byte address 0x4 - core index']
  #allocation1 [shape = 'u32[144,128]{1,0:T(1,128)}', space=vmem, size = 0x12000, scoped, tag = 'internal scratch']
  #allocation2 [shape = 'f32[256,128]{1,0:T(8,128)}', space=vmem, size = 0x20000, scoped, tag = 'scratch operand']
  %s0 = inlined_call_operand.vmem [shape: bf16[512,512], index: 0, kind: input, shape index: {}]
  %s1 = inlined_call_operand.vmem [shape: bf16[512,128], index: 1, kind: input, shape index: {}]
  %s2 = inlined_call_operand.vmem [shape: bf16[128,128], index: 2, kind: input, shape index: {}]
  %s3 = inlined_call_operand.vmem [shape: f32[1,128], index: 3, kind: input, shape index: {}]
  %s4 = inlined_call_operand.vmem [shape: bf16[512,128], index: 4, kind: output, shape index: {}]
  %s5 = sld [smem:[#allocation0]]
  $region57: #{gcn_forward.4} parent=0
    _
  %s7 = ssub.s32 1, %s5
  %s8 = scalar_select 0, %s7, %s5
  loop: start=0, step=1, limit=4
  $region2: #{gcn_forward.4} parent=0 // loop_pre_header
    _
  $region3: #{gcn_forward.4} parent=0 // loop_header
    %s10 = sphi 0, %s14
    %p11 = scmp.ge.s32.totalorder %s10, 4
    %s17 = sphi 0, %s29
    %s18 = sphi 0, %s25
    %s19 = sphi 0, %s17
    %s20 = sphi 0, %s18
    %s21 = sphi 0, %s19
    %s22 = sphi 0, %s20
    %s34 = sphi 0, %s36
    %s37 = sphi 0, %s34
    %s38 = sphi 0, %s37
    %s54 = sphi 0, %s38
    %s60 = sphi 0, %s62
    %s63 = sphi 0, %s60
    %s64 = sphi 0, %s63
    %s80 = sphi 0, %s64
    %s84 = sphi 0, %s84
    %s86 = sphi 0, %s84
    %s87 = sphi 0, %s86
    %s101 = sphi 0, %s87
    %s105 = sphi 0, %s105
    %s107 = sphi 0, %s105
    %s108 = sphi 0, %s107
    %s122 = sphi 0, %s108
    %s128 = sphi 0, %s130
    %s131 = sphi 0, %s128
    %s132 = sphi 0, %s131
    %s148 = sphi 0, %s132
  $region4: #{gcn_forward.4} parent=0 // loop_header_branch
    %13 = sbr.rel (%p11) target = $region8
  $region5: #{gcn_forward.4} parent=0 // loop_body
    %s15 = ssub.s32 %s10, 1
    %s16 = ssub.s32 %s10, 2
    %s23 = sadd.s32 1, %s18
    %p24 = scmp.ge.s32.totalorder %s23, 1
    %s25 = scalar_select %p24, 0, %s23
    %s26 = sadd.s32 1, %s17
    %s27 = scalar_select %p24, %s26, %s17
    %p28 = scmp.ge.s32.totalorder %s27, 2
    %s29 = scalar_select %p28, 0, %s27
    %s30 = ssub.s32 %s17, %s29
    %s31 = ssub.s32 %s18, %s25
    %s32 = sor.u32 %s30, %s31
    %p33 = scmp.eq.s32.totalorder %s32, 0
    %s35 = sadd.s32 %s34, 1
    %s36 = scalar_select %p33, %s34, %s35
    %p39 = pneg %p33
    %p40 = scmp.eq.s32.totalorder %s10, 1
    %p41 = por %p39, %p40
    %p42 = scmp.ne.s32.totalorder %s34, %s37
    %p43 = scmp.eq.s32.totalorder %s10, 0
    %p44 = por %p42, %p43
    %p45 = scmp.ne.s32.totalorder %s34, %s37
    %p46 = scmp.eq.s32.totalorder %s15, 1
    %p47 = por %p45, %p46
    %p48 = scmp.ne.s32.totalorder %s37, %s38
    %p49 = scmp.eq.s32.totalorder %s15, 0
    %p50 = por %p48, %p49
    %p51 = scmp.ne.s32.totalorder %s37, %s38
    %p52 = scmp.eq.s32.totalorder %s16, 1
    %p53 = por %p51, %p52
    %p55 = scmp.ne.s32.totalorder %s38, %s54
    %p56 = scmp.eq.s32.totalorder %s16, 0
    %p57 = por %p55, %p56
    %s58 = ssub.s32 %s18, %s25
    %p59 = scmp.eq.s32.totalorder %s58, 0
    %s61 = sadd.s32 %s60, 1
    %s62 = scalar_select %p59, %s60, %s61
    %p65 = pneg %p59
    %p66 = scmp.eq.s32.totalorder %s10, 1
    %p67 = por %p65, %p66
    %p68 = scmp.ne.s32.totalorder %s60, %s63
    %p69 = scmp.eq.s32.totalorder %s10, 0
    %p70 = por %p68, %p69
    %p71 = scmp.ne.s32.totalorder %s60, %s63
    %p72 = scmp.eq.s32.totalorder %s15, 1
    %p73 = por %p71, %p72
    %p74 = scmp.ne.s32.totalorder %s63, %s64
    %p75 = scmp.eq.s32.totalorder %s15, 0
    %p76 = por %p74, %p75
    %p77 = scmp.ne.s32.totalorder %s63, %s64
    %p78 = scmp.eq.s32.totalorder %s16, 1
    %p79 = por %p77, %p78
    %p81 = scmp.ne.s32.totalorder %s64, %s80
    %p82 = scmp.eq.s32.totalorder %s16, 0
    %p83 = por %p81, %p82
    %s85 = sadd.s32 %s84, 1
    %p88 = scmp.eq.s32.totalorder %s10, 1
    %p89 = scmp.ne.s32.totalorder %s84, %s86
    %p90 = scmp.eq.s32.totalorder %s10, 0
    %p91 = por %p89, %p90
    %p92 = scmp.ne.s32.totalorder %s84, %s86
    %p93 = scmp.eq.s32.totalorder %s15, 1
    %p94 = por %p92, %p93
    %p95 = scmp.ne.s32.totalorder %s86, %s87
    %p96 = scmp.eq.s32.totalorder %s15, 0
    %p97 = por %p95, %p96
    %p98 = scmp.ne.s32.totalorder %s86, %s87
    %p99 = scmp.eq.s32.totalorder %s16, 1
    %p100 = por %p98, %p99
    %p102 = scmp.ne.s32.totalorder %s87, %s101
    %p103 = scmp.eq.s32.totalorder %s16, 0
    %p104 = por %p102, %p103
    %s106 = sadd.s32 %s105, 1
    %p109 = scmp.eq.s32.totalorder %s10, 1
    %p110 = scmp.ne.s32.totalorder %s105, %s107
    %p111 = scmp.eq.s32.totalorder %s10, 0
    %p112 = por %p110, %p111
    %p113 = scmp.ne.s32.totalorder %s105, %s107
    %p114 = scmp.eq.s32.totalorder %s15, 1
    %p115 = por %p113, %p114
    %p116 = scmp.ne.s32.totalorder %s107, %s108
    %p117 = scmp.eq.s32.totalorder %s15, 0
    %p118 = por %p116, %p117
    %p119 = scmp.ne.s32.totalorder %s107, %s108
    %p120 = scmp.eq.s32.totalorder %s16, 1
    %p121 = por %p119, %p120
    %p123 = scmp.ne.s32.totalorder %s108, %s122
    %p124 = scmp.eq.s32.totalorder %s16, 0
    %p125 = por %p123, %p124
    %s126 = ssub.s32 %s17, %s29
    %p127 = scmp.eq.s32.totalorder %s126, 0
    %s129 = sadd.s32 %s128, 1
    %s130 = scalar_select %p127, %s128, %s129
    %p133 = pneg %p127
    %p134 = scmp.eq.s32.totalorder %s10, 1
    %p135 = por %p133, %p134
    %p136 = scmp.ne.s32.totalorder %s128, %s131
    %p137 = scmp.eq.s32.totalorder %s10, 0
    %p138 = por %p136, %p137
    %p139 = scmp.ne.s32.totalorder %s128, %s131
    %p140 = scmp.eq.s32.totalorder %s15, 1
    %p141 = por %p139, %p140
    %p142 = scmp.ne.s32.totalorder %s131, %s132
    %p143 = scmp.eq.s32.totalorder %s15, 0
    %p144 = por %p142, %p143
    %p145 = scmp.ne.s32.totalorder %s131, %s132
    %p146 = scmp.eq.s32.totalorder %s16, 1
    %p147 = por %p145, %p146
    %p149 = scmp.ne.s32.totalorder %s132, %s148
    %p150 = scmp.eq.s32.totalorder %s16, 0
    %p151 = por %p149, %p150
    %p152 = scmp.le.s32.totalorder 1, %s10
    %p153 = scmp.lt.s32.totalorder %s10, 3
    %p154 = pnand %p152, %p153
    %p155 = pneg %p154
    // Predicated region
    $region9: #{gcn_forward.4} parent=5 // pred_check
      _
    $region10: #{gcn_forward.4} parent=5 // pred_check_branch
      %157 = sbr.rel (%p154) target = $region12
    $region11: #{gcn_forward.4} parent=5 // pred_region
      %s158 = ssub.s32 %s10, 1
      // Predicated region
      $region13: #{gcn_forward.4} parent=11 // pred_check
        %p159 = pneg %p76
      $region14: #{gcn_forward.4} parent=11 // pred_check_branch
        %161 = sbr.rel (%p159) target = $region16
      $region15: #{gcn_forward.4} parent=11 // pred_region
        %s162 = smul.u32 64, %s20
        %p163 = scmp.lt.s32.totalorder %s162, 63
        %s164 = scalar_select %p163, %s162, 63
        %s165 = smul.addr %s164, 4
        %s166 = scalar_lea.vmem %s1, %s165
        %s167 = smul.u32 64, %s20
      $region16: #{gcn_forward.4} parent=11 // pred_fallthru
        _
      // Predicated region
      $region17: #{gcn_forward.4} parent=11 // pred_check
        %p168 = pneg %p97
      $region18: #{gcn_forward.4} parent=11 // pred_check_branch
        %170 = sbr.rel (%p168) target = $region20
      $region19: #{gcn_forward.4} parent=11 // pred_region
        _
      $region20: #{gcn_forward.4} parent=11 // pred_fallthru
        _
      // Predicated region
      $region21: #{gcn_forward.4} parent=11 // pred_check
        %p171 = pneg %p118
      $region22: #{gcn_forward.4} parent=11 // pred_check_branch
        %173 = sbr.rel (%p171) target = $region24
      $region23: #{gcn_forward.4} parent=11 // pred_region
        _
      $region24: #{gcn_forward.4} parent=11 // pred_fallthru
        _
    $region12: #{gcn_forward.4} parent=5 // pred_fallthru
      _
    %p174 = scmp.lt.s32.totalorder %s10, 2
    // Predicated region
    $region25: #{gcn_forward.4} parent=5 // pred_check
      %p175 = pneg %p174
    $region26: #{gcn_forward.4} parent=5 // pred_check_branch
      %177 = sbr.rel (%p175) target = $region28
    $region27: #{gcn_forward.4} parent=5 // pred_region
      // Predicated region
      $region29: #{gcn_forward.4} parent=27 // pred_check
        %p178 = pneg %p44
      $region30: #{gcn_forward.4} parent=27 // pred_check_branch
        %180 = sbr.rel (%p178) target = $region32
      $region31: #{gcn_forward.4} parent=27 // pred_region
        %s181 = smul.u32 32, %s17
        %s182 = smul.u32 4, %s18
        %p183 = scmp.lt.s32.totalorder %s181, 63
        %s184 = scalar_select %p183, %s181, 63
        %p185 = scmp.lt.s32.totalorder %s182, 3
        %s186 = scalar_select %p185, %s182, 3
        %s187 = smul.addr %s184, 4
        %s188 = sadd.s32 %s186, %s187
        %s189 = smul.addr %s188, 4
        %s190 = scalar_lea.vmem %s0, %s189
        %s191 = smul.u32 32, %s17
        %s192 = smul.u32 4, %s18
      $region32: #{gcn_forward.4} parent=27 // pred_fallthru
        _
    $region28: #{gcn_forward.4} parent=5 // pred_fallthru
      _
    %p193 = scmp.le.s32.totalorder 1, %s10
    %p194 = scmp.lt.s32.totalorder %s10, 3
    %p195 = pnand %p193, %p194
    %p196 = pneg %p195
    // Predicated region
    $region33: #{gcn_forward.4} parent=5 // pred_check
      _
    $region34: #{gcn_forward.4} parent=5 // pred_check_branch
      %198 = sbr.rel (%p195) target = $region36
    $region35: #{gcn_forward.4} parent=5 // pred_region
      %s199 = ssub.s32 %s10, 1
      %s200 = smul.u32 32, %s19
      %s201 = smul.u32 4, %s20
      %p202 = scmp.lt.s32.totalorder %s200, 63
      %s203 = scalar_select %p202, %s200, 63
      %p204 = scmp.lt.s32.totalorder %s201, 3
      %s205 = scalar_select %p204, %s201, 3
      %s206 = smul.addr %s203, 4
      %s207 = sadd.s32 %s205, %s206
      %s208 = smul.addr %s207, 4
      %s209 = scalar_lea.vmem %s0, %s208
      %p210 = pneg %p50
      %p211 = pneg %p47
      %s212 = smul.u32 64, %s20
      %p213 = scmp.lt.s32.totalorder %s212, 63
      %s214 = scalar_select %p213, %s212, 63
      %s215 = smul.addr %s214, 4
      %s216 = scalar_lea.vmem %s1, %s215
      %p217 = pneg %p76
      %p218 = pneg %p73
      %p219 = pneg %p97
      %p220 = pneg %p94
      %p221 = pneg %p118
      %p222 = pneg %p115
      %p223 = pneg %p144
      %p224 = pneg %p141
      %s225 = smul.u32 32, %s19
      %p226 = scmp.lt.s32.totalorder %s225, 63
      %s227 = scalar_select %p226, %s225, 63
      %s228 = smul.addr %s227, 4
      %s229 = scalar_lea.vmem %s4, %s228
      %s230 = smul.u32 32, %s19
      %s231 = smul.u32 4, %s20
      %p232 = scmp.lt.s32.totalorder %s230, 63
      %s233 = scalar_select %p232, %s230, 63
      %p234 = scmp.lt.s32.totalorder %s231, 3
      %s235 = scalar_select %p234, %s231, 3
      %s236 = smul.addr %s233, 4
      %s237 = sadd.s32 %s235, %s236
      %s238 = smul.addr %s237, 4
      %s239 = scalar_lea.vmem %s0, %s238
      %s240 = smul.u32 32, %s19
      %s241 = smul.u32 4, %s20
      %s242 = smul.u32 64, %s20
      %p243 = scmp.lt.s32.totalorder %s242, 63
      %s244 = scalar_select %p243, %s242, 63
      %s245 = smul.addr %s244, 4
      %s246 = scalar_lea.vmem %s1, %s245
      %s247 = smul.u32 64, %s20
      %s248 = smul.u32 32, %s19
      %p249 = scmp.lt.s32.totalorder %s248, 63
      %s250 = scalar_select %p249, %s248, 63
      %s251 = smul.addr %s250, 4
      %s252 = scalar_lea.vmem %s4, %s251
      %s253 = smul.u32 32, %s19
      %p255 = scmp.eq.s32.totalorder %s20, 0
      // Predicated region
      $region37: #{gcn_forward.4} parent=35 // pred_check
        %p256 = pneg %p255
      $region38: #{gcn_forward.4} parent=35 // pred_check_branch
        %258 = sbr.rel (%p256) target = $region40
      $region39: #{gcn_forward.4} parent=35 // pred_region
        %259 = vst [vmem:[#allocation2] sm:$0xff] 0.0
        %260 = vst [vmem:[#allocation2 + $0x8] sm:$0xff] 0.0
        %261 = vst [vmem:[#allocation2 + $0x10] sm:$0xff] 0.0
        %262 = vst [vmem:[#allocation2 + $0x18] sm:$0xff] 0.0
        %263 = vst [vmem:[#allocation2 + $0x20] sm:$0xff] 0.0
        %264 = vst [vmem:[#allocation2 + $0x28] sm:$0xff] 0.0
        %265 = vst [vmem:[#allocation2 + $0x30] sm:$0xff] 0.0
        %266 = vst [vmem:[#allocation2 + $0x38] sm:$0xff] 0.0
        %267 = vst [vmem:[#allocation2 + $0x40] sm:$0xff] 0.0
        %268 = vst [vmem:[#allocation2 + $0x48] sm:$0xff] 0.0
        %269 = vst [vmem:[#allocation2 + $0x50] sm:$0xff] 0.0
        %270 = vst [vmem:[#allocation2 + $0x58] sm:$0xff] 0.0
        %271 = vst [vmem:[#allocation2 + $0x60] sm:$0xff] 0.0
        %272 = vst [vmem:[#allocation2 + $0x68] sm:$0xff] 0.0
        %273 = vst [vmem:[#allocation2 + $0x70] sm:$0xff] 0.0
        %274 = vst [vmem:[#allocation2 + $0x78] sm:$0xff] 0.0
        %275 = vst [vmem:[#allocation2 + $0x80] sm:$0xff] 0.0
        %276 = vst [vmem:[#allocation2 + $0x88] sm:$0xff] 0.0
        %277 = vst [vmem:[#allocation2 + $0x90] sm:$0xff] 0.0
        %278 = vst [vmem:[#allocation2 + $0x98] sm:$0xff] 0.0
        %279 = vst [vmem:[#allocation2 + $0xa0] sm:$0xff] 0.0
        %280 = vst [vmem:[#allocation2 + $0xa8] sm:$0xff] 0.0
        %281 = vst [vmem:[#allocation2 + $0xb0] sm:$0xff] 0.0
        %282 = vst [vmem:[#allocation2 + $0xb8] sm:$0xff] 0.0
        %283 = vst [vmem:[#allocation2 + $0xc0] sm:$0xff] 0.0
        %284 = vst [vmem:[#allocation2 + $0xc8] sm:$0xff] 0.0
        %285 = vst [vmem:[#allocation2 + $0xd0] sm:$0xff] 0.0
        %286 = vst [vmem:[#allocation2 + $0xd8] sm:$0xff] 0.0
        %287 = vst [vmem:[#allocation2 + $0xe0] sm:$0xff] 0.0
        %288 = vst [vmem:[#allocation2 + $0xe8] sm:$0xff] 0.0
        %289 = vst [vmem:[#allocation2 + $0xf0] sm:$0xff] 0.0
        %290 = vst [vmem:[#allocation2 + $0xf8] sm:$0xff] 0.0
      $region40: #{gcn_forward.4} parent=35 // pred_fallthru
        _
      %v291 = vld [vmem:[%s246] sm:$0xf]
      %v292 = vld [vmem:[%s246 + $0x4] sm:$0xf]
      %v293 = vld [vmem:[%s246 + $0x8] sm:$0xf]
      %v294 = vld [vmem:[%s246 + $0xc] sm:$0xf]
      %v295 = vld [vmem:[%s246 + $0x10] sm:$0xf]
      %v296 = vld [vmem:[%s246 + $0x14] sm:$0xf]
      %v297 = vld [vmem:[%s246 + $0x18] sm:$0xf]
      %v298 = vld [vmem:[%s246 + $0x1c] sm:$0xf]
      %v299 = vld [vmem:[%s246 + $0x20] sm:$0xf]
      %v300 = vld [vmem:[%s246 + $0x24] sm:$0xf]
      %v301 = vld [vmem:[%s246 + $0x28] sm:$0xf]
      %v302 = vld [vmem:[%s246 + $0x2c] sm:$0xf]
      %v303 = vld [vmem:[%s246 + $0x30] sm:$0xf]
      %v304 = vld [vmem:[%s246 + $0x34] sm:$0xf]
      %v305 = vld [vmem:[%s246 + $0x38] sm:$0xf]
      %v306 = vld [vmem:[%s246 + $0x3c] sm:$0xf]
      %v307 = vld [vmem:[%s246 + $0x40] sm:$0xf]
      %v308 = vld [vmem:[%s246 + $0x44] sm:$0xf]
      %v309 = vld [vmem:[%s246 + $0x48] sm:$0xf]
      %v310 = vld [vmem:[%s246 + $0x4c] sm:$0xf]
      %v311 = vld [vmem:[%s246 + $0x50] sm:$0xf]
      %v312 = vld [vmem:[%s246 + $0x54] sm:$0xf]
      %v313 = vld [vmem:[%s246 + $0x58] sm:$0xf]
      %v314 = vld [vmem:[%s246 + $0x5c] sm:$0xf]
      %v315 = vld [vmem:[%s246 + $0x60] sm:$0xf]
      %v316 = vld [vmem:[%s246 + $0x64] sm:$0xf]
      %v317 = vld [vmem:[%s246 + $0x68] sm:$0xf]
      %v318 = vld [vmem:[%s246 + $0x6c] sm:$0xf]
      %v319 = vld [vmem:[%s246 + $0x70] sm:$0xf]
      %v320 = vld [vmem:[%s246 + $0x74] sm:$0xf]
      %v321 = vld [vmem:[%s246 + $0x78] sm:$0xf]
      %v322 = vld [vmem:[%s246 + $0x7c] sm:$0xf]
      %v323 = vld [vmem:[%s246 + $0x80] sm:$0xf]
      %v324 = vld [vmem:[%s246 + $0x84] sm:$0xf]
      %v325 = vld [vmem:[%s246 + $0x88] sm:$0xf]
      %v326 = vld [vmem:[%s246 + $0x8c] sm:$0xf]
      %v327 = vld [vmem:[%s246 + $0x90] sm:$0xf]
      %v328 = vld [vmem:[%s246 + $0x94] sm:$0xf]
      %v329 = vld [vmem:[%s246 + $0x98] sm:$0xf]
      %v330 = vld [vmem:[%s246 + $0x9c] sm:$0xf]
      %v331 = vld [vmem:[%s246 + $0xa0] sm:$0xf]
      %v332 = vld [vmem:[%s246 + $0xa4] sm:$0xf]
      %v333 = vld [vmem:[%s246 + $0xa8] sm:$0xf]
      %v334 = vld [vmem:[%s246 + $0xac] sm:$0xf]
      %v335 = vld [vmem:[%s246 + $0xb0] sm:$0xf]
      %v336 = vld [vmem:[%s246 + $0xb4] sm:$0xf]
      %v337 = vld [vmem:[%s246 + $0xb8] sm:$0xf]
      %v338 = vld [vmem:[%s246 + $0xbc] sm:$0xf]
      %v339 = vld [vmem:[%s246 + $0xc0] sm:$0xf]
      %v340 = vld [vmem:[%s246 + $0xc4] sm:$0xf]
      %v341 = vld [vmem:[%s246 + $0xc8] sm:$0xf]
      %v342 = vld [vmem:[%s246 + $0xcc] sm:$0xf]
      %v343 = vld [vmem:[%s246 + $0xd0] sm:$0xf]
      %v344 = vld [vmem:[%s246 + $0xd4] sm:$0xf]
      %v345 = vld [vmem:[%s246 + $0xd8] sm:$0xf]
      %v346 = vld [vmem:[%s246 + $0xdc] sm:$0xf]
      %v347 = vld [vmem:[%s246 + $0xe0] sm:$0xf]
      %v348 = vld [vmem:[%s246 + $0xe4] sm:$0xf]
      %v349 = vld [vmem:[%s246 + $0xe8] sm:$0xf]
      %v350 = vld [vmem:[%s246 + $0xec] sm:$0xf]
      %v351 = vld [vmem:[%s246 + $0xf0] sm:$0xf]
      %v352 = vld [vmem:[%s246 + $0xf4] sm:$0xf]
      %v353 = vld [vmem:[%s246 + $0xf8] sm:$0xf]
      %v354 = vld [vmem:[%s246 + $0xfc] sm:$0xf]
      %v355 = vld [vmem:[%s2] sm:$0xf]
      %v356 = vld [vmem:[%s2 + $0x4] sm:$0xf]
      %v357 = vld [vmem:[%s2 + $0x8] sm:$0xf]
      %v358 = vld [vmem:[%s2 + $0xc] sm:$0xf]
      %v359 = vld [vmem:[%s2 + $0x10] sm:$0xf]
      %v360 = vld [vmem:[%s2 + $0x14] sm:$0xf]
      %v361 = vld [vmem:[%s2 + $0x18] sm:$0xf]
      %v362 = vld [vmem:[%s2 + $0x1c] sm:$0xf]
      %v363 = vld [vmem:[%s2 + $0x20] sm:$0xf]
      %v364 = vld [vmem:[%s2 + $0x24] sm:$0xf]
      %v365 = vld [vmem:[%s2 + $0x28] sm:$0xf]
      %v366 = vld [vmem:[%s2 + $0x2c] sm:$0xf]
      %v367 = vld [vmem:[%s2 + $0x30] sm:$0xf]
      %v368 = vld [vmem:[%s2 + $0x34] sm:$0xf]
      %v369 = vld [vmem:[%s2 + $0x38] sm:$0xf]
      %v370 = vld [vmem:[%s2 + $0x3c] sm:$0xf]
      %v371 = vld [vmem:[%s3] sm:$0x1]
      %v373 = vlaneseq
      %v374 = vshrl.u32 %v373, 7
      %v375 = vsub.s32 0, %v374
      %v376 = vrot.slane %v371, %v375
      %v442 = vunpack.c.l.b16 %v291
      %v443 = vunpack.c.l.b16 %v292
      %v444 = vunpack.c.l.b16 %v293
      %v445 = vunpack.c.l.b16 %v294
      %v446 = vunpack.c.l.b16 %v295
      %v447 = vunpack.c.l.b16 %v296
      %v448 = vunpack.c.l.b16 %v297
      %v449 = vunpack.c.l.b16 %v298
      %v450 = vunpack.c.l.b16 %v299
      %v451 = vunpack.c.l.b16 %v300
      %v452 = vunpack.c.l.b16 %v301
      %v453 = vunpack.c.l.b16 %v302
      %v454 = vunpack.c.l.b16 %v303
      %v455 = vunpack.c.l.b16 %v304
      %v456 = vunpack.c.l.b16 %v305
      %v457 = vunpack.c.l.b16 %v306
      %v458 = vunpack.c.l.b16 %v307
      %v459 = vunpack.c.l.b16 %v308
      %v460 = vunpack.c.l.b16 %v309
      %v461 = vunpack.c.l.b16 %v310
      %v462 = vunpack.c.l.b16 %v311
      %v463 = vunpack.c.l.b16 %v312
      %v464 = vunpack.c.l.b16 %v313
      %v465 = vunpack.c.l.b16 %v314
      %v466 = vunpack.c.l.b16 %v315
      %v467 = vunpack.c.l.b16 %v316
      %v468 = vunpack.c.l.b16 %v317
      %v469 = vunpack.c.l.b16 %v318
      %v470 = vunpack.c.l.b16 %v319
      %v471 = vunpack.c.l.b16 %v320
      %v472 = vunpack.c.l.b16 %v321
      %v473 = vunpack.c.l.b16 %v322
      %v474 = vunpack.c.l.b16 %v323
      %v475 = vunpack.c.l.b16 %v324
      %v476 = vunpack.c.l.b16 %v325
      %v477 = vunpack.c.l.b16 %v326
      %v478 = vunpack.c.l.b16 %v327
      %v479 = vunpack.c.l.b16 %v328
      %v480 = vunpack.c.l.b16 %v329
      %v481 = vunpack.c.l.b16 %v330
      %v482 = vunpack.c.l.b16 %v331
      %v483 = vunpack.c.l.b16 %v332
      %v484 = vunpack.c.l.b16 %v333
      %v485 = vunpack.c.l.b16 %v334
      %v486 = vunpack.c.l.b16 %v335
      %v487 = vunpack.c.l.b16 %v336
      %v488 = vunpack.c.l.b16 %v337
      %v489 = vunpack.c.l.b16 %v338
      %v490 = vunpack.c.l.b16 %v339
      %v491 = vunpack.c.l.b16 %v340
      %v492 = vunpack.c.l.b16 %v341
      %v493 = vunpack.c.l.b16 %v342
      %v494 = vunpack.c.l.b16 %v343
      %v495 = vunpack.c.l.b16 %v344
      %v496 = vunpack.c.l.b16 %v345
      %v497 = vunpack.c.l.b16 %v346
      %v498 = vunpack.c.l.b16 %v347
      %v499 = vunpack.c.l.b16 %v348
      %v500 = vunpack.c.l.b16 %v349
      %v501 = vunpack.c.l.b16 %v350
      %v502 = vunpack.c.l.b16 %v351
      %v503 = vunpack.c.l.b16 %v352
      %v504 = vunpack.c.l.b16 %v353
      %v505 = vunpack.c.l.b16 %v354
      %v506 = vpack.c.b16 %v443, %v442
      %v507 = vpack.c.b16 %v445, %v444
      %v508 = vpack.c.b16 %v447, %v446
      %v509 = vpack.c.b16 %v449, %v448
      %v510 = vpack.c.b16 %v451, %v450
      %v511 = vpack.c.b16 %v453, %v452
      %v512 = vpack.c.b16 %v455, %v454
      %v513 = vpack.c.b16 %v457, %v456
      %v514 = vpack.c.b16 %v459, %v458
      %v515 = vpack.c.b16 %v461, %v460
      %v516 = vpack.c.b16 %v463, %v462
      %v517 = vpack.c.b16 %v465, %v464
      %v518 = vpack.c.b16 %v467, %v466
      %v519 = vpack.c.b16 %v469, %v468
      %v520 = vpack.c.b16 %v471, %v470
      %v521 = vpack.c.b16 %v473, %v472
      %v522 = vpack.c.b16 %v475, %v474
      %v523 = vpack.c.b16 %v477, %v476
      %v524 = vpack.c.b16 %v479, %v478
      %v525 = vpack.c.b16 %v481, %v480
      %v526 = vpack.c.b16 %v483, %v482
      %v527 = vpack.c.b16 %v485, %v484
      %v528 = vpack.c.b16 %v487, %v486
      %v529 = vpack.c.b16 %v489, %v488
      %v530 = vpack.c.b16 %v491, %v490
      %v531 = vpack.c.b16 %v493, %v492
      %v532 = vpack.c.b16 %v495, %v494
      %v533 = vpack.c.b16 %v497, %v496
      %v534 = vpack.c.b16 %v499, %v498
      %v535 = vpack.c.b16 %v501, %v500
      %v536 = vpack.c.b16 %v503, %v502
      %v537 = vpack.c.b16 %v505, %v504
      %v586 = vunpack.c.l.b16 %v355
      %v587 = vunpack.c.l.b16 %v356
      %v588 = vunpack.c.l.b16 %v357
      %v589 = vunpack.c.l.b16 %v358
      %v590 = vunpack.c.l.b16 %v359
      %v591 = vunpack.c.l.b16 %v360
      %v592 = vunpack.c.l.b16 %v361
      %v593 = vunpack.c.l.b16 %v362
      %v594 = vunpack.c.l.b16 %v363
      %v595 = vunpack.c.l.b16 %v364
      %v596 = vunpack.c.l.b16 %v365
      %v597 = vunpack.c.l.b16 %v366
      %v598 = vunpack.c.l.b16 %v367
      %v599 = vunpack.c.l.b16 %v368
      %v600 = vunpack.c.l.b16 %v369
      %v601 = vunpack.c.l.b16 %v370
      %v602 = vpack.c.b16 %v587, %v586
      %v603 = vpack.c.b16 %v589, %v588
      %v604 = vpack.c.b16 %v591, %v590
      %v605 = vpack.c.b16 %v593, %v592
      %v606 = vpack.c.b16 %v595, %v594
      %v607 = vpack.c.b16 %v597, %v596
      %v608 = vpack.c.b16 %v599, %v598
      %v609 = vpack.c.b16 %v601, %v600
      %618 = vmatprep.subr.bf16.mxu0 0
      %619 = vmatpush1.bf16.msra.mxu0 %v602
      %620 = vmatprep.subr.bf16.mxu0 0
      %621 = vmatpush1.bf16.msra.mxu0 %v603
      %622 = vmatprep.subr.bf16.mxu0 0
      %623 = vmatpush1.bf16.msra.mxu0 %v604
      %624 = vmatprep.subr.bf16.mxu0 0
      %625 = vmatpush1.bf16.msra.mxu0 %v605
      %626 = vmatprep.subr.bf16.mxu0 0
      %627 = vmatpush1.bf16.msra.mxu0 %v606
      %628 = vmatprep.subr.bf16.mxu0 0
      %629 = vmatpush1.bf16.msra.mxu0 %v607
      %630 = vmatprep.subr.bf16.mxu0 0
      %631 = vmatpush1.bf16.msra.mxu0 %v608
      %632 = vmatprep.subr.bf16.mxu0 0
      %633 = vmatpush1.bf16.msra.mxu0 %v609
      %634 = vmatprep.subr.bf16.mxu0 0
      %635 = vmatpush1.bf16.msra.mxu0 0
      %636 = vmatprep.subr.bf16.mxu0 0
      %637 = vmatpush1.bf16.msra.mxu0 0
      %638 = vmatprep.subr.bf16.mxu0 0
      %639 = vmatpush1.bf16.msra.mxu0 0
      %640 = vmatprep.subr.bf16.mxu0 0
      %641 = vmatpush1.bf16.msra.mxu0 0
      %642 = vmatprep.subr.bf16.mxu0 0
      %643 = vmatpush1.bf16.msra.mxu0 0
      %644 = vmatprep.subr.bf16.mxu0 0
      %645 = vmatpush1.bf16.msra.mxu0 0
      %646 = vmatprep.subr.bf16.mxu0 0
      %647 = vmatpush1.bf16.msra.mxu0 0
      %648 = vmatprep.subr.bf16.mxu0 0
      %649 = vmatpush1.bf16.msra.mxu0 0
      %650 = vmatprep.mubr.bf16.mxu0 0
      %651 = vmatmul.mubr.bf16.gmra.mrb[0].mxu0 %v506
      %v652 = vpop.f32.mrb[0].mxu0
      %v653 = vadd.f32 %v376, %v652
      %v654 = vpop.f32.mrb[0].mxu0
      %v655 = vpop.f32.mrb[0].mxu0
      %v656 = vadd.f32 %v376, %v655
      %v657 = vpop.f32.mrb[0].mxu0
      %658 = vmatprep.mubr.bf16.mxu0 0
      %659 = vmatmul.mubr.bf16.gmra.mrb[0].mxu0 %v507
      %v660 = vpop.f32.mrb[0].mxu0
      %v661 = vadd.f32 %v376, %v660
      %v662 = vpop.f32.mrb[0].mxu0
      %v663 = vpop.f32.mrb[0].mxu0
      %v664 = vadd.f32 %v376, %v663
      %v665 = vpop.f32.mrb[0].mxu0
      %666 = vmatprep.mubr.bf16.mxu0 0
      %667 = vmatmul.mubr.bf16.gmra.mrb[0].mxu0 %v508
      %v668 = vpop.f32.mrb[0].mxu0
      %v669 = vadd.f32 %v376, %v668
      %v670 = vpop.f32.mrb[0].mxu0
      %v671 = vpop.f32.mrb[0].mxu0
      %v672 = vadd.f32 %v376, %v671
      %v673 = vpop.f32.mrb[0].mxu0
      %674 = vmatprep.mubr.bf16.mxu0 0
      %675 = vmatmul.mubr.bf16.gmra.mrb[0].mxu0 %v509
      %v676 = vpop.f32.mrb[0].mxu0
      %v677 = vadd.f32 %v376, %v676
      %v678 = vpop.f32.mrb[0].mxu0
      %v679 = vpop.f32.mrb[0].mxu0
      %v680 = vadd.f32 %v376, %v679
      %v681 = vpop.f32.mrb[0].mxu0
      %682 = vmatprep.mubr.bf16.mxu0 0
      %683 = vmatmul.mubr.bf16.gmra.mrb[0].mxu0 %v510
      %v684 = vpop.f32.mrb[0].mxu0
      %v685 = vadd.f32 %v376, %v684
      %v686 = vpop.f32.mrb[0].mxu0
      %v687 = vpop.f32.mrb[0].mxu0
      %v688 = vadd.f32 %v376, %v687
      %v689 = vpop.f32.mrb[0].mxu0
      %690 = vmatprep.mubr.bf16.mxu0 0
      %691 = vmatmul.mubr.bf16.gmra.mrb[0].mxu0 %v511
      %v692 = vpop.f32.mrb[0].mxu0
      %v693 = vadd.f32 %v376, %v692
      %v694 = vpop.f32.mrb[0].mxu0
      %v695 = vpop.f32.mrb[0].mxu0
      %v696 = vadd.f32 %v376, %v695
      %v697 = vpop.f32.mrb[0].mxu0
      %698 = vmatprep.mubr.bf16.mxu0 0
      %699 = vmatmul.mubr.bf16.gmra.mrb[0].mxu0 %v512
      %v700 = vpop.f32.mrb[0].mxu0
      %v701 = vadd.f32 %v376, %v700
      %v702 = vpop.f32.mrb[0].mxu0
      %v703 = vpop.f32.mrb[0].mxu0
      %v704 = vadd.f32 %v376, %v703
      %v705 = vpop.f32.mrb[0].mxu0
      %706 = vmatprep.mubr.bf16.mxu0 0
      %707 = vmatmul.mubr.bf16.gmra.mrb[0].mxu0 %v513
      %v708 = vpop.f32.mrb[0].mxu0
      %v709 = vadd.f32 %v376, %v708
      %v710 = vpop.f32.mrb[0].mxu0
      %v711 = vpop.f32.mrb[0].mxu0
      %v712 = vadd.f32 %v376, %v711
      %v713 = vpop.f32.mrb[0].mxu0
      %714 = vmatprep.mubr.bf16.mxu0 0
      %715 = vmatmul.mubr.bf16.gmra.mrb[0].mxu0 %v514
      %v716 = vpop.f32.mrb[0].mxu0
      %v717 = vadd.f32 %v376, %v716
      %v718 = vpop.f32.mrb[0].mxu0
      %v719 = vpop.f32.mrb[0].mxu0
      %v720 = vadd.f32 %v376, %v719
      %v721 = vpop.f32.mrb[0].mxu0
      %722 = vmatprep.mubr.bf16.mxu0 0
      %723 = vmatmul.mubr.bf16.gmra.mrb[0].mxu0 %v515
      %v724 = vpop.f32.mrb[0].mxu0
      %v725 = vadd.f32 %v376, %v724
      %v726 = vpop.f32.mrb[0].mxu0
      %v727 = vpop.f32.mrb[0].mxu0
      %v728 = vadd.f32 %v376, %v727
      %v729 = vpop.f32.mrb[0].mxu0
      %730 = vmatprep.mubr.bf16.mxu0 0
      %731 = vmatmul.mubr.bf16.gmra.mrb[0].mxu0 %v516
      %v732 = vpop.f32.mrb[0].mxu0
      %v733 = vadd.f32 %v376, %v732
      %v734 = vpop.f32.mrb[0].mxu0
      %v735 = vpop.f32.mrb[0].mxu0
      %v736 = vadd.f32 %v376, %v735
      %v737 = vpop.f32.mrb[0].mxu0
      %738 = vmatprep.mubr.bf16.mxu0 0
      %739 = vmatmul.mubr.bf16.gmra.mrb[0].mxu0 %v517
      %v740 = vpop.f32.mrb[0].mxu0
      %v741 = vadd.f32 %v376, %v740
      %v742 = vpop.f32.mrb[0].mxu0
      %v743 = vpop.f32.mrb[0].mxu0
      %v744 = vadd.f32 %v376, %v743
      %v745 = vpop.f32.mrb[0].mxu0
      %746 = vmatprep.mubr.bf16.mxu0 0
      %747 = vmatmul.mubr.bf16.gmra.mrb[0].mxu0 %v518
      %v748 = vpop.f32.mrb[0].mxu0
      %v749 = vadd.f32 %v376, %v748
      %v750 = vpop.f32.mrb[0].mxu0
      %v751 = vpop.f32.mrb[0].mxu0
      %v752 = vadd.f32 %v376, %v751
      %v753 = vpop.f32.mrb[0].mxu0
      %754 = vmatprep.mubr.bf16.mxu0 0
      %755 = vmatmul.mubr.bf16.gmra.mrb[0].mxu0 %v519
      %v756 = vpop.f32.mrb[0].mxu0
      %v757 = vadd.f32 %v376, %v756
      %v758 = vpop.f32.mrb[0].mxu0
      %v759 = vpop.f32.mrb[0].mxu0
      %v760 = vadd.f32 %v376, %v759
      %v761 = vpop.f32.mrb[0].mxu0
      %762 = vmatprep.mubr.bf16.mxu0 0
      %763 = vmatmul.mubr.bf16.gmra.mrb[0].mxu0 %v520
      %v764 = vpop.f32.mrb[0].mxu0
      %v765 = vadd.f32 %v376, %v764
      %v766 = vpop.f32.mrb[0].mxu0
      %v767 = vpop.f32.mrb[0].mxu0
      %v768 = vadd.f32 %v376, %v767
      %v769 = vpop.f32.mrb[0].mxu0
      %770 = vmatprep.mubr.bf16.mxu0 0
      %771 = vmatmul.mubr.bf16.gmra.mrb[0].mxu0 %v521
      %v772 = vpop.f32.mrb[0].mxu0
      %v773 = vadd.f32 %v376, %v772
      %v774 = vpop.f32.mrb[0].mxu0
      %v775 = vpop.f32.mrb[0].mxu0
      %v776 = vadd.f32 %v376, %v775
      %v777 = vpop.f32.mrb[0].mxu0
      %778 = vmatprep.mubr.bf16.mxu0 0
      %779 = vmatmul.mubr.bf16.gmra.mrb[0].mxu0 %v522
      %v780 = vpop.f32.mrb[0].mxu0
      %v781 = vadd.f32 %v376, %v780
      %v782 = vpop.f32.mrb[0].mxu0
      %v783 = vpop.f32.mrb[0].mxu0
      %v784 = vadd.f32 %v376, %v783
      %v785 = vpop.f32.mrb[0].mxu0
      %786 = vmatprep.mubr.bf16.mxu0 0
      %787 = vmatmul.mubr.bf16.gmra.mrb[0].mxu0 %v523
      %v788 = vpop.f32.mrb[0].mxu0
      %v789 = vadd.f32 %v376, %v788
      %v790 = vpop.f32.mrb[0].mxu0
      %v791 = vpop.f32.mrb[0].mxu0
      %v792 = vadd.f32 %v376, %v791
      %v793 = vpop.f32.mrb[0].mxu0
      %794 = vmatprep.mubr.bf16.mxu0 0
      %795 = vmatmul.mubr.bf16.gmra.mrb[0].mxu0 %v524
      %v796 = vpop.f32.mrb[0].mxu0
      %v797 = vadd.f32 %v376, %v796
      %v798 = vpop.f32.mrb[0].mxu0
      %v799 = vpop.f32.mrb[0].mxu0
      %v800 = vadd.f32 %v376, %v799
      %v801 = vpop.f32.mrb[0].mxu0
      %802 = vmatprep.mubr.bf16.mxu0 0
      %803 = vmatmul.mubr.bf16.gmra.mrb[0].mxu0 %v525
      %v804 = vpop.f32.mrb[0].mxu0
      %v805 = vadd.f32 %v376, %v804
      %v806 = vpop.f32.mrb[0].mxu0
      %v807 = vpop.f32.mrb[0].mxu0
      %v808 = vadd.f32 %v376, %v807
      %v809 = vpop.f32.mrb[0].mxu0
      %810 = vmatprep.mubr.bf16.mxu0 0
      %811 = vmatmul.mubr.bf16.gmra.mrb[0].mxu0 %v526
      %v812 = vpop.f32.mrb[0].mxu0
      %v813 = vadd.f32 %v376, %v812
      %v814 = vpop.f32.mrb[0].mxu0
      %v815 = vpop.f32.mrb[0].mxu0
      %v816 = vadd.f32 %v376, %v815
      %v817 = vpop.f32.mrb[0].mxu0
      %818 = vmatprep.mubr.bf16.mxu0 0
      %819 = vmatmul.mubr.bf16.gmra.mrb[0].mxu0 %v527
      %v820 = vpop.f32.mrb[0].mxu0
      %v821 = vadd.f32 %v376, %v820
      %v822 = vpop.f32.mrb[0].mxu0
      %v823 = vpop.f32.mrb[0].mxu0
      %v824 = vadd.f32 %v376, %v823
      %v825 = vpop.f32.mrb[0].mxu0
      %826 = vmatprep.mubr.bf16.mxu0 0
      %827 = vmatmul.mubr.bf16.gmra.mrb[0].mxu0 %v528
      %v828 = vpop.f32.mrb[0].mxu0
      %v829 = vadd.f32 %v376, %v828
      %v830 = vpop.f32.mrb[0].mxu0
      %v831 = vpop.f32.mrb[0].mxu0
      %v832 = vadd.f32 %v376, %v831
      %v833 = vpop.f32.mrb[0].mxu0
      %834 = vmatprep.mubr.bf16.mxu0 0
      %835 = vmatmul.mubr.bf16.gmra.mrb[0].mxu0 %v529
      %v836 = vpop.f32.mrb[0].mxu0
      %v837 = vadd.f32 %v376, %v836
      %v838 = vpop.f32.mrb[0].mxu0
      %v839 = vpop.f32.mrb[0].mxu0
      %v840 = vadd.f32 %v376, %v839
      %v841 = vpop.f32.mrb[0].mxu0
      %842 = vmatprep.mubr.bf16.mxu0 0
      %843 = vmatmul.mubr.bf16.gmra.mrb[0].mxu0 %v530
      %v844 = vpop.f32.mrb[0].mxu0
      %v845 = vadd.f32 %v376, %v844
      %v846 = vpop.f32.mrb[0].mxu0
      %v847 = vpop.f32.mrb[0].mxu0
      %v848 = vadd.f32 %v376, %v847
      %v849 = vpop.f32.mrb[0].mxu0
      %850 = vmatprep.mubr.bf16.mxu0 0
      %851 = vmatmul.mubr.bf16.gmra.mrb[0].mxu0 %v531
      %v852 = vpop.f32.mrb[0].mxu0
      %v853 = vadd.f32 %v376, %v852
      %v854 = vpop.f32.mrb[0].mxu0
      %v855 = vpop.f32.mrb[0].mxu0
      %v856 = vadd.f32 %v376, %v855
      %v857 = vpop.f32.mrb[0].mxu0
      %858 = vmatprep.mubr.bf16.mxu0 0
      %859 = vmatmul.mubr.bf16.gmra.mrb[0].mxu0 %v532
      %v860 = vpop.f32.mrb[0].mxu0
      %v861 = vadd.f32 %v376, %v860
      %v862 = vpop.f32.mrb[0].mxu0
      %v863 = vpop.f32.mrb[0].mxu0
      %v864 = vadd.f32 %v376, %v863
      %v865 = vpop.f32.mrb[0].mxu0
      %866 = vmatprep.mubr.bf16.mxu0 0
      %867 = vmatmul.mubr.bf16.gmra.mrb[0].mxu0 %v533
      %v868 = vpop.f32.mrb[0].mxu0
      %v869 = vadd.f32 %v376, %v868
      %v870 = vpop.f32.mrb[0].mxu0
      %v871 = vpop.f32.mrb[0].mxu0
      %v872 = vadd.f32 %v376, %v871
      %v873 = vpop.f32.mrb[0].mxu0
      %874 = vmatprep.mubr.bf16.mxu0 0
      %875 = vmatmul.mubr.bf16.gmra.mrb[0].mxu0 %v534
      %v876 = vpop.f32.mrb[0].mxu0
      %v877 = vadd.f32 %v376, %v876
      %v878 = vpop.f32.mrb[0].mxu0
      %v879 = vpop.f32.mrb[0].mxu0
      %v880 = vadd.f32 %v376, %v879
      %v881 = vpop.f32.mrb[0].mxu0
      %882 = vmatprep.mubr.bf16.mxu0 0
      %883 = vmatmul.mubr.bf16.gmra.mrb[0].mxu0 %v535
      %v884 = vpop.f32.mrb[0].mxu0
      %v885 = vadd.f32 %v376, %v884
      %v886 = vpop.f32.mrb[0].mxu0
      %v887 = vpop.f32.mrb[0].mxu0
      %v888 = vadd.f32 %v376, %v887
      %v889 = vpop.f32.mrb[0].mxu0
      %890 = vmatprep.mubr.bf16.mxu0 0
      %891 = vmatmul.mubr.bf16.gmra.mrb[0].mxu0 %v536
      %v892 = vpop.f32.mrb[0].mxu0
      %v893 = vadd.f32 %v376, %v892
      %v894 = vpop.f32.mrb[0].mxu0
      %v895 = vpop.f32.mrb[0].mxu0
      %v896 = vadd.f32 %v376, %v895
      %v897 = vpop.f32.mrb[0].mxu0
      %898 = vmatprep.mubr.bf16.mxu0 0
      %899 = vmatmul.mubr.bf16.gmra.mrb[0].mxu0 %v537
      %v900 = vpop.f32.mrb[0].mxu0
      %v901 = vadd.f32 %v376, %v900
      %v902 = vpop.f32.mrb[0].mxu0
      %v903 = vpop.f32.mrb[0].mxu0
      %v904 = vadd.f32 %v376, %v903
      %v905 = vpop.f32.mrb[0].mxu0
      %906 = vdwg.mxu0
      %v907 = vld [vmem:[#allocation2] sm:$0xff]
      %v908 = vld [vmem:[#allocation2 + $0x8] sm:$0xff]
      %v909 = vld [vmem:[#allocation2 + $0x10] sm:$0xff]
      %v910 = vld [vmem:[#allocation2 + $0x18] sm:$0xff]
      %v911 = vld [vmem:[#allocation2 + $0x20] sm:$0xff]
      %v912 = vld [vmem:[#allocation2 + $0x28] sm:$0xff]
      %v913 = vld [vmem:[#allocation2 + $0x30] sm:$0xff]
      %v914 = vld [vmem:[#allocation2 + $0x38] sm:$0xff]
      %v915 = vld [vmem:[#allocation2 + $0x40] sm:$0xff]
      %v916 = vld [vmem:[#allocation2 + $0x48] sm:$0xff]
      %v917 = vld [vmem:[#allocation2 + $0x50] sm:$0xff]
      %v918 = vld [vmem:[#allocation2 + $0x58] sm:$0xff]
      %v919 = vld [vmem:[#allocation2 + $0x60] sm:$0xff]
      %v920 = vld [vmem:[#allocation2 + $0x68] sm:$0xff]
      %v921 = vld [vmem:[#allocation2 + $0x70] sm:$0xff]
      %v922 = vld [vmem:[#allocation2 + $0x78] sm:$0xff]
      %v923 = vld [vmem:[#allocation2 + $0x80] sm:$0xff]
      %v924 = vld [vmem:[#allocation2 + $0x88] sm:$0xff]
      %v925 = vld [vmem:[#allocation2 + $0x90] sm:$0xff]
      %v926 = vld [vmem:[#allocation2 + $0x98] sm:$0xff]
      %v927 = vld [vmem:[#allocation2 + $0xa0] sm:$0xff]
      %v928 = vld [vmem:[#allocation2 + $0xa8] sm:$0xff]
      %v929 = vld [vmem:[#allocation2 + $0xb0] sm:$0xff]
      %v930 = vld [vmem:[#allocation2 + $0xb8] sm:$0xff]
      %v931 = vld [vmem:[#allocation2 + $0xc0] sm:$0xff]
      %v932 = vld [vmem:[#allocation2 + $0xc8] sm:$0xff]
      %v933 = vld [vmem:[#allocation2 + $0xd0] sm:$0xff]
      %v934 = vld [vmem:[#allocation2 + $0xd8] sm:$0xff]
      %v935 = vld [vmem:[#allocation2 + $0xe0] sm:$0xff]
      %v936 = vld [vmem:[#allocation2 + $0xe8] sm:$0xff]
      %v937 = vld [vmem:[#allocation2 + $0xf0] sm:$0xff]
      %v938 = vld [vmem:[#allocation2 + $0xf8] sm:$0xff]
      %v939 = vld [vmem:[%s239] sm:$0xff]
      %v940 = vld [vmem:[%s239 + $0x8] sm:$0xff]
      %v941 = vld [vmem:[%s239 + $0x10] sm:$0xff]
      %v942 = vld [vmem:[%s239 + $0x18] sm:$0xff]
      %v943 = vld [vmem:[%s239 + $0x20] sm:$0xff]
      %v944 = vld [vmem:[%s239 + $0x28] sm:$0xff]
      %v945 = vld [vmem:[%s239 + $0x30] sm:$0xff]
      %v946 = vld [vmem:[%s239 + $0x38] sm:$0xff]
      %v947 = vld [vmem:[%s239 + $0x40] sm:$0xff]
      %v948 = vld [vmem:[%s239 + $0x48] sm:$0xff]
      %v949 = vld [vmem:[%s239 + $0x50] sm:$0xff]
      %v950 = vld [vmem:[%s239 + $0x58] sm:$0xff]
      %v951 = vld [vmem:[%s239 + $0x60] sm:$0xff]
      %v952 = vld [vmem:[%s239 + $0x68] sm:$0xff]
      %v953 = vld [vmem:[%s239 + $0x70] sm:$0xff]
      %v954 = vld [vmem:[%s239 + $0x78] sm:$0xff]
      %v955 = vld [vmem:[%s239 + $0x80] sm:$0xff]
      %v956 = vld [vmem:[%s239 + $0x88] sm:$0xff]
      %v957 = vld [vmem:[%s239 + $0x90] sm:$0xff]
      %v958 = vld [vmem:[%s239 + $0x98] sm:$0xff]
      %v959 = vld [vmem:[%s239 + $0xa0] sm:$0xff]
      %v960 = vld [vmem:[%s239 + $0xa8] sm:$0xff]
      %v961 = vld [vmem:[%s239 + $0xb0] sm:$0xff]
      %v962 = vld [vmem:[%s239 + $0xb8] sm:$0xff]
      %v963 = vld [vmem:[%s239 + $0xc0] sm:$0xff]
      %v964 = vld [vmem:[%s239 + $0xc8] sm:$0xff]
      %v965 = vld [vmem:[%s239 + $0xd0] sm:$0xff]
      %v966 = vld [vmem:[%s239 + $0xd8] sm:$0xff]
      %v967 = vld [vmem:[%s239 + $0xe0] sm:$0xff]
      %v968 = vld [vmem:[%s239 + $0xe8] sm:$0xff]
      %v969 = vld [vmem:[%s239 + $0xf0] sm:$0xff]
      %v970 = vld [vmem:[%s239 + $0xf8] sm:$0xff]
      %v971 = vld [vmem:[%s239 + $0x100] sm:$0xff]
      %v972 = vld [vmem:[%s239 + $0x108] sm:$0xff]
      %v973 = vld [vmem:[%s239 + $0x110] sm:$0xff]
      %v974 = vld [vmem:[%s239 + $0x118] sm:$0xff]
      %v975 = vld [vmem:[%s239 + $0x120] sm:$0xff]
      %v976 = vld [vmem:[%s239 + $0x128] sm:$0xff]
      %v977 = vld [vmem:[%s239 + $0x130] sm:$0xff]
      %v978 = vld [vmem:[%s239 + $0x138] sm:$0xff]
      %v979 = vld [vmem:[%s239 + $0x140] sm:$0xff]
      %v980 = vld [vmem:[%s239 + $0x148] sm:$0xff]
      %v981 = vld [vmem:[%s239 + $0x150] sm:$0xff]
      %v982 = vld [vmem:[%s239 + $0x158] sm:$0xff]
      %v983 = vld [vmem:[%s239 + $0x160] sm:$0xff]
      %v984 = vld [vmem:[%s239 + $0x168] sm:$0xff]
      %v985 = vld [vmem:[%s239 + $0x170] sm:$0xff]
      %v986 = vld [vmem:[%s239 + $0x178] sm:$0xff]
      %v987 = vld [vmem:[%s239 + $0x180] sm:$0xff]
      %v988 = vld [vmem:[%s239 + $0x188] sm:$0xff]
      %v989 = vld [vmem:[%s239 + $0x190] sm:$0xff]
      %v990 = vld [vmem:[%s239 + $0x198] sm:$0xff]
      %v991 = vld [vmem:[%s239 + $0x1a0] sm:$0xff]
      %v992 = vld [vmem:[%s239 + $0x1a8] sm:$0xff]
      %v993 = vld [vmem:[%s239 + $0x1b0] sm:$0xff]
      %v994 = vld [vmem:[%s239 + $0x1b8] sm:$0xff]
      %v995 = vld [vmem:[%s239 + $0x1c0] sm:$0xff]
      %v996 = vld [vmem:[%s239 + $0x1c8] sm:$0xff]
      %v997 = vld [vmem:[%s239 + $0x1d0] sm:$0xff]
      %v998 = vld [vmem:[%s239 + $0x1d8] sm:$0xff]
      %v999 = vld [vmem:[%s239 + $0x1e0] sm:$0xff]
      %v1000 = vld [vmem:[%s239 + $0x1e8] sm:$0xff]
      %v1001 = vld [vmem:[%s239 + $0x1f0] sm:$0xff]
      %v1002 = vld [vmem:[%s239 + $0x1f8] sm:$0xff]
      %v1003 = vpack.c.bf16 %v656, %v653
      %v1004 = vpack.c.bf16 %v664, %v661
      %v1005 = vpack.c.bf16 %v672, %v669
      %v1006 = vpack.c.bf16 %v680, %v677
      %v1007 = vpack.c.bf16 %v688, %v685
      %v1008 = vpack.c.bf16 %v696, %v693
      %v1009 = vpack.c.bf16 %v704, %v701
      %v1010 = vpack.c.bf16 %v712, %v709
      %v1011 = vpack.c.bf16 %v720, %v717
      %v1012 = vpack.c.bf16 %v728, %v725
      %v1013 = vpack.c.bf16 %v736, %v733
      %v1014 = vpack.c.bf16 %v744, %v741
      %v1015 = vpack.c.bf16 %v752, %v749
      %v1016 = vpack.c.bf16 %v760, %v757
      %v1017 = vpack.c.bf16 %v768, %v765
      %v1018 = vpack.c.bf16 %v776, %v773
      %v1019 = vpack.c.bf16 %v784, %v781
      %v1020 = vpack.c.bf16 %v792, %v789
      %v1021 = vpack.c.bf16 %v800, %v797
      %v1022 = vpack.c.bf16 %v808, %v805
      %v1023 = vpack.c.bf16 %v816, %v813
      %v1024 = vpack.c.bf16 %v824, %v821
      %v1025 = vpack.c.bf16 %v832, %v829
      %v1026 = vpack.c.bf16 %v840, %v837
      %v1027 = vpack.c.bf16 %v848, %v845
      %v1028 = vpack.c.bf16 %v856, %v853
      %v1029 = vpack.c.bf16 %v864, %v861
      %v1030 = vpack.c.bf16 %v872, %v869
      %v1031 = vpack.c.bf16 %v880, %v877
      %v1032 = vpack.c.bf16 %v888, %v885
      %v1033 = vpack.c.bf16 %v896, %v893
      %v1034 = vpack.c.bf16 %v904, %v901
      %v1099 = vunpack.c.l.b16 %v939
      %v1100 = vunpack.c.h.b16 %v939
      %v1101 = vunpack.c.l.b16 %v940
      %v1102 = vunpack.c.h.b16 %v940
      %v1103 = vunpack.c.l.b16 %v941
      %v1104 = vunpack.c.h.b16 %v941
      %v1105 = vunpack.c.l.b16 %v942
      %v1106 = vunpack.c.h.b16 %v942
      %v1107 = vunpack.c.l.b16 %v943
      %v1108 = vunpack.c.h.b16 %v943
      %v1109 = vunpack.c.l.b16 %v944
      %v1110 = vunpack.c.h.b16 %v944
      %v1111 = vunpack.c.l.b16 %v945
      %v1112 = vunpack.c.h.b16 %v945
      %v1113 = vunpack.c.l.b16 %v946
      %v1114 = vunpack.c.h.b16 %v946
      %v1115 = vunpack.c.l.b16 %v947
      %v1116 = vunpack.c.h.b16 %v947
      %v1117 = vunpack.c.l.b16 %v948
      %v1118 = vunpack.c.h.b16 %v948
      %v1119 = vunpack.c.l.b16 %v949
      %v1120 = vunpack.c.h.b16 %v949
      %v1121 = vunpack.c.l.b16 %v950
      %v1122 = vunpack.c.h.b16 %v950
      %v1123 = vunpack.c.l.b16 %v951
      %v1124 = vunpack.c.h.b16 %v951
      %v1125 = vunpack.c.l.b16 %v952
      %v1126 = vunpack.c.h.b16 %v952
      %v1127 = vunpack.c.l.b16 %v953
      %v1128 = vunpack.c.h.b16 %v953
      %v1129 = vunpack.c.l.b16 %v954
      %v1130 = vunpack.c.h.b16 %v954
      %v1131 = vunpack.c.l.b16 %v955
      %v1132 = vunpack.c.h.b16 %v955
      %v1133 = vunpack.c.l.b16 %v956
      %v1134 = vunpack.c.h.b16 %v956
      %v1135 = vunpack.c.l.b16 %v957
      %v1136 = vunpack.c.h.b16 %v957
      %v1137 = vunpack.c.l.b16 %v958
      %v1138 = vunpack.c.h.b16 %v958
      %v1139 = vunpack.c.l.b16 %v959
      %v1140 = vunpack.c.h.b16 %v959
      %v1141 = vunpack.c.l.b16 %v960
      %v1142 = vunpack.c.h.b16 %v960
      %v1143 = vunpack.c.l.b16 %v961
      %v1144 = vunpack.c.h.b16 %v961
      %v1145 = vunpack.c.l.b16 %v962
      %v1146 = vunpack.c.h.b16 %v962
      %v1147 = vunpack.c.l.b16 %v963
      %v1148 = vunpack.c.h.b16 %v963
      %v1149 = vunpack.c.l.b16 %v964
      %v1150 = vunpack.c.h.b16 %v964
      %v1151 = vunpack.c.l.b16 %v965
      %v1152 = vunpack.c.h.b16 %v965
      %v1153 = vunpack.c.l.b16 %v966
      %v1154 = vunpack.c.h.b16 %v966
      %v1155 = vunpack.c.l.b16 %v967
      %v1156 = vunpack.c.h.b16 %v967
      %v1157 = vunpack.c.l.b16 %v968
      %v1158 = vunpack.c.h.b16 %v968
      %v1159 = vunpack.c.l.b16 %v969
      %v1160 = vunpack.c.h.b16 %v969
      %v1161 = vunpack.c.l.b16 %v970
      %v1162 = vunpack.c.h.b16 %v970
      %v1163 = vunpack.c.l.b16 %v971
      %v1164 = vunpack.c.h.b16 %v971
      %v1165 = vunpack.c.l.b16 %v972
      %v1166 = vunpack.c.h.b16 %v972
      %v1167 = vunpack.c.l.b16 %v973
      %v1168 = vunpack.c.h.b16 %v973
      %v1169 = vunpack.c.l.b16 %v974
      %v1170 = vunpack.c.h.b16 %v974
      %v1171 = vunpack.c.l.b16 %v975
      %v1172 = vunpack.c.h.b16 %v975
      %v1173 = vunpack.c.l.b16 %v976
      %v1174 = vunpack.c.h.b16 %v976
      %v1175 = vunpack.c.l.b16 %v977
      %v1176 = vunpack.c.h.b16 %v977
      %v1177 = vunpack.c.l.b16 %v978
      %v1178 = vunpack.c.h.b16 %v978
      %v1179 = vunpack.c.l.b16 %v979
      %v1180 = vunpack.c.h.b16 %v979
      %v1181 = vunpack.c.l.b16 %v980
      %v1182 = vunpack.c.h.b16 %v980
      %v1183 = vunpack.c.l.b16 %v981
      %v1184 = vunpack.c.h.b16 %v981
      %v1185 = vunpack.c.l.b16 %v982
      %v1186 = vunpack.c.h.b16 %v982
      %v1187 = vunpack.c.l.b16 %v983
      %v1188 = vunpack.c.h.b16 %v983
      %v1189 = vunpack.c.l.b16 %v984
      %v1190 = vunpack.c.h.b16 %v984
      %v1191 = vunpack.c.l.b16 %v985
      %v1192 = vunpack.c.h.b16 %v985
      %v1193 = vunpack.c.l.b16 %v986
      %v1194 = vunpack.c.h.b16 %v986
      %v1195 = vunpack.c.l.b16 %v987
      %v1196 = vunpack.c.h.b16 %v987
      %v1197 = vunpack.c.l.b16 %v988
      %v1198 = vunpack.c.h.b16 %v988
      %v1199 = vunpack.c.l.b16 %v989
      %v1200 = vunpack.c.h.b16 %v989
      %v1201 = vunpack.c.l.b16 %v990
      %v1202 = vunpack.c.h.b16 %v990
      %v1203 = vunpack.c.l.b16 %v991
      %v1204 = vunpack.c.h.b16 %v991
      %v1205 = vunpack.c.l.b16 %v992
      %v1206 = vunpack.c.h.b16 %v992
      %v1207 = vunpack.c.l.b16 %v993
      %v1208 = vunpack.c.h.b16 %v993
      %v1209 = vunpack.c.l.b16 %v994
      %v1210 = vunpack.c.h.b16 %v994
      %v1211 = vunpack.c.l.b16 %v995
      %v1212 = vunpack.c.h.b16 %v995
      %v1213 = vunpack.c.l.b16 %v996
      %v1214 = vunpack.c.h.b16 %v996
      %v1215 = vunpack.c.l.b16 %v997
      %v1216 = vunpack.c.h.b16 %v997
      %v1217 = vunpack.c.l.b16 %v998
      %v1218 = vunpack.c.h.b16 %v998
      %v1219 = vunpack.c.l.b16 %v999
      %v1220 = vunpack.c.h.b16 %v999
      %v1221 = vunpack.c.l.b16 %v1000
      %v1222 = vunpack.c.h.b16 %v1000
      %v1223 = vunpack.c.l.b16 %v1001
      %v1224 = vunpack.c.h.b16 %v1001
      %v1225 = vunpack.c.l.b16 %v1002
      %v1226 = vunpack.c.h.b16 %v1002
      %v1227 = vpack.c.b16 %v1103, %v1099
      %v1228 = vpack.c.b16 %v1104, %v1100
      %v1229 = vpack.c.b16 %v1105, %v1101
      %v1230 = vpack.c.b16 %v1106, %v1102
      %v1231 = vpack.c.b16 %v1111, %v1107
      %v1232 = vpack.c.b16 %v1112, %v1108
      %v1233 = vpack.c.b16 %v1113, %v1109
      %v1234 = vpack.c.b16 %v1114, %v1110
      %v1235 = vpack.c.b16 %v1119, %v1115
      %v1236 = vpack.c.b16 %v1120, %v1116
      %v1237 = vpack.c.b16 %v1121, %v1117
      %v1238 = vpack.c.b16 %v1122, %v1118
      %v1239 = vpack.c.b16 %v1127, %v1123
      %v1240 = vpack.c.b16 %v1128, %v1124
      %v1241 = vpack.c.b16 %v1129, %v1125
      %v1242 = vpack.c.b16 %v1130, %v1126
      %v1243 = vpack.c.b16 %v1135, %v1131
      %v1244 = vpack.c.b16 %v1136, %v1132
      %v1245 = vpack.c.b16 %v1137, %v1133
      %v1246 = vpack.c.b16 %v1138, %v1134
      %v1247 = vpack.c.b16 %v1143, %v1139
      %v1248 = vpack.c.b16 %v1144, %v1140
      %v1249 = vpack.c.b16 %v1145, %v1141
      %v1250 = vpack.c.b16 %v1146, %v1142
      %v1251 = vpack.c.b16 %v1151, %v1147
      %v1252 = vpack.c.b16 %v1152, %v1148
      %v1253 = vpack.c.b16 %v1153, %v1149
      %v1254 = vpack.c.b16 %v1154, %v1150
      %v1255 = vpack.c.b16 %v1159, %v1155
      %v1256 = vpack.c.b16 %v1160, %v1156
      %v1257 = vpack.c.b16 %v1161, %v1157
      %v1258 = vpack.c.b16 %v1162, %v1158
      %v1259 = vpack.c.b16 %v1167, %v1163
      %v1260 = vpack.c.b16 %v1168, %v1164
      %v1261 = vpack.c.b16 %v1169, %v1165
      %v1262 = vpack.c.b16 %v1170, %v1166
      %v1263 = vpack.c.b16 %v1175, %v1171
      %v1264 = vpack.c.b16 %v1176, %v1172
      %v1265 = vpack.c.b16 %v1177, %v1173
      %v1266 = vpack.c.b16 %v1178, %v1174
      %v1267 = vpack.c.b16 %v1183, %v1179
      %v1268 = vpack.c.b16 %v1184, %v1180
      %v1269 = vpack.c.b16 %v1185, %v1181
      %v1270 = vpack.c.b16 %v1186, %v1182
      %v1271 = vpack.c.b16 %v1191, %v1187
      %v1272 = vpack.c.b16 %v1192, %v1188
      %v1273 = vpack.c.b16 %v1193, %v1189
      %v1274 = vpack.c.b16 %v1194, %v1190
      %v1275 = vpack.c.b16 %v1199, %v1195
      %v1276 = vpack.c.b16 %v1200, %v1196
      %v1277 = vpack.c.b16 %v1201, %v1197
      %v1278 = vpack.c.b16 %v1202, %v1198
      %v1279 = vpack.c.b16 %v1207, %v1203
      %v1280 = vpack.c.b16 %v1208, %v1204
      %v1281 = vpack.c.b16 %v1209, %v1205
      %v1282 = vpack.c.b16 %v1210, %v1206
      %v1283 = vpack.c.b16 %v1215, %v1211
      %v1284 = vpack.c.b16 %v1216, %v1212
      %v1285 = vpack.c.b16 %v1217, %v1213
      %v1286 = vpack.c.b16 %v1218, %v1214
      %v1287 = vpack.c.b16 %v1223, %v1219
      %v1288 = vpack.c.b16 %v1224, %v1220
      %v1289 = vpack.c.b16 %v1225, %v1221
      %v1290 = vpack.c.b16 %v1226, %v1222
      %1355 = vmatprep.subr.bf16.mxu0 0
      %1356 = vmatpush1.bf16.msra.mxu0 %v1003
      %1357 = vmatprep.subr.bf16.mxu0 0
      %1358 = vmatpush1.bf16.msra.mxu0 %v1004
      %1359 = vmatprep.subr.bf16.mxu0 0
      %1360 = vmatpush1.bf16.msra.mxu0 %v1005
      %1361 = vmatprep.subr.bf16.mxu0 0
      %1362 = vmatpush1.bf16.msra.mxu0 %v1006
      %1363 = vmatprep.subr.bf16.mxu0 0
      %1364 = vmatpush1.bf16.msra.mxu0 %v1007
      %1365 = vmatprep.subr.bf16.mxu0 0
      %1366 = vmatpush1.bf16.msra.mxu0 %v1008
      %1367 = vmatprep.subr.bf16.mxu0 0
      %1368 = vmatpush1.bf16.msra.mxu0 %v1009
      %1369 = vmatprep.subr.bf16.mxu0 0
      %1370 = vmatpush1.bf16.msra.mxu0 %v1010
      %1371 = vmatprep.subr.bf16.mxu0 0
      %1372 = vmatpush1.bf16.msra.mxu0 %v1011
      %1373 = vmatprep.subr.bf16.mxu0 0
      %1374 = vmatpush1.bf16.msra.mxu0 %v1012
      %1375 = vmatprep.subr.bf16.mxu0 0
      %1376 = vmatpush1.bf16.msra.mxu0 %v1013
      %1377 = vmatprep.subr.bf16.mxu0 0
      %1378 = vmatpush1.bf16.msra.mxu0 %v1014
      %1379 = vmatprep.subr.bf16.mxu0 0
      %1380 = vmatpush1.bf16.msra.mxu0 %v1015
      %1381 = vmatprep.subr.bf16.mxu0 0
      %1382 = vmatpush1.bf16.msra.mxu0 %v1016
      %1383 = vmatprep.subr.bf16.mxu0 0
      %1384 = vmatpush1.bf16.msra.mxu0 %v1017
      %1385 = vmatprep.subr.bf16.mxu0 0
      %1386 = vmatpush1.bf16.msra.mxu0 %v1018
      %1387 = vmatprep.mubr.bf16.mxu0 %v1228
      %1388 = vmatmul.mubr.bf16.gmra.mrb[0].mxu0 %v1227
      %v1389 = vpop.f32.mrb[0].mxu0
      %v1390 = vadd.f32 0.0, %v1389
      %v1391 = vpop.f32.mrb[0].mxu0
      %v1392 = vpop.f32.mrb[0].mxu0
      %v1393 = vadd.f32 0.0, %v1392
      %v1394 = vpop.f32.mrb[0].mxu0
      %1395 = vmatprep.mubr.bf16.mxu0 %v1232
      %1396 = vmatmul.mubr.bf16.gmra.mrb[0].mxu0 %v1231
      %v1397 = vpop.f32.mrb[0].mxu0
      %v1398 = vadd.f32 0.0, %v1397
      %v1399 = vpop.f32.mrb[0].mxu0
      %v1400 = vpop.f32.mrb[0].mxu0
      %v1401 = vadd.f32 0.0, %v1400
      %v1402 = vpop.f32.mrb[0].mxu0
      %1403 = vmatprep.mubr.bf16.mxu0 %v1236
      %1404 = vmatmul.mubr.bf16.gmra.mrb[0].mxu0 %v1235
      %v1405 = vpop.f32.mrb[0].mxu0
      %v1406 = vadd.f32 0.0, %v1405
      %v1407 = vpop.f32.mrb[0].mxu0
      %v1408 = vpop.f32.mrb[0].mxu0
      %v1409 = vadd.f32 0.0, %v1408
      %v1410 = vpop.f32.mrb[0].mxu0
      %1411 = vmatprep.mubr.bf16.mxu0 %v1240
      %1412 = vmatmul.mubr.bf16.gmra.mrb[0].mxu0 %v1239
      %v1413 = vpop.f32.mrb[0].mxu0
      %v1414 = vadd.f32 0.0, %v1413
      %v1415 = vpop.f32.mrb[0].mxu0
      %v1416 = vpop.f32.mrb[0].mxu0
      %v1417 = vadd.f32 0.0, %v1416
      %v1418 = vpop.f32.mrb[0].mxu0
      %1419 = vmatprep.mubr.bf16.mxu0 %v1244
      %1420 = vmatmul.mubr.bf16.gmra.mrb[0].mxu0 %v1243
      %v1421 = vpop.f32.mrb[0].mxu0
      %v1422 = vadd.f32 0.0, %v1421
      %v1423 = vpop.f32.mrb[0].mxu0
      %v1424 = vpop.f32.mrb[0].mxu0
      %v1425 = vadd.f32 0.0, %v1424
      %v1426 = vpop.f32.mrb[0].mxu0
      %1427 = vmatprep.mubr.bf16.mxu0 %v1248
      %1428 = vmatmul.mubr.bf16.gmra.mrb[0].mxu0 %v1247
      %v1429 = vpop.f32.mrb[0].mxu0
      %v1430 = vadd.f32 0.0, %v1429
      %v1431 = vpop.f32.mrb[0].mxu0
      %v1432 = vpop.f32.mrb[0].mxu0
      %v1433 = vadd.f32 0.0, %v1432
      %v1434 = vpop.f32.mrb[0].mxu0
      %1435 = vmatprep.mubr.bf16.mxu0 %v1252
      %1436 = vmatmul.mubr.bf16.gmra.mrb[0].mxu0 %v1251
      %v1437 = vpop.f32.mrb[0].mxu0
      %v1438 = vadd.f32 0.0, %v1437
      %v1439 = vpop.f32.mrb[0].mxu0
      %v1440 = vpop.f32.mrb[0].mxu0
      %v1441 = vadd.f32 0.0, %v1440
      %v1442 = vpop.f32.mrb[0].mxu0
      %1443 = vmatprep.mubr.bf16.mxu0 %v1256
      %1444 = vmatmul.mubr.bf16.gmra.mrb[0].mxu0 %v1255
      %v1445 = vpop.f32.mrb[0].mxu0
      %v1446 = vadd.f32 0.0, %v1445
      %v1447 = vpop.f32.mrb[0].mxu0
      %v1448 = vpop.f32.mrb[0].mxu0
      %v1449 = vadd.f32 0.0, %v1448
      %v1450 = vpop.f32.mrb[0].mxu0
      %1451 = vmatprep.mubr.bf16.mxu0 %v1260
      %1452 = vmatmul.mubr.bf16.gmra.mrb[0].mxu0 %v1259
      %v1453 = vpop.f32.mrb[0].mxu0
      %v1454 = vadd.f32 0.0, %v1453
      %v1455 = vpop.f32.mrb[0].mxu0
      %v1456 = vpop.f32.mrb[0].mxu0
      %v1457 = vadd.f32 0.0, %v1456
      %v1458 = vpop.f32.mrb[0].mxu0
      %1459 = vmatprep.mubr.bf16.mxu0 %v1264
      %1460 = vmatmul.mubr.bf16.gmra.mrb[0].mxu0 %v1263
      %v1461 = vpop.f32.mrb[0].mxu0
      %v1462 = vadd.f32 0.0, %v1461
      %v1463 = vpop.f32.mrb[0].mxu0
      %v1464 = vpop.f32.mrb[0].mxu0
      %v1465 = vadd.f32 0.0, %v1464
      %v1466 = vpop.f32.mrb[0].mxu0
      %1467 = vmatprep.mubr.bf16.mxu0 %v1268
      %1468 = vmatmul.mubr.bf16.gmra.mrb[0].mxu0 %v1267
      %v1469 = vpop.f32.mrb[0].mxu0
      %v1470 = vadd.f32 0.0, %v1469
      %v1471 = vpop.f32.mrb[0].mxu0
      %v1472 = vpop.f32.mrb[0].mxu0
      %v1473 = vadd.f32 0.0, %v1472
      %v1474 = vpop.f32.mrb[0].mxu0
      %1475 = vmatprep.mubr.bf16.mxu0 %v1272
      %1476 = vmatmul.mubr.bf16.gmra.mrb[0].mxu0 %v1271
      %v1477 = vpop.f32.mrb[0].mxu0
      %v1478 = vadd.f32 0.0, %v1477
      %v1479 = vpop.f32.mrb[0].mxu0
      %v1480 = vpop.f32.mrb[0].mxu0
      %v1481 = vadd.f32 0.0, %v1480
      %v1482 = vpop.f32.mrb[0].mxu0
      %1483 = vmatprep.mubr.bf16.mxu0 %v1276
      %1484 = vmatmul.mubr.bf16.gmra.mrb[0].mxu0 %v1275
      %v1485 = vpop.f32.mrb[0].mxu0
      %v1486 = vadd.f32 0.0, %v1485
      %v1487 = vpop.f32.mrb[0].mxu0
      %v1488 = vpop.f32.mrb[0].mxu0
      %v1489 = vadd.f32 0.0, %v1488
      %v1490 = vpop.f32.mrb[0].mxu0
      %1491 = vmatprep.mubr.bf16.mxu0 %v1280
      %1492 = vmatmul.mubr.bf16.gmra.mrb[0].mxu0 %v1279
      %v1493 = vpop.f32.mrb[0].mxu0
      %v1494 = vadd.f32 0.0, %v1493
      %v1495 = vpop.f32.mrb[0].mxu0
      %v1496 = vpop.f32.mrb[0].mxu0
      %v1497 = vadd.f32 0.0, %v1496
      %v1498 = vpop.f32.mrb[0].mxu0
      %1499 = vmatprep.mubr.bf16.mxu0 %v1284
      %1500 = vmatmul.mubr.bf16.gmra.mrb[0].mxu0 %v1283
      %v1501 = vpop.f32.mrb[0].mxu0
      %v1502 = vadd.f32 0.0, %v1501
      %v1503 = vpop.f32.mrb[0].mxu0
      %v1504 = vpop.f32.mrb[0].mxu0
      %v1505 = vadd.f32 0.0, %v1504
      %v1506 = vpop.f32.mrb[0].mxu0
      %1507 = vmatprep.mubr.bf16.mxu0 %v1288
      %1508 = vmatmul.mubr.bf16.gmra.mrb[0].mxu0 %v1287
      %v1509 = vpop.f32.mrb[0].mxu0
      %v1510 = vadd.f32 0.0, %v1509
      %v1511 = vpop.f32.mrb[0].mxu0
      %v1512 = vpop.f32.mrb[0].mxu0
      %v1513 = vadd.f32 0.0, %v1512
      %v1514 = vpop.f32.mrb[0].mxu0
      %1515 = vdwg.mxu0
      %1516 = vmatprep.subr.bf16.mxu0 0
      %1517 = vmatpush1.bf16.msra.mxu0 %v1019
      %1518 = vmatprep.subr.bf16.mxu0 0
      %1519 = vmatpush1.bf16.msra.mxu0 %v1020
      %1520 = vmatprep.subr.bf16.mxu0 0
      %1521 = vmatpush1.bf16.msra.mxu0 %v1021
      %1522 = vmatprep.subr.bf16.mxu0 0
      %1523 = vmatpush1.bf16.msra.mxu0 %v1022
      %1524 = vmatprep.subr.bf16.mxu0 0
      %1525 = vmatpush1.bf16.msra.mxu0 %v1023
      %1526 = vmatprep.subr.bf16.mxu0 0
      %1527 = vmatpush1.bf16.msra.mxu0 %v1024
      %1528 = vmatprep.subr.bf16.mxu0 0
      %1529 = vmatpush1.bf16.msra.mxu0 %v1025
      %1530 = vmatprep.subr.bf16.mxu0 0
      %1531 = vmatpush1.bf16.msra.mxu0 %v1026
      %1532 = vmatprep.subr.bf16.mxu0 0
      %1533 = vmatpush1.bf16.msra.mxu0 %v1027
      %1534 = vmatprep.subr.bf16.mxu0 0
      %1535 = vmatpush1.bf16.msra.mxu0 %v1028
      %1536 = vmatprep.subr.bf16.mxu0 0
      %1537 = vmatpush1.bf16.msra.mxu0 %v1029
      %1538 = vmatprep.subr.bf16.mxu0 0
      %1539 = vmatpush1.bf16.msra.mxu0 %v1030
      %1540 = vmatprep.subr.bf16.mxu0 0
      %1541 = vmatpush1.bf16.msra.mxu0 %v1031
      %1542 = vmatprep.subr.bf16.mxu0 0
      %1543 = vmatpush1.bf16.msra.mxu0 %v1032
      %1544 = vmatprep.subr.bf16.mxu0 0
      %1545 = vmatpush1.bf16.msra.mxu0 %v1033
      %1546 = vmatprep.subr.bf16.mxu0 0
      %1547 = vmatpush1.bf16.msra.mxu0 %v1034
      %1548 = vmatprep.mubr.bf16.mxu0 %v1230
      %1549 = vmatmul.mubr.bf16.gmra.mrb[0].mxu0 %v1229
      %v1550 = vpop.f32.mrb[0].mxu0
      %v1551 = vadd.f32 %v1390, %v1550
      %v1552 = vpop.f32.mrb[0].mxu0
      %v1553 = vpop.f32.mrb[0].mxu0
      %v1554 = vadd.f32 %v1393, %v1553
      %v1555 = vpop.f32.mrb[0].mxu0
      %1556 = vmatprep.mubr.bf16.mxu0 %v1234
      %1557 = vmatmul.mubr.bf16.gmra.mrb[0].mxu0 %v1233
      %v1558 = vpop.f32.mrb[0].mxu0
      %v1559 = vadd.f32 %v1398, %v1558
      %v1560 = vpop.f32.mrb[0].mxu0
      %v1561 = vpop.f32.mrb[0].mxu0
      %v1562 = vadd.f32 %v1401, %v1561
      %v1563 = vpop.f32.mrb[0].mxu0
      %1564 = vmatprep.mubr.bf16.mxu0 %v1238
      %1565 = vmatmul.mubr.bf16.gmra.mrb[0].mxu0 %v1237
      %v1566 = vpop.f32.mrb[0].mxu0
      %v1567 = vadd.f32 %v1406, %v1566
      %v1568 = vpop.f32.mrb[0].mxu0
      %v1569 = vpop.f32.mrb[0].mxu0
      %v1570 = vadd.f32 %v1409, %v1569
      %v1571 = vpop.f32.mrb[0].mxu0
      %1572 = vmatprep.mubr.bf16.mxu0 %v1242
      %1573 = vmatmul.mubr.bf16.gmra.mrb[0].mxu0 %v1241
      %v1574 = vpop.f32.mrb[0].mxu0
      %v1575 = vadd.f32 %v1414, %v1574
      %v1576 = vpop.f32.mrb[0].mxu0
      %v1577 = vpop.f32.mrb[0].mxu0
      %v1578 = vadd.f32 %v1417, %v1577
      %v1579 = vpop.f32.mrb[0].mxu0
      %1580 = vmatprep.mubr.bf16.mxu0 %v1246
      %1581 = vmatmul.mubr.bf16.gmra.mrb[0].mxu0 %v1245
      %v1582 = vpop.f32.mrb[0].mxu0
      %v1583 = vadd.f32 %v1422, %v1582
      %v1584 = vpop.f32.mrb[0].mxu0
      %v1585 = vpop.f32.mrb[0].mxu0
      %v1586 = vadd.f32 %v1425, %v1585
      %v1587 = vpop.f32.mrb[0].mxu0
      %1588 = vmatprep.mubr.bf16.mxu0 %v1250
      %1589 = vmatmul.mubr.bf16.gmra.mrb[0].mxu0 %v1249
      %v1590 = vpop.f32.mrb[0].mxu0
      %v1591 = vadd.f32 %v1430, %v1590
      %v1592 = vpop.f32.mrb[0].mxu0
      %v1593 = vpop.f32.mrb[0].mxu0
      %v1594 = vadd.f32 %v1433, %v1593
      %v1595 = vpop.f32.mrb[0].mxu0
      %1596 = vmatprep.mubr.bf16.mxu0 %v1254
      %1597 = vmatmul.mubr.bf16.gmra.mrb[0].mxu0 %v1253
      %v1598 = vpop.f32.mrb[0].mxu0
      %v1599 = vadd.f32 %v1438, %v1598
      %v1600 = vpop.f32.mrb[0].mxu0
      %v1601 = vpop.f32.mrb[0].mxu0
      %v1602 = vadd.f32 %v1441, %v1601
      %v1603 = vpop.f32.mrb[0].mxu0
      %1604 = vmatprep.mubr.bf16.mxu0 %v1258
      %1605 = vmatmul.mubr.bf16.gmra.mrb[0].mxu0 %v1257
      %v1606 = vpop.f32.mrb[0].mxu0
      %v1607 = vadd.f32 %v1446, %v1606
      %v1608 = vpop.f32.mrb[0].mxu0
      %v1609 = vpop.f32.mrb[0].mxu0
      %v1610 = vadd.f32 %v1449, %v1609
      %v1611 = vpop.f32.mrb[0].mxu0
      %1612 = vmatprep.mubr.bf16.mxu0 %v1262
      %1613 = vmatmul.mubr.bf16.gmra.mrb[0].mxu0 %v1261
      %v1614 = vpop.f32.mrb[0].mxu0
      %v1615 = vadd.f32 %v1454, %v1614
      %v1616 = vpop.f32.mrb[0].mxu0
      %v1617 = vpop.f32.mrb[0].mxu0
      %v1618 = vadd.f32 %v1457, %v1617
      %v1619 = vpop.f32.mrb[0].mxu0
      %1620 = vmatprep.mubr.bf16.mxu0 %v1266
      %1621 = vmatmul.mubr.bf16.gmra.mrb[0].mxu0 %v1265
      %v1622 = vpop.f32.mrb[0].mxu0
      %v1623 = vadd.f32 %v1462, %v1622
      %v1624 = vpop.f32.mrb[0].mxu0
      %v1625 = vpop.f32.mrb[0].mxu0
      %v1626 = vadd.f32 %v1465, %v1625
      %v1627 = vpop.f32.mrb[0].mxu0
      %1628 = vmatprep.mubr.bf16.mxu0 %v1270
      %1629 = vmatmul.mubr.bf16.gmra.mrb[0].mxu0 %v1269
      %v1630 = vpop.f32.mrb[0].mxu0
      %v1631 = vadd.f32 %v1470, %v1630
      %v1632 = vpop.f32.mrb[0].mxu0
      %v1633 = vpop.f32.mrb[0].mxu0
      %v1634 = vadd.f32 %v1473, %v1633
      %v1635 = vpop.f32.mrb[0].mxu0
      %1636 = vmatprep.mubr.bf16.mxu0 %v1274
      %1637 = vmatmul.mubr.bf16.gmra.mrb[0].mxu0 %v1273
      %v1638 = vpop.f32.mrb[0].mxu0
      %v1639 = vadd.f32 %v1478, %v1638
      %v1640 = vpop.f32.mrb[0].mxu0
      %v1641 = vpop.f32.mrb[0].mxu0
      %v1642 = vadd.f32 %v1481, %v1641
      %v1643 = vpop.f32.mrb[0].mxu0
      %1644 = vmatprep.mubr.bf16.mxu0 %v1278
      %1645 = vmatmul.mubr.bf16.gmra.mrb[0].mxu0 %v1277
      %v1646 = vpop.f32.mrb[0].mxu0
      %v1647 = vadd.f32 %v1486, %v1646
      %v1648 = vpop.f32.mrb[0].mxu0
      %v1649 = vpop.f32.mrb[0].mxu0
      %v1650 = vadd.f32 %v1489, %v1649
      %v1651 = vpop.f32.mrb[0].mxu0
      %1652 = vmatprep.mubr.bf16.mxu0 %v1282
      %1653 = vmatmul.mubr.bf16.gmra.mrb[0].mxu0 %v1281
      %v1654 = vpop.f32.mrb[0].mxu0
      %v1655 = vadd.f32 %v1494, %v1654
      %v1656 = vpop.f32.mrb[0].mxu0
      %v1657 = vpop.f32.mrb[0].mxu0
      %v1658 = vadd.f32 %v1497, %v1657
      %v1659 = vpop.f32.mrb[0].mxu0
      %1660 = vmatprep.mubr.bf16.mxu0 %v1286
      %1661 = vmatmul.mubr.bf16.gmra.mrb[0].mxu0 %v1285
      %v1662 = vpop.f32.mrb[0].mxu0
      %v1663 = vadd.f32 %v1502, %v1662
      %v1664 = vpop.f32.mrb[0].mxu0
      %v1665 = vpop.f32.mrb[0].mxu0
      %v1666 = vadd.f32 %v1505, %v1665
      %v1667 = vpop.f32.mrb[0].mxu0
      %1668 = vmatprep.mubr.bf16.mxu0 %v1290
      %1669 = vmatmul.mubr.bf16.gmra.mrb[0].mxu0 %v1289
      %v1670 = vpop.f32.mrb[0].mxu0
      %v1671 = vadd.f32 %v1510, %v1670
      %v1672 = vpop.f32.mrb[0].mxu0
      %v1673 = vpop.f32.mrb[0].mxu0
      %v1674 = vadd.f32 %v1513, %v1673
      %v1675 = vpop.f32.mrb[0].mxu0
      %1676 = vdwg.mxu0
      %v1677 = vadd.f32 %v907, %v1551
      %v1678 = vadd.f32 %v908, %v1554
      %v1679 = vadd.f32 %v909, %v1559
      %v1680 = vadd.f32 %v910, %v1562
      %v1681 = vadd.f32 %v911, %v1567
      %v1682 = vadd.f32 %v912, %v1570
      %v1683 = vadd.f32 %v913, %v1575
      %v1684 = vadd.f32 %v914, %v1578
      %v1685 = vadd.f32 %v915, %v1583
      %v1686 = vadd.f32 %v916, %v1586
      %v1687 = vadd.f32 %v917, %v1591
      %v1688 = vadd.f32 %v918, %v1594
      %v1689 = vadd.f32 %v919, %v1599
      %v1690 = vadd.f32 %v920, %v1602
      %v1691 = vadd.f32 %v921, %v1607
      %v1692 = vadd.f32 %v922, %v1610
      %v1693 = vadd.f32 %v923, %v1615
      %v1694 = vadd.f32 %v924, %v1618
      %v1695 = vadd.f32 %v925, %v1623
      %v1696 = vadd.f32 %v926, %v1626
      %v1697 = vadd.f32 %v927, %v1631
      %v1698 = vadd.f32 %v928, %v1634
      %v1699 = vadd.f32 %v929, %v1639
      %v1700 = vadd.f32 %v930, %v1642
      %v1701 = vadd.f32 %v931, %v1647
      %v1702 = vadd.f32 %v932, %v1650
      %v1703 = vadd.f32 %v933, %v1655
      %v1704 = vadd.f32 %v934, %v1658
      %v1705 = vadd.f32 %v935, %v1663
      %v1706 = vadd.f32 %v936, %v1666
      %v1707 = vadd.f32 %v937, %v1671
      %v1708 = vadd.f32 %v938, %v1674
      %1709 = vst [vmem:[#allocation2] sm:$0xff] %v1677
      %1710 = vst [vmem:[#allocation2 + $0x8] sm:$0xff] %v1678
      %1711 = vst [vmem:[#allocation2 + $0x10] sm:$0xff] %v1679
      %1712 = vst [vmem:[#allocation2 + $0x18] sm:$0xff] %v1680
      %1713 = vst [vmem:[#allocation2 + $0x20] sm:$0xff] %v1681
      %1714 = vst [vmem:[#allocation2 + $0x28] sm:$0xff] %v1682
      %1715 = vst [vmem:[#allocation2 + $0x30] sm:$0xff] %v1683
      %1716 = vst [vmem:[#allocation2 + $0x38] sm:$0xff] %v1684
      %1717 = vst [vmem:[#allocation2 + $0x40] sm:$0xff] %v1685
      %1718 = vst [vmem:[#allocation2 + $0x48] sm:$0xff] %v1686
      %1719 = vst [vmem:[#allocation2 + $0x50] sm:$0xff] %v1687
      %1720 = vst [vmem:[#allocation2 + $0x58] sm:$0xff] %v1688
      %1721 = vst [vmem:[#allocation2 + $0x60] sm:$0xff] %v1689
      %1722 = vst [vmem:[#allocation2 + $0x68] sm:$0xff] %v1690
      %1723 = vst [vmem:[#allocation2 + $0x70] sm:$0xff] %v1691
      %1724 = vst [vmem:[#allocation2 + $0x78] sm:$0xff] %v1692
      %1725 = vst [vmem:[#allocation2 + $0x80] sm:$0xff] %v1693
      %1726 = vst [vmem:[#allocation2 + $0x88] sm:$0xff] %v1694
      %1727 = vst [vmem:[#allocation2 + $0x90] sm:$0xff] %v1695
      %1728 = vst [vmem:[#allocation2 + $0x98] sm:$0xff] %v1696
      %1729 = vst [vmem:[#allocation2 + $0xa0] sm:$0xff] %v1697
      %1730 = vst [vmem:[#allocation2 + $0xa8] sm:$0xff] %v1698
      %1731 = vst [vmem:[#allocation2 + $0xb0] sm:$0xff] %v1699
      %1732 = vst [vmem:[#allocation2 + $0xb8] sm:$0xff] %v1700
      %1733 = vst [vmem:[#allocation2 + $0xc0] sm:$0xff] %v1701
      %1734 = vst [vmem:[#allocation2 + $0xc8] sm:$0xff] %v1702
      %1735 = vst [vmem:[#allocation2 + $0xd0] sm:$0xff] %v1703
      %1736 = vst [vmem:[#allocation2 + $0xd8] sm:$0xff] %v1704
      %1737 = vst [vmem:[#allocation2 + $0xe0] sm:$0xff] %v1705
      %1738 = vst [vmem:[#allocation2 + $0xe8] sm:$0xff] %v1706
      %1739 = vst [vmem:[#allocation2 + $0xf0] sm:$0xff] %v1707
      %1740 = vst [vmem:[#allocation2 + $0xf8] sm:$0xff] %v1708
      // Predicated region
      $region41: #{gcn_forward.4} parent=35 // pred_check
        %p1741 = pneg %p255
      $region42: #{gcn_forward.4} parent=35 // pred_check_branch
        %1743 = sbr.rel (%p1741) target = $region44
      $region43: #{gcn_forward.4} parent=35 // pred_region
        %v1744 = vld [vmem:[#allocation2] sm:$0xff]
        %v1745 = vld [vmem:[#allocation2 + $0x8] sm:$0xff]
        %v1746 = vld [vmem:[#allocation2 + $0x10] sm:$0xff]
        %v1747 = vld [vmem:[#allocation2 + $0x18] sm:$0xff]
        %v1748 = vld [vmem:[#allocation2 + $0x20] sm:$0xff]
        %v1749 = vld [vmem:[#allocation2 + $0x28] sm:$0xff]
        %v1750 = vld [vmem:[#allocation2 + $0x30] sm:$0xff]
        %v1751 = vld [vmem:[#allocation2 + $0x38] sm:$0xff]
        %v1752 = vld [vmem:[#allocation2 + $0x40] sm:$0xff]
        %v1753 = vld [vmem:[#allocation2 + $0x48] sm:$0xff]
        %v1754 = vld [vmem:[#allocation2 + $0x50] sm:$0xff]
        %v1755 = vld [vmem:[#allocation2 + $0x58] sm:$0xff]
        %v1756 = vld [vmem:[#allocation2 + $0x60] sm:$0xff]
        %v1757 = vld [vmem:[#allocation2 + $0x68] sm:$0xff]
        %v1758 = vld [vmem:[#allocation2 + $0x70] sm:$0xff]
        %v1759 = vld [vmem:[#allocation2 + $0x78] sm:$0xff]
        %v1760 = vld [vmem:[#allocation2 + $0x80] sm:$0xff]
        %v1761 = vld [vmem:[#allocation2 + $0x88] sm:$0xff]
        %v1762 = vld [vmem:[#allocation2 + $0x90] sm:$0xff]
        %v1763 = vld [vmem:[#allocation2 + $0x98] sm:$0xff]
        %v1764 = vld [vmem:[#allocation2 + $0xa0] sm:$0xff]
        %v1765 = vld [vmem:[#allocation2 + $0xa8] sm:$0xff]
        %v1766 = vld [vmem:[#allocation2 + $0xb0] sm:$0xff]
        %v1767 = vld [vmem:[#allocation2 + $0xb8] sm:$0xff]
        %v1768 = vld [vmem:[#allocation2 + $0xc0] sm:$0xff]
        %v1769 = vld [vmem:[#allocation2 + $0xc8] sm:$0xff]
        %v1770 = vld [vmem:[#allocation2 + $0xd0] sm:$0xff]
        %v1771 = vld [vmem:[#allocation2 + $0xd8] sm:$0xff]
        %v1772 = vld [vmem:[#allocation2 + $0xe0] sm:$0xff]
        %v1773 = vld [vmem:[#allocation2 + $0xe8] sm:$0xff]
        %v1774 = vld [vmem:[#allocation2 + $0xf0] sm:$0xff]
        %v1775 = vld [vmem:[#allocation2 + $0xf8] sm:$0xff]
        %v1776 = vmax.f32 %v1744, 0.0
        %v1777 = vmax.f32 %v1745, 0.0
        %v1778 = vmax.f32 %v1746, 0.0
        %v1779 = vmax.f32 %v1747, 0.0
        %v1780 = vmax.f32 %v1748, 0.0
        %v1781 = vmax.f32 %v1749, 0.0
        %v1782 = vmax.f32 %v1750, 0.0
        %v1783 = vmax.f32 %v1751, 0.0
        %v1784 = vmax.f32 %v1752, 0.0
        %v1785 = vmax.f32 %v1753, 0.0
        %v1786 = vmax.f32 %v1754, 0.0
        %v1787 = vmax.f32 %v1755, 0.0
        %v1788 = vmax.f32 %v1756, 0.0
        %v1789 = vmax.f32 %v1757, 0.0
        %v1790 = vmax.f32 %v1758, 0.0
        %v1791 = vmax.f32 %v1759, 0.0
        %v1792 = vmax.f32 %v1760, 0.0
        %v1793 = vmax.f32 %v1761, 0.0
        %v1794 = vmax.f32 %v1762, 0.0
        %v1795 = vmax.f32 %v1763, 0.0
        %v1796 = vmax.f32 %v1764, 0.0
        %v1797 = vmax.f32 %v1765, 0.0
        %v1798 = vmax.f32 %v1766, 0.0
        %v1799 = vmax.f32 %v1767, 0.0
        %v1800 = vmax.f32 %v1768, 0.0
        %v1801 = vmax.f32 %v1769, 0.0
        %v1802 = vmax.f32 %v1770, 0.0
        %v1803 = vmax.f32 %v1771, 0.0
        %v1804 = vmax.f32 %v1772, 0.0
        %v1805 = vmax.f32 %v1773, 0.0
        %v1806 = vmax.f32 %v1774, 0.0
        %v1807 = vmax.f32 %v1775, 0.0
        %v1808 = vpack.c.bf16 %v1777, %v1776
        %v1809 = vpack.c.bf16 %v1779, %v1778
        %v1810 = vpack.c.bf16 %v1781, %v1780
        %v1811 = vpack.c.bf16 %v1783, %v1782
        %v1812 = vpack.c.bf16 %v1785, %v1784
        %v1813 = vpack.c.bf16 %v1787, %v1786
        %v1814 = vpack.c.bf16 %v1789, %v1788
        %v1815 = vpack.c.bf16 %v1791, %v1790
        %v1816 = vpack.c.bf16 %v1793, %v1792
        %v1817 = vpack.c.bf16 %v1795, %v1794
        %v1818 = vpack.c.bf16 %v1797, %v1796
        %v1819 = vpack.c.bf16 %v1799, %v1798
        %v1820 = vpack.c.bf16 %v1801, %v1800
        %v1821 = vpack.c.bf16 %v1803, %v1802
        %v1822 = vpack.c.bf16 %v1805, %v1804
        %v1823 = vpack.c.bf16 %v1807, %v1806
        %v1840 = vunpack.c.l.b16 %v1808
        %v1841 = vunpack.c.h.b16 %v1808
        %v1842 = vunpack.c.l.b16 %v1809
        %v1843 = vunpack.c.h.b16 %v1809
        %v1844 = vunpack.c.l.b16 %v1810
        %v1845 = vunpack.c.h.b16 %v1810
        %v1846 = vunpack.c.l.b16 %v1811
        %v1847 = vunpack.c.h.b16 %v1811
        %v1848 = vunpack.c.l.b16 %v1812
        %v1849 = vunpack.c.h.b16 %v1812
        %v1850 = vunpack.c.l.b16 %v1813
        %v1851 = vunpack.c.h.b16 %v1813
        %v1852 = vunpack.c.l.b16 %v1814
        %v1853 = vunpack.c.h.b16 %v1814
        %v1854 = vunpack.c.l.b16 %v1815
        %v1855 = vunpack.c.h.b16 %v1815
        %v1856 = vunpack.c.l.b16 %v1816
        %v1857 = vunpack.c.h.b16 %v1816
        %v1858 = vunpack.c.l.b16 %v1817
        %v1859 = vunpack.c.h.b16 %v1817
        %v1860 = vunpack.c.l.b16 %v1818
        %v1861 = vunpack.c.h.b16 %v1818
        %v1862 = vunpack.c.l.b16 %v1819
        %v1863 = vunpack.c.h.b16 %v1819
        %v1864 = vunpack.c.l.b16 %v1820
        %v1865 = vunpack.c.h.b16 %v1820
        %v1866 = vunpack.c.l.b16 %v1821
        %v1867 = vunpack.c.h.b16 %v1821
        %v1868 = vunpack.c.l.b16 %v1822
        %v1869 = vunpack.c.h.b16 %v1822
        %v1870 = vunpack.c.l.b16 %v1823
        %v1871 = vunpack.c.h.b16 %v1823
        %v1872 = vpack.c.b16 %v1840, %v1840
        %v1873 = vpack.c.b16 %v1841, %v1841
        %v1874 = vpack.c.b16 %v1842, %v1842
        %v1875 = vpack.c.b16 %v1843, %v1843
        %v1876 = vpack.c.b16 %v1844, %v1844
        %v1877 = vpack.c.b16 %v1845, %v1845
        %v1878 = vpack.c.b16 %v1846, %v1846
        %v1879 = vpack.c.b16 %v1847, %v1847
        %v1880 = vpack.c.b16 %v1848, %v1848
        %v1881 = vpack.c.b16 %v1849, %v1849
        %v1882 = vpack.c.b16 %v1850, %v1850
        %v1883 = vpack.c.b16 %v1851, %v1851
        %v1884 = vpack.c.b16 %v1852, %v1852
        %v1885 = vpack.c.b16 %v1853, %v1853
        %v1886 = vpack.c.b16 %v1854, %v1854
        %v1887 = vpack.c.b16 %v1855, %v1855
        %v1888 = vpack.c.b16 %v1856, %v1856
        %v1889 = vpack.c.b16 %v1857, %v1857
        %v1890 = vpack.c.b16 %v1858, %v1858
        %v1891 = vpack.c.b16 %v1859, %v1859
        %v1892 = vpack.c.b16 %v1860, %v1860
        %v1893 = vpack.c.b16 %v1861, %v1861
        %v1894 = vpack.c.b16 %v1862, %v1862
        %v1895 = vpack.c.b16 %v1863, %v1863
        %v1896 = vpack.c.b16 %v1864, %v1864
        %v1897 = vpack.c.b16 %v1865, %v1865
        %v1898 = vpack.c.b16 %v1866, %v1866
        %v1899 = vpack.c.b16 %v1867, %v1867
        %v1900 = vpack.c.b16 %v1868, %v1868
        %v1901 = vpack.c.b16 %v1869, %v1869
        %v1902 = vpack.c.b16 %v1870, %v1870
        %v1903 = vpack.c.b16 %v1871, %v1871
        %1936 = vst [vmem:[%s252] sm:$0xf] %v1872
        %1937 = vst [vmem:[%s252 + $0x4] sm:$0xf] %v1873
        %1938 = vst [vmem:[%s252 + $0x8] sm:$0xf] %v1874
        %1939 = vst [vmem:[%s252 + $0xc] sm:$0xf] %v1875
        %1940 = vst [vmem:[%s252 + $0x10] sm:$0xf] %v1876
        %1941 = vst [vmem:[%s252 + $0x14] sm:$0xf] %v1877
        %1942 = vst [vmem:[%s252 + $0x18] sm:$0xf] %v1878
        %1943 = vst [vmem:[%s252 + $0x1c] sm:$0xf] %v1879
        %1944 = vst [vmem:[%s252 + $0x20] sm:$0xf] %v1880
        %1945 = vst [vmem:[%s252 + $0x24] sm:$0xf] %v1881
        %1946 = vst [vmem:[%s252 + $0x28] sm:$0xf] %v1882
        %1947 = vst [vmem:[%s252 + $0x2c] sm:$0xf] %v1883
        %1948 = vst [vmem:[%s252 + $0x30] sm:$0xf] %v1884
        %1949 = vst [vmem:[%s252 + $0x34] sm:$0xf] %v1885
        %1950 = vst [vmem:[%s252 + $0x38] sm:$0xf] %v1886
        %1951 = vst [vmem:[%s252 + $0x3c] sm:$0xf] %v1887
        %1952 = vst [vmem:[%s252 + $0x40] sm:$0xf] %v1888
        %1953 = vst [vmem:[%s252 + $0x44] sm:$0xf] %v1889
        %1954 = vst [vmem:[%s252 + $0x48] sm:$0xf] %v1890
        %1955 = vst [vmem:[%s252 + $0x4c] sm:$0xf] %v1891
        %1956 = vst [vmem:[%s252 + $0x50] sm:$0xf] %v1892
        %1957 = vst [vmem:[%s252 + $0x54] sm:$0xf] %v1893
        %1958 = vst [vmem:[%s252 + $0x58] sm:$0xf] %v1894
        %1959 = vst [vmem:[%s252 + $0x5c] sm:$0xf] %v1895
        %1960 = vst [vmem:[%s252 + $0x60] sm:$0xf] %v1896
        %1961 = vst [vmem:[%s252 + $0x64] sm:$0xf] %v1897
        %1962 = vst [vmem:[%s252 + $0x68] sm:$0xf] %v1898
        %1963 = vst [vmem:[%s252 + $0x6c] sm:$0xf] %v1899
        %1964 = vst [vmem:[%s252 + $0x70] sm:$0xf] %v1900
        %1965 = vst [vmem:[%s252 + $0x74] sm:$0xf] %v1901
        %1966 = vst [vmem:[%s252 + $0x78] sm:$0xf] %v1902
        %1967 = vst [vmem:[%s252 + $0x7c] sm:$0xf] %v1903
      $region44: #{gcn_forward.4} parent=35 // pred_fallthru
        _
      %s1968 = smul.u32 32, %s19
      %p1969 = scmp.lt.s32.totalorder %s1968, 63
      %s1970 = scalar_select %p1969, %s1968, 63
      %s1971 = smul.addr %s1970, 4
      %s1972 = scalar_lea.vmem %s4, %s1971
      // Predicated region
      $region45: #{gcn_forward.4} parent=35 // pred_check
        %p1973 = pneg %p141
      $region46: #{gcn_forward.4} parent=35 // pred_check_branch
        %1975 = sbr.rel (%p1973) target = $region48
      $region47: #{gcn_forward.4} parent=35 // pred_region
        %s1976 = smul.u32 32, %s19
      $region48: #{gcn_forward.4} parent=35 // pred_fallthru
        _
    $region36: #{gcn_forward.4} parent=5 // pred_fallthru
      _
    %p1977 = scmp.le.s32.totalorder 2, %s10
    // Predicated region
    $region49: #{gcn_forward.4} parent=5 // pred_check
      %p1978 = pneg %p1977
    $region50: #{gcn_forward.4} parent=5 // pred_check_branch
      %1980 = sbr.rel (%p1978) target = $region52
    $region51: #{gcn_forward.4} parent=5 // pred_region
      %s1981 = ssub.s32 %s10, 2
      // Predicated region
      $region53: #{gcn_forward.4} parent=51 // pred_check
        %p1982 = pneg %p147
      $region54: #{gcn_forward.4} parent=51 // pred_check_branch
        %1984 = sbr.rel (%p1982) target = $region56
      $region55: #{gcn_forward.4} parent=51 // pred_region
        %s1985 = smul.u32 32, %s21
        %p1986 = scmp.lt.s32.totalorder %s1985, 63
        %s1987 = scalar_select %p1986, %s1985, 63
        %s1988 = smul.addr %s1987, 4
        %s1989 = scalar_lea.vmem %s4, %s1988
      $region56: #{gcn_forward.4} parent=51 // pred_fallthru
        _
    $region52: #{gcn_forward.4} parent=5 // pred_fallthru
      _
  $region6: #{gcn_forward.4} parent=0 // loop_footer
    %s14 = sadd.s32 1, %s10
  $region7: #{gcn_forward.4} parent=0 // loop_footer_branch
    %9 = sbr.rel target = $region3
  $region8: #{gcn_forward.4} parent=0 // loop_exit
    _

// kernel: gcn_forward.5
$region0: #{gcn_forward.5}
  #allocation0 [shape = 'u32[]', space=smem, size = 0x4, offset = 0x4, fixed_abs, tag = 'smem constant byte address 0x4 - core index']
  #allocation1 [shape = 'u32[144,128]{1,0:T(1,128)}', space=vmem, size = 0x12000, scoped, tag = 'internal scratch']
  #allocation2 [shape = 'f32[256,128]{1,0:T(8,128)}', space=vmem, size = 0x20000, scoped, tag = 'scratch operand']
  #allocation3 [shape = 'f32[1,1]{1,0:T(1,128)}', space=vmem, size = 0x200, scoped, tag = 'scratch operand']
  %s0 = inlined_call_operand.vmem [shape: bf16[512,512], index: 0, kind: input, shape index: {}]
  %s1 = inlined_call_operand.vmem [shape: bf16[512,128], index: 1, kind: input, shape index: {}]
  %s2 = inlined_call_operand.vmem [shape: bf16[128,128], index: 2, kind: input, shape index: {}]
  %s3 = inlined_call_operand.vmem [shape: f32[1,128], index: 3, kind: input, shape index: {}]
  %s4 = inlined_call_operand.vmem [shape: s32[512,1], index: 4, kind: input, shape index: {}]
  %s5 = inlined_call_operand.hbm [shape: f32[1,1], index: 5, kind: output, shape index: {}]
  %s6 = sld [smem:[#allocation0]]
  $region69: #{gcn_forward.5} parent=0
    _
  %s8 = ssub.s32 1, %s6
  %s9 = scalar_select 0, %s8, %s6
  $region1: #{gcn_forward.5} parent=0
    #allocation4 [shape = 'u8[512]{0}', space=vmem, size = 0x400, scoped, tag = 'output window, operand 0, single buffered']
    #allocation5 [shape = 's32[2]{0}', space=sflag, size = 0x8, scoped, tag = 'scoped memory for gcn_forward.5']
    %10 = vsyncpa [#allocation5], 0
    loop: start=0, step=1, limit=4
    $region2: #{gcn_forward.5} parent=1 // loop_pre_header
      _
    $region3: #{gcn_forward.5} parent=1 // loop_header
      %s12 = sphi 0, %s16
      %p13 = scmp.ge.s32.totalorder %s12, 4
      %s19 = sphi 0, %s31
      %s20 = sphi 0, %s27
      %s21 = sphi 0, %s19
      %s22 = sphi 0, %s20
      %s23 = sphi 0, %s21
      %s24 = sphi 0, %s22
      %s36 = sphi 0, %s38
      %s39 = sphi 0, %s36
      %s40 = sphi 0, %s39
      %s56 = sphi 0, %s40
      %s62 = sphi 0, %s64
      %s65 = sphi 0, %s62
      %s66 = sphi 0, %s65
      %s82 = sphi 0, %s66
      %s86 = sphi 0, %s86
      %s88 = sphi 0, %s86
      %s89 = sphi 0, %s88
      %s103 = sphi 0, %s89
      %s107 = sphi 0, %s107
      %s109 = sphi 0, %s107
      %s110 = sphi 0, %s109
      %s124 = sphi 0, %s110
      %s130 = sphi 0, %s132
      %s133 = sphi 0, %s130
      %s134 = sphi 0, %s133
      %s150 = sphi 0, %s134
      %s154 = sphi 0, %s154
      %s156 = sphi 0, %s154
      %s157 = sphi 0, %s156
      %s171 = sphi 0, %s157
    $region4: #{gcn_forward.5} parent=1 // loop_header_branch
      %15 = sbr.rel (%p13) target = $region8
    $region5: #{gcn_forward.5} parent=1 // loop_body
      %s17 = ssub.s32 %s12, 1
      %s18 = ssub.s32 %s12, 2
      %s25 = sadd.s32 1, %s20
      %p26 = scmp.ge.s32.totalorder %s25, 1
      %s27 = scalar_select %p26, 0, %s25
      %s28 = sadd.s32 1, %s19
      %s29 = scalar_select %p26, %s28, %s19
      %p30 = scmp.ge.s32.totalorder %s29, 2
      %s31 = scalar_select %p30, 0, %s29
      %s32 = ssub.s32 %s19, %s31
      %s33 = ssub.s32 %s20, %s27
      %s34 = sor.u32 %s32, %s33
      %p35 = scmp.eq.s32.totalorder %s34, 0
      %s37 = sadd.s32 %s36, 1
      %s38 = scalar_select %p35, %s36, %s37
      %p41 = pneg %p35
      %p42 = scmp.eq.s32.totalorder %s12, 1
      %p43 = por %p41, %p42
      %p44 = scmp.ne.s32.totalorder %s36, %s39
      %p45 = scmp.eq.s32.totalorder %s12, 0
      %p46 = por %p44, %p45
      %p47 = scmp.ne.s32.totalorder %s36, %s39
      %p48 = scmp.eq.s32.totalorder %s17, 1
      %p49 = por %p47, %p48
      %p50 = scmp.ne.s32.totalorder %s39, %s40
      %p51 = scmp.eq.s32.totalorder %s17, 0
      %p52 = por %p50, %p51
      %p53 = scmp.ne.s32.totalorder %s39, %s40
      %p54 = scmp.eq.s32.totalorder %s18, 1
      %p55 = por %p53, %p54
      %p57 = scmp.ne.s32.totalorder %s40, %s56
      %p58 = scmp.eq.s32.totalorder %s18, 0
      %p59 = por %p57, %p58
      %s60 = ssub.s32 %s20, %s27
      %p61 = scmp.eq.s32.totalorder %s60, 0
      %s63 = sadd.s32 %s62, 1
      %s64 = scalar_select %p61, %s62, %s63
      %p67 = pneg %p61
      %p68 = scmp.eq.s32.totalorder %s12, 1
      %p69 = por %p67, %p68
      %p70 = scmp.ne.s32.totalorder %s62, %s65
      %p71 = scmp.eq.s32.totalorder %s12, 0
      %p72 = por %p70, %p71
      %p73 = scmp.ne.s32.totalorder %s62, %s65
      %p74 = scmp.eq.s32.totalorder %s17, 1
      %p75 = por %p73, %p74
      %p76 = scmp.ne.s32.totalorder %s65, %s66
      %p77 = scmp.eq.s32.totalorder %s17, 0
      %p78 = por %p76, %p77
      %p79 = scmp.ne.s32.totalorder %s65, %s66
      %p80 = scmp.eq.s32.totalorder %s18, 1
      %p81 = por %p79, %p80
      %p83 = scmp.ne.s32.totalorder %s66, %s82
      %p84 = scmp.eq.s32.totalorder %s18, 0
      %p85 = por %p83, %p84
      %s87 = sadd.s32 %s86, 1
      %p90 = scmp.eq.s32.totalorder %s12, 1
      %p91 = scmp.ne.s32.totalorder %s86, %s88
      %p92 = scmp.eq.s32.totalorder %s12, 0
      %p93 = por %p91, %p92
      %p94 = scmp.ne.s32.totalorder %s86, %s88
      %p95 = scmp.eq.s32.totalorder %s17, 1
      %p96 = por %p94, %p95
      %p97 = scmp.ne.s32.totalorder %s88, %s89
      %p98 = scmp.eq.s32.totalorder %s17, 0
      %p99 = por %p97, %p98
      %p100 = scmp.ne.s32.totalorder %s88, %s89
      %p101 = scmp.eq.s32.totalorder %s18, 1
      %p102 = por %p100, %p101
      %p104 = scmp.ne.s32.totalorder %s89, %s103
      %p105 = scmp.eq.s32.totalorder %s18, 0
      %p106 = por %p104, %p105
      %s108 = sadd.s32 %s107, 1
      %p111 = scmp.eq.s32.totalorder %s12, 1
      %p112 = scmp.ne.s32.totalorder %s107, %s109
      %p113 = scmp.eq.s32.totalorder %s12, 0
      %p114 = por %p112, %p113
      %p115 = scmp.ne.s32.totalorder %s107, %s109
      %p116 = scmp.eq.s32.totalorder %s17, 1
      %p117 = por %p115, %p116
      %p118 = scmp.ne.s32.totalorder %s109, %s110
      %p119 = scmp.eq.s32.totalorder %s17, 0
      %p120 = por %p118, %p119
      %p121 = scmp.ne.s32.totalorder %s109, %s110
      %p122 = scmp.eq.s32.totalorder %s18, 1
      %p123 = por %p121, %p122
      %p125 = scmp.ne.s32.totalorder %s110, %s124
      %p126 = scmp.eq.s32.totalorder %s18, 0
      %p127 = por %p125, %p126
      %s128 = ssub.s32 %s19, %s31
      %p129 = scmp.eq.s32.totalorder %s128, 0
      %s131 = sadd.s32 %s130, 1
      %s132 = scalar_select %p129, %s130, %s131
      %p135 = pneg %p129
      %p136 = scmp.eq.s32.totalorder %s12, 1
      %p137 = por %p135, %p136
      %p138 = scmp.ne.s32.totalorder %s130, %s133
      %p139 = scmp.eq.s32.totalorder %s12, 0
      %p140 = por %p138, %p139
      %p141 = scmp.ne.s32.totalorder %s130, %s133
      %p142 = scmp.eq.s32.totalorder %s17, 1
      %p143 = por %p141, %p142
      %p144 = scmp.ne.s32.totalorder %s133, %s134
      %p145 = scmp.eq.s32.totalorder %s17, 0
      %p146 = por %p144, %p145
      %p147 = scmp.ne.s32.totalorder %s133, %s134
      %p148 = scmp.eq.s32.totalorder %s18, 1
      %p149 = por %p147, %p148
      %p151 = scmp.ne.s32.totalorder %s134, %s150
      %p152 = scmp.eq.s32.totalorder %s18, 0
      %p153 = por %p151, %p152
      %s155 = sadd.s32 %s154, 1
      %p158 = scmp.eq.s32.totalorder %s12, 1
      %p159 = scmp.ne.s32.totalorder %s154, %s156
      %p160 = scmp.eq.s32.totalorder %s12, 0
      %p161 = por %p159, %p160
      %p162 = scmp.ne.s32.totalorder %s154, %s156
      %p163 = scmp.eq.s32.totalorder %s17, 1
      %p164 = por %p162, %p163
      %p165 = scmp.ne.s32.totalorder %s156, %s157
      %p166 = scmp.eq.s32.totalorder %s17, 0
      %p167 = por %p165, %p166
      %p168 = scmp.ne.s32.totalorder %s156, %s157
      %p169 = scmp.eq.s32.totalorder %s18, 1
      %p170 = por %p168, %p169
      %p172 = scmp.ne.s32.totalorder %s157, %s171
      %p173 = scmp.eq.s32.totalorder %s18, 0
      %p174 = por %p172, %p173
      %p175 = scmp.le.s32.totalorder 1, %s12
      %p176 = scmp.lt.s32.totalorder %s12, 3
      %p177 = pnand %p175, %p176
      %p178 = pneg %p177
      // Predicated region
      $region9: #{gcn_forward.5} parent=5 // pred_check
        _
      $region10: #{gcn_forward.5} parent=5 // pred_check_branch
        %180 = sbr.rel (%p177) target = $region12
      $region11: #{gcn_forward.5} parent=5 // pred_region
        %s181 = ssub.s32 %s12, 1
        // Predicated region
        $region13: #{gcn_forward.5} parent=11 // pred_check
          %p182 = pneg %p78
        $region14: #{gcn_forward.5} parent=11 // pred_check_branch
          %184 = sbr.rel (%p182) target = $region16
        $region15: #{gcn_forward.5} parent=11 // pred_region
          %s185 = smul.u32 64, %s22
          %p186 = scmp.lt.s32.totalorder %s185, 63
          %s187 = scalar_select %p186, %s185, 63
          %s188 = smul.addr %s187, 4
          %s189 = scalar_lea.vmem %s1, %s188
          %s190 = smul.u32 64, %s22
        $region16: #{gcn_forward.5} parent=11 // pred_fallthru
          _
        // Predicated region
        $region17: #{gcn_forward.5} parent=11 // pred_check
          %p191 = pneg %p99
        $region18: #{gcn_forward.5} parent=11 // pred_check_branch
          %193 = sbr.rel (%p191) target = $region20
        $region19: #{gcn_forward.5} parent=11 // pred_region
          _
        $region20: #{gcn_forward.5} parent=11 // pred_fallthru
          _
        // Predicated region
        $region21: #{gcn_forward.5} parent=11 // pred_check
          %p194 = pneg %p120
        $region22: #{gcn_forward.5} parent=11 // pred_check_branch
          %196 = sbr.rel (%p194) target = $region24
        $region23: #{gcn_forward.5} parent=11 // pred_region
          _
        $region24: #{gcn_forward.5} parent=11 // pred_fallthru
          _
      $region12: #{gcn_forward.5} parent=5 // pred_fallthru
        _
      %p197 = scmp.lt.s32.totalorder %s12, 2
      // Predicated region
      $region25: #{gcn_forward.5} parent=5 // pred_check
        %p198 = pneg %p197
      $region26: #{gcn_forward.5} parent=5 // pred_check_branch
        %200 = sbr.rel (%p198) target = $region28
      $region27: #{gcn_forward.5} parent=5 // pred_region
        // Predicated region
        $region29: #{gcn_forward.5} parent=27 // pred_check
          %p201 = pneg %p46
        $region30: #{gcn_forward.5} parent=27 // pred_check_branch
          %203 = sbr.rel (%p201) target = $region32
        $region31: #{gcn_forward.5} parent=27 // pred_region
          %s204 = smul.u32 32, %s19
          %s205 = smul.u32 4, %s20
          %p206 = scmp.lt.s32.totalorder %s204, 63
          %s207 = scalar_select %p206, %s204, 63
          %p208 = scmp.lt.s32.totalorder %s205, 3
          %s209 = scalar_select %p208, %s205, 3
          %s210 = smul.addr %s207, 4
          %s211 = sadd.s32 %s209, %s210
          %s212 = smul.addr %s211, 4
          %s213 = scalar_lea.vmem %s0, %s212
          %s214 = smul.u32 32, %s19
          %s215 = smul.u32 4, %s20
        $region32: #{gcn_forward.5} parent=27 // pred_fallthru
          _
        // Predicated region
        $region33: #{gcn_forward.5} parent=27 // pred_check
          %p216 = pneg %p140
        $region34: #{gcn_forward.5} parent=27 // pred_check_branch
          %218 = sbr.rel (%p216) target = $region36
        $region35: #{gcn_forward.5} parent=27 // pred_region
          %s219 = smul.u32 32, %s19
          %p220 = scmp.lt.s32.totalorder %s219, 63
          %s221 = scalar_select %p220, %s219, 63
          %s222 = smul.addr %s221, 8
          %s223 = scalar_lea.vmem %s4, %s222
          %s224 = smul.u32 32, %s19
        $region36: #{gcn_forward.5} parent=27 // pred_fallthru
          _
      $region28: #{gcn_forward.5} parent=5 // pred_fallthru
        _
      %p225 = scmp.le.s32.totalorder 1, %s12
      %p226 = scmp.lt.s32.totalorder %s12, 3
      %p227 = pnand %p225, %p226
      %p228 = pneg %p227
      // Predicated region
      $region37: #{gcn_forward.5} parent=5 // pred_check
        _
      $region38: #{gcn_forward.5} parent=5 // pred_check_branch
        %230 = sbr.rel (%p227) target = $region40
      $region39: #{gcn_forward.5} parent=5 // pred_region
        %s231 = ssub.s32 %s12, 1
        %s232 = smul.u32 32, %s21
        %s233 = smul.u32 4, %s22
        %p234 = scmp.lt.s32.totalorder %s232, 63
        %s235 = scalar_select %p234, %s232, 63
        %p236 = scmp.lt.s32.totalorder %s233, 3
        %s237 = scalar_select %p236, %s233, 3
        %s238 = smul.addr %s235, 4
        %s239 = sadd.s32 %s237, %s238
        %s240 = smul.addr %s239, 4
        %s241 = scalar_lea.vmem %s0, %s240
        %p242 = pneg %p52
        %p243 = pneg %p49
        %s244 = smul.u32 64, %s22
        %p245 = scmp.lt.s32.totalorder %s244, 63
        %s246 = scalar_select %p245, %s244, 63
        %s247 = smul.addr %s246, 4
        %s248 = scalar_lea.vmem %s1, %s247
        %p249 = pneg %p78
        %p250 = pneg %p75
        %p251 = pneg %p99
        %p252 = pneg %p96
        %p253 = pneg %p120
        %p254 = pneg %p117
        %s255 = smul.u32 32, %s21
        %p256 = scmp.lt.s32.totalorder %s255, 63
        %s257 = scalar_select %p256, %s255, 63
        %s258 = smul.addr %s257, 8
        %s259 = scalar_lea.vmem %s4, %s258
        %p260 = pneg %p146
        %p261 = pneg %p143
        %p262 = pneg %p167
        %p263 = pneg %p164
        %s264 = smul.u32 32, %s21
        %s265 = smul.u32 4, %s22
        %p266 = scmp.lt.s32.totalorder %s264, 63
        %s267 = scalar_select %p266, %s264, 63
        %p268 = scmp.lt.s32.totalorder %s265, 3
        %s269 = scalar_select %p268, %s265, 3
        %s270 = smul.addr %s267, 4
        %s271 = sadd.s32 %s269, %s270
        %s272 = smul.addr %s271, 4
        %s273 = scalar_lea.vmem %s0, %s272
        %s274 = smul.u32 32, %s21
        %s275 = smul.u32 4, %s22
        %s276 = smul.u32 64, %s22
        %p277 = scmp.lt.s32.totalorder %s276, 63
        %s278 = scalar_select %p277, %s276, 63
        %s279 = smul.addr %s278, 4
        %s280 = scalar_lea.vmem %s1, %s279
        %s281 = smul.u32 64, %s22
        %s282 = smul.u32 32, %s21
        %p283 = scmp.lt.s32.totalorder %s282, 63
        %s284 = scalar_select %p283, %s282, 63
        %s285 = smul.addr %s284, 8
        %s286 = scalar_lea.vmem %s4, %s285
        %s287 = smul.u32 32, %s21
        %p289 = scmp.eq.s32.totalorder %s21, 0
        %p290 = scmp.eq.s32.totalorder %s22, 0
        %p291 = pnand %p289, %p290
        %p292 = pneg %p291
        // Predicated region
        $region41: #{gcn_forward.5} parent=39 // pred_check
          _
        $region42: #{gcn_forward.5} parent=39 // pred_check_branch
          %294 = sbr.rel (%p291) target = $region44
        $region43: #{gcn_forward.5} parent=39 // pred_region
          %vm295 = vcmask 0
          %296 = vst.msk [vmem:[#allocation3] sm:$0x1] %vm295, 0.0
        $region44: #{gcn_forward.5} parent=39 // pred_fallthru
          _
        // Predicated region
        $region45: #{gcn_forward.5} parent=39 // pred_check
          %p297 = pneg %p290
        $region46: #{gcn_forward.5} parent=39 // pred_check_branch
          %299 = sbr.rel (%p297) target = $region48
        $region47: #{gcn_forward.5} parent=39 // pred_region
          %300 = vst [vmem:[#allocation2] sm:$0xff] 0.0
          %301 = vst [vmem:[#allocation2 + $0x8] sm:$0xff] 0.0
          %302 = vst [vmem:[#allocation2 + $0x10] sm:$0xff] 0.0
          %303 = vst [vmem:[#allocation2 + $0x18] sm:$0xff] 0.0
          %304 = vst [vmem:[#allocation2 + $0x20] sm:$0xff] 0.0
          %305 = vst [vmem:[#allocation2 + $0x28] sm:$0xff] 0.0
          %306 = vst [vmem:[#allocation2 + $0x30] sm:$0xff] 0.0
          %307 = vst [vmem:[#allocation2 + $0x38] sm:$0xff] 0.0
          %308 = vst [vmem:[#allocation2 + $0x40] sm:$0xff] 0.0
          %309 = vst [vmem:[#allocation2 + $0x48] sm:$0xff] 0.0
          %310 = vst [vmem:[#allocation2 + $0x50] sm:$0xff] 0.0
          %311 = vst [vmem:[#allocation2 + $0x58] sm:$0xff] 0.0
          %312 = vst [vmem:[#allocation2 + $0x60] sm:$0xff] 0.0
          %313 = vst [vmem:[#allocation2 + $0x68] sm:$0xff] 0.0
          %314 = vst [vmem:[#allocation2 + $0x70] sm:$0xff] 0.0
          %315 = vst [vmem:[#allocation2 + $0x78] sm:$0xff] 0.0
          %316 = vst [vmem:[#allocation2 + $0x80] sm:$0xff] 0.0
          %317 = vst [vmem:[#allocation2 + $0x88] sm:$0xff] 0.0
          %318 = vst [vmem:[#allocation2 + $0x90] sm:$0xff] 0.0
          %319 = vst [vmem:[#allocation2 + $0x98] sm:$0xff] 0.0
          %320 = vst [vmem:[#allocation2 + $0xa0] sm:$0xff] 0.0
          %321 = vst [vmem:[#allocation2 + $0xa8] sm:$0xff] 0.0
          %322 = vst [vmem:[#allocation2 + $0xb0] sm:$0xff] 0.0
          %323 = vst [vmem:[#allocation2 + $0xb8] sm:$0xff] 0.0
          %324 = vst [vmem:[#allocation2 + $0xc0] sm:$0xff] 0.0
          %325 = vst [vmem:[#allocation2 + $0xc8] sm:$0xff] 0.0
          %326 = vst [vmem:[#allocation2 + $0xd0] sm:$0xff] 0.0
          %327 = vst [vmem:[#allocation2 + $0xd8] sm:$0xff] 0.0
          %328 = vst [vmem:[#allocation2 + $0xe0] sm:$0xff] 0.0
          %329 = vst [vmem:[#allocation2 + $0xe8] sm:$0xff] 0.0
          %330 = vst [vmem:[#allocation2 + $0xf0] sm:$0xff] 0.0
          %331 = vst [vmem:[#allocation2 + $0xf8] sm:$0xff] 0.0
        $region48: #{gcn_forward.5} parent=39 // pred_fallthru
          _
        %v332 = vld [vmem:[%s280] sm:$0xf]
        %v333 = vld [vmem:[%s280 + $0x4] sm:$0xf]
        %v334 = vld [vmem:[%s280 + $0x8] sm:$0xf]
        %v335 = vld [vmem:[%s280 + $0xc] sm:$0xf]
        %v336 = vld [vmem:[%s280 + $0x10] sm:$0xf]
        %v337 = vld [vmem:[%s280 + $0x14] sm:$0xf]
        %v338 = vld [vmem:[%s280 + $0x18] sm:$0xf]
        %v339 = vld [vmem:[%s280 + $0x1c] sm:$0xf]
        %v340 = vld [vmem:[%s280 + $0x20] sm:$0xf]
        %v341 = vld [vmem:[%s280 + $0x24] sm:$0xf]
        %v342 = vld [vmem:[%s280 + $0x28] sm:$0xf]
        %v343 = vld [vmem:[%s280 + $0x2c] sm:$0xf]
        %v344 = vld [vmem:[%s280 + $0x30] sm:$0xf]
        %v345 = vld [vmem:[%s280 + $0x34] sm:$0xf]
        %v346 = vld [vmem:[%s280 + $0x38] sm:$0xf]
        %v347 = vld [vmem:[%s280 + $0x3c] sm:$0xf]
        %v348 = vld [vmem:[%s280 + $0x40] sm:$0xf]
        %v349 = vld [vmem:[%s280 + $0x44] sm:$0xf]
        %v350 = vld [vmem:[%s280 + $0x48] sm:$0xf]
        %v351 = vld [vmem:[%s280 + $0x4c] sm:$0xf]
        %v352 = vld [vmem:[%s280 + $0x50] sm:$0xf]
        %v353 = vld [vmem:[%s280 + $0x54] sm:$0xf]
        %v354 = vld [vmem:[%s280 + $0x58] sm:$0xf]
        %v355 = vld [vmem:[%s280 + $0x5c] sm:$0xf]
        %v356 = vld [vmem:[%s280 + $0x60] sm:$0xf]
        %v357 = vld [vmem:[%s280 + $0x64] sm:$0xf]
        %v358 = vld [vmem:[%s280 + $0x68] sm:$0xf]
        %v359 = vld [vmem:[%s280 + $0x6c] sm:$0xf]
        %v360 = vld [vmem:[%s280 + $0x70] sm:$0xf]
        %v361 = vld [vmem:[%s280 + $0x74] sm:$0xf]
        %v362 = vld [vmem:[%s280 + $0x78] sm:$0xf]
        %v363 = vld [vmem:[%s280 + $0x7c] sm:$0xf]
        %v364 = vld [vmem:[%s280 + $0x80] sm:$0xf]
        %v365 = vld [vmem:[%s280 + $0x84] sm:$0xf]
        %v366 = vld [vmem:[%s280 + $0x88] sm:$0xf]
        %v367 = vld [vmem:[%s280 + $0x8c] sm:$0xf]
        %v368 = vld [vmem:[%s280 + $0x90] sm:$0xf]
        %v369 = vld [vmem:[%s280 + $0x94] sm:$0xf]
        %v370 = vld [vmem:[%s280 + $0x98] sm:$0xf]
        %v371 = vld [vmem:[%s280 + $0x9c] sm:$0xf]
        %v372 = vld [vmem:[%s280 + $0xa0] sm:$0xf]
        %v373 = vld [vmem:[%s280 + $0xa4] sm:$0xf]
        %v374 = vld [vmem:[%s280 + $0xa8] sm:$0xf]
        %v375 = vld [vmem:[%s280 + $0xac] sm:$0xf]
        %v376 = vld [vmem:[%s280 + $0xb0] sm:$0xf]
        %v377 = vld [vmem:[%s280 + $0xb4] sm:$0xf]
        %v378 = vld [vmem:[%s280 + $0xb8] sm:$0xf]
        %v379 = vld [vmem:[%s280 + $0xbc] sm:$0xf]
        %v380 = vld [vmem:[%s280 + $0xc0] sm:$0xf]
        %v381 = vld [vmem:[%s280 + $0xc4] sm:$0xf]
        %v382 = vld [vmem:[%s280 + $0xc8] sm:$0xf]
        %v383 = vld [vmem:[%s280 + $0xcc] sm:$0xf]
        %v384 = vld [vmem:[%s280 + $0xd0] sm:$0xf]
        %v385 = vld [vmem:[%s280 + $0xd4] sm:$0xf]
        %v386 = vld [vmem:[%s280 + $0xd8] sm:$0xf]
        %v387 = vld [vmem:[%s280 + $0xdc] sm:$0xf]
        %v388 = vld [vmem:[%s280 + $0xe0] sm:$0xf]
        %v389 = vld [vmem:[%s280 + $0xe4] sm:$0xf]
        %v390 = vld [vmem:[%s280 + $0xe8] sm:$0xf]
        %v391 = vld [vmem:[%s280 + $0xec] sm:$0xf]
        %v392 = vld [vmem:[%s280 + $0xf0] sm:$0xf]
        %v393 = vld [vmem:[%s280 + $0xf4] sm:$0xf]
        %v394 = vld [vmem:[%s280 + $0xf8] sm:$0xf]
        %v395 = vld [vmem:[%s280 + $0xfc] sm:$0xf]
        %v396 = vld [vmem:[%s2] sm:$0xf]
        %v397 = vld [vmem:[%s2 + $0x4] sm:$0xf]
        %v398 = vld [vmem:[%s2 + $0x8] sm:$0xf]
        %v399 = vld [vmem:[%s2 + $0xc] sm:$0xf]
        %v400 = vld [vmem:[%s2 + $0x10] sm:$0xf]
        %v401 = vld [vmem:[%s2 + $0x14] sm:$0xf]
        %v402 = vld [vmem:[%s2 + $0x18] sm:$0xf]
        %v403 = vld [vmem:[%s2 + $0x1c] sm:$0xf]
        %v404 = vld [vmem:[%s2 + $0x20] sm:$0xf]
        %v405 = vld [vmem:[%s2 + $0x24] sm:$0xf]
        %v406 = vld [vmem:[%s2 + $0x28] sm:$0xf]
        %v407 = vld [vmem:[%s2 + $0x2c] sm:$0xf]
        %v408 = vld [vmem:[%s2 + $0x30] sm:$0xf]
        %v409 = vld [vmem:[%s2 + $0x34] sm:$0xf]
        %v410 = vld [vmem:[%s2 + $0x38] sm:$0xf]
        %v411 = vld [vmem:[%s2 + $0x3c] sm:$0xf]
        %v412 = vld [vmem:[%s3] sm:$0x1]
        %v414 = vlaneseq
        %v415 = vshrl.u32 %v414, 7
        %v416 = vsub.s32 0, %v415
        %v417 = vrot.slane %v412, %v416
        %v483 = vunpack.c.l.b16 %v332
        %v484 = vunpack.c.l.b16 %v333
        %v485 = vunpack.c.l.b16 %v334
        %v486 = vunpack.c.l.b16 %v335
        %v487 = vunpack.c.l.b16 %v336
        %v488 = vunpack.c.l.b16 %v337
        %v489 = vunpack.c.l.b16 %v338
        %v490 = vunpack.c.l.b16 %v339
        %v491 = vunpack.c.l.b16 %v340
        %v492 = vunpack.c.l.b16 %v341
        %v493 = vunpack.c.l.b16 %v342
        %v494 = vunpack.c.l.b16 %v343
        %v495 = vunpack.c.l.b16 %v344
        %v496 = vunpack.c.l.b16 %v345
        %v497 = vunpack.c.l.b16 %v346
        %v498 = vunpack.c.l.b16 %v347
        %v499 = vunpack.c.l.b16 %v348
        %v500 = vunpack.c.l.b16 %v349
        %v501 = vunpack.c.l.b16 %v350
        %v502 = vunpack.c.l.b16 %v351
        %v503 = vunpack.c.l.b16 %v352
        %v504 = vunpack.c.l.b16 %v353
        %v505 = vunpack.c.l.b16 %v354
        %v506 = vunpack.c.l.b16 %v355
        %v507 = vunpack.c.l.b16 %v356
        %v508 = vunpack.c.l.b16 %v357
        %v509 = vunpack.c.l.b16 %v358
        %v510 = vunpack.c.l.b16 %v359
        %v511 = vunpack.c.l.b16 %v360
        %v512 = vunpack.c.l.b16 %v361
        %v513 = vunpack.c.l.b16 %v362
        %v514 = vunpack.c.l.b16 %v363
        %v515 = vunpack.c.l.b16 %v364
        %v516 = vunpack.c.l.b16 %v365
        %v517 = vunpack.c.l.b16 %v366
        %v518 = vunpack.c.l.b16 %v367
        %v519 = vunpack.c.l.b16 %v368
        %v520 = vunpack.c.l.b16 %v369
        %v521 = vunpack.c.l.b16 %v370
        %v522 = vunpack.c.l.b16 %v371
        %v523 = vunpack.c.l.b16 %v372
        %v524 = vunpack.c.l.b16 %v373
        %v525 = vunpack.c.l.b16 %v374
        %v526 = vunpack.c.l.b16 %v375
        %v527 = vunpack.c.l.b16 %v376
        %v528 = vunpack.c.l.b16 %v377
        %v529 = vunpack.c.l.b16 %v378
        %v530 = vunpack.c.l.b16 %v379
        %v531 = vunpack.c.l.b16 %v380
        %v532 = vunpack.c.l.b16 %v381
        %v533 = vunpack.c.l.b16 %v382
        %v534 = vunpack.c.l.b16 %v383
        %v535 = vunpack.c.l.b16 %v384
        %v536 = vunpack.c.l.b16 %v385
        %v537 = vunpack.c.l.b16 %v386
        %v538 = vunpack.c.l.b16 %v387
        %v539 = vunpack.c.l.b16 %v388
        %v540 = vunpack.c.l.b16 %v389
        %v541 = vunpack.c.l.b16 %v390
        %v542 = vunpack.c.l.b16 %v391
        %v543 = vunpack.c.l.b16 %v392
        %v544 = vunpack.c.l.b16 %v393
        %v545 = vunpack.c.l.b16 %v394
        %v546 = vunpack.c.l.b16 %v395
        %v547 = vpack.c.b16 %v484, %v483
        %v548 = vpack.c.b16 %v486, %v485
        %v549 = vpack.c.b16 %v488, %v487
        %v550 = vpack.c.b16 %v490, %v489
        %v551 = vpack.c.b16 %v492, %v491
        %v552 = vpack.c.b16 %v494, %v493
        %v553 = vpack.c.b16 %v496, %v495
        %v554 = vpack.c.b16 %v498, %v497
        %v555 = vpack.c.b16 %v500, %v499
        %v556 = vpack.c.b16 %v502, %v501
        %v557 = vpack.c.b16 %v504, %v503
        %v558 = vpack.c.b16 %v506, %v505
        %v559 = vpack.c.b16 %v508, %v507
        %v560 = vpack.c.b16 %v510, %v509
        %v561 = vpack.c.b16 %v512, %v511
        %v562 = vpack.c.b16 %v514, %v513
        %v563 = vpack.c.b16 %v516, %v515
        %v564 = vpack.c.b16 %v518, %v517
        %v565 = vpack.c.b16 %v520, %v519
        %v566 = vpack.c.b16 %v522, %v521
        %v567 = vpack.c.b16 %v524, %v523
        %v568 = vpack.c.b16 %v526, %v525
        %v569 = vpack.c.b16 %v528, %v527
        %v570 = vpack.c.b16 %v530, %v529
        %v571 = vpack.c.b16 %v532, %v531
        %v572 = vpack.c.b16 %v534, %v533
        %v573 = vpack.c.b16 %v536, %v535
        %v574 = vpack.c.b16 %v538, %v537
        %v575 = vpack.c.b16 %v540, %v539
        %v576 = vpack.c.b16 %v542, %v541
        %v577 = vpack.c.b16 %v544, %v543
        %v578 = vpack.c.b16 %v546, %v545
        %v627 = vunpack.c.l.b16 %v396
        %v628 = vunpack.c.l.b16 %v397
        %v629 = vunpack.c.l.b16 %v398
        %v630 = vunpack.c.l.b16 %v399
        %v631 = vunpack.c.l.b16 %v400
        %v632 = vunpack.c.l.b16 %v401
        %v633 = vunpack.c.l.b16 %v402
        %v634 = vunpack.c.l.b16 %v403
        %v635 = vunpack.c.l.b16 %v404
        %v636 = vunpack.c.l.b16 %v405
        %v637 = vunpack.c.l.b16 %v406
        %v638 = vunpack.c.l.b16 %v407
        %v639 = vunpack.c.l.b16 %v408
        %v640 = vunpack.c.l.b16 %v409
        %v641 = vunpack.c.l.b16 %v410
        %v642 = vunpack.c.l.b16 %v411
        %v643 = vpack.c.b16 %v628, %v627
        %v644 = vpack.c.b16 %v630, %v629
        %v645 = vpack.c.b16 %v632, %v631
        %v646 = vpack.c.b16 %v634, %v633
        %v647 = vpack.c.b16 %v636, %v635
        %v648 = vpack.c.b16 %v638, %v637
        %v649 = vpack.c.b16 %v640, %v639
        %v650 = vpack.c.b16 %v642, %v641
        %659 = vmatprep.subr.bf16.mxu0 0
        %660 = vmatpush1.bf16.msra.mxu0 %v643
        %661 = vmatprep.subr.bf16.mxu0 0
        %662 = vmatpush1.bf16.msra.mxu0 %v644
        %663 = vmatprep.subr.bf16.mxu0 0
        %664 = vmatpush1.bf16.msra.mxu0 %v645
        %665 = vmatprep.subr.bf16.mxu0 0
        %666 = vmatpush1.bf16.msra.mxu0 %v646
        %667 = vmatprep.subr.bf16.mxu0 0
        %668 = vmatpush1.bf16.msra.mxu0 %v647
        %669 = vmatprep.subr.bf16.mxu0 0
        %670 = vmatpush1.bf16.msra.mxu0 %v648
        %671 = vmatprep.subr.bf16.mxu0 0
        %672 = vmatpush1.bf16.msra.mxu0 %v649
        %673 = vmatprep.subr.bf16.mxu0 0
        %674 = vmatpush1.bf16.msra.mxu0 %v650
        %675 = vmatprep.subr.bf16.mxu0 0
        %676 = vmatpush1.bf16.msra.mxu0 0
        %677 = vmatprep.subr.bf16.mxu0 0
        %678 = vmatpush1.bf16.msra.mxu0 0
        %679 = vmatprep.subr.bf16.mxu0 0
        %680 = vmatpush1.bf16.msra.mxu0 0
        %681 = vmatprep.subr.bf16.mxu0 0
        %682 = vmatpush1.bf16.msra.mxu0 0
        %683 = vmatprep.subr.bf16.mxu0 0
        %684 = vmatpush1.bf16.msra.mxu0 0
        %685 = vmatprep.subr.bf16.mxu0 0
        %686 = vmatpush1.bf16.msra.mxu0 0
        %687 = vmatprep.subr.bf16.mxu0 0
        %688 = vmatpush1.bf16.msra.mxu0 0
        %689 = vmatprep.subr.bf16.mxu0 0
        %690 = vmatpush1.bf16.msra.mxu0 0
        %691 = vmatprep.mubr.bf16.mxu0 0
        %692 = vmatmul.mubr.bf16.gmra.mrb[0].mxu0 %v547
        %v693 = vpop.f32.mrb[0].mxu0
        %v694 = vadd.f32 %v417, %v693
        %v695 = vpop.f32.mrb[0].mxu0
        %v696 = vpop.f32.mrb[0].mxu0
        %v697 = vadd.f32 %v417, %v696
        %v698 = vpop.f32.mrb[0].mxu0
        %699 = vmatprep.mubr.bf16.mxu0 0
        %700 = vmatmul.mubr.bf16.gmra.mrb[0].mxu0 %v548
        %v701 = vpop.f32.mrb[0].mxu0
        %v702 = vadd.f32 %v417, %v701
        %v703 = vpop.f32.mrb[0].mxu0
        %v704 = vpop.f32.mrb[0].mxu0
        %v705 = vadd.f32 %v417, %v704
        %v706 = vpop.f32.mrb[0].mxu0
        %707 = vmatprep.mubr.bf16.mxu0 0
        %708 = vmatmul.mubr.bf16.gmra.mrb[0].mxu0 %v549
        %v709 = vpop.f32.mrb[0].mxu0
        %v710 = vadd.f32 %v417, %v709
        %v711 = vpop.f32.mrb[0].mxu0
        %v712 = vpop.f32.mrb[0].mxu0
        %v713 = vadd.f32 %v417, %v712
        %v714 = vpop.f32.mrb[0].mxu0
        %715 = vmatprep.mubr.bf16.mxu0 0
        %716 = vmatmul.mubr.bf16.gmra.mrb[0].mxu0 %v550
        %v717 = vpop.f32.mrb[0].mxu0
        %v718 = vadd.f32 %v417, %v717
        %v719 = vpop.f32.mrb[0].mxu0
        %v720 = vpop.f32.mrb[0].mxu0
        %v721 = vadd.f32 %v417, %v720
        %v722 = vpop.f32.mrb[0].mxu0
        %723 = vmatprep.mubr.bf16.mxu0 0
        %724 = vmatmul.mubr.bf16.gmra.mrb[0].mxu0 %v551
        %v725 = vpop.f32.mrb[0].mxu0
        %v726 = vadd.f32 %v417, %v725
        %v727 = vpop.f32.mrb[0].mxu0
        %v728 = vpop.f32.mrb[0].mxu0
        %v729 = vadd.f32 %v417, %v728
        %v730 = vpop.f32.mrb[0].mxu0
        %731 = vmatprep.mubr.bf16.mxu0 0
        %732 = vmatmul.mubr.bf16.gmra.mrb[0].mxu0 %v552
        %v733 = vpop.f32.mrb[0].mxu0
        %v734 = vadd.f32 %v417, %v733
        %v735 = vpop.f32.mrb[0].mxu0
        %v736 = vpop.f32.mrb[0].mxu0
        %v737 = vadd.f32 %v417, %v736
        %v738 = vpop.f32.mrb[0].mxu0
        %739 = vmatprep.mubr.bf16.mxu0 0
        %740 = vmatmul.mubr.bf16.gmra.mrb[0].mxu0 %v553
        %v741 = vpop.f32.mrb[0].mxu0
        %v742 = vadd.f32 %v417, %v741
        %v743 = vpop.f32.mrb[0].mxu0
        %v744 = vpop.f32.mrb[0].mxu0
        %v745 = vadd.f32 %v417, %v744
        %v746 = vpop.f32.mrb[0].mxu0
        %747 = vmatprep.mubr.bf16.mxu0 0
        %748 = vmatmul.mubr.bf16.gmra.mrb[0].mxu0 %v554
        %v749 = vpop.f32.mrb[0].mxu0
        %v750 = vadd.f32 %v417, %v749
        %v751 = vpop.f32.mrb[0].mxu0
        %v752 = vpop.f32.mrb[0].mxu0
        %v753 = vadd.f32 %v417, %v752
        %v754 = vpop.f32.mrb[0].mxu0
        %755 = vmatprep.mubr.bf16.mxu0 0
        %756 = vmatmul.mubr.bf16.gmra.mrb[0].mxu0 %v555
        %v757 = vpop.f32.mrb[0].mxu0
        %v758 = vadd.f32 %v417, %v757
        %v759 = vpop.f32.mrb[0].mxu0
        %v760 = vpop.f32.mrb[0].mxu0
        %v761 = vadd.f32 %v417, %v760
        %v762 = vpop.f32.mrb[0].mxu0
        %763 = vmatprep.mubr.bf16.mxu0 0
        %764 = vmatmul.mubr.bf16.gmra.mrb[0].mxu0 %v556
        %v765 = vpop.f32.mrb[0].mxu0
        %v766 = vadd.f32 %v417, %v765
        %v767 = vpop.f32.mrb[0].mxu0
        %v768 = vpop.f32.mrb[0].mxu0
        %v769 = vadd.f32 %v417, %v768
        %v770 = vpop.f32.mrb[0].mxu0
        %771 = vmatprep.mubr.bf16.mxu0 0
        %772 = vmatmul.mubr.bf16.gmra.mrb[0].mxu0 %v557
        %v773 = vpop.f32.mrb[0].mxu0
        %v774 = vadd.f32 %v417, %v773
        %v775 = vpop.f32.mrb[0].mxu0
        %v776 = vpop.f32.mrb[0].mxu0
        %v777 = vadd.f32 %v417, %v776
        %v778 = vpop.f32.mrb[0].mxu0
        %779 = vmatprep.mubr.bf16.mxu0 0
        %780 = vmatmul.mubr.bf16.gmra.mrb[0].mxu0 %v558
        %v781 = vpop.f32.mrb[0].mxu0
        %v782 = vadd.f32 %v417, %v781
        %v783 = vpop.f32.mrb[0].mxu0
        %v784 = vpop.f32.mrb[0].mxu0
        %v785 = vadd.f32 %v417, %v784
        %v786 = vpop.f32.mrb[0].mxu0
        %787 = vmatprep.mubr.bf16.mxu0 0
        %788 = vmatmul.mubr.bf16.gmra.mrb[0].mxu0 %v559
        %v789 = vpop.f32.mrb[0].mxu0
        %v790 = vadd.f32 %v417, %v789
        %v791 = vpop.f32.mrb[0].mxu0
        %v792 = vpop.f32.mrb[0].mxu0
        %v793 = vadd.f32 %v417, %v792
        %v794 = vpop.f32.mrb[0].mxu0
        %795 = vmatprep.mubr.bf16.mxu0 0
        %796 = vmatmul.mubr.bf16.gmra.mrb[0].mxu0 %v560
        %v797 = vpop.f32.mrb[0].mxu0
        %v798 = vadd.f32 %v417, %v797
        %v799 = vpop.f32.mrb[0].mxu0
        %v800 = vpop.f32.mrb[0].mxu0
        %v801 = vadd.f32 %v417, %v800
        %v802 = vpop.f32.mrb[0].mxu0
        %803 = vmatprep.mubr.bf16.mxu0 0
        %804 = vmatmul.mubr.bf16.gmra.mrb[0].mxu0 %v561
        %v805 = vpop.f32.mrb[0].mxu0
        %v806 = vadd.f32 %v417, %v805
        %v807 = vpop.f32.mrb[0].mxu0
        %v808 = vpop.f32.mrb[0].mxu0
        %v809 = vadd.f32 %v417, %v808
        %v810 = vpop.f32.mrb[0].mxu0
        %811 = vmatprep.mubr.bf16.mxu0 0
        %812 = vmatmul.mubr.bf16.gmra.mrb[0].mxu0 %v562
        %v813 = vpop.f32.mrb[0].mxu0
        %v814 = vadd.f32 %v417, %v813
        %v815 = vpop.f32.mrb[0].mxu0
        %v816 = vpop.f32.mrb[0].mxu0
        %v817 = vadd.f32 %v417, %v816
        %v818 = vpop.f32.mrb[0].mxu0
        %819 = vmatprep.mubr.bf16.mxu0 0
        %820 = vmatmul.mubr.bf16.gmra.mrb[0].mxu0 %v563
        %v821 = vpop.f32.mrb[0].mxu0
        %v822 = vadd.f32 %v417, %v821
        %v823 = vpop.f32.mrb[0].mxu0
        %v824 = vpop.f32.mrb[0].mxu0
        %v825 = vadd.f32 %v417, %v824
        %v826 = vpop.f32.mrb[0].mxu0
        %827 = vmatprep.mubr.bf16.mxu0 0
        %828 = vmatmul.mubr.bf16.gmra.mrb[0].mxu0 %v564
        %v829 = vpop.f32.mrb[0].mxu0
        %v830 = vadd.f32 %v417, %v829
        %v831 = vpop.f32.mrb[0].mxu0
        %v832 = vpop.f32.mrb[0].mxu0
        %v833 = vadd.f32 %v417, %v832
        %v834 = vpop.f32.mrb[0].mxu0
        %835 = vmatprep.mubr.bf16.mxu0 0
        %836 = vmatmul.mubr.bf16.gmra.mrb[0].mxu0 %v565
        %v837 = vpop.f32.mrb[0].mxu0
        %v838 = vadd.f32 %v417, %v837
        %v839 = vpop.f32.mrb[0].mxu0
        %v840 = vpop.f32.mrb[0].mxu0
        %v841 = vadd.f32 %v417, %v840
        %v842 = vpop.f32.mrb[0].mxu0
        %843 = vmatprep.mubr.bf16.mxu0 0
        %844 = vmatmul.mubr.bf16.gmra.mrb[0].mxu0 %v566
        %v845 = vpop.f32.mrb[0].mxu0
        %v846 = vadd.f32 %v417, %v845
        %v847 = vpop.f32.mrb[0].mxu0
        %v848 = vpop.f32.mrb[0].mxu0
        %v849 = vadd.f32 %v417, %v848
        %v850 = vpop.f32.mrb[0].mxu0
        %851 = vmatprep.mubr.bf16.mxu0 0
        %852 = vmatmul.mubr.bf16.gmra.mrb[0].mxu0 %v567
        %v853 = vpop.f32.mrb[0].mxu0
        %v854 = vadd.f32 %v417, %v853
        %v855 = vpop.f32.mrb[0].mxu0
        %v856 = vpop.f32.mrb[0].mxu0
        %v857 = vadd.f32 %v417, %v856
        %v858 = vpop.f32.mrb[0].mxu0
        %859 = vmatprep.mubr.bf16.mxu0 0
        %860 = vmatmul.mubr.bf16.gmra.mrb[0].mxu0 %v568
        %v861 = vpop.f32.mrb[0].mxu0
        %v862 = vadd.f32 %v417, %v861
        %v863 = vpop.f32.mrb[0].mxu0
        %v864 = vpop.f32.mrb[0].mxu0
        %v865 = vadd.f32 %v417, %v864
        %v866 = vpop.f32.mrb[0].mxu0
        %867 = vmatprep.mubr.bf16.mxu0 0
        %868 = vmatmul.mubr.bf16.gmra.mrb[0].mxu0 %v569
        %v869 = vpop.f32.mrb[0].mxu0
        %v870 = vadd.f32 %v417, %v869
        %v871 = vpop.f32.mrb[0].mxu0
        %v872 = vpop.f32.mrb[0].mxu0
        %v873 = vadd.f32 %v417, %v872
        %v874 = vpop.f32.mrb[0].mxu0
        %875 = vmatprep.mubr.bf16.mxu0 0
        %876 = vmatmul.mubr.bf16.gmra.mrb[0].mxu0 %v570
        %v877 = vpop.f32.mrb[0].mxu0
        %v878 = vadd.f32 %v417, %v877
        %v879 = vpop.f32.mrb[0].mxu0
        %v880 = vpop.f32.mrb[0].mxu0
        %v881 = vadd.f32 %v417, %v880
        %v882 = vpop.f32.mrb[0].mxu0
        %883 = vmatprep.mubr.bf16.mxu0 0
        %884 = vmatmul.mubr.bf16.gmra.mrb[0].mxu0 %v571
        %v885 = vpop.f32.mrb[0].mxu0
        %v886 = vadd.f32 %v417, %v885
        %v887 = vpop.f32.mrb[0].mxu0
        %v888 = vpop.f32.mrb[0].mxu0
        %v889 = vadd.f32 %v417, %v888
        %v890 = vpop.f32.mrb[0].mxu0
        %891 = vmatprep.mubr.bf16.mxu0 0
        %892 = vmatmul.mubr.bf16.gmra.mrb[0].mxu0 %v572
        %v893 = vpop.f32.mrb[0].mxu0
        %v894 = vadd.f32 %v417, %v893
        %v895 = vpop.f32.mrb[0].mxu0
        %v896 = vpop.f32.mrb[0].mxu0
        %v897 = vadd.f32 %v417, %v896
        %v898 = vpop.f32.mrb[0].mxu0
        %899 = vmatprep.mubr.bf16.mxu0 0
        %900 = vmatmul.mubr.bf16.gmra.mrb[0].mxu0 %v573
        %v901 = vpop.f32.mrb[0].mxu0
        %v902 = vadd.f32 %v417, %v901
        %v903 = vpop.f32.mrb[0].mxu0
        %v904 = vpop.f32.mrb[0].mxu0
        %v905 = vadd.f32 %v417, %v904
        %v906 = vpop.f32.mrb[0].mxu0
        %907 = vmatprep.mubr.bf16.mxu0 0
        %908 = vmatmul.mubr.bf16.gmra.mrb[0].mxu0 %v574
        %v909 = vpop.f32.mrb[0].mxu0
        %v910 = vadd.f32 %v417, %v909
        %v911 = vpop.f32.mrb[0].mxu0
        %v912 = vpop.f32.mrb[0].mxu0
        %v913 = vadd.f32 %v417, %v912
        %v914 = vpop.f32.mrb[0].mxu0
        %915 = vmatprep.mubr.bf16.mxu0 0
        %916 = vmatmul.mubr.bf16.gmra.mrb[0].mxu0 %v575
        %v917 = vpop.f32.mrb[0].mxu0
        %v918 = vadd.f32 %v417, %v917
        %v919 = vpop.f32.mrb[0].mxu0
        %v920 = vpop.f32.mrb[0].mxu0
        %v921 = vadd.f32 %v417, %v920
        %v922 = vpop.f32.mrb[0].mxu0
        %923 = vmatprep.mubr.bf16.mxu0 0
        %924 = vmatmul.mubr.bf16.gmra.mrb[0].mxu0 %v576
        %v925 = vpop.f32.mrb[0].mxu0
        %v926 = vadd.f32 %v417, %v925
        %v927 = vpop.f32.mrb[0].mxu0
        %v928 = vpop.f32.mrb[0].mxu0
        %v929 = vadd.f32 %v417, %v928
        %v930 = vpop.f32.mrb[0].mxu0
        %931 = vmatprep.mubr.bf16.mxu0 0
        %932 = vmatmul.mubr.bf16.gmra.mrb[0].mxu0 %v577
        %v933 = vpop.f32.mrb[0].mxu0
        %v934 = vadd.f32 %v417, %v933
        %v935 = vpop.f32.mrb[0].mxu0
        %v936 = vpop.f32.mrb[0].mxu0
        %v937 = vadd.f32 %v417, %v936
        %v938 = vpop.f32.mrb[0].mxu0
        %939 = vmatprep.mubr.bf16.mxu0 0
        %940 = vmatmul.mubr.bf16.gmra.mrb[0].mxu0 %v578
        %v941 = vpop.f32.mrb[0].mxu0
        %v942 = vadd.f32 %v417, %v941
        %v943 = vpop.f32.mrb[0].mxu0
        %v944 = vpop.f32.mrb[0].mxu0
        %v945 = vadd.f32 %v417, %v944
        %v946 = vpop.f32.mrb[0].mxu0
        %947 = vdwg.mxu0
        %v948 = vld [vmem:[#allocation2] sm:$0xff]
        %v949 = vld [vmem:[#allocation2 + $0x8] sm:$0xff]
        %v950 = vld [vmem:[#allocation2 + $0x10] sm:$0xff]
        %v951 = vld [vmem:[#allocation2 + $0x18] sm:$0xff]
        %v952 = vld [vmem:[#allocation2 + $0x20] sm:$0xff]
        %v953 = vld [vmem:[#allocation2 + $0x28] sm:$0xff]
        %v954 = vld [vmem:[#allocation2 + $0x30] sm:$0xff]
        %v955 = vld [vmem:[#allocation2 + $0x38] sm:$0xff]
        %v956 = vld [vmem:[#allocation2 + $0x40] sm:$0xff]
        %v957 = vld [vmem:[#allocation2 + $0x48] sm:$0xff]
        %v958 = vld [vmem:[#allocation2 + $0x50] sm:$0xff]
        %v959 = vld [vmem:[#allocation2 + $0x58] sm:$0xff]
        %v960 = vld [vmem:[#allocation2 + $0x60] sm:$0xff]
        %v961 = vld [vmem:[#allocation2 + $0x68] sm:$0xff]
        %v962 = vld [vmem:[#allocation2 + $0x70] sm:$0xff]
        %v963 = vld [vmem:[#allocation2 + $0x78] sm:$0xff]
        %v964 = vld [vmem:[#allocation2 + $0x80] sm:$0xff]
        %v965 = vld [vmem:[#allocation2 + $0x88] sm:$0xff]
        %v966 = vld [vmem:[#allocation2 + $0x90] sm:$0xff]
        %v967 = vld [vmem:[#allocation2 + $0x98] sm:$0xff]
        %v968 = vld [vmem:[#allocation2 + $0xa0] sm:$0xff]
        %v969 = vld [vmem:[#allocation2 + $0xa8] sm:$0xff]
        %v970 = vld [vmem:[#allocation2 + $0xb0] sm:$0xff]
        %v971 = vld [vmem:[#allocation2 + $0xb8] sm:$0xff]
        %v972 = vld [vmem:[#allocation2 + $0xc0] sm:$0xff]
        %v973 = vld [vmem:[#allocation2 + $0xc8] sm:$0xff]
        %v974 = vld [vmem:[#allocation2 + $0xd0] sm:$0xff]
        %v975 = vld [vmem:[#allocation2 + $0xd8] sm:$0xff]
        %v976 = vld [vmem:[#allocation2 + $0xe0] sm:$0xff]
        %v977 = vld [vmem:[#allocation2 + $0xe8] sm:$0xff]
        %v978 = vld [vmem:[#allocation2 + $0xf0] sm:$0xff]
        %v979 = vld [vmem:[#allocation2 + $0xf8] sm:$0xff]
        %v980 = vld [vmem:[%s273] sm:$0xff]
        %v981 = vld [vmem:[%s273 + $0x8] sm:$0xff]
        %v982 = vld [vmem:[%s273 + $0x10] sm:$0xff]
        %v983 = vld [vmem:[%s273 + $0x18] sm:$0xff]
        %v984 = vld [vmem:[%s273 + $0x20] sm:$0xff]
        %v985 = vld [vmem:[%s273 + $0x28] sm:$0xff]
        %v986 = vld [vmem:[%s273 + $0x30] sm:$0xff]
        %v987 = vld [vmem:[%s273 + $0x38] sm:$0xff]
        %v988 = vld [vmem:[%s273 + $0x40] sm:$0xff]
        %v989 = vld [vmem:[%s273 + $0x48] sm:$0xff]
        %v990 = vld [vmem:[%s273 + $0x50] sm:$0xff]
        %v991 = vld [vmem:[%s273 + $0x58] sm:$0xff]
        %v992 = vld [vmem:[%s273 + $0x60] sm:$0xff]
        %v993 = vld [vmem:[%s273 + $0x68] sm:$0xff]
        %v994 = vld [vmem:[%s273 + $0x70] sm:$0xff]
        %v995 = vld [vmem:[%s273 + $0x78] sm:$0xff]
        %v996 = vld [vmem:[%s273 + $0x80] sm:$0xff]
        %v997 = vld [vmem:[%s273 + $0x88] sm:$0xff]
        %v998 = vld [vmem:[%s273 + $0x90] sm:$0xff]
        %v999 = vld [vmem:[%s273 + $0x98] sm:$0xff]
        %v1000 = vld [vmem:[%s273 + $0xa0] sm:$0xff]
        %v1001 = vld [vmem:[%s273 + $0xa8] sm:$0xff]
        %v1002 = vld [vmem:[%s273 + $0xb0] sm:$0xff]
        %v1003 = vld [vmem:[%s273 + $0xb8] sm:$0xff]
        %v1004 = vld [vmem:[%s273 + $0xc0] sm:$0xff]
        %v1005 = vld [vmem:[%s273 + $0xc8] sm:$0xff]
        %v1006 = vld [vmem:[%s273 + $0xd0] sm:$0xff]
        %v1007 = vld [vmem:[%s273 + $0xd8] sm:$0xff]
        %v1008 = vld [vmem:[%s273 + $0xe0] sm:$0xff]
        %v1009 = vld [vmem:[%s273 + $0xe8] sm:$0xff]
        %v1010 = vld [vmem:[%s273 + $0xf0] sm:$0xff]
        %v1011 = vld [vmem:[%s273 + $0xf8] sm:$0xff]
        %v1012 = vld [vmem:[%s273 + $0x100] sm:$0xff]
        %v1013 = vld [vmem:[%s273 + $0x108] sm:$0xff]
        %v1014 = vld [vmem:[%s273 + $0x110] sm:$0xff]
        %v1015 = vld [vmem:[%s273 + $0x118] sm:$0xff]
        %v1016 = vld [vmem:[%s273 + $0x120] sm:$0xff]
        %v1017 = vld [vmem:[%s273 + $0x128] sm:$0xff]
        %v1018 = vld [vmem:[%s273 + $0x130] sm:$0xff]
        %v1019 = vld [vmem:[%s273 + $0x138] sm:$0xff]
        %v1020 = vld [vmem:[%s273 + $0x140] sm:$0xff]
        %v1021 = vld [vmem:[%s273 + $0x148] sm:$0xff]
        %v1022 = vld [vmem:[%s273 + $0x150] sm:$0xff]
        %v1023 = vld [vmem:[%s273 + $0x158] sm:$0xff]
        %v1024 = vld [vmem:[%s273 + $0x160] sm:$0xff]
        %v1025 = vld [vmem:[%s273 + $0x168] sm:$0xff]
        %v1026 = vld [vmem:[%s273 + $0x170] sm:$0xff]
        %v1027 = vld [vmem:[%s273 + $0x178] sm:$0xff]
        %v1028 = vld [vmem:[%s273 + $0x180] sm:$0xff]
        %v1029 = vld [vmem:[%s273 + $0x188] sm:$0xff]
        %v1030 = vld [vmem:[%s273 + $0x190] sm:$0xff]
        %v1031 = vld [vmem:[%s273 + $0x198] sm:$0xff]
        %v1032 = vld [vmem:[%s273 + $0x1a0] sm:$0xff]
        %v1033 = vld [vmem:[%s273 + $0x1a8] sm:$0xff]
        %v1034 = vld [vmem:[%s273 + $0x1b0] sm:$0xff]
        %v1035 = vld [vmem:[%s273 + $0x1b8] sm:$0xff]
        %v1036 = vld [vmem:[%s273 + $0x1c0] sm:$0xff]
        %v1037 = vld [vmem:[%s273 + $0x1c8] sm:$0xff]
        %v1038 = vld [vmem:[%s273 + $0x1d0] sm:$0xff]
        %v1039 = vld [vmem:[%s273 + $0x1d8] sm:$0xff]
        %v1040 = vld [vmem:[%s273 + $0x1e0] sm:$0xff]
        %v1041 = vld [vmem:[%s273 + $0x1e8] sm:$0xff]
        %v1042 = vld [vmem:[%s273 + $0x1f0] sm:$0xff]
        %v1043 = vld [vmem:[%s273 + $0x1f8] sm:$0xff]
        %v1044 = vpack.c.bf16 %v697, %v694
        %v1045 = vpack.c.bf16 %v705, %v702
        %v1046 = vpack.c.bf16 %v713, %v710
        %v1047 = vpack.c.bf16 %v721, %v718
        %v1048 = vpack.c.bf16 %v729, %v726
        %v1049 = vpack.c.bf16 %v737, %v734
        %v1050 = vpack.c.bf16 %v745, %v742
        %v1051 = vpack.c.bf16 %v753, %v750
        %v1052 = vpack.c.bf16 %v761, %v758
        %v1053 = vpack.c.bf16 %v769, %v766
        %v1054 = vpack.c.bf16 %v777, %v774
        %v1055 = vpack.c.bf16 %v785, %v782
        %v1056 = vpack.c.bf16 %v793, %v790
        %v1057 = vpack.c.bf16 %v801, %v798
        %v1058 = vpack.c.bf16 %v809, %v806
        %v1059 = vpack.c.bf16 %v817, %v814
        %v1060 = vpack.c.bf16 %v825, %v822
        %v1061 = vpack.c.bf16 %v833, %v830
        %v1062 = vpack.c.bf16 %v841, %v838
        %v1063 = vpack.c.bf16 %v849, %v846
        %v1064 = vpack.c.bf16 %v857, %v854
        %v1065 = vpack.c.bf16 %v865, %v862
        %v1066 = vpack.c.bf16 %v873, %v870
        %v1067 = vpack.c.bf16 %v881, %v878
        %v1068 = vpack.c.bf16 %v889, %v886
        %v1069 = vpack.c.bf16 %v897, %v894
        %v1070 = vpack.c.bf16 %v905, %v902
        %v1071 = vpack.c.bf16 %v913, %v910
        %v1072 = vpack.c.bf16 %v921, %v918
        %v1073 = vpack.c.bf16 %v929, %v926
        %v1074 = vpack.c.bf16 %v937, %v934
        %v1075 = vpack.c.bf16 %v945, %v942
        %v1140 = vunpack.c.l.b16 %v980
        %v1141 = vunpack.c.h.b16 %v980
        %v1142 = vunpack.c.l.b16 %v981
        %v1143 = vunpack.c.h.b16 %v981
        %v1144 = vunpack.c.l.b16 %v982
        %v1145 = vunpack.c.h.b16 %v982
        %v1146 = vunpack.c.l.b16 %v983
        %v1147 = vunpack.c.h.b16 %v983
        %v1148 = vunpack.c.l.b16 %v984
        %v1149 = vunpack.c.h.b16 %v984
        %v1150 = vunpack.c.l.b16 %v985
        %v1151 = vunpack.c.h.b16 %v985
        %v1152 = vunpack.c.l.b16 %v986
        %v1153 = vunpack.c.h.b16 %v986
        %v1154 = vunpack.c.l.b16 %v987
        %v1155 = vunpack.c.h.b16 %v987
        %v1156 = vunpack.c.l.b16 %v988
        %v1157 = vunpack.c.h.b16 %v988
        %v1158 = vunpack.c.l.b16 %v989
        %v1159 = vunpack.c.h.b16 %v989
        %v1160 = vunpack.c.l.b16 %v990
        %v1161 = vunpack.c.h.b16 %v990
        %v1162 = vunpack.c.l.b16 %v991
        %v1163 = vunpack.c.h.b16 %v991
        %v1164 = vunpack.c.l.b16 %v992
        %v1165 = vunpack.c.h.b16 %v992
        %v1166 = vunpack.c.l.b16 %v993
        %v1167 = vunpack.c.h.b16 %v993
        %v1168 = vunpack.c.l.b16 %v994
        %v1169 = vunpack.c.h.b16 %v994
        %v1170 = vunpack.c.l.b16 %v995
        %v1171 = vunpack.c.h.b16 %v995
        %v1172 = vunpack.c.l.b16 %v996
        %v1173 = vunpack.c.h.b16 %v996
        %v1174 = vunpack.c.l.b16 %v997
        %v1175 = vunpack.c.h.b16 %v997
        %v1176 = vunpack.c.l.b16 %v998
        %v1177 = vunpack.c.h.b16 %v998
        %v1178 = vunpack.c.l.b16 %v999
        %v1179 = vunpack.c.h.b16 %v999
        %v1180 = vunpack.c.l.b16 %v1000
        %v1181 = vunpack.c.h.b16 %v1000
        %v1182 = vunpack.c.l.b16 %v1001
        %v1183 = vunpack.c.h.b16 %v1001
        %v1184 = vunpack.c.l.b16 %v1002
        %v1185 = vunpack.c.h.b16 %v1002
        %v1186 = vunpack.c.l.b16 %v1003
        %v1187 = vunpack.c.h.b16 %v1003
        %v1188 = vunpack.c.l.b16 %v1004
        %v1189 = vunpack.c.h.b16 %v1004
        %v1190 = vunpack.c.l.b16 %v1005
        %v1191 = vunpack.c.h.b16 %v1005
        %v1192 = vunpack.c.l.b16 %v1006
        %v1193 = vunpack.c.h.b16 %v1006
        %v1194 = vunpack.c.l.b16 %v1007
        %v1195 = vunpack.c.h.b16 %v1007
        %v1196 = vunpack.c.l.b16 %v1008
        %v1197 = vunpack.c.h.b16 %v1008
        %v1198 = vunpack.c.l.b16 %v1009
        %v1199 = vunpack.c.h.b16 %v1009
        %v1200 = vunpack.c.l.b16 %v1010
        %v1201 = vunpack.c.h.b16 %v1010
        %v1202 = vunpack.c.l.b16 %v1011
        %v1203 = vunpack.c.h.b16 %v1011
        %v1204 = vunpack.c.l.b16 %v1012
        %v1205 = vunpack.c.h.b16 %v1012
        %v1206 = vunpack.c.l.b16 %v1013
        %v1207 = vunpack.c.h.b16 %v1013
        %v1208 = vunpack.c.l.b16 %v1014
        %v1209 = vunpack.c.h.b16 %v1014
        %v1210 = vunpack.c.l.b16 %v1015
        %v1211 = vunpack.c.h.b16 %v1015
        %v1212 = vunpack.c.l.b16 %v1016
        %v1213 = vunpack.c.h.b16 %v1016
        %v1214 = vunpack.c.l.b16 %v1017
        %v1215 = vunpack.c.h.b16 %v1017
        %v1216 = vunpack.c.l.b16 %v1018
        %v1217 = vunpack.c.h.b16 %v1018
        %v1218 = vunpack.c.l.b16 %v1019
        %v1219 = vunpack.c.h.b16 %v1019
        %v1220 = vunpack.c.l.b16 %v1020
        %v1221 = vunpack.c.h.b16 %v1020
        %v1222 = vunpack.c.l.b16 %v1021
        %v1223 = vunpack.c.h.b16 %v1021
        %v1224 = vunpack.c.l.b16 %v1022
        %v1225 = vunpack.c.h.b16 %v1022
        %v1226 = vunpack.c.l.b16 %v1023
        %v1227 = vunpack.c.h.b16 %v1023
        %v1228 = vunpack.c.l.b16 %v1024
        %v1229 = vunpack.c.h.b16 %v1024
        %v1230 = vunpack.c.l.b16 %v1025
        %v1231 = vunpack.c.h.b16 %v1025
        %v1232 = vunpack.c.l.b16 %v1026
        %v1233 = vunpack.c.h.b16 %v1026
        %v1234 = vunpack.c.l.b16 %v1027
        %v1235 = vunpack.c.h.b16 %v1027
        %v1236 = vunpack.c.l.b16 %v1028
        %v1237 = vunpack.c.h.b16 %v1028
        %v1238 = vunpack.c.l.b16 %v1029
        %v1239 = vunpack.c.h.b16 %v1029
        %v1240 = vunpack.c.l.b16 %v1030
        %v1241 = vunpack.c.h.b16 %v1030
        %v1242 = vunpack.c.l.b16 %v1031
        %v1243 = vunpack.c.h.b16 %v1031
        %v1244 = vunpack.c.l.b16 %v1032
        %v1245 = vunpack.c.h.b16 %v1032
        %v1246 = vunpack.c.l.b16 %v1033
        %v1247 = vunpack.c.h.b16 %v1033
        %v1248 = vunpack.c.l.b16 %v1034
        %v1249 = vunpack.c.h.b16 %v1034
        %v1250 = vunpack.c.l.b16 %v1035
        %v1251 = vunpack.c.h.b16 %v1035
        %v1252 = vunpack.c.l.b16 %v1036
        %v1253 = vunpack.c.h.b16 %v1036
        %v1254 = vunpack.c.l.b16 %v1037
        %v1255 = vunpack.c.h.b16 %v1037
        %v1256 = vunpack.c.l.b16 %v1038
        %v1257 = vunpack.c.h.b16 %v1038
        %v1258 = vunpack.c.l.b16 %v1039
        %v1259 = vunpack.c.h.b16 %v1039
        %v1260 = vunpack.c.l.b16 %v1040
        %v1261 = vunpack.c.h.b16 %v1040
        %v1262 = vunpack.c.l.b16 %v1041
        %v1263 = vunpack.c.h.b16 %v1041
        %v1264 = vunpack.c.l.b16 %v1042
        %v1265 = vunpack.c.h.b16 %v1042
        %v1266 = vunpack.c.l.b16 %v1043
        %v1267 = vunpack.c.h.b16 %v1043
        %v1268 = vpack.c.b16 %v1144, %v1140
        %v1269 = vpack.c.b16 %v1145, %v1141
        %v1270 = vpack.c.b16 %v1146, %v1142
        %v1271 = vpack.c.b16 %v1147, %v1143
        %v1272 = vpack.c.b16 %v1152, %v1148
        %v1273 = vpack.c.b16 %v1153, %v1149
        %v1274 = vpack.c.b16 %v1154, %v1150
        %v1275 = vpack.c.b16 %v1155, %v1151
        %v1276 = vpack.c.b16 %v1160, %v1156
        %v1277 = vpack.c.b16 %v1161, %v1157
        %v1278 = vpack.c.b16 %v1162, %v1158
        %v1279 = vpack.c.b16 %v1163, %v1159
        %v1280 = vpack.c.b16 %v1168, %v1164
        %v1281 = vpack.c.b16 %v1169, %v1165
        %v1282 = vpack.c.b16 %v1170, %v1166
        %v1283 = vpack.c.b16 %v1171, %v1167
        %v1284 = vpack.c.b16 %v1176, %v1172
        %v1285 = vpack.c.b16 %v1177, %v1173
        %v1286 = vpack.c.b16 %v1178, %v1174
        %v1287 = vpack.c.b16 %v1179, %v1175
        %v1288 = vpack.c.b16 %v1184, %v1180
        %v1289 = vpack.c.b16 %v1185, %v1181
        %v1290 = vpack.c.b16 %v1186, %v1182
        %v1291 = vpack.c.b16 %v1187, %v1183
        %v1292 = vpack.c.b16 %v1192, %v1188
        %v1293 = vpack.c.b16 %v1193, %v1189
        %v1294 = vpack.c.b16 %v1194, %v1190
        %v1295 = vpack.c.b16 %v1195, %v1191
        %v1296 = vpack.c.b16 %v1200, %v1196
        %v1297 = vpack.c.b16 %v1201, %v1197
        %v1298 = vpack.c.b16 %v1202, %v1198
        %v1299 = vpack.c.b16 %v1203, %v1199
        %v1300 = vpack.c.b16 %v1208, %v1204
        %v1301 = vpack.c.b16 %v1209, %v1205
        %v1302 = vpack.c.b16 %v1210, %v1206
        %v1303 = vpack.c.b16 %v1211, %v1207
        %v1304 = vpack.c.b16 %v1216, %v1212
        %v1305 = vpack.c.b16 %v1217, %v1213
        %v1306 = vpack.c.b16 %v1218, %v1214
        %v1307 = vpack.c.b16 %v1219, %v1215
        %v1308 = vpack.c.b16 %v1224, %v1220
        %v1309 = vpack.c.b16 %v1225, %v1221
        %v1310 = vpack.c.b16 %v1226, %v1222
        %v1311 = vpack.c.b16 %v1227, %v1223
        %v1312 = vpack.c.b16 %v1232, %v1228
        %v1313 = vpack.c.b16 %v1233, %v1229
        %v1314 = vpack.c.b16 %v1234, %v1230
        %v1315 = vpack.c.b16 %v1235, %v1231
        %v1316 = vpack.c.b16 %v1240, %v1236
        %v1317 = vpack.c.b16 %v1241, %v1237
        %v1318 = vpack.c.b16 %v1242, %v1238
        %v1319 = vpack.c.b16 %v1243, %v1239
        %v1320 = vpack.c.b16 %v1248, %v1244
        %v1321 = vpack.c.b16 %v1249, %v1245
        %v1322 = vpack.c.b16 %v1250, %v1246
        %v1323 = vpack.c.b16 %v1251, %v1247
        %v1324 = vpack.c.b16 %v1256, %v1252
        %v1325 = vpack.c.b16 %v1257, %v1253
        %v1326 = vpack.c.b16 %v1258, %v1254
        %v1327 = vpack.c.b16 %v1259, %v1255
        %v1328 = vpack.c.b16 %v1264, %v1260
        %v1329 = vpack.c.b16 %v1265, %v1261
        %v1330 = vpack.c.b16 %v1266, %v1262
        %v1331 = vpack.c.b16 %v1267, %v1263
        %1396 = vmatprep.subr.bf16.mxu0 0
        %1397 = vmatpush1.bf16.msra.mxu0 %v1044
        %1398 = vmatprep.subr.bf16.mxu0 0
        %1399 = vmatpush1.bf16.msra.mxu0 %v1045
        %1400 = vmatprep.subr.bf16.mxu0 0
        %1401 = vmatpush1.bf16.msra.mxu0 %v1046
        %1402 = vmatprep.subr.bf16.mxu0 0
        %1403 = vmatpush1.bf16.msra.mxu0 %v1047
        %1404 = vmatprep.subr.bf16.mxu0 0
        %1405 = vmatpush1.bf16.msra.mxu0 %v1048
        %1406 = vmatprep.subr.bf16.mxu0 0
        %1407 = vmatpush1.bf16.msra.mxu0 %v1049
        %1408 = vmatprep.subr.bf16.mxu0 0
        %1409 = vmatpush1.bf16.msra.mxu0 %v1050
        %1410 = vmatprep.subr.bf16.mxu0 0
        %1411 = vmatpush1.bf16.msra.mxu0 %v1051
        %1412 = vmatprep.subr.bf16.mxu0 0
        %1413 = vmatpush1.bf16.msra.mxu0 %v1052
        %1414 = vmatprep.subr.bf16.mxu0 0
        %1415 = vmatpush1.bf16.msra.mxu0 %v1053
        %1416 = vmatprep.subr.bf16.mxu0 0
        %1417 = vmatpush1.bf16.msra.mxu0 %v1054
        %1418 = vmatprep.subr.bf16.mxu0 0
        %1419 = vmatpush1.bf16.msra.mxu0 %v1055
        %1420 = vmatprep.subr.bf16.mxu0 0
        %1421 = vmatpush1.bf16.msra.mxu0 %v1056
        %1422 = vmatprep.subr.bf16.mxu0 0
        %1423 = vmatpush1.bf16.msra.mxu0 %v1057
        %1424 = vmatprep.subr.bf16.mxu0 0
        %1425 = vmatpush1.bf16.msra.mxu0 %v1058
        %1426 = vmatprep.subr.bf16.mxu0 0
        %1427 = vmatpush1.bf16.msra.mxu0 %v1059
        %1428 = vmatprep.mubr.bf16.mxu0 %v1269
        %1429 = vmatmul.mubr.bf16.gmra.mrb[0].mxu0 %v1268
        %v1430 = vpop.f32.mrb[0].mxu0
        %v1431 = vadd.f32 0.0, %v1430
        %v1432 = vpop.f32.mrb[0].mxu0
        %v1433 = vpop.f32.mrb[0].mxu0
        %v1434 = vadd.f32 0.0, %v1433
        %v1435 = vpop.f32.mrb[0].mxu0
        %1436 = vmatprep.mubr.bf16.mxu0 %v1273
        %1437 = vmatmul.mubr.bf16.gmra.mrb[0].mxu0 %v1272
        %v1438 = vpop.f32.mrb[0].mxu0
        %v1439 = vadd.f32 0.0, %v1438
        %v1440 = vpop.f32.mrb[0].mxu0
        %v1441 = vpop.f32.mrb[0].mxu0
        %v1442 = vadd.f32 0.0, %v1441
        %v1443 = vpop.f32.mrb[0].mxu0
        %1444 = vmatprep.mubr.bf16.mxu0 %v1277
        %1445 = vmatmul.mubr.bf16.gmra.mrb[0].mxu0 %v1276
        %v1446 = vpop.f32.mrb[0].mxu0
        %v1447 = vadd.f32 0.0, %v1446
        %v1448 = vpop.f32.mrb[0].mxu0
        %v1449 = vpop.f32.mrb[0].mxu0
        %v1450 = vadd.f32 0.0, %v1449
        %v1451 = vpop.f32.mrb[0].mxu0
        %1452 = vmatprep.mubr.bf16.mxu0 %v1281
        %1453 = vmatmul.mubr.bf16.gmra.mrb[0].mxu0 %v1280
        %v1454 = vpop.f32.mrb[0].mxu0
        %v1455 = vadd.f32 0.0, %v1454
        %v1456 = vpop.f32.mrb[0].mxu0
        %v1457 = vpop.f32.mrb[0].mxu0
        %v1458 = vadd.f32 0.0, %v1457
        %v1459 = vpop.f32.mrb[0].mxu0
        %1460 = vmatprep.mubr.bf16.mxu0 %v1285
        %1461 = vmatmul.mubr.bf16.gmra.mrb[0].mxu0 %v1284
        %v1462 = vpop.f32.mrb[0].mxu0
        %v1463 = vadd.f32 0.0, %v1462
        %v1464 = vpop.f32.mrb[0].mxu0
        %v1465 = vpop.f32.mrb[0].mxu0
        %v1466 = vadd.f32 0.0, %v1465
        %v1467 = vpop.f32.mrb[0].mxu0
        %1468 = vmatprep.mubr.bf16.mxu0 %v1289
        %1469 = vmatmul.mubr.bf16.gmra.mrb[0].mxu0 %v1288
        %v1470 = vpop.f32.mrb[0].mxu0
        %v1471 = vadd.f32 0.0, %v1470
        %v1472 = vpop.f32.mrb[0].mxu0
        %v1473 = vpop.f32.mrb[0].mxu0
        %v1474 = vadd.f32 0.0, %v1473
        %v1475 = vpop.f32.mrb[0].mxu0
        %1476 = vmatprep.mubr.bf16.mxu0 %v1293
        %1477 = vmatmul.mubr.bf16.gmra.mrb[0].mxu0 %v1292
        %v1478 = vpop.f32.mrb[0].mxu0
        %v1479 = vadd.f32 0.0, %v1478
        %v1480 = vpop.f32.mrb[0].mxu0
        %v1481 = vpop.f32.mrb[0].mxu0
        %v1482 = vadd.f32 0.0, %v1481
        %v1483 = vpop.f32.mrb[0].mxu0
        %1484 = vmatprep.mubr.bf16.mxu0 %v1297
        %1485 = vmatmul.mubr.bf16.gmra.mrb[0].mxu0 %v1296
        %v1486 = vpop.f32.mrb[0].mxu0
        %v1487 = vadd.f32 0.0, %v1486
        %v1488 = vpop.f32.mrb[0].mxu0
        %v1489 = vpop.f32.mrb[0].mxu0
        %v1490 = vadd.f32 0.0, %v1489
        %v1491 = vpop.f32.mrb[0].mxu0
        %1492 = vmatprep.mubr.bf16.mxu0 %v1301
        %1493 = vmatmul.mubr.bf16.gmra.mrb[0].mxu0 %v1300
        %v1494 = vpop.f32.mrb[0].mxu0
        %v1495 = vadd.f32 0.0, %v1494
        %v1496 = vpop.f32.mrb[0].mxu0
        %v1497 = vpop.f32.mrb[0].mxu0
        %v1498 = vadd.f32 0.0, %v1497
        %v1499 = vpop.f32.mrb[0].mxu0
        %1500 = vmatprep.mubr.bf16.mxu0 %v1305
        %1501 = vmatmul.mubr.bf16.gmra.mrb[0].mxu0 %v1304
        %v1502 = vpop.f32.mrb[0].mxu0
        %v1503 = vadd.f32 0.0, %v1502
        %v1504 = vpop.f32.mrb[0].mxu0
        %v1505 = vpop.f32.mrb[0].mxu0
        %v1506 = vadd.f32 0.0, %v1505
        %v1507 = vpop.f32.mrb[0].mxu0
        %1508 = vmatprep.mubr.bf16.mxu0 %v1309
        %1509 = vmatmul.mubr.bf16.gmra.mrb[0].mxu0 %v1308
        %v1510 = vpop.f32.mrb[0].mxu0
        %v1511 = vadd.f32 0.0, %v1510
        %v1512 = vpop.f32.mrb[0].mxu0
        %v1513 = vpop.f32.mrb[0].mxu0
        %v1514 = vadd.f32 0.0, %v1513
        %v1515 = vpop.f32.mrb[0].mxu0
        %1516 = vmatprep.mubr.bf16.mxu0 %v1313
        %1517 = vmatmul.mubr.bf16.gmra.mrb[0].mxu0 %v1312
        %v1518 = vpop.f32.mrb[0].mxu0
        %v1519 = vadd.f32 0.0, %v1518
        %v1520 = vpop.f32.mrb[0].mxu0
        %v1521 = vpop.f32.mrb[0].mxu0
        %v1522 = vadd.f32 0.0, %v1521
        %v1523 = vpop.f32.mrb[0].mxu0
        %1524 = vmatprep.mubr.bf16.mxu0 %v1317
        %1525 = vmatmul.mubr.bf16.gmra.mrb[0].mxu0 %v1316
        %v1526 = vpop.f32.mrb[0].mxu0
        %v1527 = vadd.f32 0.0, %v1526
        %v1528 = vpop.f32.mrb[0].mxu0
        %v1529 = vpop.f32.mrb[0].mxu0
        %v1530 = vadd.f32 0.0, %v1529
        %v1531 = vpop.f32.mrb[0].mxu0
        %1532 = vmatprep.mubr.bf16.mxu0 %v1321
        %1533 = vmatmul.mubr.bf16.gmra.mrb[0].mxu0 %v1320
        %v1534 = vpop.f32.mrb[0].mxu0
        %v1535 = vadd.f32 0.0, %v1534
        %v1536 = vpop.f32.mrb[0].mxu0
        %v1537 = vpop.f32.mrb[0].mxu0
        %v1538 = vadd.f32 0.0, %v1537
        %v1539 = vpop.f32.mrb[0].mxu0
        %1540 = vmatprep.mubr.bf16.mxu0 %v1325
        %1541 = vmatmul.mubr.bf16.gmra.mrb[0].mxu0 %v1324
        %v1542 = vpop.f32.mrb[0].mxu0
        %v1543 = vadd.f32 0.0, %v1542
        %v1544 = vpop.f32.mrb[0].mxu0
        %v1545 = vpop.f32.mrb[0].mxu0
        %v1546 = vadd.f32 0.0, %v1545
        %v1547 = vpop.f32.mrb[0].mxu0
        %1548 = vmatprep.mubr.bf16.mxu0 %v1329
        %1549 = vmatmul.mubr.bf16.gmra.mrb[0].mxu0 %v1328
        %v1550 = vpop.f32.mrb[0].mxu0
        %v1551 = vadd.f32 0.0, %v1550
        %v1552 = vpop.f32.mrb[0].mxu0
        %v1553 = vpop.f32.mrb[0].mxu0
        %v1554 = vadd.f32 0.0, %v1553
        %v1555 = vpop.f32.mrb[0].mxu0
        %1556 = vdwg.mxu0
        %1557 = vmatprep.subr.bf16.mxu0 0
        %1558 = vmatpush1.bf16.msra.mxu0 %v1060
        %1559 = vmatprep.subr.bf16.mxu0 0
        %1560 = vmatpush1.bf16.msra.mxu0 %v1061
        %1561 = vmatprep.subr.bf16.mxu0 0
        %1562 = vmatpush1.bf16.msra.mxu0 %v1062
        %1563 = vmatprep.subr.bf16.mxu0 0
        %1564 = vmatpush1.bf16.msra.mxu0 %v1063
        %1565 = vmatprep.subr.bf16.mxu0 0
        %1566 = vmatpush1.bf16.msra.mxu0 %v1064
        %1567 = vmatprep.subr.bf16.mxu0 0
        %1568 = vmatpush1.bf16.msra.mxu0 %v1065
        %1569 = vmatprep.subr.bf16.mxu0 0
        %1570 = vmatpush1.bf16.msra.mxu0 %v1066
        %1571 = vmatprep.subr.bf16.mxu0 0
        %1572 = vmatpush1.bf16.msra.mxu0 %v1067
        %1573 = vmatprep.subr.bf16.mxu0 0
        %1574 = vmatpush1.bf16.msra.mxu0 %v1068
        %1575 = vmatprep.subr.bf16.mxu0 0
        %1576 = vmatpush1.bf16.msra.mxu0 %v1069
        %1577 = vmatprep.subr.bf16.mxu0 0
        %1578 = vmatpush1.bf16.msra.mxu0 %v1070
        %1579 = vmatprep.subr.bf16.mxu0 0
        %1580 = vmatpush1.bf16.msra.mxu0 %v1071
        %1581 = vmatprep.subr.bf16.mxu0 0
        %1582 = vmatpush1.bf16.msra.mxu0 %v1072
        %1583 = vmatprep.subr.bf16.mxu0 0
        %1584 = vmatpush1.bf16.msra.mxu0 %v1073
        %1585 = vmatprep.subr.bf16.mxu0 0
        %1586 = vmatpush1.bf16.msra.mxu0 %v1074
        %1587 = vmatprep.subr.bf16.mxu0 0
        %1588 = vmatpush1.bf16.msra.mxu0 %v1075
        %1589 = vmatprep.mubr.bf16.mxu0 %v1271
        %1590 = vmatmul.mubr.bf16.gmra.mrb[0].mxu0 %v1270
        %v1591 = vpop.f32.mrb[0].mxu0
        %v1592 = vadd.f32 %v1431, %v1591
        %v1593 = vpop.f32.mrb[0].mxu0
        %v1594 = vpop.f32.mrb[0].mxu0
        %v1595 = vadd.f32 %v1434, %v1594
        %v1596 = vpop.f32.mrb[0].mxu0
        %1597 = vmatprep.mubr.bf16.mxu0 %v1275
        %1598 = vmatmul.mubr.bf16.gmra.mrb[0].mxu0 %v1274
        %v1599 = vpop.f32.mrb[0].mxu0
        %v1600 = vadd.f32 %v1439, %v1599
        %v1601 = vpop.f32.mrb[0].mxu0
        %v1602 = vpop.f32.mrb[0].mxu0
        %v1603 = vadd.f32 %v1442, %v1602
        %v1604 = vpop.f32.mrb[0].mxu0
        %1605 = vmatprep.mubr.bf16.mxu0 %v1279
        %1606 = vmatmul.mubr.bf16.gmra.mrb[0].mxu0 %v1278
        %v1607 = vpop.f32.mrb[0].mxu0
        %v1608 = vadd.f32 %v1447, %v1607
        %v1609 = vpop.f32.mrb[0].mxu0
        %v1610 = vpop.f32.mrb[0].mxu0
        %v1611 = vadd.f32 %v1450, %v1610
        %v1612 = vpop.f32.mrb[0].mxu0
        %1613 = vmatprep.mubr.bf16.mxu0 %v1283
        %1614 = vmatmul.mubr.bf16.gmra.mrb[0].mxu0 %v1282
        %v1615 = vpop.f32.mrb[0].mxu0
        %v1616 = vadd.f32 %v1455, %v1615
        %v1617 = vpop.f32.mrb[0].mxu0
        %v1618 = vpop.f32.mrb[0].mxu0
        %v1619 = vadd.f32 %v1458, %v1618
        %v1620 = vpop.f32.mrb[0].mxu0
        %1621 = vmatprep.mubr.bf16.mxu0 %v1287
        %1622 = vmatmul.mubr.bf16.gmra.mrb[0].mxu0 %v1286
        %v1623 = vpop.f32.mrb[0].mxu0
        %v1624 = vadd.f32 %v1463, %v1623
        %v1625 = vpop.f32.mrb[0].mxu0
        %v1626 = vpop.f32.mrb[0].mxu0
        %v1627 = vadd.f32 %v1466, %v1626
        %v1628 = vpop.f32.mrb[0].mxu0
        %1629 = vmatprep.mubr.bf16.mxu0 %v1291
        %1630 = vmatmul.mubr.bf16.gmra.mrb[0].mxu0 %v1290
        %v1631 = vpop.f32.mrb[0].mxu0
        %v1632 = vadd.f32 %v1471, %v1631
        %v1633 = vpop.f32.mrb[0].mxu0
        %v1634 = vpop.f32.mrb[0].mxu0
        %v1635 = vadd.f32 %v1474, %v1634
        %v1636 = vpop.f32.mrb[0].mxu0
        %1637 = vmatprep.mubr.bf16.mxu0 %v1295
        %1638 = vmatmul.mubr.bf16.gmra.mrb[0].mxu0 %v1294
        %v1639 = vpop.f32.mrb[0].mxu0
        %v1640 = vadd.f32 %v1479, %v1639
        %v1641 = vpop.f32.mrb[0].mxu0
        %v1642 = vpop.f32.mrb[0].mxu0
        %v1643 = vadd.f32 %v1482, %v1642
        %v1644 = vpop.f32.mrb[0].mxu0
        %1645 = vmatprep.mubr.bf16.mxu0 %v1299
        %1646 = vmatmul.mubr.bf16.gmra.mrb[0].mxu0 %v1298
        %v1647 = vpop.f32.mrb[0].mxu0
        %v1648 = vadd.f32 %v1487, %v1647
        %v1649 = vpop.f32.mrb[0].mxu0
        %v1650 = vpop.f32.mrb[0].mxu0
        %v1651 = vadd.f32 %v1490, %v1650
        %v1652 = vpop.f32.mrb[0].mxu0
        %1653 = vmatprep.mubr.bf16.mxu0 %v1303
        %1654 = vmatmul.mubr.bf16.gmra.mrb[0].mxu0 %v1302
        %v1655 = vpop.f32.mrb[0].mxu0
        %v1656 = vadd.f32 %v1495, %v1655
        %v1657 = vpop.f32.mrb[0].mxu0
        %v1658 = vpop.f32.mrb[0].mxu0
        %v1659 = vadd.f32 %v1498, %v1658
        %v1660 = vpop.f32.mrb[0].mxu0
        %1661 = vmatprep.mubr.bf16.mxu0 %v1307
        %1662 = vmatmul.mubr.bf16.gmra.mrb[0].mxu0 %v1306
        %v1663 = vpop.f32.mrb[0].mxu0
        %v1664 = vadd.f32 %v1503, %v1663
        %v1665 = vpop.f32.mrb[0].mxu0
        %v1666 = vpop.f32.mrb[0].mxu0
        %v1667 = vadd.f32 %v1506, %v1666
        %v1668 = vpop.f32.mrb[0].mxu0
        %1669 = vmatprep.mubr.bf16.mxu0 %v1311
        %1670 = vmatmul.mubr.bf16.gmra.mrb[0].mxu0 %v1310
        %v1671 = vpop.f32.mrb[0].mxu0
        %v1672 = vadd.f32 %v1511, %v1671
        %v1673 = vpop.f32.mrb[0].mxu0
        %v1674 = vpop.f32.mrb[0].mxu0
        %v1675 = vadd.f32 %v1514, %v1674
        %v1676 = vpop.f32.mrb[0].mxu0
        %1677 = vmatprep.mubr.bf16.mxu0 %v1315
        %1678 = vmatmul.mubr.bf16.gmra.mrb[0].mxu0 %v1314
        %v1679 = vpop.f32.mrb[0].mxu0
        %v1680 = vadd.f32 %v1519, %v1679
        %v1681 = vpop.f32.mrb[0].mxu0
        %v1682 = vpop.f32.mrb[0].mxu0
        %v1683 = vadd.f32 %v1522, %v1682
        %v1684 = vpop.f32.mrb[0].mxu0
        %1685 = vmatprep.mubr.bf16.mxu0 %v1319
        %1686 = vmatmul.mubr.bf16.gmra.mrb[0].mxu0 %v1318
        %v1687 = vpop.f32.mrb[0].mxu0
        %v1688 = vadd.f32 %v1527, %v1687
        %v1689 = vpop.f32.mrb[0].mxu0
        %v1690 = vpop.f32.mrb[0].mxu0
        %v1691 = vadd.f32 %v1530, %v1690
        %v1692 = vpop.f32.mrb[0].mxu0
        %1693 = vmatprep.mubr.bf16.mxu0 %v1323
        %1694 = vmatmul.mubr.bf16.gmra.mrb[0].mxu0 %v1322
        %v1695 = vpop.f32.mrb[0].mxu0
        %v1696 = vadd.f32 %v1535, %v1695
        %v1697 = vpop.f32.mrb[0].mxu0
        %v1698 = vpop.f32.mrb[0].mxu0
        %v1699 = vadd.f32 %v1538, %v1698
        %v1700 = vpop.f32.mrb[0].mxu0
        %1701 = vmatprep.mubr.bf16.mxu0 %v1327
        %1702 = vmatmul.mubr.bf16.gmra.mrb[0].mxu0 %v1326
        %v1703 = vpop.f32.mrb[0].mxu0
        %v1704 = vadd.f32 %v1543, %v1703
        %v1705 = vpop.f32.mrb[0].mxu0
        %v1706 = vpop.f32.mrb[0].mxu0
        %v1707 = vadd.f32 %v1546, %v1706
        %v1708 = vpop.f32.mrb[0].mxu0
        %1709 = vmatprep.mubr.bf16.mxu0 %v1331
        %1710 = vmatmul.mubr.bf16.gmra.mrb[0].mxu0 %v1330
        %v1711 = vpop.f32.mrb[0].mxu0
        %v1712 = vadd.f32 %v1551, %v1711
        %v1713 = vpop.f32.mrb[0].mxu0
        %v1714 = vpop.f32.mrb[0].mxu0
        %v1715 = vadd.f32 %v1554, %v1714
        %v1716 = vpop.f32.mrb[0].mxu0
        %1717 = vdwg.mxu0
        %v1718 = vadd.f32 %v948, %v1592
        %v1719 = vadd.f32 %v949, %v1595
        %v1720 = vadd.f32 %v950, %v1600
        %v1721 = vadd.f32 %v951, %v1603
        %v1722 = vadd.f32 %v952, %v1608
        %v1723 = vadd.f32 %v953, %v1611
        %v1724 = vadd.f32 %v954, %v1616
        %v1725 = vadd.f32 %v955, %v1619
        %v1726 = vadd.f32 %v956, %v1624
        %v1727 = vadd.f32 %v957, %v1627
        %v1728 = vadd.f32 %v958, %v1632
        %v1729 = vadd.f32 %v959, %v1635
        %v1730 = vadd.f32 %v960, %v1640
        %v1731 = vadd.f32 %v961, %v1643
        %v1732 = vadd.f32 %v962, %v1648
        %v1733 = vadd.f32 %v963, %v1651
        %v1734 = vadd.f32 %v964, %v1656
        %v1735 = vadd.f32 %v965, %v1659
        %v1736 = vadd.f32 %v966, %v1664
        %v1737 = vadd.f32 %v967, %v1667
        %v1738 = vadd.f32 %v968, %v1672
        %v1739 = vadd.f32 %v969, %v1675
        %v1740 = vadd.f32 %v970, %v1680
        %v1741 = vadd.f32 %v971, %v1683
        %v1742 = vadd.f32 %v972, %v1688
        %v1743 = vadd.f32 %v973, %v1691
        %v1744 = vadd.f32 %v974, %v1696
        %v1745 = vadd.f32 %v975, %v1699
        %v1746 = vadd.f32 %v976, %v1704
        %v1747 = vadd.f32 %v977, %v1707
        %v1748 = vadd.f32 %v978, %v1712
        %v1749 = vadd.f32 %v979, %v1715
        %1750 = vst [vmem:[#allocation2] sm:$0xff] %v1718
        %1751 = vst [vmem:[#allocation2 + $0x8] sm:$0xff] %v1719
        %1752 = vst [vmem:[#allocation2 + $0x10] sm:$0xff] %v1720
        %1753 = vst [vmem:[#allocation2 + $0x18] sm:$0xff] %v1721
        %1754 = vst [vmem:[#allocation2 + $0x20] sm:$0xff] %v1722
        %1755 = vst [vmem:[#allocation2 + $0x28] sm:$0xff] %v1723
        %1756 = vst [vmem:[#allocation2 + $0x30] sm:$0xff] %v1724
        %1757 = vst [vmem:[#allocation2 + $0x38] sm:$0xff] %v1725
        %1758 = vst [vmem:[#allocation2 + $0x40] sm:$0xff] %v1726
        %1759 = vst [vmem:[#allocation2 + $0x48] sm:$0xff] %v1727
        %1760 = vst [vmem:[#allocation2 + $0x50] sm:$0xff] %v1728
        %1761 = vst [vmem:[#allocation2 + $0x58] sm:$0xff] %v1729
        %1762 = vst [vmem:[#allocation2 + $0x60] sm:$0xff] %v1730
        %1763 = vst [vmem:[#allocation2 + $0x68] sm:$0xff] %v1731
        %1764 = vst [vmem:[#allocation2 + $0x70] sm:$0xff] %v1732
        %1765 = vst [vmem:[#allocation2 + $0x78] sm:$0xff] %v1733
        %1766 = vst [vmem:[#allocation2 + $0x80] sm:$0xff] %v1734
        %1767 = vst [vmem:[#allocation2 + $0x88] sm:$0xff] %v1735
        %1768 = vst [vmem:[#allocation2 + $0x90] sm:$0xff] %v1736
        %1769 = vst [vmem:[#allocation2 + $0x98] sm:$0xff] %v1737
        %1770 = vst [vmem:[#allocation2 + $0xa0] sm:$0xff] %v1738
        %1771 = vst [vmem:[#allocation2 + $0xa8] sm:$0xff] %v1739
        %1772 = vst [vmem:[#allocation2 + $0xb0] sm:$0xff] %v1740
        %1773 = vst [vmem:[#allocation2 + $0xb8] sm:$0xff] %v1741
        %1774 = vst [vmem:[#allocation2 + $0xc0] sm:$0xff] %v1742
        %1775 = vst [vmem:[#allocation2 + $0xc8] sm:$0xff] %v1743
        %1776 = vst [vmem:[#allocation2 + $0xd0] sm:$0xff] %v1744
        %1777 = vst [vmem:[#allocation2 + $0xd8] sm:$0xff] %v1745
        %1778 = vst [vmem:[#allocation2 + $0xe0] sm:$0xff] %v1746
        %1779 = vst [vmem:[#allocation2 + $0xe8] sm:$0xff] %v1747
        %1780 = vst [vmem:[#allocation2 + $0xf0] sm:$0xff] %v1748
        %1781 = vst [vmem:[#allocation2 + $0xf8] sm:$0xff] %v1749
        // Predicated region
        $region49: #{gcn_forward.5} parent=39 // pred_check
          %p1782 = pneg %p290
        $region50: #{gcn_forward.5} parent=39 // pred_check_branch
          %1784 = sbr.rel (%p1782) target = $region52
        $region51: #{gcn_forward.5} parent=39 // pred_region
          %v1785 = vld [vmem:[#allocation2] sm:$0xff]
          %v1786 = vld [vmem:[#allocation2 + $0x8] sm:$0xff]
          %v1787 = vld [vmem:[#allocation2 + $0x10] sm:$0xff]
          %v1788 = vld [vmem:[#allocation2 + $0x18] sm:$0xff]
          %v1789 = vld [vmem:[#allocation2 + $0x20] sm:$0xff]
          %v1790 = vld [vmem:[#allocation2 + $0x28] sm:$0xff]
          %v1791 = vld [vmem:[#allocation2 + $0x30] sm:$0xff]
          %v1792 = vld [vmem:[#allocation2 + $0x38] sm:$0xff]
          %v1793 = vld [vmem:[#allocation2 + $0x40] sm:$0xff]
          %v1794 = vld [vmem:[#allocation2 + $0x48] sm:$0xff]
          %v1795 = vld [vmem:[#allocation2 + $0x50] sm:$0xff]
          %v1796 = vld [vmem:[#allocation2 + $0x58] sm:$0xff]
          %v1797 = vld [vmem:[#allocation2 + $0x60] sm:$0xff]
          %v1798 = vld [vmem:[#allocation2 + $0x68] sm:$0xff]
          %v1799 = vld [vmem:[#allocation2 + $0x70] sm:$0xff]
          %v1800 = vld [vmem:[#allocation2 + $0x78] sm:$0xff]
          %v1801 = vld [vmem:[#allocation2 + $0x80] sm:$0xff]
          %v1802 = vld [vmem:[#allocation2 + $0x88] sm:$0xff]
          %v1803 = vld [vmem:[#allocation2 + $0x90] sm:$0xff]
          %v1804 = vld [vmem:[#allocation2 + $0x98] sm:$0xff]
          %v1805 = vld [vmem:[#allocation2 + $0xa0] sm:$0xff]
          %v1806 = vld [vmem:[#allocation2 + $0xa8] sm:$0xff]
          %v1807 = vld [vmem:[#allocation2 + $0xb0] sm:$0xff]
          %v1808 = vld [vmem:[#allocation2 + $0xb8] sm:$0xff]
          %v1809 = vld [vmem:[#allocation2 + $0xc0] sm:$0xff]
          %v1810 = vld [vmem:[#allocation2 + $0xc8] sm:$0xff]
          %v1811 = vld [vmem:[#allocation2 + $0xd0] sm:$0xff]
          %v1812 = vld [vmem:[#allocation2 + $0xd8] sm:$0xff]
          %v1813 = vld [vmem:[#allocation2 + $0xe0] sm:$0xff]
          %v1814 = vld [vmem:[#allocation2 + $0xe8] sm:$0xff]
          %v1815 = vld [vmem:[#allocation2 + $0xf0] sm:$0xff]
          %v1816 = vld [vmem:[#allocation2 + $0xf8] sm:$0xff]
          %v1817 = vlaneseq
          %v1818 = vand.u32 %v1817, 127
          %vm1819 = vcmp.lt.s32.totalorder %v1818, 8
          %v1820 = vsel %vm1819, %v1785, -1e+30
          %v1821 = vsel %vm1819, %v1786, -1e+30
          %v1822 = vsel %vm1819, %v1787, -1e+30
          %v1823 = vsel %vm1819, %v1788, -1e+30
          %v1824 = vsel %vm1819, %v1789, -1e+30
          %v1825 = vsel %vm1819, %v1790, -1e+30
          %v1826 = vsel %vm1819, %v1791, -1e+30
          %v1827 = vsel %vm1819, %v1792, -1e+30
          %v1828 = vsel %vm1819, %v1793, -1e+30
          %v1829 = vsel %vm1819, %v1794, -1e+30
          %v1830 = vsel %vm1819, %v1795, -1e+30
          %v1831 = vsel %vm1819, %v1796, -1e+30
          %v1832 = vsel %vm1819, %v1797, -1e+30
          %v1833 = vsel %vm1819, %v1798, -1e+30
          %v1834 = vsel %vm1819, %v1799, -1e+30
          %v1835 = vsel %vm1819, %v1800, -1e+30
          %v1836 = vsel %vm1819, %v1801, -1e+30
          %v1837 = vsel %vm1819, %v1802, -1e+30
          %v1838 = vsel %vm1819, %v1803, -1e+30
          %v1839 = vsel %vm1819, %v1804, -1e+30
          %v1840 = vsel %vm1819, %v1805, -1e+30
          %v1841 = vsel %vm1819, %v1806, -1e+30
          %v1842 = vsel %vm1819, %v1807, -1e+30
          %v1843 = vsel %vm1819, %v1808, -1e+30
          %v1844 = vsel %vm1819, %v1809, -1e+30
          %v1845 = vsel %vm1819, %v1810, -1e+30
          %v1846 = vsel %vm1819, %v1811, -1e+30
          %v1847 = vsel %vm1819, %v1812, -1e+30
          %v1848 = vsel %vm1819, %v1813, -1e+30
          %v1849 = vsel %vm1819, %v1814, -1e+30
          %v1850 = vsel %vm1819, %v1815, -1e+30
          %v1851 = vsel %vm1819, %v1816, -1e+30
          %1852 = vmax.xlane.f32.xlu0 %v1820
          %v1853 = vpop.xlane.xlu0 %1852
          %1854 = vmax.xlane.f32.xlu0 %v1821
          %v1855 = vpop.xlane.xlu0 %1854
          %1856 = vmax.xlane.f32.xlu0 %v1822
          %v1857 = vpop.xlane.xlu0 %1856
          %1858 = vmax.xlane.f32.xlu0 %v1823
          %v1859 = vpop.xlane.xlu0 %1858
          %1860 = vmax.xlane.f32.xlu0 %v1824
          %v1861 = vpop.xlane.xlu0 %1860
          %1862 = vmax.xlane.f32.xlu0 %v1825
          %v1863 = vpop.xlane.xlu0 %1862
          %1864 = vmax.xlane.f32.xlu0 %v1826
          %v1865 = vpop.xlane.xlu0 %1864
          %1866 = vmax.xlane.f32.xlu0 %v1827
          %v1867 = vpop.xlane.xlu0 %1866
          %1868 = vmax.xlane.f32.xlu0 %v1828
          %v1869 = vpop.xlane.xlu0 %1868
          %1870 = vmax.xlane.f32.xlu0 %v1829
          %v1871 = vpop.xlane.xlu0 %1870
          %1872 = vmax.xlane.f32.xlu0 %v1830
          %v1873 = vpop.xlane.xlu0 %1872
          %1874 = vmax.xlane.f32.xlu0 %v1831
          %v1875 = vpop.xlane.xlu0 %1874
          %1876 = vmax.xlane.f32.xlu0 %v1832
          %v1877 = vpop.xlane.xlu0 %1876
          %1878 = vmax.xlane.f32.xlu0 %v1833
          %v1879 = vpop.xlane.xlu0 %1878
          %1880 = vmax.xlane.f32.xlu0 %v1834
          %v1881 = vpop.xlane.xlu0 %1880
          %1882 = vmax.xlane.f32.xlu0 %v1835
          %v1883 = vpop.xlane.xlu0 %1882
          %1884 = vmax.xlane.f32.xlu0 %v1836
          %v1885 = vpop.xlane.xlu0 %1884
          %1886 = vmax.xlane.f32.xlu0 %v1837
          %v1887 = vpop.xlane.xlu0 %1886
          %1888 = vmax.xlane.f32.xlu0 %v1838
          %v1889 = vpop.xlane.xlu0 %1888
          %1890 = vmax.xlane.f32.xlu0 %v1839
          %v1891 = vpop.xlane.xlu0 %1890
          %1892 = vmax.xlane.f32.xlu0 %v1840
          %v1893 = vpop.xlane.xlu0 %1892
          %1894 = vmax.xlane.f32.xlu0 %v1841
          %v1895 = vpop.xlane.xlu0 %1894
          %1896 = vmax.xlane.f32.xlu0 %v1842
          %v1897 = vpop.xlane.xlu0 %1896
          %1898 = vmax.xlane.f32.xlu0 %v1843
          %v1899 = vpop.xlane.xlu0 %1898
          %1900 = vmax.xlane.f32.xlu0 %v1844
          %v1901 = vpop.xlane.xlu0 %1900
          %1902 = vmax.xlane.f32.xlu0 %v1845
          %v1903 = vpop.xlane.xlu0 %1902
          %1904 = vmax.xlane.f32.xlu0 %v1846
          %v1905 = vpop.xlane.xlu0 %1904
          %1906 = vmax.xlane.f32.xlu0 %v1847
          %v1907 = vpop.xlane.xlu0 %1906
          %1908 = vmax.xlane.f32.xlu0 %v1848
          %v1909 = vpop.xlane.xlu0 %1908
          %1910 = vmax.xlane.f32.xlu0 %v1849
          %v1911 = vpop.xlane.xlu0 %1910
          %1912 = vmax.xlane.f32.xlu0 %v1850
          %v1913 = vpop.xlane.xlu0 %1912
          %1914 = vmax.xlane.f32.xlu0 %v1851
          %v1915 = vpop.xlane.xlu0 %1914
          %v1916 = vsub.f32 %v1820, %v1853
          %v1917 = vsub.f32 %v1821, %v1855
          %v1918 = vsub.f32 %v1822, %v1857
          %v1919 = vsub.f32 %v1823, %v1859
          %v1920 = vsub.f32 %v1824, %v1861
          %v1921 = vsub.f32 %v1825, %v1863
          %v1922 = vsub.f32 %v1826, %v1865
          %v1923 = vsub.f32 %v1827, %v1867
          %v1924 = vsub.f32 %v1828, %v1869
          %v1925 = vsub.f32 %v1829, %v1871
          %v1926 = vsub.f32 %v1830, %v1873
          %v1927 = vsub.f32 %v1831, %v1875
          %v1928 = vsub.f32 %v1832, %v1877
          %v1929 = vsub.f32 %v1833, %v1879
          %v1930 = vsub.f32 %v1834, %v1881
          %v1931 = vsub.f32 %v1835, %v1883
          %v1932 = vsub.f32 %v1836, %v1885
          %v1933 = vsub.f32 %v1837, %v1887
          %v1934 = vsub.f32 %v1838, %v1889
          %v1935 = vsub.f32 %v1839, %v1891
          %v1936 = vsub.f32 %v1840, %v1893
          %v1937 = vsub.f32 %v1841, %v1895
          %v1938 = vsub.f32 %v1842, %v1897
          %v1939 = vsub.f32 %v1843, %v1899
          %v1940 = vsub.f32 %v1844, %v1901
          %v1941 = vsub.f32 %v1845, %v1903
          %v1942 = vsub.f32 %v1846, %v1905
          %v1943 = vsub.f32 %v1847, %v1907
          %v1944 = vsub.f32 %v1848, %v1909
          %v1945 = vsub.f32 %v1849, %v1911
          %v1946 = vsub.f32 %v1850, %v1913
          %v1947 = vsub.f32 %v1851, %v1915
          %v1948 = vmul.f32 %v1916, 1.442695
          %v1949 = vpow.pop %v1948
          %v1950 = vmul.f32 %v1917, 1.442695
          %v1951 = vpow.pop %v1950
          %v1952 = vmul.f32 %v1918, 1.442695
          %v1953 = vpow.pop %v1952
          %v1954 = vmul.f32 %v1919, 1.442695
          %v1955 = vpow.pop %v1954
          %v1956 = vmul.f32 %v1920, 1.442695
          %v1957 = vpow.pop %v1956
          %v1958 = vmul.f32 %v1921, 1.442695
          %v1959 = vpow.pop %v1958
          %v1960 = vmul.f32 %v1922, 1.442695
          %v1961 = vpow.pop %v1960
          %v1962 = vmul.f32 %v1923, 1.442695
          %v1963 = vpow.pop %v1962
          %v1964 = vmul.f32 %v1924, 1.442695
          %v1965 = vpow.pop %v1964
          %v1966 = vmul.f32 %v1925, 1.442695
          %v1967 = vpow.pop %v1966
          %v1968 = vmul.f32 %v1926, 1.442695
          %v1969 = vpow.pop %v1968
          %v1970 = vmul.f32 %v1927, 1.442695
          %v1971 = vpow.pop %v1970
          %v1972 = vmul.f32 %v1928, 1.442695
          %v1973 = vpow.pop %v1972
          %v1974 = vmul.f32 %v1929, 1.442695
          %v1975 = vpow.pop %v1974
          %v1976 = vmul.f32 %v1930, 1.442695
          %v1977 = vpow.pop %v1976
          %v1978 = vmul.f32 %v1931, 1.442695
          %v1979 = vpow.pop %v1978
          %v1980 = vmul.f32 %v1932, 1.442695
          %v1981 = vpow.pop %v1980
          %v1982 = vmul.f32 %v1933, 1.442695
          %v1983 = vpow.pop %v1982
          %v1984 = vmul.f32 %v1934, 1.442695
          %v1985 = vpow.pop %v1984
          %v1986 = vmul.f32 %v1935, 1.442695
          %v1987 = vpow.pop %v1986
          %v1988 = vmul.f32 %v1936, 1.442695
          %v1989 = vpow.pop %v1988
          %v1990 = vmul.f32 %v1937, 1.442695
          %v1991 = vpow.pop %v1990
          %v1992 = vmul.f32 %v1938, 1.442695
          %v1993 = vpow.pop %v1992
          %v1994 = vmul.f32 %v1939, 1.442695
          %v1995 = vpow.pop %v1994
          %v1996 = vmul.f32 %v1940, 1.442695
          %v1997 = vpow.pop %v1996
          %v1998 = vmul.f32 %v1941, 1.442695
          %v1999 = vpow.pop %v1998
          %v2000 = vmul.f32 %v1942, 1.442695
          %v2001 = vpow.pop %v2000
          %v2002 = vmul.f32 %v1943, 1.442695
          %v2003 = vpow.pop %v2002
          %v2004 = vmul.f32 %v1944, 1.442695
          %v2005 = vpow.pop %v2004
          %v2006 = vmul.f32 %v1945, 1.442695
          %v2007 = vpow.pop %v2006
          %v2008 = vmul.f32 %v1946, 1.442695
          %v2009 = vpow.pop %v2008
          %v2010 = vmul.f32 %v1947, 1.442695
          %v2011 = vpow.pop %v2010
          %2012 = vadd.xlane.f32.xlu0 %v1949
          %v2013 = vpop.xlane.xlu0 %2012
          %2014 = vadd.xlane.f32.xlu0 %v1951
          %v2015 = vpop.xlane.xlu0 %2014
          %2016 = vadd.xlane.f32.xlu0 %v1953
          %v2017 = vpop.xlane.xlu0 %2016
          %2018 = vadd.xlane.f32.xlu0 %v1955
          %v2019 = vpop.xlane.xlu0 %2018
          %2020 = vadd.xlane.f32.xlu0 %v1957
          %v2021 = vpop.xlane.xlu0 %2020
          %2022 = vadd.xlane.f32.xlu0 %v1959
          %v2023 = vpop.xlane.xlu0 %2022
          %2024 = vadd.xlane.f32.xlu0 %v1961
          %v2025 = vpop.xlane.xlu0 %2024
          %2026 = vadd.xlane.f32.xlu0 %v1963
          %v2027 = vpop.xlane.xlu0 %2026
          %2028 = vadd.xlane.f32.xlu0 %v1965
          %v2029 = vpop.xlane.xlu0 %2028
          %2030 = vadd.xlane.f32.xlu0 %v1967
          %v2031 = vpop.xlane.xlu0 %2030
          %2032 = vadd.xlane.f32.xlu0 %v1969
          %v2033 = vpop.xlane.xlu0 %2032
          %2034 = vadd.xlane.f32.xlu0 %v1971
          %v2035 = vpop.xlane.xlu0 %2034
          %2036 = vadd.xlane.f32.xlu0 %v1973
          %v2037 = vpop.xlane.xlu0 %2036
          %2038 = vadd.xlane.f32.xlu0 %v1975
          %v2039 = vpop.xlane.xlu0 %2038
          %2040 = vadd.xlane.f32.xlu0 %v1977
          %v2041 = vpop.xlane.xlu0 %2040
          %2042 = vadd.xlane.f32.xlu0 %v1979
          %v2043 = vpop.xlane.xlu0 %2042
          %2044 = vadd.xlane.f32.xlu0 %v1981
          %v2045 = vpop.xlane.xlu0 %2044
          %2046 = vadd.xlane.f32.xlu0 %v1983
          %v2047 = vpop.xlane.xlu0 %2046
          %2048 = vadd.xlane.f32.xlu0 %v1985
          %v2049 = vpop.xlane.xlu0 %2048
          %2050 = vadd.xlane.f32.xlu0 %v1987
          %v2051 = vpop.xlane.xlu0 %2050
          %2052 = vadd.xlane.f32.xlu0 %v1989
          %v2053 = vpop.xlane.xlu0 %2052
          %2054 = vadd.xlane.f32.xlu0 %v1991
          %v2055 = vpop.xlane.xlu0 %2054
          %2056 = vadd.xlane.f32.xlu0 %v1993
          %v2057 = vpop.xlane.xlu0 %2056
          %2058 = vadd.xlane.f32.xlu0 %v1995
          %v2059 = vpop.xlane.xlu0 %2058
          %2060 = vadd.xlane.f32.xlu0 %v1997
          %v2061 = vpop.xlane.xlu0 %2060
          %2062 = vadd.xlane.f32.xlu0 %v1999
          %v2063 = vpop.xlane.xlu0 %2062
          %2064 = vadd.xlane.f32.xlu0 %v2001
          %v2065 = vpop.xlane.xlu0 %2064
          %2066 = vadd.xlane.f32.xlu0 %v2003
          %v2067 = vpop.xlane.xlu0 %2066
          %2068 = vadd.xlane.f32.xlu0 %v2005
          %v2069 = vpop.xlane.xlu0 %2068
          %2070 = vadd.xlane.f32.xlu0 %v2007
          %v2071 = vpop.xlane.xlu0 %2070
          %2072 = vadd.xlane.f32.xlu0 %v2009
          %v2073 = vpop.xlane.xlu0 %2072
          %2074 = vadd.xlane.f32.xlu0 %v2011
          %v2075 = vpop.xlane.xlu0 %2074
          %v2076 = vlog2.pop %v2013
          %v2077 = vmul.f32 %v2076, 0.6931472
          %v2078 = vlog2.pop %v2015
          %v2079 = vmul.f32 %v2078, 0.6931472
          %v2080 = vlog2.pop %v2017
          %v2081 = vmul.f32 %v2080, 0.6931472
          %v2082 = vlog2.pop %v2019
          %v2083 = vmul.f32 %v2082, 0.6931472
          %v2084 = vlog2.pop %v2021
          %v2085 = vmul.f32 %v2084, 0.6931472
          %v2086 = vlog2.pop %v2023
          %v2087 = vmul.f32 %v2086, 0.6931472
          %v2088 = vlog2.pop %v2025
          %v2089 = vmul.f32 %v2088, 0.6931472
          %v2090 = vlog2.pop %v2027
          %v2091 = vmul.f32 %v2090, 0.6931472
          %v2092 = vlog2.pop %v2029
          %v2093 = vmul.f32 %v2092, 0.6931472
          %v2094 = vlog2.pop %v2031
          %v2095 = vmul.f32 %v2094, 0.6931472
          %v2096 = vlog2.pop %v2033
          %v2097 = vmul.f32 %v2096, 0.6931472
          %v2098 = vlog2.pop %v2035
          %v2099 = vmul.f32 %v2098, 0.6931472
          %v2100 = vlog2.pop %v2037
          %v2101 = vmul.f32 %v2100, 0.6931472
          %v2102 = vlog2.pop %v2039
          %v2103 = vmul.f32 %v2102, 0.6931472
          %v2104 = vlog2.pop %v2041
          %v2105 = vmul.f32 %v2104, 0.6931472
          %v2106 = vlog2.pop %v2043
          %v2107 = vmul.f32 %v2106, 0.6931472
          %v2108 = vlog2.pop %v2045
          %v2109 = vmul.f32 %v2108, 0.6931472
          %v2110 = vlog2.pop %v2047
          %v2111 = vmul.f32 %v2110, 0.6931472
          %v2112 = vlog2.pop %v2049
          %v2113 = vmul.f32 %v2112, 0.6931472
          %v2114 = vlog2.pop %v2051
          %v2115 = vmul.f32 %v2114, 0.6931472
          %v2116 = vlog2.pop %v2053
          %v2117 = vmul.f32 %v2116, 0.6931472
          %v2118 = vlog2.pop %v2055
          %v2119 = vmul.f32 %v2118, 0.6931472
          %v2120 = vlog2.pop %v2057
          %v2121 = vmul.f32 %v2120, 0.6931472
          %v2122 = vlog2.pop %v2059
          %v2123 = vmul.f32 %v2122, 0.6931472
          %v2124 = vlog2.pop %v2061
          %v2125 = vmul.f32 %v2124, 0.6931472
          %v2126 = vlog2.pop %v2063
          %v2127 = vmul.f32 %v2126, 0.6931472
          %v2128 = vlog2.pop %v2065
          %v2129 = vmul.f32 %v2128, 0.6931472
          %v2130 = vlog2.pop %v2067
          %v2131 = vmul.f32 %v2130, 0.6931472
          %v2132 = vlog2.pop %v2069
          %v2133 = vmul.f32 %v2132, 0.6931472
          %v2134 = vlog2.pop %v2071
          %v2135 = vmul.f32 %v2134, 0.6931472
          %v2136 = vlog2.pop %v2073
          %v2137 = vmul.f32 %v2136, 0.6931472
          %v2138 = vlog2.pop %v2075
          %v2139 = vmul.f32 %v2138, 0.6931472
          %v2140 = vadd.f32 %v1853, %v2077
          %v2141 = vadd.f32 %v1855, %v2079
          %v2142 = vadd.f32 %v1857, %v2081
          %v2143 = vadd.f32 %v1859, %v2083
          %v2144 = vadd.f32 %v1861, %v2085
          %v2145 = vadd.f32 %v1863, %v2087
          %v2146 = vadd.f32 %v1865, %v2089
          %v2147 = vadd.f32 %v1867, %v2091
          %v2148 = vadd.f32 %v1869, %v2093
          %v2149 = vadd.f32 %v1871, %v2095
          %v2150 = vadd.f32 %v1873, %v2097
          %v2151 = vadd.f32 %v1875, %v2099
          %v2152 = vadd.f32 %v1877, %v2101
          %v2153 = vadd.f32 %v1879, %v2103
          %v2154 = vadd.f32 %v1881, %v2105
          %v2155 = vadd.f32 %v1883, %v2107
          %v2156 = vadd.f32 %v1885, %v2109
          %v2157 = vadd.f32 %v1887, %v2111
          %v2158 = vadd.f32 %v1889, %v2113
          %v2159 = vadd.f32 %v1891, %v2115
          %v2160 = vadd.f32 %v1893, %v2117
          %v2161 = vadd.f32 %v1895, %v2119
          %v2162 = vadd.f32 %v1897, %v2121
          %v2163 = vadd.f32 %v1899, %v2123
          %v2164 = vadd.f32 %v1901, %v2125
          %v2165 = vadd.f32 %v1903, %v2127
          %v2166 = vadd.f32 %v1905, %v2129
          %v2167 = vadd.f32 %v1907, %v2131
          %v2168 = vadd.f32 %v1909, %v2133
          %v2169 = vadd.f32 %v1911, %v2135
          %v2170 = vadd.f32 %v1913, %v2137
          %v2171 = vadd.f32 %v1915, %v2139
          %v2172 = vld [vmem:[%s286] sm:$0xff]
          %v2173 = vld [vmem:[%s286 + $0x8] sm:$0xff]
          %v2174 = vld [vmem:[%s286 + $0x10] sm:$0xff]
          %v2175 = vld [vmem:[%s286 + $0x18] sm:$0xff]
          %v2176 = vld [vmem:[%s286 + $0x20] sm:$0xff]
          %v2177 = vld [vmem:[%s286 + $0x28] sm:$0xff]
          %v2178 = vld [vmem:[%s286 + $0x30] sm:$0xff]
          %v2179 = vld [vmem:[%s286 + $0x38] sm:$0xff]
          %v2180 = vld [vmem:[%s286 + $0x40] sm:$0xff]
          %v2181 = vld [vmem:[%s286 + $0x48] sm:$0xff]
          %v2182 = vld [vmem:[%s286 + $0x50] sm:$0xff]
          %v2183 = vld [vmem:[%s286 + $0x58] sm:$0xff]
          %v2184 = vld [vmem:[%s286 + $0x60] sm:$0xff]
          %v2185 = vld [vmem:[%s286 + $0x68] sm:$0xff]
          %v2186 = vld [vmem:[%s286 + $0x70] sm:$0xff]
          %v2187 = vld [vmem:[%s286 + $0x78] sm:$0xff]
          %v2188 = vld [vmem:[%s286 + $0x80] sm:$0xff]
          %v2189 = vld [vmem:[%s286 + $0x88] sm:$0xff]
          %v2190 = vld [vmem:[%s286 + $0x90] sm:$0xff]
          %v2191 = vld [vmem:[%s286 + $0x98] sm:$0xff]
          %v2192 = vld [vmem:[%s286 + $0xa0] sm:$0xff]
          %v2193 = vld [vmem:[%s286 + $0xa8] sm:$0xff]
          %v2194 = vld [vmem:[%s286 + $0xb0] sm:$0xff]
          %v2195 = vld [vmem:[%s286 + $0xb8] sm:$0xff]
          %v2196 = vld [vmem:[%s286 + $0xc0] sm:$0xff]
          %v2197 = vld [vmem:[%s286 + $0xc8] sm:$0xff]
          %v2198 = vld [vmem:[%s286 + $0xd0] sm:$0xff]
          %v2199 = vld [vmem:[%s286 + $0xd8] sm:$0xff]
          %v2200 = vld [vmem:[%s286 + $0xe0] sm:$0xff]
          %v2201 = vld [vmem:[%s286 + $0xe8] sm:$0xff]
          %v2202 = vld [vmem:[%s286 + $0xf0] sm:$0xff]
          %v2203 = vld [vmem:[%s286 + $0xf8] sm:$0xff]
          %2204 = vset.pattern.permute.xlu0 0
          %2205 = vperm.xlu0 %2204, %v2172
          %v2206 = vpop.permute.xlu0 %2205
          %2207 = vset.pattern.permute.xlu0 0
          %2208 = vperm.xlu0 %2207, %v2173
          %v2209 = vpop.permute.xlu0 %2208
          %2210 = vset.pattern.permute.xlu0 0
          %2211 = vperm.xlu0 %2210, %v2174
          %v2212 = vpop.permute.xlu0 %2211
          %2213 = vset.pattern.permute.xlu0 0
          %2214 = vperm.xlu0 %2213, %v2175
          %v2215 = vpop.permute.xlu0 %2214
          %2216 = vset.pattern.permute.xlu0 0
          %2217 = vperm.xlu0 %2216, %v2176
          %v2218 = vpop.permute.xlu0 %2217
          %2219 = vset.pattern.permute.xlu0 0
          %2220 = vperm.xlu0 %2219, %v2177
          %v2221 = vpop.permute.xlu0 %2220
          %2222 = vset.pattern.permute.xlu0 0
          %2223 = vperm.xlu0 %2222, %v2178
          %v2224 = vpop.permute.xlu0 %2223
          %2225 = vset.pattern.permute.xlu0 0
          %2226 = vperm.xlu0 %2225, %v2179
          %v2227 = vpop.permute.xlu0 %2226
          %2228 = vset.pattern.permute.xlu0 0
          %2229 = vperm.xlu0 %2228, %v2180
          %v2230 = vpop.permute.xlu0 %2229
          %2231 = vset.pattern.permute.xlu0 0
          %2232 = vperm.xlu0 %2231, %v2181
          %v2233 = vpop.permute.xlu0 %2232
          %2234 = vset.pattern.permute.xlu0 0
          %2235 = vperm.xlu0 %2234, %v2182
          %v2236 = vpop.permute.xlu0 %2235
          %2237 = vset.pattern.permute.xlu0 0
          %2238 = vperm.xlu0 %2237, %v2183
          %v2239 = vpop.permute.xlu0 %2238
          %2240 = vset.pattern.permute.xlu0 0
          %2241 = vperm.xlu0 %2240, %v2184
          %v2242 = vpop.permute.xlu0 %2241
          %2243 = vset.pattern.permute.xlu0 0
          %2244 = vperm.xlu0 %2243, %v2185
          %v2245 = vpop.permute.xlu0 %2244
          %2246 = vset.pattern.permute.xlu0 0
          %2247 = vperm.xlu0 %2246, %v2186
          %v2248 = vpop.permute.xlu0 %2247
          %2249 = vset.pattern.permute.xlu0 0
          %2250 = vperm.xlu0 %2249, %v2187
          %v2251 = vpop.permute.xlu0 %2250
          %2252 = vset.pattern.permute.xlu0 0
          %2253 = vperm.xlu0 %2252, %v2188
          %v2254 = vpop.permute.xlu0 %2253
          %2255 = vset.pattern.permute.xlu0 0
          %2256 = vperm.xlu0 %2255, %v2189
          %v2257 = vpop.permute.xlu0 %2256
          %2258 = vset.pattern.permute.xlu0 0
          %2259 = vperm.xlu0 %2258, %v2190
          %v2260 = vpop.permute.xlu0 %2259
          %2261 = vset.pattern.permute.xlu0 0
          %2262 = vperm.xlu0 %2261, %v2191
          %v2263 = vpop.permute.xlu0 %2262
          %2264 = vset.pattern.permute.xlu0 0
          %2265 = vperm.xlu0 %2264, %v2192
          %v2266 = vpop.permute.xlu0 %2265
          %2267 = vset.pattern.permute.xlu0 0
          %2268 = vperm.xlu0 %2267, %v2193
          %v2269 = vpop.permute.xlu0 %2268
          %2270 = vset.pattern.permute.xlu0 0
          %2271 = vperm.xlu0 %2270, %v2194
          %v2272 = vpop.permute.xlu0 %2271
          %2273 = vset.pattern.permute.xlu0 0
          %2274 = vperm.xlu0 %2273, %v2195
          %v2275 = vpop.permute.xlu0 %2274
          %2276 = vset.pattern.permute.xlu0 0
          %2277 = vperm.xlu0 %2276, %v2196
          %v2278 = vpop.permute.xlu0 %2277
          %2279 = vset.pattern.permute.xlu0 0
          %2280 = vperm.xlu0 %2279, %v2197
          %v2281 = vpop.permute.xlu0 %2280
          %2282 = vset.pattern.permute.xlu0 0
          %2283 = vperm.xlu0 %2282, %v2198
          %v2284 = vpop.permute.xlu0 %2283
          %2285 = vset.pattern.permute.xlu0 0
          %2286 = vperm.xlu0 %2285, %v2199
          %v2287 = vpop.permute.xlu0 %2286
          %2288 = vset.pattern.permute.xlu0 0
          %2289 = vperm.xlu0 %2288, %v2200
          %v2290 = vpop.permute.xlu0 %2289
          %2291 = vset.pattern.permute.xlu0 0
          %2292 = vperm.xlu0 %2291, %v2201
          %v2293 = vpop.permute.xlu0 %2292
          %2294 = vset.pattern.permute.xlu0 0
          %2295 = vperm.xlu0 %2294, %v2202
          %v2296 = vpop.permute.xlu0 %2295
          %2297 = vset.pattern.permute.xlu0 0
          %2298 = vperm.xlu0 %2297, %v2203
          %v2299 = vpop.permute.xlu0 %2298
          %vm2300 = vcmp.eq.s32.totalorder %v1818, %v2206
          %vm2301 = vcmp.eq.s32.totalorder %v1818, %v2209
          %vm2302 = vcmp.eq.s32.totalorder %v1818, %v2212
          %vm2303 = vcmp.eq.s32.totalorder %v1818, %v2215
          %vm2304 = vcmp.eq.s32.totalorder %v1818, %v2218
          %vm2305 = vcmp.eq.s32.totalorder %v1818, %v2221
          %vm2306 = vcmp.eq.s32.totalorder %v1818, %v2224
          %vm2307 = vcmp.eq.s32.totalorder %v1818, %v2227
          %vm2308 = vcmp.eq.s32.totalorder %v1818, %v2230
          %vm2309 = vcmp.eq.s32.totalorder %v1818, %v2233
          %vm2310 = vcmp.eq.s32.totalorder %v1818, %v2236
          %vm2311 = vcmp.eq.s32.totalorder %v1818, %v2239
          %vm2312 = vcmp.eq.s32.totalorder %v1818, %v2242
          %vm2313 = vcmp.eq.s32.totalorder %v1818, %v2245
          %vm2314 = vcmp.eq.s32.totalorder %v1818, %v2248
          %vm2315 = vcmp.eq.s32.totalorder %v1818, %v2251
          %vm2316 = vcmp.eq.s32.totalorder %v1818, %v2254
          %vm2317 = vcmp.eq.s32.totalorder %v1818, %v2257
          %vm2318 = vcmp.eq.s32.totalorder %v1818, %v2260
          %vm2319 = vcmp.eq.s32.totalorder %v1818, %v2263
          %vm2320 = vcmp.eq.s32.totalorder %v1818, %v2266
          %vm2321 = vcmp.eq.s32.totalorder %v1818, %v2269
          %vm2322 = vcmp.eq.s32.totalorder %v1818, %v2272
          %vm2323 = vcmp.eq.s32.totalorder %v1818, %v2275
          %vm2324 = vcmp.eq.s32.totalorder %v1818, %v2278
          %vm2325 = vcmp.eq.s32.totalorder %v1818, %v2281
          %vm2326 = vcmp.eq.s32.totalorder %v1818, %v2284
          %vm2327 = vcmp.eq.s32.totalorder %v1818, %v2287
          %vm2328 = vcmp.eq.s32.totalorder %v1818, %v2290
          %vm2329 = vcmp.eq.s32.totalorder %v1818, %v2293
          %vm2330 = vcmp.eq.s32.totalorder %v1818, %v2296
          %vm2331 = vcmp.eq.s32.totalorder %v1818, %v2299
          %v2332 = vsel %vm2300, 1, 0
          %v2333 = vsel %vm2301, 1, 0
          %v2334 = vsel %vm2302, 1, 0
          %v2335 = vsel %vm2303, 1, 0
          %v2336 = vsel %vm2304, 1, 0
          %v2337 = vsel %vm2305, 1, 0
          %v2338 = vsel %vm2306, 1, 0
          %v2339 = vsel %vm2307, 1, 0
          %v2340 = vsel %vm2308, 1, 0
          %v2341 = vsel %vm2309, 1, 0
          %v2342 = vsel %vm2310, 1, 0
          %v2343 = vsel %vm2311, 1, 0
          %v2344 = vsel %vm2312, 1, 0
          %v2345 = vsel %vm2313, 1, 0
          %v2346 = vsel %vm2314, 1, 0
          %v2347 = vsel %vm2315, 1, 0
          %v2348 = vsel %vm2316, 1, 0
          %v2349 = vsel %vm2317, 1, 0
          %v2350 = vsel %vm2318, 1, 0
          %v2351 = vsel %vm2319, 1, 0
          %v2352 = vsel %vm2320, 1, 0
          %v2353 = vsel %vm2321, 1, 0
          %v2354 = vsel %vm2322, 1, 0
          %v2355 = vsel %vm2323, 1, 0
          %v2356 = vsel %vm2324, 1, 0
          %v2357 = vsel %vm2325, 1, 0
          %v2358 = vsel %vm2326, 1, 0
          %v2359 = vsel %vm2327, 1, 0
          %v2360 = vsel %vm2328, 1, 0
          %v2361 = vsel %vm2329, 1, 0
          %v2362 = vsel %vm2330, 1, 0
          %v2363 = vsel %vm2331, 1, 0
          %v2364 = vcvt.s32.f32 %v2332
          %v2365 = vcvt.s32.f32 %v2333
          %v2366 = vcvt.s32.f32 %v2334
          %v2367 = vcvt.s32.f32 %v2335
          %v2368 = vcvt.s32.f32 %v2336
          %v2369 = vcvt.s32.f32 %v2337
          %v2370 = vcvt.s32.f32 %v2338
          %v2371 = vcvt.s32.f32 %v2339
          %v2372 = vcvt.s32.f32 %v2340
          %v2373 = vcvt.s32.f32 %v2341
          %v2374 = vcvt.s32.f32 %v2342
          %v2375 = vcvt.s32.f32 %v2343
          %v2376 = vcvt.s32.f32 %v2344
          %v2377 = vcvt.s32.f32 %v2345
          %v2378 = vcvt.s32.f32 %v2346
          %v2379 = vcvt.s32.f32 %v2347
          %v2380 = vcvt.s32.f32 %v2348
          %v2381 = vcvt.s32.f32 %v2349
          %v2382 = vcvt.s32.f32 %v2350
          %v2383 = vcvt.s32.f32 %v2351
          %v2384 = vcvt.s32.f32 %v2352
          %v2385 = vcvt.s32.f32 %v2353
          %v2386 = vcvt.s32.f32 %v2354
          %v2387 = vcvt.s32.f32 %v2355
          %v2388 = vcvt.s32.f32 %v2356
          %v2389 = vcvt.s32.f32 %v2357
          %v2390 = vcvt.s32.f32 %v2358
          %v2391 = vcvt.s32.f32 %v2359
          %v2392 = vcvt.s32.f32 %v2360
          %v2393 = vcvt.s32.f32 %v2361
          %v2394 = vcvt.s32.f32 %v2362
          %v2395 = vcvt.s32.f32 %v2363
          %v2396 = vmul.f32 %v1785, %v2364
          %v2397 = vmul.f32 %v1786, %v2365
          %v2398 = vmul.f32 %v1787, %v2366
          %v2399 = vmul.f32 %v1788, %v2367
          %v2400 = vmul.f32 %v1789, %v2368
          %v2401 = vmul.f32 %v1790, %v2369
          %v2402 = vmul.f32 %v1791, %v2370
          %v2403 = vmul.f32 %v1792, %v2371
          %v2404 = vmul.f32 %v1793, %v2372
          %v2405 = vmul.f32 %v1794, %v2373
          %v2406 = vmul.f32 %v1795, %v2374
          %v2407 = vmul.f32 %v1796, %v2375
          %v2408 = vmul.f32 %v1797, %v2376
          %v2409 = vmul.f32 %v1798, %v2377
          %v2410 = vmul.f32 %v1799, %v2378
          %v2411 = vmul.f32 %v1800, %v2379
          %v2412 = vmul.f32 %v1801, %v2380
          %v2413 = vmul.f32 %v1802, %v2381
          %v2414 = vmul.f32 %v1803, %v2382
          %v2415 = vmul.f32 %v1804, %v2383
          %v2416 = vmul.f32 %v1805, %v2384
          %v2417 = vmul.f32 %v1806, %v2385
          %v2418 = vmul.f32 %v1807, %v2386
          %v2419 = vmul.f32 %v1808, %v2387
          %v2420 = vmul.f32 %v1809, %v2388
          %v2421 = vmul.f32 %v1810, %v2389
          %v2422 = vmul.f32 %v1811, %v2390
          %v2423 = vmul.f32 %v1812, %v2391
          %v2424 = vmul.f32 %v1813, %v2392
          %v2425 = vmul.f32 %v1814, %v2393
          %v2426 = vmul.f32 %v1815, %v2394
          %v2427 = vmul.f32 %v1816, %v2395
          %2428 = vadd.xlane.f32.xlu0 %v2396
          %v2429 = vpop.xlane.xlu0 %2428
          %2430 = vadd.xlane.f32.xlu0 %v2397
          %v2431 = vpop.xlane.xlu0 %2430
          %2432 = vadd.xlane.f32.xlu0 %v2398
          %v2433 = vpop.xlane.xlu0 %2432
          %2434 = vadd.xlane.f32.xlu0 %v2399
          %v2435 = vpop.xlane.xlu0 %2434
          %2436 = vadd.xlane.f32.xlu0 %v2400
          %v2437 = vpop.xlane.xlu0 %2436
          %2438 = vadd.xlane.f32.xlu0 %v2401
          %v2439 = vpop.xlane.xlu0 %2438
          %2440 = vadd.xlane.f32.xlu0 %v2402
          %v2441 = vpop.xlane.xlu0 %2440
          %2442 = vadd.xlane.f32.xlu0 %v2403
          %v2443 = vpop.xlane.xlu0 %2442
          %2444 = vadd.xlane.f32.xlu0 %v2404
          %v2445 = vpop.xlane.xlu0 %2444
          %2446 = vadd.xlane.f32.xlu0 %v2405
          %v2447 = vpop.xlane.xlu0 %2446
          %2448 = vadd.xlane.f32.xlu0 %v2406
          %v2449 = vpop.xlane.xlu0 %2448
          %2450 = vadd.xlane.f32.xlu0 %v2407
          %v2451 = vpop.xlane.xlu0 %2450
          %2452 = vadd.xlane.f32.xlu0 %v2408
          %v2453 = vpop.xlane.xlu0 %2452
          %2454 = vadd.xlane.f32.xlu0 %v2409
          %v2455 = vpop.xlane.xlu0 %2454
          %2456 = vadd.xlane.f32.xlu0 %v2410
          %v2457 = vpop.xlane.xlu0 %2456
          %2458 = vadd.xlane.f32.xlu0 %v2411
          %v2459 = vpop.xlane.xlu0 %2458
          %2460 = vadd.xlane.f32.xlu0 %v2412
          %v2461 = vpop.xlane.xlu0 %2460
          %2462 = vadd.xlane.f32.xlu0 %v2413
          %v2463 = vpop.xlane.xlu0 %2462
          %2464 = vadd.xlane.f32.xlu0 %v2414
          %v2465 = vpop.xlane.xlu0 %2464
          %2466 = vadd.xlane.f32.xlu0 %v2415
          %v2467 = vpop.xlane.xlu0 %2466
          %2468 = vadd.xlane.f32.xlu0 %v2416
          %v2469 = vpop.xlane.xlu0 %2468
          %2470 = vadd.xlane.f32.xlu0 %v2417
          %v2471 = vpop.xlane.xlu0 %2470
          %2472 = vadd.xlane.f32.xlu0 %v2418
          %v2473 = vpop.xlane.xlu0 %2472
          %2474 = vadd.xlane.f32.xlu0 %v2419
          %v2475 = vpop.xlane.xlu0 %2474
          %2476 = vadd.xlane.f32.xlu0 %v2420
          %v2477 = vpop.xlane.xlu0 %2476
          %2478 = vadd.xlane.f32.xlu0 %v2421
          %v2479 = vpop.xlane.xlu0 %2478
          %2480 = vadd.xlane.f32.xlu0 %v2422
          %v2481 = vpop.xlane.xlu0 %2480
          %2482 = vadd.xlane.f32.xlu0 %v2423
          %v2483 = vpop.xlane.xlu0 %2482
          %2484 = vadd.xlane.f32.xlu0 %v2424
          %v2485 = vpop.xlane.xlu0 %2484
          %2486 = vadd.xlane.f32.xlu0 %v2425
          %v2487 = vpop.xlane.xlu0 %2486
          %2488 = vadd.xlane.f32.xlu0 %v2426
          %v2489 = vpop.xlane.xlu0 %2488
          %2490 = vadd.xlane.f32.xlu0 %v2427
          %v2491 = vpop.xlane.xlu0 %2490
          %s2492 = smul.u32 %s21, 256
          %v2493 = vlaneseq
          %v2494 = vshrl.u32 %v2493, 7
          %v2495 = vadd.s32 %v2494, 8
          %v2496 = vadd.s32 %v2494, 16
          %v2497 = vadd.s32 %v2494, 24
          %v2498 = vadd.s32 %v2494, 32
          %v2499 = vadd.s32 %v2494, 40
          %v2500 = vadd.s32 %v2494, 48
          %v2501 = vadd.s32 %v2494, 56
          %v2502 = vadd.s32 %v2494, 64
          %v2503 = vadd.s32 %v2494, 72
          %v2504 = vadd.s32 %v2494, 80
          %v2505 = vadd.s32 %v2494, 88
          %v2506 = vadd.s32 %v2494, 96
          %v2507 = vadd.s32 %v2494, 104
          %v2508 = vadd.s32 %v2494, 112
          %v2509 = vadd.s32 %v2494, 120
          %v2510 = vadd.s32 %v2494, 128
          %v2511 = vadd.s32 %v2494, 136
          %v2512 = vadd.s32 %v2494, 144
          %v2513 = vadd.s32 %v2494, 152
          %v2514 = vadd.s32 %v2494, 160
          %v2515 = vadd.s32 %v2494, 168
          %v2516 = vadd.s32 %v2494, 176
          %v2517 = vadd.s32 %v2494, 184
          %v2518 = vadd.s32 %v2494, 192
          %v2519 = vadd.s32 %v2494, 200
          %v2520 = vadd.s32 %v2494, 208
          %v2521 = vadd.s32 %v2494, 216
          %v2522 = vadd.s32 %v2494, 224
          %v2523 = vadd.s32 %v2494, 232
          %v2524 = vadd.s32 %v2494, 240
          %v2525 = vadd.s32 %v2494, 248
          %v2526 = vstv %s2492
          %v2527 = vadd.s32 %v2526, %v2494
          %v2528 = vadd.s32 %v2526, %v2495
          %v2529 = vadd.s32 %v2526, %v2496
          %v2530 = vadd.s32 %v2526, %v2497
          %v2531 = vadd.s32 %v2526, %v2498
          %v2532 = vadd.s32 %v2526, %v2499
          %v2533 = vadd.s32 %v2526, %v2500
          %v2534 = vadd.s32 %v2526, %v2501
          %v2535 = vadd.s32 %v2526, %v2502
          %v2536 = vadd.s32 %v2526, %v2503
          %v2537 = vadd.s32 %v2526, %v2504
          %v2538 = vadd.s32 %v2526, %v2505
          %v2539 = vadd.s32 %v2526, %v2506
          %v2540 = vadd.s32 %v2526, %v2507
          %v2541 = vadd.s32 %v2526, %v2508
          %v2542 = vadd.s32 %v2526, %v2509
          %v2543 = vadd.s32 %v2526, %v2510
          %v2544 = vadd.s32 %v2526, %v2511
          %v2545 = vadd.s32 %v2526, %v2512
          %v2546 = vadd.s32 %v2526, %v2513
          %v2547 = vadd.s32 %v2526, %v2514
          %v2548 = vadd.s32 %v2526, %v2515
          %v2549 = vadd.s32 %v2526, %v2516
          %v2550 = vadd.s32 %v2526, %v2517
          %v2551 = vadd.s32 %v2526, %v2518
          %v2552 = vadd.s32 %v2526, %v2519
          %v2553 = vadd.s32 %v2526, %v2520
          %v2554 = vadd.s32 %v2526, %v2521
          %v2555 = vadd.s32 %v2526, %v2522
          %v2556 = vadd.s32 %v2526, %v2523
          %v2557 = vadd.s32 %v2526, %v2524
          %v2558 = vadd.s32 %v2526, %v2525
          %vm2559 = vcmp.lt.s32.totalorder %v2527, 64
          %vm2560 = vcmp.lt.s32.totalorder %v2528, 64
          %vm2561 = vcmp.lt.s32.totalorder %v2529, 64
          %vm2562 = vcmp.lt.s32.totalorder %v2530, 64
          %vm2563 = vcmp.lt.s32.totalorder %v2531, 64
          %vm2564 = vcmp.lt.s32.totalorder %v2532, 64
          %vm2565 = vcmp.lt.s32.totalorder %v2533, 64
          %vm2566 = vcmp.lt.s32.totalorder %v2534, 64
          %vm2567 = vcmp.lt.s32.totalorder %v2535, 64
          %vm2568 = vcmp.lt.s32.totalorder %v2536, 64
          %vm2569 = vcmp.lt.s32.totalorder %v2537, 64
          %vm2570 = vcmp.lt.s32.totalorder %v2538, 64
          %vm2571 = vcmp.lt.s32.totalorder %v2539, 64
          %vm2572 = vcmp.lt.s32.totalorder %v2540, 64
          %vm2573 = vcmp.lt.s32.totalorder %v2541, 64
          %vm2574 = vcmp.lt.s32.totalorder %v2542, 64
          %vm2575 = vcmp.lt.s32.totalorder %v2543, 64
          %vm2576 = vcmp.lt.s32.totalorder %v2544, 64
          %vm2577 = vcmp.lt.s32.totalorder %v2545, 64
          %vm2578 = vcmp.lt.s32.totalorder %v2546, 64
          %vm2579 = vcmp.lt.s32.totalorder %v2547, 64
          %vm2580 = vcmp.lt.s32.totalorder %v2548, 64
          %vm2581 = vcmp.lt.s32.totalorder %v2549, 64
          %vm2582 = vcmp.lt.s32.totalorder %v2550, 64
          %vm2583 = vcmp.lt.s32.totalorder %v2551, 64
          %vm2584 = vcmp.lt.s32.totalorder %v2552, 64
          %vm2585 = vcmp.lt.s32.totalorder %v2553, 64
          %vm2586 = vcmp.lt.s32.totalorder %v2554, 64
          %vm2587 = vcmp.lt.s32.totalorder %v2555, 64
          %vm2588 = vcmp.lt.s32.totalorder %v2556, 64
          %vm2589 = vcmp.lt.s32.totalorder %v2557, 64
          %vm2590 = vcmp.lt.s32.totalorder %v2558, 64
          %v2591 = vsel %vm2559, 1, 0
          %v2592 = vsel %vm2560, 1, 0
          %v2593 = vsel %vm2561, 1, 0
          %v2594 = vsel %vm2562, 1, 0
          %v2595 = vsel %vm2563, 1, 0
          %v2596 = vsel %vm2564, 1, 0
          %v2597 = vsel %vm2565, 1, 0
          %v2598 = vsel %vm2566, 1, 0
          %v2599 = vsel %vm2567, 1, 0
          %v2600 = vsel %vm2568, 1, 0
          %v2601 = vsel %vm2569, 1, 0
          %v2602 = vsel %vm2570, 1, 0
          %v2603 = vsel %vm2571, 1, 0
          %v2604 = vsel %vm2572, 1, 0
          %v2605 = vsel %vm2573, 1, 0
          %v2606 = vsel %vm2574, 1, 0
          %v2607 = vsel %vm2575, 1, 0
          %v2608 = vsel %vm2576, 1, 0
          %v2609 = vsel %vm2577, 1, 0
          %v2610 = vsel %vm2578, 1, 0
          %v2611 = vsel %vm2579, 1, 0
          %v2612 = vsel %vm2580, 1, 0
          %v2613 = vsel %vm2581, 1, 0
          %v2614 = vsel %vm2582, 1, 0
          %v2615 = vsel %vm2583, 1, 0
          %v2616 = vsel %vm2584, 1, 0
          %v2617 = vsel %vm2585, 1, 0
          %v2618 = vsel %vm2586, 1, 0
          %v2619 = vsel %vm2587, 1, 0
          %v2620 = vsel %vm2588, 1, 0
          %v2621 = vsel %vm2589, 1, 0
          %v2622 = vsel %vm2590, 1, 0
          %v2623 = vcvt.s32.f32 %v2591
          %v2624 = vcvt.s32.f32 %v2592
          %v2625 = vcvt.s32.f32 %v2593
          %v2626 = vcvt.s32.f32 %v2594
          %v2627 = vcvt.s32.f32 %v2595
          %v2628 = vcvt.s32.f32 %v2596
          %v2629 = vcvt.s32.f32 %v2597
          %v2630 = vcvt.s32.f32 %v2598
          %v2631 = vcvt.s32.f32 %v2599
          %v2632 = vcvt.s32.f32 %v2600
          %v2633 = vcvt.s32.f32 %v2601
          %v2634 = vcvt.s32.f32 %v2602
          %v2635 = vcvt.s32.f32 %v2603
          %v2636 = vcvt.s32.f32 %v2604
          %v2637 = vcvt.s32.f32 %v2605
          %v2638 = vcvt.s32.f32 %v2606
          %v2639 = vcvt.s32.f32 %v2607
          %v2640 = vcvt.s32.f32 %v2608
          %v2641 = vcvt.s32.f32 %v2609
          %v2642 = vcvt.s32.f32 %v2610
          %v2643 = vcvt.s32.f32 %v2611
          %v2644 = vcvt.s32.f32 %v2612
          %v2645 = vcvt.s32.f32 %v2613
          %v2646 = vcvt.s32.f32 %v2614
          %v2647 = vcvt.s32.f32 %v2615
          %v2648 = vcvt.s32.f32 %v2616
          %v2649 = vcvt.s32.f32 %v2617
          %v2650 = vcvt.s32.f32 %v2618
          %v2651 = vcvt.s32.f32 %v2619
          %v2652 = vcvt.s32.f32 %v2620
          %v2653 = vcvt.s32.f32 %v2621
          %v2654 = vcvt.s32.f32 %v2622
          %v2655 = vsub.f32 %v2140, %v2429
          %v2656 = vsub.f32 %v2141, %v2431
          %v2657 = vsub.f32 %v2142, %v2433
          %v2658 = vsub.f32 %v2143, %v2435
          %v2659 = vsub.f32 %v2144, %v2437
          %v2660 = vsub.f32 %v2145, %v2439
          %v2661 = vsub.f32 %v2146, %v2441
          %v2662 = vsub.f32 %v2147, %v2443
          %v2663 = vsub.f32 %v2148, %v2445
          %v2664 = vsub.f32 %v2149, %v2447
          %v2665 = vsub.f32 %v2150, %v2449
          %v2666 = vsub.f32 %v2151, %v2451
          %v2667 = vsub.f32 %v2152, %v2453
          %v2668 = vsub.f32 %v2153, %v2455
          %v2669 = vsub.f32 %v2154, %v2457
          %v2670 = vsub.f32 %v2155, %v2459
          %v2671 = vsub.f32 %v2156, %v2461
          %v2672 = vsub.f32 %v2157, %v2463
          %v2673 = vsub.f32 %v2158, %v2465
          %v2674 = vsub.f32 %v2159, %v2467
          %v2675 = vsub.f32 %v2160, %v2469
          %v2676 = vsub.f32 %v2161, %v2471
          %v2677 = vsub.f32 %v2162, %v2473
          %v2678 = vsub.f32 %v2163, %v2475
          %v2679 = vsub.f32 %v2164, %v2477
          %v2680 = vsub.f32 %v2165, %v2479
          %v2681 = vsub.f32 %v2166, %v2481
          %v2682 = vsub.f32 %v2167, %v2483
          %v2683 = vsub.f32 %v2168, %v2485
          %v2684 = vsub.f32 %v2169, %v2487
          %v2685 = vsub.f32 %v2170, %v2489
          %v2686 = vsub.f32 %v2171, %v2491
          %v2687 = vmul.f32 %v2655, %v2623
          %v2688 = vmul.f32 %v2656, %v2624
          %v2689 = vmul.f32 %v2657, %v2625
          %v2690 = vmul.f32 %v2658, %v2626
          %v2691 = vmul.f32 %v2659, %v2627
          %v2692 = vmul.f32 %v2660, %v2628
          %v2693 = vmul.f32 %v2661, %v2629
          %v2694 = vmul.f32 %v2662, %v2630
          %v2695 = vmul.f32 %v2663, %v2631
          %v2696 = vmul.f32 %v2664, %v2632
          %v2697 = vmul.f32 %v2665, %v2633
          %v2698 = vmul.f32 %v2666, %v2634
          %v2699 = vmul.f32 %v2667, %v2635
          %v2700 = vmul.f32 %v2668, %v2636
          %v2701 = vmul.f32 %v2669, %v2637
          %v2702 = vmul.f32 %v2670, %v2638
          %v2703 = vmul.f32 %v2671, %v2639
          %v2704 = vmul.f32 %v2672, %v2640
          %v2705 = vmul.f32 %v2673, %v2641
          %v2706 = vmul.f32 %v2674, %v2642
          %v2707 = vmul.f32 %v2675, %v2643
          %v2708 = vmul.f32 %v2676, %v2644
          %v2709 = vmul.f32 %v2677, %v2645
          %v2710 = vmul.f32 %v2678, %v2646
          %v2711 = vmul.f32 %v2679, %v2647
          %v2712 = vmul.f32 %v2680, %v2648
          %v2713 = vmul.f32 %v2681, %v2649
          %v2714 = vmul.f32 %v2682, %v2650
          %v2715 = vmul.f32 %v2683, %v2651
          %v2716 = vmul.f32 %v2684, %v2652
          %v2717 = vmul.f32 %v2685, %v2653
          %v2718 = vmul.f32 %v2686, %v2654
          %vm2719 = vcmask 7168
          %v2720 = vsel %vm2719, %v2687, 0.0
          %v2721 = vsel %vm2719, %v2688, 0.0
          %v2722 = vadd.f32 %v2720, %v2721
          %v2723 = vsel %vm2719, %v2689, 0.0
          %v2724 = vadd.f32 %v2722, %v2723
          %v2725 = vsel %vm2719, %v2690, 0.0
          %v2726 = vadd.f32 %v2724, %v2725
          %v2727 = vsel %vm2719, %v2691, 0.0
          %v2728 = vadd.f32 %v2726, %v2727
          %v2729 = vsel %vm2719, %v2692, 0.0
          %v2730 = vadd.f32 %v2728, %v2729
          %v2731 = vsel %vm2719, %v2693, 0.0
          %v2732 = vadd.f32 %v2730, %v2731
          %v2733 = vsel %vm2719, %v2694, 0.0
          %v2734 = vadd.f32 %v2732, %v2733
          %v2735 = vsel %vm2719, %v2695, 0.0
          %v2736 = vadd.f32 %v2734, %v2735
          %v2737 = vsel %vm2719, %v2696, 0.0
          %v2738 = vadd.f32 %v2736, %v2737
          %v2739 = vsel %vm2719, %v2697, 0.0
          %v2740 = vadd.f32 %v2738, %v2739
          %v2741 = vsel %vm2719, %v2698, 0.0
          %v2742 = vadd.f32 %v2740, %v2741
          %v2743 = vsel %vm2719, %v2699, 0.0
          %v2744 = vadd.f32 %v2742, %v2743
          %v2745 = vsel %vm2719, %v2700, 0.0
          %v2746 = vadd.f32 %v2744, %v2745
          %v2747 = vsel %vm2719, %v2701, 0.0
          %v2748 = vadd.f32 %v2746, %v2747
          %v2749 = vsel %vm2719, %v2702, 0.0
          %v2750 = vadd.f32 %v2748, %v2749
          %v2751 = vsel %vm2719, %v2703, 0.0
          %v2752 = vadd.f32 %v2750, %v2751
          %v2753 = vsel %vm2719, %v2704, 0.0
          %v2754 = vadd.f32 %v2752, %v2753
          %v2755 = vsel %vm2719, %v2705, 0.0
          %v2756 = vadd.f32 %v2754, %v2755
          %v2757 = vsel %vm2719, %v2706, 0.0
          %v2758 = vadd.f32 %v2756, %v2757
          %v2759 = vsel %vm2719, %v2707, 0.0
          %v2760 = vadd.f32 %v2758, %v2759
          %v2761 = vsel %vm2719, %v2708, 0.0
          %v2762 = vadd.f32 %v2760, %v2761
          %v2763 = vsel %vm2719, %v2709, 0.0
          %v2764 = vadd.f32 %v2762, %v2763
          %v2765 = vsel %vm2719, %v2710, 0.0
          %v2766 = vadd.f32 %v2764, %v2765
          %v2767 = vsel %vm2719, %v2711, 0.0
          %v2768 = vadd.f32 %v2766, %v2767
          %v2769 = vsel %vm2719, %v2712, 0.0
          %v2770 = vadd.f32 %v2768, %v2769
          %v2771 = vsel %vm2719, %v2713, 0.0
          %v2772 = vadd.f32 %v2770, %v2771
          %v2773 = vsel %vm2719, %v2714, 0.0
          %v2774 = vadd.f32 %v2772, %v2773
          %v2775 = vsel %vm2719, %v2715, 0.0
          %v2776 = vadd.f32 %v2774, %v2775
          %v2777 = vsel %vm2719, %v2716, 0.0
          %v2778 = vadd.f32 %v2776, %v2777
          %v2779 = vsel %vm2719, %v2717, 0.0
          %v2780 = vadd.f32 %v2778, %v2779
          %v2781 = vsel %vm2719, %v2718, 0.0
          %v2782 = vadd.f32 %v2780, %v2781
          %2783 = vadd.xlane.f32.xlu0 %v2782
          %v2784 = vpop.xlane.xlu0 %2783
          %v2785 = vrot.slane %v2784, 4
          %v2786 = vadd.f32 %v2784, %v2785
          %v2787 = vrot.slane %v2786, 2
          %v2788 = vadd.f32 %v2786, %v2787
          %v2789 = vrot.slane %v2788, 1
          %v2790 = vadd.f32 %v2788, %v2789
          %s2791 = vtos %v2790
          %v2792 = vld [vmem:[#allocation3] sm:$0x1]
          %v2793 = vstv %s2791
          %v2794 = vadd.f32 %v2792, %v2793
          %vm2795 = vcmask 0
          %2796 = vst.msk [vmem:[#allocation3] sm:$0x1] %vm2795, %v2794
        $region52: #{gcn_forward.5} parent=39 // pred_fallthru
          _
        %p2797 = scmp.eq.s32.totalorder %s21, 1
        %p2798 = pnand %p2797, %p290
        %p2799 = pneg %p2798
        // Predicated region
        $region53: #{gcn_forward.5} parent=39 // pred_check
          _
        $region54: #{gcn_forward.5} parent=39 // pred_check_branch
          %2801 = sbr.rel (%p2798) target = $region56
        $region55: #{gcn_forward.5} parent=39 // pred_region
          %v2802 = vld [vmem:[#allocation3] sm:$0x1]
          %vm2803 = vcmask 0
          %2804 = vst.msk [vmem:[#allocation4] sm:$0x1] %vm2803, %v2802
        $region56: #{gcn_forward.5} parent=39 // pred_fallthru
          _
        // Predicated region
        $region57: #{gcn_forward.5} parent=39 // pred_check
          %p2805 = pneg %p164
        $region58: #{gcn_forward.5} parent=39 // pred_check_branch
          %2807 = sbr.rel (%p2805) target = $region60
        $region59: #{gcn_forward.5} parent=39 // pred_region
          %s2809 = ssub.s32 16, 16
          %2810 = vsyncadd [#allocation5], %s2809
          %s2812 = sshll.u32 [#allocation4], 4
          %s2813 = int_to_ptr.vmem [resolvable:$true] %s2812
          %2815 = dma.vmem_to_hbm [thread:$0]  %s2813, 16, %s5, [#allocation5]
        $region60: #{gcn_forward.5} parent=39 // pred_fallthru
          _
        // Predicated region
        $region61: #{gcn_forward.5} parent=39 // pred_check
          %p2816 = pneg %p164
        $region62: #{gcn_forward.5} parent=39 // pred_check_branch
          %2818 = sbr.rel (%p2816) target = $region64
        $region63: #{gcn_forward.5} parent=39 // pred_region
          %2819 = dma.done [#allocation5], 16
        $region64: #{gcn_forward.5} parent=39 // pred_fallthru
          _
      $region40: #{gcn_forward.5} parent=5 // pred_fallthru
        _
      %p2820 = scmp.le.s32.totalorder 2, %s12
      // Predicated region
      $region65: #{gcn_forward.5} parent=5 // pred_check
        %p2821 = pneg %p2820
      $region66: #{gcn_forward.5} parent=5 // pred_check_branch
        %2823 = sbr.rel (%p2821) target = $region68
      $region67: #{gcn_forward.5} parent=5 // pred_region
        %s2824 = ssub.s32 %s12, 2
      $region68: #{gcn_forward.5} parent=5 // pred_fallthru
        _
    $region6: #{gcn_forward.5} parent=1 // loop_footer
      %s16 = sadd.s32 1, %s12
    $region7: #{gcn_forward.5} parent=1 // loop_footer_branch
      %11 = sbr.rel target = $region3
    $region8: #{gcn_forward.5} parent=1 // loop_exit
      _
    %2825 = vsyncpa [#allocation5], 1
    %s2826 = scalar_lea.sflag [#allocation5], 1
    %2827 = vsyncpa %s2826, 1

</llo_original>
